<compile_context>
chip_gen: v7x
topology: tpu7x:2x2x1
jax: 0.10.0
libtpu: 0.0.40
codegen_flags: <defaults>
</compile_context>

<pallas_src>
import numpy as np
import jax
import jax.numpy as jnp
from jax.experimental import pallas as pl
from jax.experimental.pallas import tpu as pltpu

EPS = 1e-5
LATENT = 128  # latent size L (chosen 128 so every tensor is lane-dense)
_VMEM = pl.BlockSpec(memory_space=pltpu.MemorySpace.VMEM)

_MLP_NAMES = ('node_enc', 'edge_enc', 'glbl_enc', 'edge_model', 'node_model',
              'global_model', 'node_dec', 'glbl_dec')


# --------------------------------------------------------------------------
# Fused per-step kernel (grid axis 0 = message-passing step)
# --------------------------------------------------------------------------
def _make_fused_kernel(node_dim, global_dim, L):
    L2 = 2 * L
    BF = jnp.bfloat16

    def kernel(*refs):
        (nodes0_ref, edges0_ref, glbls0_ref,
         rec_oh_ref, snd_oh_ref, rec_oh_t_ref,
         ngid_oh_ref, ngid_oh_t_ref, egid_oh_ref, egid_oh_t_ref,
         *rest) = refs
        n_w = 6 * len(_MLP_NAMES)
        mlp_refs = {name: rest[6 * i: 6 * (i + 1)]
                    for i, name in enumerate(_MLP_NAMES)}
        dec_nodes_o, edges_o, dec_glbls_o = rest[n_w:n_w + 3]
        nodes_cat_ref, edges_cat_ref, glbls_cat_ref = rest[n_w + 3:n_w + 6]

        step = pl.program_id(0)

        def bdot(a, b):
            # both operands already bf16; accumulate in f32 on the MXU
            return jnp.dot(a, b, preferred_element_type=jnp.float32)

        def w1_dot(x_bf, name, row0, nrows):
            """Partial first-layer projection: x_bf @ W1[row0:row0+nrows]."""
            w1 = mlp_refs[name][0]
            return bdot(x_bf, w1[row0:row0 + nrows, :])

        def mlp_tail(pre, name, d_true):
            """(+b1) -> ReLU -> Linear -> LayerNorm applied to the summed
            first-layer pre-activation `pre` (f32).  Padded output lanes
            (zero W2 cols / b2 / gamma / beta) come out exactly zero and the
            LayerNorm statistics use the true feature count via
            var = E[y^2] - mu^2 (no lane mask needed).  Dropout p=0: no-op."""
            _, b1, w2, b2, g, beta = mlp_refs[name]
            h = jnp.maximum(pre + b1[...], 0.0).astype(BF)
            y = bdot(h, w2[...]) + b2[...]
            inv_d = 1.0 / float(d_true)
            mu = jnp.sum(y, axis=-1, keepdims=True) * inv_d
            ms = jnp.sum(y * y, axis=-1, keepdims=True) * inv_d
            var = ms - mu * mu
            yn = (y - mu) * jax.lax.rsqrt(var + EPS)
            return yn * g[...] + beta[...]

        # ---------------- encoders: grid step 0 only ----------------
        @pl.when(step == 0)
        def _():
            lat_n = mlp_tail(w1_dot(nodes0_ref[...].astype(BF), 'node_enc', 0, L),
                             'node_enc', L)
            lat_e = mlp_tail(w1_dot(edges0_ref[...].astype(BF), 'edge_enc', 0, L),
                             'edge_enc', L)
            lat_g = mlp_tail(w1_dot(glbls0_ref[...].astype(BF), 'glbl_enc', 0, L),
                             'glbl_enc', L)
            ln, le, lg = lat_n.astype(BF), lat_e.astype(BF), lat_g.astype(BF)
            # carried state = lane-concat [latent0 | current]; at the first
            # step the "current" graph is still latent0 (as in the reference).
            nodes_cat_ref[:, 0:L] = ln
            nodes_cat_ref[:, L:L2] = ln
            edges_cat_ref[:, 0:L] = le
            edges_cat_ref[:, L:L2] = le
            glbls_cat_ref[:, 0:L] = lg
            glbls_cat_ref[:, L:L2] = lg

        ncat = nodes_cat_ref[...]    # (N, 2L) bf16 == concat([latent0_nodes, nodes])
        ecat = edges_cat_ref[...]    # (E, 2L)
        gcat = glbls_cat_ref[...]    # (B, 2L)

        rec_oh = rec_oh_ref[...]
        snd_oh = snd_oh_ref[...]
        rec_oh_t = rec_oh_t_ref[...]
        ngid_oh = ngid_oh_ref[...]
        ngid_oh_t = ngid_oh_t_ref[...]
        egid_oh = egid_oh_ref[...]
        egid_oh_t = egid_oh_t_ref[...]

        # ---- edge block: project-then-gather (K=256 W1 dots) ----
        rec_proj = w1_dot(ncat, 'edge_model', 0, L2)           # (N, L)
        snd_proj = w1_dot(ncat, 'edge_model', L2, L2)          # (N, L)
        edge_proj = w1_dot(ecat, 'edge_model', 2 * L2, L2)     # (E, L)
        globe_proj = w1_dot(gcat, 'edge_model', 3 * L2, L2)    # (B, L)
        pre_e = (bdot(rec_oh, rec_proj.astype(BF))             # gather receivers
                 + bdot(snd_oh, snd_proj.astype(BF))           # gather senders
                 + edge_proj
                 + bdot(egid_oh, globe_proj.astype(BF)))       # broadcast globals
        edges_new = mlp_tail(pre_e, 'edge_model', L)           # (E, L) f32
        edges_new_bf = edges_new.astype(BF)                    # cast once, reuse

        # ---- node block ----
        node_proj = w1_dot(ncat, 'node_model', 0, L2)          # (N, L)
        agg_e = bdot(rec_oh_t, edges_new_bf)                   # scatter-add to receivers
        agg_proj = w1_dot(agg_e.astype(BF), 'node_model', L2, L)
        globn_proj = w1_dot(gcat, 'node_model', L2 + L, L2)    # (B, L)
        pre_n = node_proj + agg_proj + bdot(ngid_oh, globn_proj.astype(BF))
        nodes_new = mlp_tail(pre_n, 'node_model', L)           # (N, L) f32
        nodes_new_bf = nodes_new.astype(BF)

        # ---- global block (aggregate-then-project for the sums) ----
        glob_proj = w1_dot(gcat, 'global_model', 0, L2)        # (B, L)
        nodes_agg = bdot(ngid_oh_t, nodes_new_bf)              # (B, L)
        edges_agg = bdot(egid_oh_t, edges_new_bf)              # (B, L)
        pre_g = (glob_proj
                 + w1_dot(nodes_agg.astype(BF), 'global_model', L2, L)
                 + w1_dot(edges_agg.astype(BF), 'global_model', L2 + L, L))
        glbls_new = mlp_tail(pre_g, 'global_model', L)         # (B, L) f32
        glbls_new_bf = glbls_new.astype(BF)

        # ---- decoders + replace() ----
        dec_n = mlp_tail(w1_dot(nodes_new_bf, 'node_dec', 0, L), 'node_dec', node_dim)
        dec_g = mlp_tail(w1_dot(glbls_new_bf, 'glbl_dec', 0, L), 'glbl_dec', global_dim)

        # ---- per-step outputs (lane-dense 128-wide slabs) ----
        dec_nodes_o[0] = dec_n
        edges_o[0] = edges_new   # latent edges: reference uses no edge decoder in replace()
        dec_glbls_o[0] = dec_g

        # ---- carry state to the next grid step ----
        nodes_cat_ref[:, L:L2] = nodes_new_bf
        edges_cat_ref[:, L:L2] = edges_new_bf
        glbls_cat_ref[:, L:L2] = glbls_new_bf

    return kernel


# --------------------------------------------------------------------------
# Deterministic parameter construction (mirrors MLP(layers=[h, d_out], d_in))
# --------------------------------------------------------------------------
def init_mlp(key, d_in, hidden, d_out, d_in_pad=None, d_out_pad=None):
    d_in_pad = d_in if d_in_pad is None else d_in_pad
    d_out_pad = d_out if d_out_pad is None else d_out_pad
    k1, k2, k3, k4 = jax.random.split(key, 4)
    w1 = jax.random.uniform(k1, (d_in, hidden), minval=-1.0, maxval=1.0) / np.sqrt(d_in)
    b1 = jax.random.uniform(k2, (1, hidden), minval=-1.0, maxval=1.0) / np.sqrt(d_in)
    w2 = jax.random.uniform(k3, (hidden, d_out), minval=-1.0, maxval=1.0) / np.sqrt(hidden)
    b2 = jax.random.uniform(k4, (1, d_out), minval=-1.0, maxval=1.0) / np.sqrt(hidden)
    # pad to lane-dense shapes; padded rows/cols are zero so the math is unchanged
    w1 = jnp.pad(w1.astype(jnp.float32), ((0, d_in_pad - d_in), (0, 0)))
    w2 = jnp.pad(w2.astype(jnp.float32), ((0, 0), (0, d_out_pad - d_out)))
    b2 = jnp.pad(b2.astype(jnp.float32), ((0, 0), (0, d_out_pad - d_out)))
    g = jnp.pad(jnp.ones((1, d_out), jnp.float32), ((0, 0), (0, d_out_pad - d_out)))
    beta = jnp.zeros((1, d_out_pad), jnp.float32)
    return (w1.astype(jnp.bfloat16), b1.astype(jnp.float32),
            w2.astype(jnp.bfloat16), b2.astype(jnp.float32), g, beta)


# --------------------------------------------------------------------------
# EncodeProcessDecode forward (single fused pallas_call, grid over num_steps)
# --------------------------------------------------------------------------
def encode_process_decode_forward(graph, params, num_steps, n_node, n_edge):
    B = len(n_node)
    N = graph['nodes'].shape[0]
    E = graph['edges'].shape[0]
    node_dim = graph['nodes'].shape[1]
    global_dim = graph['globals'].shape[1]
    L = LATENT

    # static bookkeeping (np.repeat of graph ids), as in the torch code
    node_gidx = np.repeat(np.arange(B), n_node)
    edge_gidx = np.repeat(np.arange(B), n_edge)

    def onehot(idx, ncol):
        # NOTE: like the torch one-hot formulation, out-of-range indices map
        # to an all-zero row instead of raising.
        idx = jnp.asarray(idx, jnp.int32).reshape(-1)
        return (idx[:, None] == jnp.arange(ncol, dtype=jnp.int32)[None, :]
                ).astype(jnp.bfloat16)

    rec_oh = onehot(graph['receivers'], N)    # (E, N)
    snd_oh = onehot(graph['senders'], N)      # (E, N)
    ngid_oh = onehot(node_gidx, B)            # (N, B)
    egid_oh = onehot(edge_gidx, B)            # (E, B)

    def pad_feat(x):
        x = x.astype(jnp.float32)
        return jnp.pad(x, ((0, 0), (0, L - x.shape[1])))

    nodes0 = pad_feat(graph['nodes'])
    edges0 = pad_feat(graph['edges'])
    glbls0 = pad_feat(graph['globals'])

    flat_params = []
    for name in _MLP_NAMES:
        flat_params.extend(params[name])

    # TODO(synk): for large graphs drop the transposed one-hot copies (use a
    # transposed-lhs dot_general or an index-driven DMA gather) to halve the
    # O(E*N) one-hot VMEM footprint; kept here since they are guaranteed to
    # lower and are tiny at these sizes.
    inputs = [nodes0, edges0, glbls0,
              rec_oh, snd_oh, rec_oh.T,
              ngid_oh, ngid_oh.T, egid_oh, egid_oh.T] + flat_params

    out_shapes = (jax.ShapeDtypeStruct((num_steps, N, L), jnp.float32),
                  jax.ShapeDtypeStruct((num_steps, E, L), jnp.float32),
                  jax.ShapeDtypeStruct((num_steps, B, L), jnp.float32))
    out_specs = (pl.BlockSpec((1, N, L), lambda s: (s, 0, 0)),
                 pl.BlockSpec((1, E, L), lambda s: (s, 0, 0)),
                 pl.BlockSpec((1, B, L), lambda s: (s, 0, 0)))

    # carried [latent0 | current] state, bf16, lane-concatenated (K=256 dots)
    scratch_shapes = [pltpu.VMEM((N, 2 * L), jnp.bfloat16),
                      pltpu.VMEM((E, 2 * L), jnp.bfloat16),
                      pltpu.VMEM((B, 2 * L), jnp.bfloat16)]

    # explicit VMEM budget: resident inputs + double-buffered per-step output
    # blocks + carried scratch, with headroom (defaults are 16/32 MiB scoped).
    in_bytes = sum(int(np.prod(x.shape)) * x.dtype.itemsize for x in inputs)
    out_blk_bytes = (N + E + B) * L * 4
    scratch_bytes = (N + E + B) * 2 * L * 2
    vmem_limit = int(min(max(2 * (in_bytes + 2 * out_blk_bytes + scratch_bytes)
                             + (8 << 20), 32 << 20), 64 << 20))

    kernel = _make_fused_kernel(node_dim, global_dim, L)

    dec_nodes, edges_all, dec_glbls = pl.pallas_call(
        kernel,
        grid=(num_steps,),
        out_shape=out_shapes,
        in_specs=[_VMEM] * len(inputs),
        out_specs=out_specs,
        scratch_shapes=scratch_shapes,
        compiler_params=pltpu.CompilerParams(
            dimension_semantics=("arbitrary",),
            vmem_limit_bytes=vmem_limit),
    )(*inputs)

    outputs = []
    for s in range(num_steps):
        outputs.append({'nodes': dec_nodes[s, :, :node_dim],
                        'edges': edges_all[s],
                        'globals': dec_glbls[s, :, :global_dim],
                        'receivers': graph['receivers'],
                        'senders': graph['senders']})
    return outputs


# --------------------------------------------------------------------------
# Example run
# --------------------------------------------------------------------------
if __name__ == "__main__":
    key = jax.random.PRNGKey(0)
    ks = jax.random.split(key, 16)

    B = 2
    n_node = [5, 3]        # 8 nodes total
    n_edge = [7, 5]        # 12 edges total
    N, E = sum(n_node), sum(n_edge)
    node_dim, edge_dim, global_dim = 6, 5, 4
    L = LATENT             # shared latent size (lane-dense: 128)

    nodes = jax.random.normal(ks[0], (N, node_dim), jnp.float32)
    edges = jax.random.normal(ks[1], (E, edge_dim), jnp.float32)
    glbls = jax.random.normal(ks[2], (B, global_dim), jnp.float32)

    # edges stay within their own graph (graph 0: nodes 0..4, graph 1: nodes 5..7)
    receivers = jnp.asarray(np.concatenate([
        np.array([0, 1, 2, 3, 4, 0, 2]),
        5 + np.array([0, 1, 2, 0, 1]),
    ]).astype(np.int32))
    senders = jnp.asarray(np.concatenate([
        np.array([1, 2, 3, 4, 0, 3, 4]),
        5 + np.array([1, 2, 0, 2, 0]),
    ]).astype(np.int32))

    graph = {'nodes': nodes, 'edges': edges, 'globals': glbls,
             'receivers': receivers, 'senders': senders}

    # MLP input dims follow GraphModel.__init__ with node_dim=edge_dim=global_dim=L
    # after encoding (feature widths doubled by concat([latent0, graph])).
    params = {
        'node_enc':     init_mlp(ks[3], node_dim, L, L, d_in_pad=L),
        'edge_enc':     init_mlp(ks[4], edge_dim, L, L, d_in_pad=L),
        'glbl_enc':     init_mlp(ks[5], global_dim, L, L, d_in_pad=L),
        'edge_model':   init_mlp(ks[6], 2 * L * 2 + 2 * L + 2 * L, L, L),   # 8L
        'node_model':   init_mlp(ks[7], 2 * L + L + 2 * L, L, L),           # 5L
        'global_model': init_mlp(ks[8], L + L + 2 * L, L, L),               # 4L
        'node_dec':     init_mlp(ks[9], L, L, node_dim, d_out_pad=L),
        'glbl_dec':     init_mlp(ks[10], L, L, global_dim, d_out_pad=L),
    }

    num_steps = 2
    outs = encode_process_decode_forward(graph, params, num_steps, n_node, n_edge)
    jax.block_until_ready(outs)
    # TODO(synk): nn.Dropout(p=dropout) is a no-op here (dropout=0.0 default, eval mode).
    print("KERNEL_OK")
</pallas_src>

<mosaic_0001>
module attributes {stable_mosaic.version = 11 : i64} {
  func.func @kernel(%arg0: i32, %arg1: memref<8x128xf32, #tpu.memory_space<vmem>>, %arg2: memref<12x128xf32, #tpu.memory_space<vmem>>, %arg3: memref<2x128xf32, #tpu.memory_space<vmem>>, %arg4: memref<12x8xbf16, #tpu.memory_space<vmem>>, %arg5: memref<12x8xbf16, #tpu.memory_space<vmem>>, %arg6: memref<8x12xbf16, #tpu.memory_space<vmem>>, %arg7: memref<8x2xbf16, #tpu.memory_space<vmem>>, %arg8: memref<2x8xbf16, #tpu.memory_space<vmem>>, %arg9: memref<12x2xbf16, #tpu.memory_space<vmem>>, %arg10: memref<2x12xbf16, #tpu.memory_space<vmem>>, %arg11: memref<128x128xbf16, #tpu.memory_space<vmem>>, %arg12: memref<1x128xf32, #tpu.memory_space<vmem>>, %arg13: memref<128x128xbf16, #tpu.memory_space<vmem>>, %arg14: memref<1x128xf32, #tpu.memory_space<vmem>>, %arg15: memref<1x128xf32, #tpu.memory_space<vmem>>, %arg16: memref<1x128xf32, #tpu.memory_space<vmem>>, %arg17: memref<128x128xbf16, #tpu.memory_space<vmem>>, %arg18: memref<1x128xf32, #tpu.memory_space<vmem>>, %arg19: memref<128x128xbf16, #tpu.memory_space<vmem>>, %arg20: memref<1x128xf32, #tpu.memory_space<vmem>>, %arg21: memref<1x128xf32, #tpu.memory_space<vmem>>, %arg22: memref<1x128xf32, #tpu.memory_space<vmem>>, %arg23: memref<128x128xbf16, #tpu.memory_space<vmem>>, %arg24: memref<1x128xf32, #tpu.memory_space<vmem>>, %arg25: memref<128x128xbf16, #tpu.memory_space<vmem>>, %arg26: memref<1x128xf32, #tpu.memory_space<vmem>>, %arg27: memref<1x128xf32, #tpu.memory_space<vmem>>, %arg28: memref<1x128xf32, #tpu.memory_space<vmem>>, %arg29: memref<1024x128xbf16, #tpu.memory_space<vmem>>, %arg30: memref<1x128xf32, #tpu.memory_space<vmem>>, %arg31: memref<128x128xbf16, #tpu.memory_space<vmem>>, %arg32: memref<1x128xf32, #tpu.memory_space<vmem>>, %arg33: memref<1x128xf32, #tpu.memory_space<vmem>>, %arg34: memref<1x128xf32, #tpu.memory_space<vmem>>, %arg35: memref<640x128xbf16, #tpu.memory_space<vmem>>, %arg36: memref<1x128xf32, #tpu.memory_space<vmem>>, %arg37: memref<128x128xbf16, #tpu.memory_space<vmem>>, %arg38: memref<1x128xf32, #tpu.memory_space<vmem>>, %arg39: memref<1x128xf32, #tpu.memory_space<vmem>>, %arg40: memref<1x128xf32, #tpu.memory_space<vmem>>, %arg41: memref<512x128xbf16, #tpu.memory_space<vmem>>, %arg42: memref<1x128xf32, #tpu.memory_space<vmem>>, %arg43: memref<128x128xbf16, #tpu.memory_space<vmem>>, %arg44: memref<1x128xf32, #tpu.memory_space<vmem>>, %arg45: memref<1x128xf32, #tpu.memory_space<vmem>>, %arg46: memref<1x128xf32, #tpu.memory_space<vmem>>, %arg47: memref<128x128xbf16, #tpu.memory_space<vmem>>, %arg48: memref<1x128xf32, #tpu.memory_space<vmem>>, %arg49: memref<128x128xbf16, #tpu.memory_space<vmem>>, %arg50: memref<1x128xf32, #tpu.memory_space<vmem>>, %arg51: memref<1x128xf32, #tpu.memory_space<vmem>>, %arg52: memref<1x128xf32, #tpu.memory_space<vmem>>, %arg53: memref<128x128xbf16, #tpu.memory_space<vmem>>, %arg54: memref<1x128xf32, #tpu.memory_space<vmem>>, %arg55: memref<128x128xbf16, #tpu.memory_space<vmem>>, %arg56: memref<1x128xf32, #tpu.memory_space<vmem>>, %arg57: memref<1x128xf32, #tpu.memory_space<vmem>>, %arg58: memref<1x128xf32, #tpu.memory_space<vmem>>, %arg59: memref<1x8x128xf32, #tpu.memory_space<vmem>>, %arg60: memref<1x12x128xf32, #tpu.memory_space<vmem>>, %arg61: memref<1x2x128xf32, #tpu.memory_space<vmem>>, %arg62: memref<8x256xbf16, #tpu.memory_space<vmem>>, %arg63: memref<12x256xbf16, #tpu.memory_space<vmem>>, %arg64: memref<2x256xbf16, #tpu.memory_space<vmem>>) attributes {dimension_semantics = [#tpu.dimension_semantics<arbitrary>], iteration_bounds = array<i64: 2>, scalar_prefetch = 0 : i64, scratch_operands = 3 : i64, tpu.core_type = #tpu.core_type<tc>, window_params = [{pipeline_mode = #tpu.pipeline_mode<synchronous>, transform_indices = @transform_0, window_bounds = array<i64: 8, 128>}, {pipeline_mode = #tpu.pipeline_mode<synchronous>, transform_indices = @transform_1, window_bounds = array<i64: 12, 128>}, {pipeline_mode = #tpu.pipeline_mode<synchronous>, transform_indices = @transform_2, window_bounds = array<i64: 2, 128>}, {pipeline_mode = #tpu.pipeline_mode<synchronous>, transform_indices = @transform_3, window_bounds = array<i64: 12, 8>}, {pipeline_mode = #tpu.pipeline_mode<synchronous>, transform_indices = @transform_4, window_bounds = array<i64: 12, 8>}, {pipeline_mode = #tpu.pipeline_mode<synchronous>, transform_indices = @transform_5, window_bounds = array<i64: 8, 12>}, {pipeline_mode = #tpu.pipeline_mode<synchronous>, transform_indices = @transform_6, window_bounds = array<i64: 8, 2>}, {pipeline_mode = #tpu.pipeline_mode<synchronous>, transform_indices = @transform_7, window_bounds = array<i64: 2, 8>}, {pipeline_mode = #tpu.pipeline_mode<synchronous>, transform_indices = @transform_8, window_bounds = array<i64: 12, 2>}, {pipeline_mode = #tpu.pipeline_mode<synchronous>, transform_indices = @transform_9, window_bounds = array<i64: 2, 12>}, {pipeline_mode = #tpu.pipeline_mode<synchronous>, transform_indices = @transform_10, window_bounds = array<i64: 128, 128>}, {pipeline_mode = #tpu.pipeline_mode<synchronous>, transform_indices = @transform_11, window_bounds = array<i64: 1, 128>}, {pipeline_mode = #tpu.pipeline_mode<synchronous>, transform_indices = @transform_12, window_bounds = array<i64: 128, 128>}, {pipeline_mode = #tpu.pipeline_mode<synchronous>, transform_indices = @transform_13, window_bounds = array<i64: 1, 128>}, {pipeline_mode = #tpu.pipeline_mode<synchronous>, transform_indices = @transform_14, window_bounds = array<i64: 1, 128>}, {pipeline_mode = #tpu.pipeline_mode<synchronous>, transform_indices = @transform_15, window_bounds = array<i64: 1, 128>}, {pipeline_mode = #tpu.pipeline_mode<synchronous>, transform_indices = @transform_16, window_bounds = array<i64: 128, 128>}, {pipeline_mode = #tpu.pipeline_mode<synchronous>, transform_indices = @transform_17, window_bounds = array<i64: 1, 128>}, {pipeline_mode = #tpu.pipeline_mode<synchronous>, transform_indices = @transform_18, window_bounds = array<i64: 128, 128>}, {pipeline_mode = #tpu.pipeline_mode<synchronous>, transform_indices = @transform_19, window_bounds = array<i64: 1, 128>}, {pipeline_mode = #tpu.pipeline_mode<synchronous>, transform_indices = @transform_20, window_bounds = array<i64: 1, 128>}, {pipeline_mode = #tpu.pipeline_mode<synchronous>, transform_indices = @transform_21, window_bounds = array<i64: 1, 128>}, {pipeline_mode = #tpu.pipeline_mode<synchronous>, transform_indices = @transform_22, window_bounds = array<i64: 128, 128>}, {pipeline_mode = #tpu.pipeline_mode<synchronous>, transform_indices = @transform_23, window_bounds = array<i64: 1, 128>}, {pipeline_mode = #tpu.pipeline_mode<synchronous>, transform_indices = @transform_24, window_bounds = array<i64: 128, 128>}, {pipeline_mode = #tpu.pipeline_mode<synchronous>, transform_indices = @transform_25, window_bounds = array<i64: 1, 128>}, {pipeline_mode = #tpu.pipeline_mode<synchronous>, transform_indices = @transform_26, window_bounds = array<i64: 1, 128>}, {pipeline_mode = #tpu.pipeline_mode<synchronous>, transform_indices = @transform_27, window_bounds = array<i64: 1, 128>}, {pipeline_mode = #tpu.pipeline_mode<synchronous>, transform_indices = @transform_28, window_bounds = array<i64: 1024, 128>}, {pipeline_mode = #tpu.pipeline_mode<synchronous>, transform_indices = @transform_29, window_bounds = array<i64: 1, 128>}, {pipeline_mode = #tpu.pipeline_mode<synchronous>, transform_indices = @transform_30, window_bounds = array<i64: 128, 128>}, {pipeline_mode = #tpu.pipeline_mode<synchronous>, transform_indices = @transform_31, window_bounds = array<i64: 1, 128>}, {pipeline_mode = #tpu.pipeline_mode<synchronous>, transform_indices = @transform_32, window_bounds = array<i64: 1, 128>}, {pipeline_mode = #tpu.pipeline_mode<synchronous>, transform_indices = @transform_33, window_bounds = array<i64: 1, 128>}, {pipeline_mode = #tpu.pipeline_mode<synchronous>, transform_indices = @transform_34, window_bounds = array<i64: 640, 128>}, {pipeline_mode = #tpu.pipeline_mode<synchronous>, transform_indices = @transform_35, window_bounds = array<i64: 1, 128>}, {pipeline_mode = #tpu.pipeline_mode<synchronous>, transform_indices = @transform_36, window_bounds = array<i64: 128, 128>}, {pipeline_mode = #tpu.pipeline_mode<synchronous>, transform_indices = @transform_37, window_bounds = array<i64: 1, 128>}, {pipeline_mode = #tpu.pipeline_mode<synchronous>, transform_indices = @transform_38, window_bounds = array<i64: 1, 128>}, {pipeline_mode = #tpu.pipeline_mode<synchronous>, transform_indices = @transform_39, window_bounds = array<i64: 1, 128>}, {pipeline_mode = #tpu.pipeline_mode<synchronous>, transform_indices = @transform_40, window_bounds = array<i64: 512, 128>}, {pipeline_mode = #tpu.pipeline_mode<synchronous>, transform_indices = @transform_41, window_bounds = array<i64: 1, 128>}, {pipeline_mode = #tpu.pipeline_mode<synchronous>, transform_indices = @transform_42, window_bounds = array<i64: 128, 128>}, {pipeline_mode = #tpu.pipeline_mode<synchronous>, transform_indices = @transform_43, window_bounds = array<i64: 1, 128>}, {pipeline_mode = #tpu.pipeline_mode<synchronous>, transform_indices = @transform_44, window_bounds = array<i64: 1, 128>}, {pipeline_mode = #tpu.pipeline_mode<synchronous>, transform_indices = @transform_45, window_bounds = array<i64: 1, 128>}, {pipeline_mode = #tpu.pipeline_mode<synchronous>, transform_indices = @transform_46, window_bounds = array<i64: 128, 128>}, {pipeline_mode = #tpu.pipeline_mode<synchronous>, transform_indices = @transform_47, window_bounds = array<i64: 1, 128>}, {pipeline_mode = #tpu.pipeline_mode<synchronous>, transform_indices = @transform_48, window_bounds = array<i64: 128, 128>}, {pipeline_mode = #tpu.pipeline_mode<synchronous>, transform_indices = @transform_49, window_bounds = array<i64: 1, 128>}, {pipeline_mode = #tpu.pipeline_mode<synchronous>, transform_indices = @transform_50, window_bounds = array<i64: 1, 128>}, {pipeline_mode = #tpu.pipeline_mode<synchronous>, transform_indices = @transform_51, window_bounds = array<i64: 1, 128>}, {pipeline_mode = #tpu.pipeline_mode<synchronous>, transform_indices = @transform_52, window_bounds = array<i64: 128, 128>}, {pipeline_mode = #tpu.pipeline_mode<synchronous>, transform_indices = @transform_53, window_bounds = array<i64: 1, 128>}, {pipeline_mode = #tpu.pipeline_mode<synchronous>, transform_indices = @transform_54, window_bounds = array<i64: 128, 128>}, {pipeline_mode = #tpu.pipeline_mode<synchronous>, transform_indices = @transform_55, window_bounds = array<i64: 1, 128>}, {pipeline_mode = #tpu.pipeline_mode<synchronous>, transform_indices = @transform_56, window_bounds = array<i64: 1, 128>}, {pipeline_mode = #tpu.pipeline_mode<synchronous>, transform_indices = @transform_57, window_bounds = array<i64: 1, 128>}, {transform_indices = @transform_58, window_bounds = array<i64: 1, 8, 128>}, {transform_indices = @transform_59, window_bounds = array<i64: 1, 12, 128>}, {transform_indices = @transform_60, window_bounds = array<i64: 1, 2, 128>}]} {
    %c0_i32 = arith.constant 0 : i32
    %0 = arith.cmpi eq, %arg0, %c0_i32 : i32
    %1 = arith.extui %0 : i1 to i32
    %c0_i32_0 = arith.constant 0 : i32
    %2 = arith.cmpi ne, %1, %c0_i32_0 : i32
    scf.if %2 {
      %c0_157 = arith.constant 0 : index
      %c0_158 = arith.constant 0 : index
      %248 = vector.load %arg1[%c0_157, %c0_158] : memref<8x128xf32, #tpu.memory_space<vmem>>, vector<8x128xf32>
      %249 = arith.truncf %248 : vector<8x128xf32> to vector<8x128xbf16>
      %c0_159 = arith.constant 0 : index
      %c0_160 = arith.constant 0 : index
      %250 = vector.load %arg11[%c0_159, %c0_160] : memref<128x128xbf16, #tpu.memory_space<vmem>>, vector<128x128xbf16>
      %cst_161 = arith.constant dense<0.000000e+00> : vector<8x128xf32>
      %251 = tpu.matmul %249, %250, %cst_161 {dimension_numbers = #tpu.dot_dimension_numbers<[1], [0], [0], [1], [0, 0, 1, 1], [], []>} : vector<8x128xbf16>, vector<128x128xbf16>, vector<8x128xf32> -> vector<8x128xf32>
      %c0_162 = arith.constant 0 : index
      %c0_163 = arith.constant 0 : index
      %252 = vector.load %arg12[%c0_162, %c0_163] : memref<1x128xf32, #tpu.memory_space<vmem>>, vector<1x128xf32>
      %253 = vector.broadcast %252 : vector<1x128xf32> to vector<8x128xf32>
      %254 = arith.addf %251, %253 : vector<8x128xf32>
      %cst_164 = arith.constant 0.000000e+00 : f32
      %255 = vector.broadcast %cst_164 : f32 to vector<8x128xf32>
      %256 = arith.maximumf %254, %255 : vector<8x128xf32>
      %257 = arith.truncf %256 : vector<8x128xf32> to vector<8x128xbf16>
      %c0_165 = arith.constant 0 : index
      %c0_166 = arith.constant 0 : index
      %258 = vector.load %arg13[%c0_165, %c0_166] : memref<128x128xbf16, #tpu.memory_space<vmem>>, vector<128x128xbf16>
      %cst_167 = arith.constant dense<0.000000e+00> : vector<8x128xf32>
      %259 = tpu.matmul %257, %258, %cst_167 {dimension_numbers = #tpu.dot_dimension_numbers<[1], [0], [0], [1], [0, 0, 1, 1], [], []>} : vector<8x128xbf16>, vector<128x128xbf16>, vector<8x128xf32> -> vector<8x128xf32>
      %c0_168 = arith.constant 0 : index
      %c0_169 = arith.constant 0 : index
      %260 = vector.load %arg14[%c0_168, %c0_169] : memref<1x128xf32, #tpu.memory_space<vmem>>, vector<1x128xf32>
      %261 = vector.broadcast %260 : vector<1x128xf32> to vector<8x128xf32>
      %262 = arith.addf %259, %261 : vector<8x128xf32>
      %cst_170 = arith.constant dense<0.000000e+00> : vector<8xf32>
      %263 = vector.multi_reduction <add>, %262, %cst_170 [1] : vector<8x128xf32> to vector<8xf32>
      %264 = vector.shape_cast %263 : vector<8xf32> to vector<8x1xf32>
      %cst_171 = arith.constant 7.812500e-03 : f32
      %265 = vector.broadcast %cst_171 : f32 to vector<8x1xf32>
      %266 = arith.mulf %264, %265 : vector<8x1xf32>
      %267 = arith.mulf %262, %262 : vector<8x128xf32>
      %cst_172 = arith.constant dense<0.000000e+00> : vector<8xf32>
      %268 = vector.multi_reduction <add>, %267, %cst_172 [1] : vector<8x128xf32> to vector<8xf32>
      %269 = vector.shape_cast %268 : vector<8xf32> to vector<8x1xf32>
      %cst_173 = arith.constant 7.812500e-03 : f32
      %270 = vector.broadcast %cst_173 : f32 to vector<8x1xf32>
      %271 = arith.mulf %269, %270 : vector<8x1xf32>
      %272 = arith.mulf %266, %266 : vector<8x1xf32>
      %273 = arith.subf %271, %272 : vector<8x1xf32>
      %274 = vector.broadcast %266 : vector<8x1xf32> to vector<8x128xf32>
      %275 = arith.subf %262, %274 : vector<8x128xf32>
      %cst_174 = arith.constant 9.99999974E-6 : f32
      %276 = vector.broadcast %cst_174 : f32 to vector<8x1xf32>
      %277 = arith.addf %273, %276 : vector<8x1xf32>
      %278 = math.rsqrt %277 : vector<8x1xf32>
      %279 = vector.broadcast %278 : vector<8x1xf32> to vector<8x128xf32>
      %280 = arith.mulf %275, %279 : vector<8x128xf32>
      %c0_175 = arith.constant 0 : index
      %c0_176 = arith.constant 0 : index
      %281 = vector.load %arg15[%c0_175, %c0_176] : memref<1x128xf32, #tpu.memory_space<vmem>>, vector<1x128xf32>
      %282 = vector.broadcast %281 : vector<1x128xf32> to vector<8x128xf32>
      %283 = arith.mulf %280, %282 : vector<8x128xf32>
      %c0_177 = arith.constant 0 : index
      %c0_178 = arith.constant 0 : index
      %284 = vector.load %arg16[%c0_177, %c0_178] : memref<1x128xf32, #tpu.memory_space<vmem>>, vector<1x128xf32>
      %285 = vector.broadcast %284 : vector<1x128xf32> to vector<8x128xf32>
      %286 = arith.addf %283, %285 : vector<8x128xf32>
      %c0_179 = arith.constant 0 : index
      %c0_180 = arith.constant 0 : index
      %287 = vector.load %arg2[%c0_179, %c0_180] : memref<12x128xf32, #tpu.memory_space<vmem>>, vector<12x128xf32>
      %288 = arith.truncf %287 : vector<12x128xf32> to vector<12x128xbf16>
      %c0_181 = arith.constant 0 : index
      %c0_182 = arith.constant 0 : index
      %289 = vector.load %arg17[%c0_181, %c0_182] : memref<128x128xbf16, #tpu.memory_space<vmem>>, vector<128x128xbf16>
      %cst_183 = arith.constant dense<0.000000e+00> : vector<12x128xf32>
      %290 = tpu.matmul %288, %289, %cst_183 {dimension_numbers = #tpu.dot_dimension_numbers<[1], [0], [0], [1], [0, 0, 1, 1], [], []>} : vector<12x128xbf16>, vector<128x128xbf16>, vector<12x128xf32> -> vector<12x128xf32>
      %c0_184 = arith.constant 0 : index
      %c0_185 = arith.constant 0 : index
      %291 = vector.load %arg18[%c0_184, %c0_185] : memref<1x128xf32, #tpu.memory_space<vmem>>, vector<1x128xf32>
      %292 = vector.broadcast %291 : vector<1x128xf32> to vector<12x128xf32>
      %293 = arith.addf %290, %292 : vector<12x128xf32>
      %cst_186 = arith.constant 0.000000e+00 : f32
      %294 = vector.broadcast %cst_186 : f32 to vector<12x128xf32>
      %295 = arith.maximumf %293, %294 : vector<12x128xf32>
      %296 = arith.truncf %295 : vector<12x128xf32> to vector<12x128xbf16>
      %c0_187 = arith.constant 0 : index
      %c0_188 = arith.constant 0 : index
      %297 = vector.load %arg19[%c0_187, %c0_188] : memref<128x128xbf16, #tpu.memory_space<vmem>>, vector<128x128xbf16>
      %cst_189 = arith.constant dense<0.000000e+00> : vector<12x128xf32>
      %298 = tpu.matmul %296, %297, %cst_189 {dimension_numbers = #tpu.dot_dimension_numbers<[1], [0], [0], [1], [0, 0, 1, 1], [], []>} : vector<12x128xbf16>, vector<128x128xbf16>, vector<12x128xf32> -> vector<12x128xf32>
      %c0_190 = arith.constant 0 : index
      %c0_191 = arith.constant 0 : index
      %299 = vector.load %arg20[%c0_190, %c0_191] : memref<1x128xf32, #tpu.memory_space<vmem>>, vector<1x128xf32>
      %300 = vector.broadcast %299 : vector<1x128xf32> to vector<12x128xf32>
      %301 = arith.addf %298, %300 : vector<12x128xf32>
      %cst_192 = arith.constant dense<0.000000e+00> : vector<12xf32>
      %302 = vector.multi_reduction <add>, %301, %cst_192 [1] : vector<12x128xf32> to vector<12xf32>
      %303 = vector.shape_cast %302 : vector<12xf32> to vector<12x1xf32>
      %cst_193 = arith.constant 7.812500e-03 : f32
      %304 = vector.broadcast %cst_193 : f32 to vector<12x1xf32>
      %305 = arith.mulf %303, %304 : vector<12x1xf32>
      %306 = arith.mulf %301, %301 : vector<12x128xf32>
      %cst_194 = arith.constant dense<0.000000e+00> : vector<12xf32>
      %307 = vector.multi_reduction <add>, %306, %cst_194 [1] : vector<12x128xf32> to vector<12xf32>
      %308 = vector.shape_cast %307 : vector<12xf32> to vector<12x1xf32>
      %cst_195 = arith.constant 7.812500e-03 : f32
      %309 = vector.broadcast %cst_195 : f32 to vector<12x1xf32>
      %310 = arith.mulf %308, %309 : vector<12x1xf32>
      %311 = arith.mulf %305, %305 : vector<12x1xf32>
      %312 = arith.subf %310, %311 : vector<12x1xf32>
      %313 = vector.broadcast %305 : vector<12x1xf32> to vector<12x128xf32>
      %314 = arith.subf %301, %313 : vector<12x128xf32>
      %cst_196 = arith.constant 9.99999974E-6 : f32
      %315 = vector.broadcast %cst_196 : f32 to vector<12x1xf32>
      %316 = arith.addf %312, %315 : vector<12x1xf32>
      %317 = math.rsqrt %316 : vector<12x1xf32>
      %318 = vector.broadcast %317 : vector<12x1xf32> to vector<12x128xf32>
      %319 = arith.mulf %314, %318 : vector<12x128xf32>
      %c0_197 = arith.constant 0 : index
      %c0_198 = arith.constant 0 : index
      %320 = vector.load %arg21[%c0_197, %c0_198] : memref<1x128xf32, #tpu.memory_space<vmem>>, vector<1x128xf32>
      %321 = vector.broadcast %320 : vector<1x128xf32> to vector<12x128xf32>
      %322 = arith.mulf %319, %321 : vector<12x128xf32>
      %c0_199 = arith.constant 0 : index
      %c0_200 = arith.constant 0 : index
      %323 = vector.load %arg22[%c0_199, %c0_200] : memref<1x128xf32, #tpu.memory_space<vmem>>, vector<1x128xf32>
      %324 = vector.broadcast %323 : vector<1x128xf32> to vector<12x128xf32>
      %325 = arith.addf %322, %324 : vector<12x128xf32>
      %c0_201 = arith.constant 0 : index
      %c0_202 = arith.constant 0 : index
      %326 = vector.load %arg3[%c0_201, %c0_202] : memref<2x128xf32, #tpu.memory_space<vmem>>, vector<2x128xf32>
      %327 = arith.truncf %326 : vector<2x128xf32> to vector<2x128xbf16>
      %c0_203 = arith.constant 0 : index
      %c0_204 = arith.constant 0 : index
      %328 = vector.load %arg23[%c0_203, %c0_204] : memref<128x128xbf16, #tpu.memory_space<vmem>>, vector<128x128xbf16>
      %cst_205 = arith.constant dense<0.000000e+00> : vector<2x128xf32>
      %329 = tpu.matmul %327, %328, %cst_205 {dimension_numbers = #tpu.dot_dimension_numbers<[1], [0], [0], [1], [0, 0, 1, 1], [], []>} : vector<2x128xbf16>, vector<128x128xbf16>, vector<2x128xf32> -> vector<2x128xf32>
      %c0_206 = arith.constant 0 : index
      %c0_207 = arith.constant 0 : index
      %330 = vector.load %arg24[%c0_206, %c0_207] : memref<1x128xf32, #tpu.memory_space<vmem>>, vector<1x128xf32>
      %331 = vector.broadcast %330 : vector<1x128xf32> to vector<2x128xf32>
      %332 = arith.addf %329, %331 : vector<2x128xf32>
      %cst_208 = arith.constant 0.000000e+00 : f32
      %333 = vector.broadcast %cst_208 : f32 to vector<2x128xf32>
      %334 = arith.maximumf %332, %333 : vector<2x128xf32>
      %335 = arith.truncf %334 : vector<2x128xf32> to vector<2x128xbf16>
      %c0_209 = arith.constant 0 : index
      %c0_210 = arith.constant 0 : index
      %336 = vector.load %arg25[%c0_209, %c0_210] : memref<128x128xbf16, #tpu.memory_space<vmem>>, vector<128x128xbf16>
      %cst_211 = arith.constant dense<0.000000e+00> : vector<2x128xf32>
      %337 = tpu.matmul %335, %336, %cst_211 {dimension_numbers = #tpu.dot_dimension_numbers<[1], [0], [0], [1], [0, 0, 1, 1], [], []>} : vector<2x128xbf16>, vector<128x128xbf16>, vector<2x128xf32> -> vector<2x128xf32>
      %c0_212 = arith.constant 0 : index
      %c0_213 = arith.constant 0 : index
      %338 = vector.load %arg26[%c0_212, %c0_213] : memref<1x128xf32, #tpu.memory_space<vmem>>, vector<1x128xf32>
      %339 = vector.broadcast %338 : vector<1x128xf32> to vector<2x128xf32>
      %340 = arith.addf %337, %339 : vector<2x128xf32>
      %cst_214 = arith.constant dense<0.000000e+00> : vector<2xf32>
      %341 = vector.multi_reduction <add>, %340, %cst_214 [1] : vector<2x128xf32> to vector<2xf32>
      %342 = vector.shape_cast %341 : vector<2xf32> to vector<2x1xf32>
      %cst_215 = arith.constant 7.812500e-03 : f32
      %343 = vector.broadcast %cst_215 : f32 to vector<2x1xf32>
      %344 = arith.mulf %342, %343 : vector<2x1xf32>
      %345 = arith.mulf %340, %340 : vector<2x128xf32>
      %cst_216 = arith.constant dense<0.000000e+00> : vector<2xf32>
      %346 = vector.multi_reduction <add>, %345, %cst_216 [1] : vector<2x128xf32> to vector<2xf32>
      %347 = vector.shape_cast %346 : vector<2xf32> to vector<2x1xf32>
      %cst_217 = arith.constant 7.812500e-03 : f32
      %348 = vector.broadcast %cst_217 : f32 to vector<2x1xf32>
      %349 = arith.mulf %347, %348 : vector<2x1xf32>
      %350 = arith.mulf %344, %344 : vector<2x1xf32>
      %351 = arith.subf %349, %350 : vector<2x1xf32>
      %352 = vector.broadcast %344 : vector<2x1xf32> to vector<2x128xf32>
      %353 = arith.subf %340, %352 : vector<2x128xf32>
      %cst_218 = arith.constant 9.99999974E-6 : f32
      %354 = vector.broadcast %cst_218 : f32 to vector<2x1xf32>
      %355 = arith.addf %351, %354 : vector<2x1xf32>
      %356 = math.rsqrt %355 : vector<2x1xf32>
      %357 = vector.broadcast %356 : vector<2x1xf32> to vector<2x128xf32>
      %358 = arith.mulf %353, %357 : vector<2x128xf32>
      %c0_219 = arith.constant 0 : index
      %c0_220 = arith.constant 0 : index
      %359 = vector.load %arg27[%c0_219, %c0_220] : memref<1x128xf32, #tpu.memory_space<vmem>>, vector<1x128xf32>
      %360 = vector.broadcast %359 : vector<1x128xf32> to vector<2x128xf32>
      %361 = arith.mulf %358, %360 : vector<2x128xf32>
      %c0_221 = arith.constant 0 : index
      %c0_222 = arith.constant 0 : index
      %362 = vector.load %arg28[%c0_221, %c0_222] : memref<1x128xf32, #tpu.memory_space<vmem>>, vector<1x128xf32>
      %363 = vector.broadcast %362 : vector<1x128xf32> to vector<2x128xf32>
      %364 = arith.addf %361, %363 : vector<2x128xf32>
      %365 = arith.truncf %286 : vector<8x128xf32> to vector<8x128xbf16>
      %366 = arith.truncf %325 : vector<12x128xf32> to vector<12x128xbf16>
      %367 = arith.truncf %364 : vector<2x128xf32> to vector<2x128xbf16>
      %c0_223 = arith.constant 0 : index
      %c0_224 = arith.constant 0 : index
      %368 = vector.load %arg62[%c0_223, %c0_224] : memref<8x256xbf16, #tpu.memory_space<vmem>>, vector<8x128xbf16>
      tpu.vector_store %arg62[%c0_223, %c0_224], %365 {strides = array<i32>} : memref<8x256xbf16, #tpu.memory_space<vmem>>, vector<8x128xbf16>,
      %c0_225 = arith.constant 0 : index
      %c128_226 = arith.constant 128 : index
      %369 = vector.load %arg62[%c0_225, %c128_226] : memref<8x256xbf16, #tpu.memory_space<vmem>>, vector<8x128xbf16>
      tpu.vector_store %arg62[%c0_225, %c128_226], %365 {strides = array<i32>} : memref<8x256xbf16, #tpu.memory_space<vmem>>, vector<8x128xbf16>,
      %c0_227 = arith.constant 0 : index
      %c0_228 = arith.constant 0 : index
      %370 = vector.load %arg63[%c0_227, %c0_228] : memref<12x256xbf16, #tpu.memory_space<vmem>>, vector<12x128xbf16>
      tpu.vector_store %arg63[%c0_227, %c0_228], %366 {strides = array<i32>} : memref<12x256xbf16, #tpu.memory_space<vmem>>, vector<12x128xbf16>,
      %c0_229 = arith.constant 0 : index
      %c128_230 = arith.constant 128 : index
      %371 = vector.load %arg63[%c0_229, %c128_230] : memref<12x256xbf16, #tpu.memory_space<vmem>>, vector<12x128xbf16>
      tpu.vector_store %arg63[%c0_229, %c128_230], %366 {strides = array<i32>} : memref<12x256xbf16, #tpu.memory_space<vmem>>, vector<12x128xbf16>,
      %c0_231 = arith.constant 0 : index
      %c0_232 = arith.constant 0 : index
      %372 = vector.load %arg64[%c0_231, %c0_232] : memref<2x256xbf16, #tpu.memory_space<vmem>>, vector<2x128xbf16>
      tpu.vector_store %arg64[%c0_231, %c0_232], %367 {strides = array<i32>} : memref<2x256xbf16, #tpu.memory_space<vmem>>, vector<2x128xbf16>,
      %c0_233 = arith.constant 0 : index
      %c128_234 = arith.constant 128 : index
      %373 = vector.load %arg64[%c0_233, %c128_234] : memref<2x256xbf16, #tpu.memory_space<vmem>>, vector<2x128xbf16>
      tpu.vector_store %arg64[%c0_233, %c128_234], %367 {strides = array<i32>} : memref<2x256xbf16, #tpu.memory_space<vmem>>, vector<2x128xbf16>,
    } else {
    }
    %c0 = arith.constant 0 : index
    %c0_1 = arith.constant 0 : index
    %3 = vector.load %arg62[%c0, %c0_1] : memref<8x256xbf16, #tpu.memory_space<vmem>>, vector<8x256xbf16>
    %c0_2 = arith.constant 0 : index
    %c0_3 = arith.constant 0 : index
    %4 = vector.load %arg63[%c0_2, %c0_3] : memref<12x256xbf16, #tpu.memory_space<vmem>>, vector<12x256xbf16>
    %c0_4 = arith.constant 0 : index
    %c0_5 = arith.constant 0 : index
    %5 = vector.load %arg64[%c0_4, %c0_5] : memref<2x256xbf16, #tpu.memory_space<vmem>>, vector<2x256xbf16>
    %c0_6 = arith.constant 0 : index
    %c0_7 = arith.constant 0 : index
    %6 = vector.load %arg4[%c0_6, %c0_7] : memref<12x8xbf16, #tpu.memory_space<vmem>>, vector<12x8xbf16>
    %c0_8 = arith.constant 0 : index
    %c0_9 = arith.constant 0 : index
    %7 = vector.load %arg5[%c0_8, %c0_9] : memref<12x8xbf16, #tpu.memory_space<vmem>>, vector<12x8xbf16>
    %c0_10 = arith.constant 0 : index
    %c0_11 = arith.constant 0 : index
    %8 = vector.load %arg6[%c0_10, %c0_11] : memref<8x12xbf16, #tpu.memory_space<vmem>>, vector<8x12xbf16>
    %c0_12 = arith.constant 0 : index
    %c0_13 = arith.constant 0 : index
    %9 = vector.load %arg7[%c0_12, %c0_13] : memref<8x2xbf16, #tpu.memory_space<vmem>>, vector<8x2xbf16>
    %c0_14 = arith.constant 0 : index
    %c0_15 = arith.constant 0 : index
    %10 = vector.load %arg8[%c0_14, %c0_15] : memref<2x8xbf16, #tpu.memory_space<vmem>>, vector<2x8xbf16>
    %c0_16 = arith.constant 0 : index
    %c0_17 = arith.constant 0 : index
    %11 = vector.load %arg9[%c0_16, %c0_17] : memref<12x2xbf16, #tpu.memory_space<vmem>>, vector<12x2xbf16>
    %c0_18 = arith.constant 0 : index
    %c0_19 = arith.constant 0 : index
    %12 = vector.load %arg10[%c0_18, %c0_19] : memref<2x12xbf16, #tpu.memory_space<vmem>>, vector<2x12xbf16>
    %c0_20 = arith.constant 0 : index
    %c0_21 = arith.constant 0 : index
    %13 = vector.load %arg29[%c0_20, %c0_21] : memref<1024x128xbf16, #tpu.memory_space<vmem>>, vector<256x128xbf16>
    %cst = arith.constant dense<0.000000e+00> : vector<8x128xf32>
    %14 = tpu.matmul %3, %13, %cst {dimension_numbers = #tpu.dot_dimension_numbers<[1], [0], [0], [1], [0, 0, 1, 1], [], []>} : vector<8x256xbf16>, vector<256x128xbf16>, vector<8x128xf32> -> vector<8x128xf32>
    %c256 = arith.constant 256 : index
    %c0_22 = arith.constant 0 : index
    %15 = vector.load %arg29[%c256, %c0_22] : memref<1024x128xbf16, #tpu.memory_space<vmem>>, vector<256x128xbf16>
    %cst_23 = arith.constant dense<0.000000e+00> : vector<8x128xf32>
    %16 = tpu.matmul %3, %15, %cst_23 {dimension_numbers = #tpu.dot_dimension_numbers<[1], [0], [0], [1], [0, 0, 1, 1], [], []>} : vector<8x256xbf16>, vector<256x128xbf16>, vector<8x128xf32> -> vector<8x128xf32>
    %c512 = arith.constant 512 : index
    %c0_24 = arith.constant 0 : index
    %17 = vector.load %arg29[%c512, %c0_24] : memref<1024x128xbf16, #tpu.memory_space<vmem>>, vector<256x128xbf16>
    %cst_25 = arith.constant dense<0.000000e+00> : vector<12x128xf32>
    %18 = tpu.matmul %4, %17, %cst_25 {dimension_numbers = #tpu.dot_dimension_numbers<[1], [0], [0], [1], [0, 0, 1, 1], [], []>} : vector<12x256xbf16>, vector<256x128xbf16>, vector<12x128xf32> -> vector<12x128xf32>
    %c768 = arith.constant 768 : index
    %c0_26 = arith.constant 0 : index
    %19 = vector.load %arg29[%c768, %c0_26] : memref<1024x128xbf16, #tpu.memory_space<vmem>>, vector<256x128xbf16>
    %cst_27 = arith.constant dense<0.000000e+00> : vector<2x128xf32>
    %20 = tpu.matmul %5, %19, %cst_27 {dimension_numbers = #tpu.dot_dimension_numbers<[1], [0], [0], [1], [0, 0, 1, 1], [], []>} : vector<2x256xbf16>, vector<256x128xbf16>, vector<2x128xf32> -> vector<2x128xf32>
    %21 = arith.truncf %14 : vector<8x128xf32> to vector<8x128xbf16>
    %cst_28 = arith.constant dense<0.000000e+00> : vector<12x128xf32>
    %22 = tpu.matmul %6, %21, %cst_28 {dimension_numbers = #tpu.dot_dimension_numbers<[1], [0], [0], [1], [0, 0, 1, 1], [], []>} : vector<12x8xbf16>, vector<8x128xbf16>, vector<12x128xf32> -> vector<12x128xf32>
    %23 = arith.truncf %16 : vector<8x128xf32> to vector<8x128xbf16>
    %cst_29 = arith.constant dense<0.000000e+00> : vector<12x128xf32>
    %24 = tpu.matmul %7, %23, %cst_29 {dimension_numbers = #tpu.dot_dimension_numbers<[1], [0], [0], [1], [0, 0, 1, 1], [], []>} : vector<12x8xbf16>, vector<8x128xbf16>, vector<12x128xf32> -> vector<12x128xf32>
    %25 = arith.addf %22, %24 : vector<12x128xf32>
    %26 = arith.addf %25, %18 : vector<12x128xf32>
    %27 = arith.truncf %20 : vector<2x128xf32> to vector<2x128xbf16>
    %cst_30 = arith.constant dense<0.000000e+00> : vector<12x128xf32>
    %28 = tpu.matmul %11, %27, %cst_30 {dimension_numbers = #tpu.dot_dimension_numbers<[1], [0], [0], [1], [0, 0, 1, 1], [], []>} : vector<12x2xbf16>, vector<2x128xbf16>, vector<12x128xf32> -> vector<12x128xf32>
    %29 = arith.addf %26, %28 : vector<12x128xf32>
    %c0_31 = arith.constant 0 : index
    %c0_32 = arith.constant 0 : index
    %30 = vector.load %arg30[%c0_31, %c0_32] : memref<1x128xf32, #tpu.memory_space<vmem>>, vector<1x128xf32>
    %31 = vector.broadcast %30 : vector<1x128xf32> to vector<12x128xf32>
    %32 = arith.addf %29, %31 : vector<12x128xf32>
    %cst_33 = arith.constant 0.000000e+00 : f32
    %33 = vector.broadcast %cst_33 : f32 to vector<12x128xf32>
    %34 = arith.maximumf %32, %33 : vector<12x128xf32>
    %35 = arith.truncf %34 : vector<12x128xf32> to vector<12x128xbf16>
    %c0_34 = arith.constant 0 : index
    %c0_35 = arith.constant 0 : index
    %36 = vector.load %arg31[%c0_34, %c0_35] : memref<128x128xbf16, #tpu.memory_space<vmem>>, vector<128x128xbf16>
    %cst_36 = arith.constant dense<0.000000e+00> : vector<12x128xf32>
    %37 = tpu.matmul %35, %36, %cst_36 {dimension_numbers = #tpu.dot_dimension_numbers<[1], [0], [0], [1], [0, 0, 1, 1], [], []>} : vector<12x128xbf16>, vector<128x128xbf16>, vector<12x128xf32> -> vector<12x128xf32>
    %c0_37 = arith.constant 0 : index
    %c0_38 = arith.constant 0 : index
    %38 = vector.load %arg32[%c0_37, %c0_38] : memref<1x128xf32, #tpu.memory_space<vmem>>, vector<1x128xf32>
    %39 = vector.broadcast %38 : vector<1x128xf32> to vector<12x128xf32>
    %40 = arith.addf %37, %39 : vector<12x128xf32>
    %cst_39 = arith.constant dense<0.000000e+00> : vector<12xf32>
    %41 = vector.multi_reduction <add>, %40, %cst_39 [1] : vector<12x128xf32> to vector<12xf32>
    %42 = vector.shape_cast %41 : vector<12xf32> to vector<12x1xf32>
    %cst_40 = arith.constant 7.812500e-03 : f32
    %43 = vector.broadcast %cst_40 : f32 to vector<12x1xf32>
    %44 = arith.mulf %42, %43 : vector<12x1xf32>
    %45 = arith.mulf %40, %40 : vector<12x128xf32>
    %cst_41 = arith.constant dense<0.000000e+00> : vector<12xf32>
    %46 = vector.multi_reduction <add>, %45, %cst_41 [1] : vector<12x128xf32> to vector<12xf32>
    %47 = vector.shape_cast %46 : vector<12xf32> to vector<12x1xf32>
    %cst_42 = arith.constant 7.812500e-03 : f32
    %48 = vector.broadcast %cst_42 : f32 to vector<12x1xf32>
    %49 = arith.mulf %47, %48 : vector<12x1xf32>
    %50 = arith.mulf %44, %44 : vector<12x1xf32>
    %51 = arith.subf %49, %50 : vector<12x1xf32>
    %52 = vector.broadcast %44 : vector<12x1xf32> to vector<12x128xf32>
    %53 = arith.subf %40, %52 : vector<12x128xf32>
    %cst_43 = arith.constant 9.99999974E-6 : f32
    %54 = vector.broadcast %cst_43 : f32 to vector<12x1xf32>
    %55 = arith.addf %51, %54 : vector<12x1xf32>
    %56 = math.rsqrt %55 : vector<12x1xf32>
    %57 = vector.broadcast %56 : vector<12x1xf32> to vector<12x128xf32>
    %58 = arith.mulf %53, %57 : vector<12x128xf32>
    %c0_44 = arith.constant 0 : index
    %c0_45 = arith.constant 0 : index
    %59 = vector.load %arg33[%c0_44, %c0_45] : memref<1x128xf32, #tpu.memory_space<vmem>>, vector<1x128xf32>
    %60 = vector.broadcast %59 : vector<1x128xf32> to vector<12x128xf32>
    %61 = arith.mulf %58, %60 : vector<12x128xf32>
    %c0_46 = arith.constant 0 : index
    %c0_47 = arith.constant 0 : index
    %62 = vector.load %arg34[%c0_46, %c0_47] : memref<1x128xf32, #tpu.memory_space<vmem>>, vector<1x128xf32>
    %63 = vector.broadcast %62 : vector<1x128xf32> to vector<12x128xf32>
    %64 = arith.addf %61, %63 : vector<12x128xf32>
    %65 = arith.truncf %64 : vector<12x128xf32> to vector<12x128xbf16>
    %c0_48 = arith.constant 0 : index
    %c0_49 = arith.constant 0 : index
    %66 = vector.load %arg35[%c0_48, %c0_49] : memref<640x128xbf16, #tpu.memory_space<vmem>>, vector<256x128xbf16>
    %cst_50 = arith.constant dense<0.000000e+00> : vector<8x128xf32>
    %67 = tpu.matmul %3, %66, %cst_50 {dimension_numbers = #tpu.dot_dimension_numbers<[1], [0], [0], [1], [0, 0, 1, 1], [], []>} : vector<8x256xbf16>, vector<256x128xbf16>, vector<8x128xf32> -> vector<8x128xf32>
    %cst_51 = arith.constant dense<0.000000e+00> : vector<8x128xf32>
    %68 = tpu.matmul %8, %65, %cst_51 {dimension_numbers = #tpu.dot_dimension_numbers<[1], [0], [0], [1], [0, 0, 1, 1], [], []>} : vector<8x12xbf16>, vector<12x128xbf16>, vector<8x128xf32> -> vector<8x128xf32>
    %69 = arith.truncf %68 : vector<8x128xf32> to vector<8x128xbf16>
    %c256_52 = arith.constant 256 : index
    %c0_53 = arith.constant 0 : index
    %70 = vector.load %arg35[%c256_52, %c0_53] : memref<640x128xbf16, #tpu.memory_space<vmem>>, vector<128x128xbf16>
    %cst_54 = arith.constant dense<0.000000e+00> : vector<8x128xf32>
    %71 = tpu.matmul %69, %70, %cst_54 {dimension_numbers = #tpu.dot_dimension_numbers<[1], [0], [0], [1], [0, 0, 1, 1], [], []>} : vector<8x128xbf16>, vector<128x128xbf16>, vector<8x128xf32> -> vector<8x128xf32>
    %c384 = arith.constant 384 : index
    %c0_55 = arith.constant 0 : index
    %72 = vector.load %arg35[%c384, %c0_55] : memref<640x128xbf16, #tpu.memory_space<vmem>>, vector<256x128xbf16>
    %cst_56 = arith.constant dense<0.000000e+00> : vector<2x128xf32>
    %73 = tpu.matmul %5, %72, %cst_56 {dimension_numbers = #tpu.dot_dimension_numbers<[1], [0], [0], [1], [0, 0, 1, 1], [], []>} : vector<2x256xbf16>, vector<256x128xbf16>, vector<2x128xf32> -> vector<2x128xf32>
    %74 = arith.addf %67, %71 : vector<8x128xf32>
    %75 = arith.truncf %73 : vector<2x128xf32> to vector<2x128xbf16>
    %cst_57 = arith.constant dense<0.000000e+00> : vector<8x128xf32>
    %76 = tpu.matmul %9, %75, %cst_57 {dimension_numbers = #tpu.dot_dimension_numbers<[1], [0], [0], [1], [0, 0, 1, 1], [], []>} : vector<8x2xbf16>, vector<2x128xbf16>, vector<8x128xf32> -> vector<8x128xf32>
    %77 = arith.addf %74, %76 : vector<8x128xf32>
    %c0_58 = arith.constant 0 : index
    %c0_59 = arith.constant 0 : index
    %78 = vector.load %arg36[%c0_58, %c0_59] : memref<1x128xf32, #tpu.memory_space<vmem>>, vector<1x128xf32>
    %79 = vector.broadcast %78 : vector<1x128xf32> to vector<8x128xf32>
    %80 = arith.addf %77, %79 : vector<8x128xf32>
    %cst_60 = arith.constant 0.000000e+00 : f32
    %81 = vector.broadcast %cst_60 : f32 to vector<8x128xf32>
    %82 = arith.maximumf %80, %81 : vector<8x128xf32>
    %83 = arith.truncf %82 : vector<8x128xf32> to vector<8x128xbf16>
    %c0_61 = arith.constant 0 : index
    %c0_62 = arith.constant 0 : index
    %84 = vector.load %arg37[%c0_61, %c0_62] : memref<128x128xbf16, #tpu.memory_space<vmem>>, vector<128x128xbf16>
    %cst_63 = arith.constant dense<0.000000e+00> : vector<8x128xf32>
    %85 = tpu.matmul %83, %84, %cst_63 {dimension_numbers = #tpu.dot_dimension_numbers<[1], [0], [0], [1], [0, 0, 1, 1], [], []>} : vector<8x128xbf16>, vector<128x128xbf16>, vector<8x128xf32> -> vector<8x128xf32>
    %c0_64 = arith.constant 0 : index
    %c0_65 = arith.constant 0 : index
    %86 = vector.load %arg38[%c0_64, %c0_65] : memref<1x128xf32, #tpu.memory_space<vmem>>, vector<1x128xf32>
    %87 = vector.broadcast %86 : vector<1x128xf32> to vector<8x128xf32>
    %88 = arith.addf %85, %87 : vector<8x128xf32>
    %cst_66 = arith.constant dense<0.000000e+00> : vector<8xf32>
    %89 = vector.multi_reduction <add>, %88, %cst_66 [1] : vector<8x128xf32> to vector<8xf32>
    %90 = vector.shape_cast %89 : vector<8xf32> to vector<8x1xf32>
    %cst_67 = arith.constant 7.812500e-03 : f32
    %91 = vector.broadcast %cst_67 : f32 to vector<8x1xf32>
    %92 = arith.mulf %90, %91 : vector<8x1xf32>
    %93 = arith.mulf %88, %88 : vector<8x128xf32>
    %cst_68 = arith.constant dense<0.000000e+00> : vector<8xf32>
    %94 = vector.multi_reduction <add>, %93, %cst_68 [1] : vector<8x128xf32> to vector<8xf32>
    %95 = vector.shape_cast %94 : vector<8xf32> to vector<8x1xf32>
    %cst_69 = arith.constant 7.812500e-03 : f32
    %96 = vector.broadcast %cst_69 : f32 to vector<8x1xf32>
    %97 = arith.mulf %95, %96 : vector<8x1xf32>
    %98 = arith.mulf %92, %92 : vector<8x1xf32>
    %99 = arith.subf %97, %98 : vector<8x1xf32>
    %100 = vector.broadcast %92 : vector<8x1xf32> to vector<8x128xf32>
    %101 = arith.subf %88, %100 : vector<8x128xf32>
    %cst_70 = arith.constant 9.99999974E-6 : f32
    %102 = vector.broadcast %cst_70 : f32 to vector<8x1xf32>
    %103 = arith.addf %99, %102 : vector<8x1xf32>
    %104 = math.rsqrt %103 : vector<8x1xf32>
    %105 = vector.broadcast %104 : vector<8x1xf32> to vector<8x128xf32>
    %106 = arith.mulf %101, %105 : vector<8x128xf32>
    %c0_71 = arith.constant 0 : index
    %c0_72 = arith.constant 0 : index
    %107 = vector.load %arg39[%c0_71, %c0_72] : memref<1x128xf32, #tpu.memory_space<vmem>>, vector<1x128xf32>
    %108 = vector.broadcast %107 : vector<1x128xf32> to vector<8x128xf32>
    %109 = arith.mulf %106, %108 : vector<8x128xf32>
    %c0_73 = arith.constant 0 : index
    %c0_74 = arith.constant 0 : index
    %110 = vector.load %arg40[%c0_73, %c0_74] : memref<1x128xf32, #tpu.memory_space<vmem>>, vector<1x128xf32>
    %111 = vector.broadcast %110 : vector<1x128xf32> to vector<8x128xf32>
    %112 = arith.addf %109, %111 : vector<8x128xf32>
    %113 = arith.truncf %112 : vector<8x128xf32> to vector<8x128xbf16>
    %c0_75 = arith.constant 0 : index
    %c0_76 = arith.constant 0 : index
    %114 = vector.load %arg41[%c0_75, %c0_76] : memref<512x128xbf16, #tpu.memory_space<vmem>>, vector<256x128xbf16>
    %cst_77 = arith.constant dense<0.000000e+00> : vector<2x128xf32>
    %115 = tpu.matmul %5, %114, %cst_77 {dimension_numbers = #tpu.dot_dimension_numbers<[1], [0], [0], [1], [0, 0, 1, 1], [], []>} : vector<2x256xbf16>, vector<256x128xbf16>, vector<2x128xf32> -> vector<2x128xf32>
    %cst_78 = arith.constant dense<0.000000e+00> : vector<2x128xf32>
    %116 = tpu.matmul %10, %113, %cst_78 {dimension_numbers = #tpu.dot_dimension_numbers<[1], [0], [0], [1], [0, 0, 1, 1], [], []>} : vector<2x8xbf16>, vector<8x128xbf16>, vector<2x128xf32> -> vector<2x128xf32>
    %cst_79 = arith.constant dense<0.000000e+00> : vector<2x128xf32>
    %117 = tpu.matmul %12, %65, %cst_79 {dimension_numbers = #tpu.dot_dimension_numbers<[1], [0], [0], [1], [0, 0, 1, 1], [], []>} : vector<2x12xbf16>, vector<12x128xbf16>, vector<2x128xf32> -> vector<2x128xf32>
    %118 = arith.truncf %116 : vector<2x128xf32> to vector<2x128xbf16>
    %c256_80 = arith.constant 256 : index
    %c0_81 = arith.constant 0 : index
    %119 = vector.load %arg41[%c256_80, %c0_81] : memref<512x128xbf16, #tpu.memory_space<vmem>>, vector<128x128xbf16>
    %cst_82 = arith.constant dense<0.000000e+00> : vector<2x128xf32>
    %120 = tpu.matmul %118, %119, %cst_82 {dimension_numbers = #tpu.dot_dimension_numbers<[1], [0], [0], [1], [0, 0, 1, 1], [], []>} : vector<2x128xbf16>, vector<128x128xbf16>, vector<2x128xf32> -> vector<2x128xf32>
    %121 = arith.addf %115, %120 : vector<2x128xf32>
    %122 = arith.truncf %117 : vector<2x128xf32> to vector<2x128xbf16>
    %c384_83 = arith.constant 384 : index
    %c0_84 = arith.constant 0 : index
    %123 = vector.load %arg41[%c384_83, %c0_84] : memref<512x128xbf16, #tpu.memory_space<vmem>>, vector<128x128xbf16>
    %cst_85 = arith.constant dense<0.000000e+00> : vector<2x128xf32>
    %124 = tpu.matmul %122, %123, %cst_85 {dimension_numbers = #tpu.dot_dimension_numbers<[1], [0], [0], [1], [0, 0, 1, 1], [], []>} : vector<2x128xbf16>, vector<128x128xbf16>, vector<2x128xf32> -> vector<2x128xf32>
    %125 = arith.addf %121, %124 : vector<2x128xf32>
    %c0_86 = arith.constant 0 : index
    %c0_87 = arith.constant 0 : index
    %126 = vector.load %arg42[%c0_86, %c0_87] : memref<1x128xf32, #tpu.memory_space<vmem>>, vector<1x128xf32>
    %127 = vector.broadcast %126 : vector<1x128xf32> to vector<2x128xf32>
    %128 = arith.addf %125, %127 : vector<2x128xf32>
    %cst_88 = arith.constant 0.000000e+00 : f32
    %129 = vector.broadcast %cst_88 : f32 to vector<2x128xf32>
    %130 = arith.maximumf %128, %129 : vector<2x128xf32>
    %131 = arith.truncf %130 : vector<2x128xf32> to vector<2x128xbf16>
    %c0_89 = arith.constant 0 : index
    %c0_90 = arith.constant 0 : index
    %132 = vector.load %arg43[%c0_89, %c0_90] : memref<128x128xbf16, #tpu.memory_space<vmem>>, vector<128x128xbf16>
    %cst_91 = arith.constant dense<0.000000e+00> : vector<2x128xf32>
    %133 = tpu.matmul %131, %132, %cst_91 {dimension_numbers = #tpu.dot_dimension_numbers<[1], [0], [0], [1], [0, 0, 1, 1], [], []>} : vector<2x128xbf16>, vector<128x128xbf16>, vector<2x128xf32> -> vector<2x128xf32>
    %c0_92 = arith.constant 0 : index
    %c0_93 = arith.constant 0 : index
    %134 = vector.load %arg44[%c0_92, %c0_93] : memref<1x128xf32, #tpu.memory_space<vmem>>, vector<1x128xf32>
    %135 = vector.broadcast %134 : vector<1x128xf32> to vector<2x128xf32>
    %136 = arith.addf %133, %135 : vector<2x128xf32>
    %cst_94 = arith.constant dense<0.000000e+00> : vector<2xf32>
    %137 = vector.multi_reduction <add>, %136, %cst_94 [1] : vector<2x128xf32> to vector<2xf32>
    %138 = vector.shape_cast %137 : vector<2xf32> to vector<2x1xf32>
    %cst_95 = arith.constant 7.812500e-03 : f32
    %139 = vector.broadcast %cst_95 : f32 to vector<2x1xf32>
    %140 = arith.mulf %138, %139 : vector<2x1xf32>
    %141 = arith.mulf %136, %136 : vector<2x128xf32>
    %cst_96 = arith.constant dense<0.000000e+00> : vector<2xf32>
    %142 = vector.multi_reduction <add>, %141, %cst_96 [1] : vector<2x128xf32> to vector<2xf32>
    %143 = vector.shape_cast %142 : vector<2xf32> to vector<2x1xf32>
    %cst_97 = arith.constant 7.812500e-03 : f32
    %144 = vector.broadcast %cst_97 : f32 to vector<2x1xf32>
    %145 = arith.mulf %143, %144 : vector<2x1xf32>
    %146 = arith.mulf %140, %140 : vector<2x1xf32>
    %147 = arith.subf %145, %146 : vector<2x1xf32>
    %148 = vector.broadcast %140 : vector<2x1xf32> to vector<2x128xf32>
    %149 = arith.subf %136, %148 : vector<2x128xf32>
    %cst_98 = arith.constant 9.99999974E-6 : f32
    %150 = vector.broadcast %cst_98 : f32 to vector<2x1xf32>
    %151 = arith.addf %147, %150 : vector<2x1xf32>
    %152 = math.rsqrt %151 : vector<2x1xf32>
    %153 = vector.broadcast %152 : vector<2x1xf32> to vector<2x128xf32>
    %154 = arith.mulf %149, %153 : vector<2x128xf32>
    %c0_99 = arith.constant 0 : index
    %c0_100 = arith.constant 0 : index
    %155 = vector.load %arg45[%c0_99, %c0_100] : memref<1x128xf32, #tpu.memory_space<vmem>>, vector<1x128xf32>
    %156 = vector.broadcast %155 : vector<1x128xf32> to vector<2x128xf32>
    %157 = arith.mulf %154, %156 : vector<2x128xf32>
    %c0_101 = arith.constant 0 : index
    %c0_102 = arith.constant 0 : index
    %158 = vector.load %arg46[%c0_101, %c0_102] : memref<1x128xf32, #tpu.memory_space<vmem>>, vector<1x128xf32>
    %159 = vector.broadcast %158 : vector<1x128xf32> to vector<2x128xf32>
    %160 = arith.addf %157, %159 : vector<2x128xf32>
    %161 = arith.truncf %160 : vector<2x128xf32> to vector<2x128xbf16>
    %c0_103 = arith.constant 0 : index
    %c0_104 = arith.constant 0 : index
    %162 = vector.load %arg47[%c0_103, %c0_104] : memref<128x128xbf16, #tpu.memory_space<vmem>>, vector<128x128xbf16>
    %cst_105 = arith.constant dense<0.000000e+00> : vector<8x128xf32>
    %163 = tpu.matmul %113, %162, %cst_105 {dimension_numbers = #tpu.dot_dimension_numbers<[1], [0], [0], [1], [0, 0, 1, 1], [], []>} : vector<8x128xbf16>, vector<128x128xbf16>, vector<8x128xf32> -> vector<8x128xf32>
    %c0_106 = arith.constant 0 : index
    %c0_107 = arith.constant 0 : index
    %164 = vector.load %arg48[%c0_106, %c0_107] : memref<1x128xf32, #tpu.memory_space<vmem>>, vector<1x128xf32>
    %165 = vector.broadcast %164 : vector<1x128xf32> to vector<8x128xf32>
    %166 = arith.addf %163, %165 : vector<8x128xf32>
    %cst_108 = arith.constant 0.000000e+00 : f32
    %167 = vector.broadcast %cst_108 : f32 to vector<8x128xf32>
    %168 = arith.maximumf %166, %167 : vector<8x128xf32>
    %169 = arith.truncf %168 : vector<8x128xf32> to vector<8x128xbf16>
    %c0_109 = arith.constant 0 : index
    %c0_110 = arith.constant 0 : index
    %170 = vector.load %arg49[%c0_109, %c0_110] : memref<128x128xbf16, #tpu.memory_space<vmem>>, vector<128x128xbf16>
    %cst_111 = arith.constant dense<0.000000e+00> : vector<8x128xf32>
    %171 = tpu.matmul %169, %170, %cst_111 {dimension_numbers = #tpu.dot_dimension_numbers<[1], [0], [0], [1], [0, 0, 1, 1], [], []>} : vector<8x128xbf16>, vector<128x128xbf16>, vector<8x128xf32> -> vector<8x128xf32>
    %c0_112 = arith.constant 0 : index
    %c0_113 = arith.constant 0 : index
    %172 = vector.load %arg50[%c0_112, %c0_113] : memref<1x128xf32, #tpu.memory_space<vmem>>, vector<1x128xf32>
    %173 = vector.broadcast %172 : vector<1x128xf32> to vector<8x128xf32>
    %174 = arith.addf %171, %173 : vector<8x128xf32>
    %cst_114 = arith.constant dense<0.000000e+00> : vector<8xf32>
    %175 = vector.multi_reduction <add>, %174, %cst_114 [1] : vector<8x128xf32> to vector<8xf32>
    %176 = vector.shape_cast %175 : vector<8xf32> to vector<8x1xf32>
    %cst_115 = arith.constant 0.166666672 : f32
    %177 = vector.broadcast %cst_115 : f32 to vector<8x1xf32>
    %178 = arith.mulf %176, %177 : vector<8x1xf32>
    %179 = arith.mulf %174, %174 : vector<8x128xf32>
    %cst_116 = arith.constant dense<0.000000e+00> : vector<8xf32>
    %180 = vector.multi_reduction <add>, %179, %cst_116 [1] : vector<8x128xf32> to vector<8xf32>
    %181 = vector.shape_cast %180 : vector<8xf32> to vector<8x1xf32>
    %cst_117 = arith.constant 0.166666672 : f32
    %182 = vector.broadcast %cst_117 : f32 to vector<8x1xf32>
    %183 = arith.mulf %181, %182 : vector<8x1xf32>
    %184 = arith.mulf %178, %178 : vector<8x1xf32>
    %185 = arith.subf %183, %184 : vector<8x1xf32>
    %186 = vector.broadcast %178 : vector<8x1xf32> to vector<8x128xf32>
    %187 = arith.subf %174, %186 : vector<8x128xf32>
    %cst_118 = arith.constant 9.99999974E-6 : f32
    %188 = vector.broadcast %cst_118 : f32 to vector<8x1xf32>
    %189 = arith.addf %185, %188 : vector<8x1xf32>
    %190 = math.rsqrt %189 : vector<8x1xf32>
    %191 = vector.broadcast %190 : vector<8x1xf32> to vector<8x128xf32>
    %192 = arith.mulf %187, %191 : vector<8x128xf32>
    %c0_119 = arith.constant 0 : index
    %c0_120 = arith.constant 0 : index
    %193 = vector.load %arg51[%c0_119, %c0_120] : memref<1x128xf32, #tpu.memory_space<vmem>>, vector<1x128xf32>
    %194 = vector.broadcast %193 : vector<1x128xf32> to vector<8x128xf32>
    %195 = arith.mulf %192, %194 : vector<8x128xf32>
    %c0_121 = arith.constant 0 : index
    %c0_122 = arith.constant 0 : index
    %196 = vector.load %arg52[%c0_121, %c0_122] : memref<1x128xf32, #tpu.memory_space<vmem>>, vector<1x128xf32>
    %197 = vector.broadcast %196 : vector<1x128xf32> to vector<8x128xf32>
    %198 = arith.addf %195, %197 : vector<8x128xf32>
    %c0_123 = arith.constant 0 : index
    %c0_124 = arith.constant 0 : index
    %199 = vector.load %arg53[%c0_123, %c0_124] : memref<128x128xbf16, #tpu.memory_space<vmem>>, vector<128x128xbf16>
    %cst_125 = arith.constant dense<0.000000e+00> : vector<2x128xf32>
    %200 = tpu.matmul %161, %199, %cst_125 {dimension_numbers = #tpu.dot_dimension_numbers<[1], [0], [0], [1], [0, 0, 1, 1], [], []>} : vector<2x128xbf16>, vector<128x128xbf16>, vector<2x128xf32> -> vector<2x128xf32>
    %c0_126 = arith.constant 0 : index
    %c0_127 = arith.constant 0 : index
    %201 = vector.load %arg54[%c0_126, %c0_127] : memref<1x128xf32, #tpu.memory_space<vmem>>, vector<1x128xf32>
    %202 = vector.broadcast %201 : vector<1x128xf32> to vector<2x128xf32>
    %203 = arith.addf %200, %202 : vector<2x128xf32>
    %cst_128 = arith.constant 0.000000e+00 : f32
    %204 = vector.broadcast %cst_128 : f32 to vector<2x128xf32>
    %205 = arith.maximumf %203, %204 : vector<2x128xf32>
    %206 = arith.truncf %205 : vector<2x128xf32> to vector<2x128xbf16>
    %c0_129 = arith.constant 0 : index
    %c0_130 = arith.constant 0 : index
    %207 = vector.load %arg55[%c0_129, %c0_130] : memref<128x128xbf16, #tpu.memory_space<vmem>>, vector<128x128xbf16>
    %cst_131 = arith.constant dense<0.000000e+00> : vector<2x128xf32>
    %208 = tpu.matmul %206, %207, %cst_131 {dimension_numbers = #tpu.dot_dimension_numbers<[1], [0], [0], [1], [0, 0, 1, 1], [], []>} : vector<2x128xbf16>, vector<128x128xbf16>, vector<2x128xf32> -> vector<2x128xf32>
    %c0_132 = arith.constant 0 : index
    %c0_133 = arith.constant 0 : index
    %209 = vector.load %arg56[%c0_132, %c0_133] : memref<1x128xf32, #tpu.memory_space<vmem>>, vector<1x128xf32>
    %210 = vector.broadcast %209 : vector<1x128xf32> to vector<2x128xf32>
    %211 = arith.addf %208, %210 : vector<2x128xf32>
    %cst_134 = arith.constant dense<0.000000e+00> : vector<2xf32>
    %212 = vector.multi_reduction <add>, %211, %cst_134 [1] : vector<2x128xf32> to vector<2xf32>
    %213 = vector.shape_cast %212 : vector<2xf32> to vector<2x1xf32>
    %cst_135 = arith.constant 2.500000e-01 : f32
    %214 = vector.broadcast %cst_135 : f32 to vector<2x1xf32>
    %215 = arith.mulf %213, %214 : vector<2x1xf32>
    %216 = arith.mulf %211, %211 : vector<2x128xf32>
    %cst_136 = arith.constant dense<0.000000e+00> : vector<2xf32>
    %217 = vector.multi_reduction <add>, %216, %cst_136 [1] : vector<2x128xf32> to vector<2xf32>
    %218 = vector.shape_cast %217 : vector<2xf32> to vector<2x1xf32>
    %cst_137 = arith.constant 2.500000e-01 : f32
    %219 = vector.broadcast %cst_137 : f32 to vector<2x1xf32>
    %220 = arith.mulf %218, %219 : vector<2x1xf32>
    %221 = arith.mulf %215, %215 : vector<2x1xf32>
    %222 = arith.subf %220, %221 : vector<2x1xf32>
    %223 = vector.broadcast %215 : vector<2x1xf32> to vector<2x128xf32>
    %224 = arith.subf %211, %223 : vector<2x128xf32>
    %cst_138 = arith.constant 9.99999974E-6 : f32
    %225 = vector.broadcast %cst_138 : f32 to vector<2x1xf32>
    %226 = arith.addf %222, %225 : vector<2x1xf32>
    %227 = math.rsqrt %226 : vector<2x1xf32>
    %228 = vector.broadcast %227 : vector<2x1xf32> to vector<2x128xf32>
    %229 = arith.mulf %224, %228 : vector<2x128xf32>
    %c0_139 = arith.constant 0 : index
    %c0_140 = arith.constant 0 : index
    %230 = vector.load %arg57[%c0_139, %c0_140] : memref<1x128xf32, #tpu.memory_space<vmem>>, vector<1x128xf32>
    %231 = vector.broadcast %230 : vector<1x128xf32> to vector<2x128xf32>
    %232 = arith.mulf %229, %231 : vector<2x128xf32>
    %c0_141 = arith.constant 0 : index
    %c0_142 = arith.constant 0 : index
    %233 = vector.load %arg58[%c0_141, %c0_142] : memref<1x128xf32, #tpu.memory_space<vmem>>, vector<1x128xf32>
    %234 = vector.broadcast %233 : vector<1x128xf32> to vector<2x128xf32>
    %235 = arith.addf %232, %234 : vector<2x128xf32>
    %c0_143 = arith.constant 0 : index
    %c0_144 = arith.constant 0 : index
    %c0_145 = arith.constant 0 : index
    %236 = vector.load %arg59[%c0_143, %c0_144, %c0_145] : memref<1x8x128xf32, #tpu.memory_space<vmem>>, vector<1x8x128xf32>
    %237 = vector.shape_cast %236 : vector<1x8x128xf32> to vector<8x128xf32>
    %238 = vector.shape_cast %198 : vector<8x128xf32> to vector<1x8x128xf32>
    tpu.vector_store %arg59[%c0_143, %c0_144, %c0_145], %238 {strides = array<i32>} : memref<1x8x128xf32, #tpu.memory_space<vmem>>, vector<1x8x128xf32>,
    %c0_146 = arith.constant 0 : index
    %c0_147 = arith.constant 0 : index
    %c0_148 = arith.constant 0 : index
    %239 = vector.load %arg60[%c0_146, %c0_147, %c0_148] : memref<1x12x128xf32, #tpu.memory_space<vmem>>, vector<1x12x128xf32>
    %240 = vector.shape_cast %239 : vector<1x12x128xf32> to vector<12x128xf32>
    %241 = vector.shape_cast %64 : vector<12x128xf32> to vector<1x12x128xf32>
    tpu.vector_store %arg60[%c0_146, %c0_147, %c0_148], %241 {strides = array<i32>} : memref<1x12x128xf32, #tpu.memory_space<vmem>>, vector<1x12x128xf32>,
    %c0_149 = arith.constant 0 : index
    %c0_150 = arith.constant 0 : index
    %c0_151 = arith.constant 0 : index
    %242 = vector.load %arg61[%c0_149, %c0_150, %c0_151] : memref<1x2x128xf32, #tpu.memory_space<vmem>>, vector<1x2x128xf32>
    %243 = vector.shape_cast %242 : vector<1x2x128xf32> to vector<2x128xf32>
    %244 = vector.shape_cast %235 : vector<2x128xf32> to vector<1x2x128xf32>
    tpu.vector_store %arg61[%c0_149, %c0_150, %c0_151], %244 {strides = array<i32>} : memref<1x2x128xf32, #tpu.memory_space<vmem>>, vector<1x2x128xf32>,
    %c0_152 = arith.constant 0 : index
    %c128 = arith.constant 128 : index
    %245 = vector.load %arg62[%c0_152, %c128] : memref<8x256xbf16, #tpu.memory_space<vmem>>, vector<8x128xbf16>
    tpu.vector_store %arg62[%c0_152, %c128], %113 {strides = array<i32>} : memref<8x256xbf16, #tpu.memory_space<vmem>>, vector<8x128xbf16>,
    %c0_153 = arith.constant 0 : index
    %c128_154 = arith.constant 128 : index
    %246 = vector.load %arg63[%c0_153, %c128_154] : memref<12x256xbf16, #tpu.memory_space<vmem>>, vector<12x128xbf16>
    tpu.vector_store %arg63[%c0_153, %c128_154], %65 {strides = array<i32>} : memref<12x256xbf16, #tpu.memory_space<vmem>>, vector<12x128xbf16>,
    %c0_155 = arith.constant 0 : index
    %c128_156 = arith.constant 128 : index
    %247 = vector.load %arg64[%c0_155, %c128_156] : memref<2x256xbf16, #tpu.memory_space<vmem>>, vector<2x128xbf16>
    tpu.vector_store %arg64[%c0_155, %c128_156], %161 {strides = array<i32>} : memref<2x256xbf16, #tpu.memory_space<vmem>>, vector<2x128xbf16>,
    return
  }
  func.func @transform_0(%arg0: i32) -> (i32, i32) {
    %c0_i32 = arith.constant 0 : i32
    %c0_i32_0 = arith.constant 0 : i32
    %c0_i32_1 = arith.constant 0 : i32
    return %c0_i32, %c0_i32_0 : i32, i32
  }
  func.func @transform_1(%arg0: i32) -> (i32, i32) {
    %c0_i32 = arith.constant 0 : i32
    %c0_i32_0 = arith.constant 0 : i32
    %c0_i32_1 = arith.constant 0 : i32
    return %c0_i32, %c0_i32_0 : i32, i32
  }
  func.func @transform_2(%arg0: i32) -> (i32, i32) {
    %c0_i32 = arith.constant 0 : i32
    %c0_i32_0 = arith.constant 0 : i32
    %c0_i32_1 = arith.constant 0 : i32
    return %c0_i32, %c0_i32_0 : i32, i32
  }
  func.func @transform_3(%arg0: i32) -> (i32, i32) {
    %c0_i32 = arith.constant 0 : i32
    %c0_i32_0 = arith.constant 0 : i32
    %c0_i32_1 = arith.constant 0 : i32
    return %c0_i32, %c0_i32_0 : i32, i32
  }
  func.func @transform_4(%arg0: i32) -> (i32, i32) {
    %c0_i32 = arith.constant 0 : i32
    %c0_i32_0 = arith.constant 0 : i32
    %c0_i32_1 = arith.constant 0 : i32
    return %c0_i32, %c0_i32_0 : i32, i32
  }
  func.func @transform_5(%arg0: i32) -> (i32, i32) {
    %c0_i32 = arith.constant 0 : i32
    %c0_i32_0 = arith.constant 0 : i32
    %c0_i32_1 = arith.constant 0 : i32
    return %c0_i32, %c0_i32_0 : i32, i32
  }
  func.func @transform_6(%arg0: i32) -> (i32, i32) {
    %c0_i32 = arith.constant 0 : i32
    %c0_i32_0 = arith.constant 0 : i32
    %c0_i32_1 = arith.constant 0 : i32
    return %c0_i32, %c0_i32_0 : i32, i32
  }
  func.func @transform_7(%arg0: i32) -> (i32, i32) {
    %c0_i32 = arith.constant 0 : i32
    %c0_i32_0 = arith.constant 0 : i32
    %c0_i32_1 = arith.constant 0 : i32
    return %c0_i32, %c0_i32_0 : i32, i32
  }
  func.func @transform_8(%arg0: i32) -> (i32, i32) {
    %c0_i32 = arith.constant 0 : i32
    %c0_i32_0 = arith.constant 0 : i32
    %c0_i32_1 = arith.constant 0 : i32
    return %c0_i32, %c0_i32_0 : i32, i32
  }
  func.func @transform_9(%arg0: i32) -> (i32, i32) {
    %c0_i32 = arith.constant 0 : i32
    %c0_i32_0 = arith.constant 0 : i32
    %c0_i32_1 = arith.constant 0 : i32
    return %c0_i32, %c0_i32_0 : i32, i32
  }
  func.func @transform_10(%arg0: i32) -> (i32, i32) {
    %c0_i32 = arith.constant 0 : i32
    %c0_i32_0 = arith.constant 0 : i32
    %c0_i32_1 = arith.constant 0 : i32
    return %c0_i32, %c0_i32_0 : i32, i32
  }
  func.func @transform_11(%arg0: i32) -> (i32, i32) {
    %c0_i32 = arith.constant 0 : i32
    %c0_i32_0 = arith.constant 0 : i32
    %c0_i32_1 = arith.constant 0 : i32
    return %c0_i32, %c0_i32_0 : i32, i32
  }
  func.func @transform_12(%arg0: i32) -> (i32, i32) {
    %c0_i32 = arith.constant 0 : i32
    %c0_i32_0 = arith.constant 0 : i32
    %c0_i32_1 = arith.constant 0 : i32
    return %c0_i32, %c0_i32_0 : i32, i32
  }
  func.func @transform_13(%arg0: i32) -> (i32, i32) {
    %c0_i32 = arith.constant 0 : i32
    %c0_i32_0 = arith.constant 0 : i32
    %c0_i32_1 = arith.constant 0 : i32
    return %c0_i32, %c0_i32_0 : i32, i32
  }
  func.func @transform_14(%arg0: i32) -> (i32, i32) {
    %c0_i32 = arith.constant 0 : i32
    %c0_i32_0 = arith.constant 0 : i32
    %c0_i32_1 = arith.constant 0 : i32
    return %c0_i32, %c0_i32_0 : i32, i32
  }
  func.func @transform_15(%arg0: i32) -> (i32, i32) {
    %c0_i32 = arith.constant 0 : i32
    %c0_i32_0 = arith.constant 0 : i32
    %c0_i32_1 = arith.constant 0 : i32
    return %c0_i32, %c0_i32_0 : i32, i32
  }
  func.func @transform_16(%arg0: i32) -> (i32, i32) {
    %c0_i32 = arith.constant 0 : i32
    %c0_i32_0 = arith.constant 0 : i32
    %c0_i32_1 = arith.constant 0 : i32
    return %c0_i32, %c0_i32_0 : i32, i32
  }
  func.func @transform_17(%arg0: i32) -> (i32, i32) {
    %c0_i32 = arith.constant 0 : i32
    %c0_i32_0 = arith.constant 0 : i32
    %c0_i32_1 = arith.constant 0 : i32
    return %c0_i32, %c0_i32_0 : i32, i32
  }
  func.func @transform_18(%arg0: i32) -> (i32, i32) {
    %c0_i32 = arith.constant 0 : i32
    %c0_i32_0 = arith.constant 0 : i32
    %c0_i32_1 = arith.constant 0 : i32
    return %c0_i32, %c0_i32_0 : i32, i32
  }
  func.func @transform_19(%arg0: i32) -> (i32, i32) {
    %c0_i32 = arith.constant 0 : i32
    %c0_i32_0 = arith.constant 0 : i32
    %c0_i32_1 = arith.constant 0 : i32
    return %c0_i32, %c0_i32_0 : i32, i32
  }
  func.func @transform_20(%arg0: i32) -> (i32, i32) {
    %c0_i32 = arith.constant 0 : i32
    %c0_i32_0 = arith.constant 0 : i32
    %c0_i32_1 = arith.constant 0 : i32
    return %c0_i32, %c0_i32_0 : i32, i32
  }
  func.func @transform_21(%arg0: i32) -> (i32, i32) {
    %c0_i32 = arith.constant 0 : i32
    %c0_i32_0 = arith.constant 0 : i32
    %c0_i32_1 = arith.constant 0 : i32
    return %c0_i32, %c0_i32_0 : i32, i32
  }
  func.func @transform_22(%arg0: i32) -> (i32, i32) {
    %c0_i32 = arith.constant 0 : i32
    %c0_i32_0 = arith.constant 0 : i32
    %c0_i32_1 = arith.constant 0 : i32
    return %c0_i32, %c0_i32_0 : i32, i32
  }
  func.func @transform_23(%arg0: i32) -> (i32, i32) {
    %c0_i32 = arith.constant 0 : i32
    %c0_i32_0 = arith.constant 0 : i32
    %c0_i32_1 = arith.constant 0 : i32
    return %c0_i32, %c0_i32_0 : i32, i32
  }
  func.func @transform_24(%arg0: i32) -> (i32, i32) {
    %c0_i32 = arith.constant 0 : i32
    %c0_i32_0 = arith.constant 0 : i32
    %c0_i32_1 = arith.constant 0 : i32
    return %c0_i32, %c0_i32_0 : i32, i32
  }
  func.func @transform_25(%arg0: i32) -> (i32, i32) {
    %c0_i32 = arith.constant 0 : i32
    %c0_i32_0 = arith.constant 0 : i32
    %c0_i32_1 = arith.constant 0 : i32
    return %c0_i32, %c0_i32_0 : i32, i32
  }
  func.func @transform_26(%arg0: i32) -> (i32, i32) {
    %c0_i32 = arith.constant 0 : i32
    %c0_i32_0 = arith.constant 0 : i32
    %c0_i32_1 = arith.constant 0 : i32
    return %c0_i32, %c0_i32_0 : i32, i32
  }
  func.func @transform_27(%arg0: i32) -> (i32, i32) {
    %c0_i32 = arith.constant 0 : i32
    %c0_i32_0 = arith.constant 0 : i32
    %c0_i32_1 = arith.constant 0 : i32
    return %c0_i32, %c0_i32_0 : i32, i32
  }
  func.func @transform_28(%arg0: i32) -> (i32, i32) {
    %c0_i32 = arith.constant 0 : i32
    %c0_i32_0 = arith.constant 0 : i32
    %c0_i32_1 = arith.constant 0 : i32
    return %c0_i32, %c0_i32_0 : i32, i32
  }
  func.func @transform_29(%arg0: i32) -> (i32, i32) {
    %c0_i32 = arith.constant 0 : i32
    %c0_i32_0 = arith.constant 0 : i32
    %c0_i32_1 = arith.constant 0 : i32
    return %c0_i32, %c0_i32_0 : i32, i32
  }
  func.func @transform_30(%arg0: i32) -> (i32, i32) {
    %c0_i32 = arith.constant 0 : i32
    %c0_i32_0 = arith.constant 0 : i32
    %c0_i32_1 = arith.constant 0 : i32
    return %c0_i32, %c0_i32_0 : i32, i32
  }
  func.func @transform_31(%arg0: i32) -> (i32, i32) {
    %c0_i32 = arith.constant 0 : i32
    %c0_i32_0 = arith.constant 0 : i32
    %c0_i32_1 = arith.constant 0 : i32
    return %c0_i32, %c0_i32_0 : i32, i32
  }
  func.func @transform_32(%arg0: i32) -> (i32, i32) {
    %c0_i32 = arith.constant 0 : i32
    %c0_i32_0 = arith.constant 0 : i32
    %c0_i32_1 = arith.constant 0 : i32
    return %c0_i32, %c0_i32_0 : i32, i32
  }
  func.func @transform_33(%arg0: i32) -> (i32, i32) {
    %c0_i32 = arith.constant 0 : i32
    %c0_i32_0 = arith.constant 0 : i32
    %c0_i32_1 = arith.constant 0 : i32
    return %c0_i32, %c0_i32_0 : i32, i32
  }
  func.func @transform_34(%arg0: i32) -> (i32, i32) {
    %c0_i32 = arith.constant 0 : i32
    %c0_i32_0 = arith.constant 0 : i32
    %c0_i32_1 = arith.constant 0 : i32
    return %c0_i32, %c0_i32_0 : i32, i32
  }
  func.func @transform_35(%arg0: i32) -> (i32, i32) {
    %c0_i32 = arith.constant 0 : i32
    %c0_i32_0 = arith.constant 0 : i32
    %c0_i32_1 = arith.constant 0 : i32
    return %c0_i32, %c0_i32_0 : i32, i32
  }
  func.func @transform_36(%arg0: i32) -> (i32, i32) {
    %c0_i32 = arith.constant 0 : i32
    %c0_i32_0 = arith.constant 0 : i32
    %c0_i32_1 = arith.constant 0 : i32
    return %c0_i32, %c0_i32_0 : i32, i32
  }
  func.func @transform_37(%arg0: i32) -> (i32, i32) {
    %c0_i32 = arith.constant 0 : i32
    %c0_i32_0 = arith.constant 0 : i32
    %c0_i32_1 = arith.constant 0 : i32
    return %c0_i32, %c0_i32_0 : i32, i32
  }
  func.func @transform_38(%arg0: i32) -> (i32, i32) {
    %c0_i32 = arith.constant 0 : i32
    %c0_i32_0 = arith.constant 0 : i32
    %c0_i32_1 = arith.constant 0 : i32
    return %c0_i32, %c0_i32_0 : i32, i32
  }
  func.func @transform_39(%arg0: i32) -> (i32, i32) {
    %c0_i32 = arith.constant 0 : i32
    %c0_i32_0 = arith.constant 0 : i32
    %c0_i32_1 = arith.constant 0 : i32
    return %c0_i32, %c0_i32_0 : i32, i32
  }
  func.func @transform_40(%arg0: i32) -> (i32, i32) {
    %c0_i32 = arith.constant 0 : i32
    %c0_i32_0 = arith.constant 0 : i32
    %c0_i32_1 = arith.constant 0 : i32
    return %c0_i32, %c0_i32_0 : i32, i32
  }
  func.func @transform_41(%arg0: i32) -> (i32, i32) {
    %c0_i32 = arith.constant 0 : i32
    %c0_i32_0 = arith.constant 0 : i32
    %c0_i32_1 = arith.constant 0 : i32
    return %c0_i32, %c0_i32_0 : i32, i32
  }
  func.func @transform_42(%arg0: i32) -> (i32, i32) {
    %c0_i32 = arith.constant 0 : i32
    %c0_i32_0 = arith.constant 0 : i32
    %c0_i32_1 = arith.constant 0 : i32
    return %c0_i32, %c0_i32_0 : i32, i32
  }
  func.func @transform_43(%arg0: i32) -> (i32, i32) {
    %c0_i32 = arith.constant 0 : i32
    %c0_i32_0 = arith.constant 0 : i32
    %c0_i32_1 = arith.constant 0 : i32
    return %c0_i32, %c0_i32_0 : i32, i32
  }
  func.func @transform_44(%arg0: i32) -> (i32, i32) {
    %c0_i32 = arith.constant 0 : i32
    %c0_i32_0 = arith.constant 0 : i32
    %c0_i32_1 = arith.constant 0 : i32
    return %c0_i32, %c0_i32_0 : i32, i32
  }
  func.func @transform_45(%arg0: i32) -> (i32, i32) {
    %c0_i32 = arith.constant 0 : i32
    %c0_i32_0 = arith.constant 0 : i32
    %c0_i32_1 = arith.constant 0 : i32
    return %c0_i32, %c0_i32_0 : i32, i32
  }
  func.func @transform_46(%arg0: i32) -> (i32, i32) {
    %c0_i32 = arith.constant 0 : i32
    %c0_i32_0 = arith.constant 0 : i32
    %c0_i32_1 = arith.constant 0 : i32
    return %c0_i32, %c0_i32_0 : i32, i32
  }
  func.func @transform_47(%arg0: i32) -> (i32, i32) {
    %c0_i32 = arith.constant 0 : i32
    %c0_i32_0 = arith.constant 0 : i32
    %c0_i32_1 = arith.constant 0 : i32
    return %c0_i32, %c0_i32_0 : i32, i32
  }
  func.func @transform_48(%arg0: i32) -> (i32, i32) {
    %c0_i32 = arith.constant 0 : i32
    %c0_i32_0 = arith.constant 0 : i32
    %c0_i32_1 = arith.constant 0 : i32
    return %c0_i32, %c0_i32_0 : i32, i32
  }
  func.func @transform_49(%arg0: i32) -> (i32, i32) {
    %c0_i32 = arith.constant 0 : i32
    %c0_i32_0 = arith.constant 0 : i32
    %c0_i32_1 = arith.constant 0 : i32
    return %c0_i32, %c0_i32_0 : i32, i32
  }
  func.func @transform_50(%arg0: i32) -> (i32, i32) {
    %c0_i32 = arith.constant 0 : i32
    %c0_i32_0 = arith.constant 0 : i32
    %c0_i32_1 = arith.constant 0 : i32
    return %c0_i32, %c0_i32_0 : i32, i32
  }
  func.func @transform_51(%arg0: i32) -> (i32, i32) {
    %c0_i32 = arith.constant 0 : i32
    %c0_i32_0 = arith.constant 0 : i32
    %c0_i32_1 = arith.constant 0 : i32
    return %c0_i32, %c0_i32_0 : i32, i32
  }
  func.func @transform_52(%arg0: i32) -> (i32, i32) {
    %c0_i32 = arith.constant 0 : i32
    %c0_i32_0 = arith.constant 0 : i32
    %c0_i32_1 = arith.constant 0 : i32
    return %c0_i32, %c0_i32_0 : i32, i32
  }
  func.func @transform_53(%arg0: i32) -> (i32, i32) {
    %c0_i32 = arith.constant 0 : i32
    %c0_i32_0 = arith.constant 0 : i32
    %c0_i32_1 = arith.constant 0 : i32
    return %c0_i32, %c0_i32_0 : i32, i32
  }
  func.func @transform_54(%arg0: i32) -> (i32, i32) {
    %c0_i32 = arith.constant 0 : i32
    %c0_i32_0 = arith.constant 0 : i32
    %c0_i32_1 = arith.constant 0 : i32
    return %c0_i32, %c0_i32_0 : i32, i32
  }
  func.func @transform_55(%arg0: i32) -> (i32, i32) {
    %c0_i32 = arith.constant 0 : i32
    %c0_i32_0 = arith.constant 0 : i32
    %c0_i32_1 = arith.constant 0 : i32
    return %c0_i32, %c0_i32_0 : i32, i32
  }
  func.func @transform_56(%arg0: i32) -> (i32, i32) {
    %c0_i32 = arith.constant 0 : i32
    %c0_i32_0 = arith.constant 0 : i32
    %c0_i32_1 = arith.constant 0 : i32
    return %c0_i32, %c0_i32_0 : i32, i32
  }
  func.func @transform_57(%arg0: i32) -> (i32, i32) {
    %c0_i32 = arith.constant 0 : i32
    %c0_i32_0 = arith.constant 0 : i32
    %c0_i32_1 = arith.constant 0 : i32
    return %c0_i32, %c0_i32_0 : i32, i32
  }
  func.func @transform_58(%arg0: i32) -> (i32, i32, i32) {
    %c0_i32 = arith.constant 0 : i32
    %c0_i32_0 = arith.constant 0 : i32
    %c0_i32_1 = arith.constant 0 : i32
    return %arg0, %c0_i32, %c0_i32_0 : i32, i32, i32
  }
  func.func @transform_59(%arg0: i32) -> (i32, i32, i32) {
    %c0_i32 = arith.constant 0 : i32
    %c0_i32_0 = arith.constant 0 : i32
    %c0_i32_1 = arith.constant 0 : i32
    return %arg0, %c0_i32, %c0_i32_0 : i32, i32, i32
  }
  func.func @transform_60(%arg0: i32) -> (i32, i32, i32) {
    %c0_i32 = arith.constant 0 : i32
    %c0_i32_0 = arith.constant 0 : i32
    %c0_i32_1 = arith.constant 0 : i32
    return %arg0, %c0_i32, %c0_i32_0 : i32, i32, i32
  }
}

</mosaic_0001>

<llo_original>
// kernel: tpu_custom_call.1
$region0: #{tpu_custom_call.1}
  #allocation0 [shape = 'u32[]', space=smem, size = 0x4, offset = 0x4, fixed_abs, tag = 'smem constant byte address 0x4 - core index']
  #allocation1 [shape = 'u32[144,128]{1,0:T(1,128)}', space=vmem, size = 0x12000, scoped, tag = 'internal scratch']
  #allocation2 [shape = 'bf16[8,256]{1,0:T(8,128)(2,1)}', space=vmem, size = 0x1000, scoped, tag = 'scratch operand']
  #allocation3 [shape = 'bf16[12,256]{1,0:T(8,128)(2,1)}', space=vmem, size = 0x2000, scoped, tag = 'scratch operand']
  #allocation4 [shape = 'bf16[2,256]{1,0:T(2,128)(2,1)}', space=vmem, size = 0x400, scoped, tag = 'scratch operand']
  %s0 = inlined_call_operand.smem [shape: u32[61], index: -1, kind: input, shape index: {}]
  %s1 = sld [smem:[%s0]]
  %s2 = scalar_lea.smem %s0, 1
  %s3 = sld [smem:[%s2]]
  %s4 = scalar_lea.smem %s0, 2
  %s5 = sld [smem:[%s4]]
  %s6 = scalar_lea.smem %s0, 3
  %s7 = sld [smem:[%s6]]
  %s8 = scalar_lea.smem %s0, 4
  %s9 = sld [smem:[%s8]]
  %s10 = scalar_lea.smem %s0, 5
  %s11 = sld [smem:[%s10]]
  %s12 = scalar_lea.smem %s0, 6
  %s13 = sld [smem:[%s12]]
  %s14 = scalar_lea.smem %s0, 7
  %s15 = sld [smem:[%s14]]
  %s16 = scalar_lea.smem %s0, 8
  %s17 = sld [smem:[%s16]]
  %s18 = scalar_lea.smem %s0, 9
  %s19 = sld [smem:[%s18]]
  %s20 = scalar_lea.smem %s0, 10
  %s21 = sld [smem:[%s20]]
  %s22 = scalar_lea.smem %s0, 11
  %s23 = sld [smem:[%s22]]
  %s24 = scalar_lea.smem %s0, 12
  %s25 = sld [smem:[%s24]]
  %s26 = scalar_lea.smem %s0, 13
  %s27 = sld [smem:[%s26]]
  %s28 = scalar_lea.smem %s0, 14
  %s29 = sld [smem:[%s28]]
  %s30 = scalar_lea.smem %s0, 15
  %s31 = sld [smem:[%s30]]
  %s32 = scalar_lea.smem %s0, 16
  %s33 = sld [smem:[%s32]]
  %s34 = scalar_lea.smem %s0, 17
  %s35 = sld [smem:[%s34]]
  %s36 = scalar_lea.smem %s0, 18
  %s37 = sld [smem:[%s36]]
  %s38 = scalar_lea.smem %s0, 19
  %s39 = sld [smem:[%s38]]
  %s40 = scalar_lea.smem %s0, 20
  %s41 = sld [smem:[%s40]]
  %s42 = scalar_lea.smem %s0, 21
  %s43 = sld [smem:[%s42]]
  %s44 = scalar_lea.smem %s0, 22
  %s45 = sld [smem:[%s44]]
  %s46 = scalar_lea.smem %s0, 23
  %s47 = sld [smem:[%s46]]
  %s48 = scalar_lea.smem %s0, 24
  %s49 = sld [smem:[%s48]]
  %s50 = scalar_lea.smem %s0, 25
  %s51 = sld [smem:[%s50]]
  %s52 = scalar_lea.smem %s0, 26
  %s53 = sld [smem:[%s52]]
  %s54 = scalar_lea.smem %s0, 27
  %s55 = sld [smem:[%s54]]
  %s56 = scalar_lea.smem %s0, 28
  %s57 = sld [smem:[%s56]]
  %s58 = scalar_lea.smem %s0, 29
  %s59 = sld [smem:[%s58]]
  %s60 = scalar_lea.smem %s0, 30
  %s61 = sld [smem:[%s60]]
  %s62 = scalar_lea.smem %s0, 31
  %s63 = sld [smem:[%s62]]
  %s64 = scalar_lea.smem %s0, 32
  %s65 = sld [smem:[%s64]]
  %s66 = scalar_lea.smem %s0, 33
  %s67 = sld [smem:[%s66]]
  %s68 = scalar_lea.smem %s0, 34
  %s69 = sld [smem:[%s68]]
  %s70 = scalar_lea.smem %s0, 35
  %s71 = sld [smem:[%s70]]
  %s72 = scalar_lea.smem %s0, 36
  %s73 = sld [smem:[%s72]]
  %s74 = scalar_lea.smem %s0, 37
  %s75 = sld [smem:[%s74]]
  %s76 = scalar_lea.smem %s0, 38
  %s77 = sld [smem:[%s76]]
  %s78 = scalar_lea.smem %s0, 39
  %s79 = sld [smem:[%s78]]
  %s80 = scalar_lea.smem %s0, 40
  %s81 = sld [smem:[%s80]]
  %s82 = scalar_lea.smem %s0, 41
  %s83 = sld [smem:[%s82]]
  %s84 = scalar_lea.smem %s0, 42
  %s85 = sld [smem:[%s84]]
  %s86 = scalar_lea.smem %s0, 43
  %s87 = sld [smem:[%s86]]
  %s88 = scalar_lea.smem %s0, 44
  %s89 = sld [smem:[%s88]]
  %s90 = scalar_lea.smem %s0, 45
  %s91 = sld [smem:[%s90]]
  %s92 = scalar_lea.smem %s0, 46
  %s93 = sld [smem:[%s92]]
  %s94 = scalar_lea.smem %s0, 47
  %s95 = sld [smem:[%s94]]
  %s96 = scalar_lea.smem %s0, 48
  %s97 = sld [smem:[%s96]]
  %s98 = scalar_lea.smem %s0, 49
  %s99 = sld [smem:[%s98]]
  %s100 = scalar_lea.smem %s0, 50
  %s101 = sld [smem:[%s100]]
  %s102 = scalar_lea.smem %s0, 51
  %s103 = sld [smem:[%s102]]
  %s104 = scalar_lea.smem %s0, 52
  %s105 = sld [smem:[%s104]]
  %s106 = scalar_lea.smem %s0, 53
  %s107 = sld [smem:[%s106]]
  %s108 = scalar_lea.smem %s0, 54
  %s109 = sld [smem:[%s108]]
  %s110 = scalar_lea.smem %s0, 55
  %s111 = sld [smem:[%s110]]
  %s112 = scalar_lea.smem %s0, 56
  %s113 = sld [smem:[%s112]]
  %s114 = scalar_lea.smem %s0, 57
  %s115 = sld [smem:[%s114]]
  %s116 = scalar_lea.smem %s0, 58
  %s117 = sld [smem:[%s116]]
  %s118 = scalar_lea.smem %s0, 59
  %s119 = sld [smem:[%s118]]
  %s120 = scalar_lea.smem %s0, 60
  %s121 = sld [smem:[%s120]]
  %122 = xla_tuple %s117, %s119, %s121
  %s123 = sld [smem:[#allocation0]]
  $region441: #{tpu_custom_call.1} parent=0
    _
  %s125 = ssub.s32 1, %s123
  %s126 = scalar_select 0, %s125, %s123
  $region1: #{tpu_custom_call.1} parent=0
    #allocation5 [shape = 'u8[4096]{0}', space=vmem, size = 0x1000, scoped, tag = 'input window, operand 0, single buffered']
    #allocation6 [shape = 's32[2]{0}', space=sflag, size = 0x8, scoped, tag = 'scoped memory for tpu_custom_call.1']
    #allocation7 [shape = 's32[2]{0}', space=sflag, size = 0x8, scoped, tag = 'scoped memory for tpu_custom_call.1']
    #allocation8 [shape = 'u8[8192]{0}', space=vmem, size = 0x2000, scoped, tag = 'input window, operand 1, single buffered']
    #allocation9 [shape = 's32[1]{0}', space=sflag, size = 0x4, scoped, tag = 'scoped memory for tpu_custom_call.1']
    #allocation10 [shape = 'u8[1024]{0}', space=vmem, size = 0x400, scoped, tag = 'input window, operand 2, single buffered']
    #allocation11 [shape = 'u8[2048]{0}', space=vmem, size = 0x800, scoped, tag = 'input window, operand 5, single buffered']
    #allocation12 [shape = 's32[1]{0}', space=sflag, size = 0x4, scoped, tag = 'scoped memory for tpu_custom_call.1']
    #allocation13 [shape = 'u8[512]{0}', space=vmem, size = 0x400, scoped, tag = 'input window, operand 7, single buffered']
    #allocation14 [shape = 'u8[512]{0}', space=vmem, size = 0x400, scoped, tag = 'input window, operand 9, single buffered']
    #allocation15 [shape = 's32[1]{0}', space=sflag, size = 0x4, scoped, tag = 'scoped memory for tpu_custom_call.1']
    #allocation16 [shape = 'u8[512]{0}', space=vmem, size = 0x400, scoped, tag = 'input window, operand 11, single buffered']
    #allocation17 [shape = 'u8[32768]{0}', space=vmem, size = 0x8000, scoped, tag = 'input window, operand 12, single buffered']
    #allocation18 [shape = 's32[1]{0}', space=sflag, size = 0x4, scoped, tag = 'scoped memory for tpu_custom_call.1']
    #allocation19 [shape = 'u8[512]{0}', space=vmem, size = 0x400, scoped, tag = 'input window, operand 13, single buffered']
    #allocation20 [shape = 'u8[512]{0}', space=vmem, size = 0x400, scoped, tag = 'input window, operand 14, single buffered']
    #allocation21 [shape = 's32[1]{0}', space=sflag, size = 0x4, scoped, tag = 'scoped memory for tpu_custom_call.1']
    #allocation22 [shape = 'u8[512]{0}', space=vmem, size = 0x400, scoped, tag = 'input window, operand 15, single buffered']
    #allocation23 [shape = 'u8[32768]{0}', space=vmem, size = 0x8000, scoped, tag = 'input window, operand 16, single buffered']
    #allocation24 [shape = 's32[1]{0}', space=sflag, size = 0x4, scoped, tag = 'scoped memory for tpu_custom_call.1']
    #allocation25 [shape = 'u8[512]{0}', space=vmem, size = 0x400, scoped, tag = 'input window, operand 17, single buffered']
    #allocation26 [shape = 'u8[32768]{0}', space=vmem, size = 0x8000, scoped, tag = 'input window, operand 18, single buffered']
    #allocation27 [shape = 's32[1]{0}', space=sflag, size = 0x4, scoped, tag = 'scoped memory for tpu_custom_call.1']
    #allocation28 [shape = 'u8[512]{0}', space=vmem, size = 0x400, scoped, tag = 'input window, operand 19, single buffered']
    #allocation29 [shape = 'u8[512]{0}', space=vmem, size = 0x400, scoped, tag = 'input window, operand 20, single buffered']
    #allocation30 [shape = 's32[1]{0}', space=sflag, size = 0x4, scoped, tag = 'scoped memory for tpu_custom_call.1']
    #allocation31 [shape = 'u8[512]{0}', space=vmem, size = 0x400, scoped, tag = 'input window, operand 21, single buffered']
    #allocation32 [shape = 'u8[32768]{0}', space=vmem, size = 0x8000, scoped, tag = 'input window, operand 22, single buffered']
    #allocation33 [shape = 's32[1]{0}', space=sflag, size = 0x4, scoped, tag = 'scoped memory for tpu_custom_call.1']
    #allocation34 [shape = 'u8[512]{0}', space=vmem, size = 0x400, scoped, tag = 'input window, operand 23, single buffered']
    #allocation35 [shape = 'u8[512]{0}', space=vmem, size = 0x400, scoped, tag = 'input window, operand 26, single buffered']
    #allocation36 [shape = 's32[1]{0}', space=sflag, size = 0x4, scoped, tag = 'scoped memory for tpu_custom_call.1']
    #allocation37 [shape = 'u8[512]{0}', space=vmem, size = 0x400, scoped, tag = 'input window, operand 27, single buffered']
    #allocation38 [shape = 'u8[262144]{0}', space=vmem, size = 0x40000, scoped, tag = 'input window, operand 28, single buffered']
    #allocation39 [shape = 's32[1]{0}', space=sflag, size = 0x4, scoped, tag = 'scoped memory for tpu_custom_call.1']
    #allocation40 [shape = 'u8[512]{0}', space=vmem, size = 0x400, scoped, tag = 'input window, operand 29, single buffered']
    #allocation41 [shape = 'u8[32768]{0}', space=vmem, size = 0x8000, scoped, tag = 'input window, operand 30, single buffered']
    #allocation42 [shape = 's32[1]{0}', space=sflag, size = 0x4, scoped, tag = 'scoped memory for tpu_custom_call.1']
    #allocation43 [shape = 'u8[512]{0}', space=vmem, size = 0x400, scoped, tag = 'input window, operand 31, single buffered']
    #allocation44 [shape = 'u8[512]{0}', space=vmem, size = 0x400, scoped, tag = 'input window, operand 32, single buffered']
    #allocation45 [shape = 's32[1]{0}', space=sflag, size = 0x4, scoped, tag = 'scoped memory for tpu_custom_call.1']
    #allocation46 [shape = 'u8[512]{0}', space=vmem, size = 0x400, scoped, tag = 'input window, operand 33, single buffered']
    #allocation47 [shape = 'u8[163840]{0}', space=vmem, size = 0x28000, scoped, tag = 'input window, operand 34, single buffered']
    #allocation48 [shape = 's32[1]{0}', space=sflag, size = 0x4, scoped, tag = 'scoped memory for tpu_custom_call.1']
    #allocation49 [shape = 'u8[512]{0}', space=vmem, size = 0x400, scoped, tag = 'input window, operand 35, single buffered']
    #allocation50 [shape = 'u8[32768]{0}', space=vmem, size = 0x8000, scoped, tag = 'input window, operand 36, single buffered']
    #allocation51 [shape = 's32[1]{0}', space=sflag, size = 0x4, scoped, tag = 'scoped memory for tpu_custom_call.1']
    #allocation52 [shape = 'u8[512]{0}', space=vmem, size = 0x400, scoped, tag = 'input window, operand 37, single buffered']
    #allocation53 [shape = 'u8[512]{0}', space=vmem, size = 0x400, scoped, tag = 'input window, operand 38, single buffered']
    #allocation54 [shape = 's32[1]{0}', space=sflag, size = 0x4, scoped, tag = 'scoped memory for tpu_custom_call.1']
    #allocation55 [shape = 'u8[512]{0}', space=vmem, size = 0x400, scoped, tag = 'input window, operand 39, single buffered']
    #allocation56 [shape = 'u8[131072]{0}', space=vmem, size = 0x20000, scoped, tag = 'input window, operand 40, single buffered']
    #allocation57 [shape = 's32[1]{0}', space=sflag, size = 0x4, scoped, tag = 'scoped memory for tpu_custom_call.1']
    #allocation58 [shape = 'u8[512]{0}', space=vmem, size = 0x400, scoped, tag = 'input window, operand 41, single buffered']
    #allocation59 [shape = 'u8[32768]{0}', space=vmem, size = 0x8000, scoped, tag = 'input window, operand 46, single buffered']
    #allocation60 [shape = 's32[1]{0}', space=sflag, size = 0x4, scoped, tag = 'scoped memory for tpu_custom_call.1']
    #allocation61 [shape = 'u8[32768]{0}', space=vmem, size = 0x8000, scoped, tag = 'input window, operand 48, single buffered']
    #allocation62 [shape = 'u8[32768]{0}', space=vmem, size = 0x8000, scoped, tag = 'input window, operand 52, single buffered']
    #allocation63 [shape = 's32[1]{0}', space=sflag, size = 0x4, scoped, tag = 'scoped memory for tpu_custom_call.1']
    #allocation64 [shape = 'u8[32768]{0}', space=vmem, size = 0x8000, scoped, tag = 'input window, operand 54, single buffered']
    #allocation65 [shape = 'u8[8192]{0}', space=vmem, size = 0x2000, scoped, tag = 'output window, operand 0']
    #allocation66 [shape = 'u8[2048]{0}', space=vmem, size = 0x800, scoped, tag = 'output window, operand 2']
    #allocation67 [shape = 's32[2]{0}', space=sflag, size = 0x8, scoped, tag = 'scoped memory for tpu_custom_call.1']
    %127 = vsyncpa [#allocation6], 0
    %128 = vsyncpa [#allocation9], 0
    %129 = vsyncpa [#allocation12], 0
    %130 = vsyncpa [#allocation15], 0
    %131 = vsyncpa [#allocation18], 0
    %132 = vsyncpa [#allocation21], 0
    %133 = vsyncpa [#allocation24], 0
    %134 = vsyncpa [#allocation27], 0
    %135 = vsyncpa [#allocation30], 0
    %136 = vsyncpa [#allocation33], 0
    %137 = vsyncpa [#allocation36], 0
    %138 = vsyncpa [#allocation39], 0
    %139 = vsyncpa [#allocation42], 0
    %140 = vsyncpa [#allocation45], 0
    %141 = vsyncpa [#allocation48], 0
    %142 = vsyncpa [#allocation51], 0
    %143 = vsyncpa [#allocation54], 0
    %144 = vsyncpa [#allocation57], 0
    %145 = vsyncpa [#allocation60], 0
    %146 = vsyncpa [#allocation63], 0
    %147 = vsyncpa [#allocation7], 0
    %s148 = scalar_lea.sflag [#allocation7], 1
    %149 = vsyncpa %s148, 0
    %150 = vsyncpa [#allocation67], 0
    %s151 = scalar_lea.sflag [#allocation67], 1
    %152 = vsyncpa %s151, 0
    loop: start=0, step=1, limit=4
    $region2: #{tpu_custom_call.1} parent=1 // loop_pre_header
      _
    $region3: #{tpu_custom_call.1} parent=1 // loop_header
      %s154 = sphi 0, %s158
      %p155 = scmp.ge.s32.totalorder %s154, 4
      %s162 = sphi 0, %s162
      %s164 = sphi 0, %s162
      %s165 = sphi 0, %s164
      %s179 = sphi 0, %s165
      %s183 = sphi 0, %s183
      %s185 = sphi 0, %s183
      %s186 = sphi 0, %s185
      %s200 = sphi 0, %s186
      %s204 = sphi 0, %s204
      %s206 = sphi 0, %s204
      %s207 = sphi 0, %s206
      %s221 = sphi 0, %s207
      %s225 = sphi 0, %s225
      %s227 = sphi 0, %s225
      %s228 = sphi 0, %s227
      %s242 = sphi 0, %s228
      %s246 = sphi 0, %s246
      %s248 = sphi 0, %s246
      %s249 = sphi 0, %s248
      %s263 = sphi 0, %s249
      %s267 = sphi 0, %s267
      %s269 = sphi 0, %s267
      %s270 = sphi 0, %s269
      %s284 = sphi 0, %s270
      %s288 = sphi 0, %s288
      %s290 = sphi 0, %s288
      %s291 = sphi 0, %s290
      %s305 = sphi 0, %s291
      %s309 = sphi 0, %s309
      %s311 = sphi 0, %s309
      %s312 = sphi 0, %s311
      %s326 = sphi 0, %s312
      %s330 = sphi 0, %s330
      %s332 = sphi 0, %s330
      %s333 = sphi 0, %s332
      %s347 = sphi 0, %s333
      %s351 = sphi 0, %s351
      %s353 = sphi 0, %s351
      %s354 = sphi 0, %s353
      %s368 = sphi 0, %s354
      %s372 = sphi 0, %s372
      %s374 = sphi 0, %s372
      %s375 = sphi 0, %s374
      %s389 = sphi 0, %s375
      %s393 = sphi 0, %s393
      %s395 = sphi 0, %s393
      %s396 = sphi 0, %s395
      %s410 = sphi 0, %s396
      %s414 = sphi 0, %s414
      %s416 = sphi 0, %s414
      %s417 = sphi 0, %s416
      %s431 = sphi 0, %s417
      %s435 = sphi 0, %s435
      %s437 = sphi 0, %s435
      %s438 = sphi 0, %s437
      %s452 = sphi 0, %s438
      %s456 = sphi 0, %s456
      %s458 = sphi 0, %s456
      %s459 = sphi 0, %s458
      %s473 = sphi 0, %s459
      %s477 = sphi 0, %s477
      %s479 = sphi 0, %s477
      %s480 = sphi 0, %s479
      %s494 = sphi 0, %s480
      %s498 = sphi 0, %s498
      %s500 = sphi 0, %s498
      %s501 = sphi 0, %s500
      %s515 = sphi 0, %s501
      %s519 = sphi 0, %s519
      %s521 = sphi 0, %s519
      %s522 = sphi 0, %s521
      %s536 = sphi 0, %s522
      %s540 = sphi 0, %s540
      %s542 = sphi 0, %s540
      %s543 = sphi 0, %s542
      %s557 = sphi 0, %s543
      %s561 = sphi 0, %s561
      %s563 = sphi 0, %s561
      %s564 = sphi 0, %s563
      %s578 = sphi 0, %s564
      %s582 = sphi 0, %s582
      %s584 = sphi 0, %s582
      %s585 = sphi 0, %s584
      %s599 = sphi 0, %s585
      %s603 = sphi 0, %s603
      %s605 = sphi 0, %s603
      %s606 = sphi 0, %s605
      %s620 = sphi 0, %s606
      %s624 = sphi 0, %s624
      %s626 = sphi 0, %s624
      %s627 = sphi 0, %s626
      %s641 = sphi 0, %s627
      %s645 = sphi 0, %s645
      %s647 = sphi 0, %s645
      %s648 = sphi 0, %s647
      %s662 = sphi 0, %s648
      %s666 = sphi 0, %s666
      %s668 = sphi 0, %s666
      %s669 = sphi 0, %s668
      %s683 = sphi 0, %s669
      %s687 = sphi 0, %s687
      %s689 = sphi 0, %s687
      %s690 = sphi 0, %s689
      %s704 = sphi 0, %s690
      %s708 = sphi 0, %s708
      %s710 = sphi 0, %s708
      %s711 = sphi 0, %s710
      %s725 = sphi 0, %s711
      %s729 = sphi 0, %s729
      %s731 = sphi 0, %s729
      %s732 = sphi 0, %s731
      %s746 = sphi 0, %s732
      %s750 = sphi 0, %s750
      %s752 = sphi 0, %s750
      %s753 = sphi 0, %s752
      %s767 = sphi 0, %s753
      %s771 = sphi 0, %s771
      %s773 = sphi 0, %s771
      %s774 = sphi 0, %s773
      %s788 = sphi 0, %s774
      %s792 = sphi 0, %s792
      %s794 = sphi 0, %s792
      %s795 = sphi 0, %s794
      %s809 = sphi 0, %s795
      %s813 = sphi 0, %s813
      %s815 = sphi 0, %s813
      %s816 = sphi 0, %s815
      %s830 = sphi 0, %s816
      %s834 = sphi 0, %s834
      %s836 = sphi 0, %s834
      %s837 = sphi 0, %s836
      %s851 = sphi 0, %s837
      %s855 = sphi 0, %s855
      %s857 = sphi 0, %s855
      %s858 = sphi 0, %s857
      %s872 = sphi 0, %s858
      %s876 = sphi 0, %s876
      %s878 = sphi 0, %s876
      %s879 = sphi 0, %s878
      %s893 = sphi 0, %s879
      %s897 = sphi 0, %s897
      %s899 = sphi 0, %s897
      %s900 = sphi 0, %s899
      %s914 = sphi 0, %s900
      %s918 = sphi 0, %s918
      %s920 = sphi 0, %s918
      %s921 = sphi 0, %s920
      %s935 = sphi 0, %s921
      %s939 = sphi 0, %s939
      %s941 = sphi 0, %s939
      %s942 = sphi 0, %s941
      %s956 = sphi 0, %s942
      %s960 = sphi 0, %s960
      %s962 = sphi 0, %s960
      %s963 = sphi 0, %s962
      %s977 = sphi 0, %s963
      %s981 = sphi 0, %s981
      %s983 = sphi 0, %s981
      %s984 = sphi 0, %s983
      %s998 = sphi 0, %s984
      %s1002 = sphi 0, %s1002
      %s1004 = sphi 0, %s1002
      %s1005 = sphi 0, %s1004
      %s1019 = sphi 0, %s1005
      %s1023 = sphi 0, %s1023
      %s1025 = sphi 0, %s1023
      %s1026 = sphi 0, %s1025
      %s1040 = sphi 0, %s1026
      %s1044 = sphi 0, %s1044
      %s1046 = sphi 0, %s1044
      %s1047 = sphi 0, %s1046
      %s1061 = sphi 0, %s1047
      %s1065 = sphi 0, %s1065
      %s1067 = sphi 0, %s1065
      %s1068 = sphi 0, %s1067
      %s1082 = sphi 0, %s1068
      %s1086 = sphi 0, %s1086
      %s1088 = sphi 0, %s1086
      %s1089 = sphi 0, %s1088
      %s1103 = sphi 0, %s1089
      %s1107 = sphi 0, %s1107
      %s1109 = sphi 0, %s1107
      %s1110 = sphi 0, %s1109
      %s1124 = sphi 0, %s1110
      %s1128 = sphi 0, %s1128
      %s1130 = sphi 0, %s1128
      %s1131 = sphi 0, %s1130
      %s1145 = sphi 0, %s1131
      %s1149 = sphi 0, %s1149
      %s1151 = sphi 0, %s1149
      %s1152 = sphi 0, %s1151
      %s1166 = sphi 0, %s1152
      %s1170 = sphi 0, %s1170
      %s1172 = sphi 0, %s1170
      %s1173 = sphi 0, %s1172
      %s1187 = sphi 0, %s1173
      %s1191 = sphi 0, %s1191
      %s1193 = sphi 0, %s1191
      %s1194 = sphi 0, %s1193
      %s1208 = sphi 0, %s1194
      %s1212 = sphi 0, %s1212
      %s1214 = sphi 0, %s1212
      %s1215 = sphi 0, %s1214
      %s1229 = sphi 0, %s1215
      %s1233 = sphi 0, %s1233
      %s1235 = sphi 0, %s1233
      %s1236 = sphi 0, %s1235
      %s1250 = sphi 0, %s1236
      %s1254 = sphi 0, %s1254
      %s1256 = sphi 0, %s1254
      %s1257 = sphi 0, %s1256
      %s1271 = sphi 0, %s1257
      %s1275 = sphi 0, %s1275
      %s1277 = sphi 0, %s1275
      %s1278 = sphi 0, %s1277
      %s1292 = sphi 0, %s1278
      %s1296 = sphi 0, %s1296
      %s1298 = sphi 0, %s1296
      %s1299 = sphi 0, %s1298
      %s1313 = sphi 0, %s1299
      %s1317 = sphi 0, %s1317
      %s1319 = sphi 0, %s1317
      %s1320 = sphi 0, %s1319
      %s1334 = sphi 0, %s1320
      %s1338 = sphi 0, %s1338
      %s1340 = sphi 0, %s1338
      %s1341 = sphi 0, %s1340
      %s1355 = sphi 0, %s1341
      %s1359 = sphi 0, %s1359
      %s1361 = sphi 0, %s1359
      %s1362 = sphi 0, %s1361
      %s1376 = sphi 0, %s1362
      %s1382 = sphi 0, %s1384
      %s1385 = sphi 0, %s1382
      %s1386 = sphi 0, %s1385
      %s1402 = sphi 0, %s1386
      %s1408 = sphi 0, %s1410
      %s1411 = sphi 0, %s1408
      %s1412 = sphi 0, %s1411
      %s1428 = sphi 0, %s1412
      %s1434 = sphi 0, %s1436
      %s1437 = sphi 0, %s1434
      %s1438 = sphi 0, %s1437
      %s1454 = sphi 0, %s1438
    $region4: #{tpu_custom_call.1} parent=1 // loop_header_branch
      %157 = sbr.rel (%p155) target = $region8
    $region5: #{tpu_custom_call.1} parent=1 // loop_body
      %s159 = ssub.s32 %s154, 1
      %s160 = ssub.s32 %s154, 2
      %s161 = sadd.s32 %s154, 1
      %s163 = sadd.s32 %s162, 1
      %p166 = scmp.eq.s32.totalorder %s154, 1
      %p167 = scmp.ne.s32.totalorder %s162, %s164
      %p168 = scmp.eq.s32.totalorder %s154, 0
      %p169 = por %p167, %p168
      %p170 = scmp.ne.s32.totalorder %s162, %s164
      %p171 = scmp.eq.s32.totalorder %s159, 1
      %p172 = por %p170, %p171
      %p173 = scmp.ne.s32.totalorder %s164, %s165
      %p174 = scmp.eq.s32.totalorder %s159, 0
      %p175 = por %p173, %p174
      %p176 = scmp.ne.s32.totalorder %s164, %s165
      %p177 = scmp.eq.s32.totalorder %s160, 1
      %p178 = por %p176, %p177
      %p180 = scmp.ne.s32.totalorder %s165, %s179
      %p181 = scmp.eq.s32.totalorder %s160, 0
      %p182 = por %p180, %p181
      %s184 = sadd.s32 %s183, 1
      %p187 = scmp.eq.s32.totalorder %s154, 1
      %p188 = scmp.ne.s32.totalorder %s183, %s185
      %p189 = scmp.eq.s32.totalorder %s154, 0
      %p190 = por %p188, %p189
      %p191 = scmp.ne.s32.totalorder %s183, %s185
      %p192 = scmp.eq.s32.totalorder %s159, 1
      %p193 = por %p191, %p192
      %p194 = scmp.ne.s32.totalorder %s185, %s186
      %p195 = scmp.eq.s32.totalorder %s159, 0
      %p196 = por %p194, %p195
      %p197 = scmp.ne.s32.totalorder %s185, %s186
      %p198 = scmp.eq.s32.totalorder %s160, 1
      %p199 = por %p197, %p198
      %p201 = scmp.ne.s32.totalorder %s186, %s200
      %p202 = scmp.eq.s32.totalorder %s160, 0
      %p203 = por %p201, %p202
      %s205 = sadd.s32 %s204, 1
      %p208 = scmp.eq.s32.totalorder %s154, 1
      %p209 = scmp.ne.s32.totalorder %s204, %s206
      %p210 = scmp.eq.s32.totalorder %s154, 0
      %p211 = por %p209, %p210
      %p212 = scmp.ne.s32.totalorder %s204, %s206
      %p213 = scmp.eq.s32.totalorder %s159, 1
      %p214 = por %p212, %p213
      %p215 = scmp.ne.s32.totalorder %s206, %s207
      %p216 = scmp.eq.s32.totalorder %s159, 0
      %p217 = por %p215, %p216
      %p218 = scmp.ne.s32.totalorder %s206, %s207
      %p219 = scmp.eq.s32.totalorder %s160, 1
      %p220 = por %p218, %p219
      %p222 = scmp.ne.s32.totalorder %s207, %s221
      %p223 = scmp.eq.s32.totalorder %s160, 0
      %p224 = por %p222, %p223
      %s226 = sadd.s32 %s225, 1
      %p229 = scmp.eq.s32.totalorder %s154, 1
      %p230 = scmp.ne.s32.totalorder %s225, %s227
      %p231 = scmp.eq.s32.totalorder %s154, 0
      %p232 = por %p230, %p231
      %p233 = scmp.ne.s32.totalorder %s225, %s227
      %p234 = scmp.eq.s32.totalorder %s159, 1
      %p235 = por %p233, %p234
      %p236 = scmp.ne.s32.totalorder %s227, %s228
      %p237 = scmp.eq.s32.totalorder %s159, 0
      %p238 = por %p236, %p237
      %p239 = scmp.ne.s32.totalorder %s227, %s228
      %p240 = scmp.eq.s32.totalorder %s160, 1
      %p241 = por %p239, %p240
      %p243 = scmp.ne.s32.totalorder %s228, %s242
      %p244 = scmp.eq.s32.totalorder %s160, 0
      %p245 = por %p243, %p244
      %s247 = sadd.s32 %s246, 1
      %p250 = scmp.eq.s32.totalorder %s154, 1
      %p251 = scmp.ne.s32.totalorder %s246, %s248
      %p252 = scmp.eq.s32.totalorder %s154, 0
      %p253 = por %p251, %p252
      %p254 = scmp.ne.s32.totalorder %s246, %s248
      %p255 = scmp.eq.s32.totalorder %s159, 1
      %p256 = por %p254, %p255
      %p257 = scmp.ne.s32.totalorder %s248, %s249
      %p258 = scmp.eq.s32.totalorder %s159, 0
      %p259 = por %p257, %p258
      %p260 = scmp.ne.s32.totalorder %s248, %s249
      %p261 = scmp.eq.s32.totalorder %s160, 1
      %p262 = por %p260, %p261
      %p264 = scmp.ne.s32.totalorder %s249, %s263
      %p265 = scmp.eq.s32.totalorder %s160, 0
      %p266 = por %p264, %p265
      %s268 = sadd.s32 %s267, 1
      %p271 = scmp.eq.s32.totalorder %s154, 1
      %p272 = scmp.ne.s32.totalorder %s267, %s269
      %p273 = scmp.eq.s32.totalorder %s154, 0
      %p274 = por %p272, %p273
      %p275 = scmp.ne.s32.totalorder %s267, %s269
      %p276 = scmp.eq.s32.totalorder %s159, 1
      %p277 = por %p275, %p276
      %p278 = scmp.ne.s32.totalorder %s269, %s270
      %p279 = scmp.eq.s32.totalorder %s159, 0
      %p280 = por %p278, %p279
      %p281 = scmp.ne.s32.totalorder %s269, %s270
      %p282 = scmp.eq.s32.totalorder %s160, 1
      %p283 = por %p281, %p282
      %p285 = scmp.ne.s32.totalorder %s270, %s284
      %p286 = scmp.eq.s32.totalorder %s160, 0
      %p287 = por %p285, %p286
      %s289 = sadd.s32 %s288, 1
      %p292 = scmp.eq.s32.totalorder %s154, 1
      %p293 = scmp.ne.s32.totalorder %s288, %s290
      %p294 = scmp.eq.s32.totalorder %s154, 0
      %p295 = por %p293, %p294
      %p296 = scmp.ne.s32.totalorder %s288, %s290
      %p297 = scmp.eq.s32.totalorder %s159, 1
      %p298 = por %p296, %p297
      %p299 = scmp.ne.s32.totalorder %s290, %s291
      %p300 = scmp.eq.s32.totalorder %s159, 0
      %p301 = por %p299, %p300
      %p302 = scmp.ne.s32.totalorder %s290, %s291
      %p303 = scmp.eq.s32.totalorder %s160, 1
      %p304 = por %p302, %p303
      %p306 = scmp.ne.s32.totalorder %s291, %s305
      %p307 = scmp.eq.s32.totalorder %s160, 0
      %p308 = por %p306, %p307
      %s310 = sadd.s32 %s309, 1
      %p313 = scmp.eq.s32.totalorder %s154, 1
      %p314 = scmp.ne.s32.totalorder %s309, %s311
      %p315 = scmp.eq.s32.totalorder %s154, 0
      %p316 = por %p314, %p315
      %p317 = scmp.ne.s32.totalorder %s309, %s311
      %p318 = scmp.eq.s32.totalorder %s159, 1
      %p319 = por %p317, %p318
      %p320 = scmp.ne.s32.totalorder %s311, %s312
      %p321 = scmp.eq.s32.totalorder %s159, 0
      %p322 = por %p320, %p321
      %p323 = scmp.ne.s32.totalorder %s311, %s312
      %p324 = scmp.eq.s32.totalorder %s160, 1
      %p325 = por %p323, %p324
      %p327 = scmp.ne.s32.totalorder %s312, %s326
      %p328 = scmp.eq.s32.totalorder %s160, 0
      %p329 = por %p327, %p328
      %s331 = sadd.s32 %s330, 1
      %p334 = scmp.eq.s32.totalorder %s154, 1
      %p335 = scmp.ne.s32.totalorder %s330, %s332
      %p336 = scmp.eq.s32.totalorder %s154, 0
      %p337 = por %p335, %p336
      %p338 = scmp.ne.s32.totalorder %s330, %s332
      %p339 = scmp.eq.s32.totalorder %s159, 1
      %p340 = por %p338, %p339
      %p341 = scmp.ne.s32.totalorder %s332, %s333
      %p342 = scmp.eq.s32.totalorder %s159, 0
      %p343 = por %p341, %p342
      %p344 = scmp.ne.s32.totalorder %s332, %s333
      %p345 = scmp.eq.s32.totalorder %s160, 1
      %p346 = por %p344, %p345
      %p348 = scmp.ne.s32.totalorder %s333, %s347
      %p349 = scmp.eq.s32.totalorder %s160, 0
      %p350 = por %p348, %p349
      %s352 = sadd.s32 %s351, 1
      %p355 = scmp.eq.s32.totalorder %s154, 1
      %p356 = scmp.ne.s32.totalorder %s351, %s353
      %p357 = scmp.eq.s32.totalorder %s154, 0
      %p358 = por %p356, %p357
      %p359 = scmp.ne.s32.totalorder %s351, %s353
      %p360 = scmp.eq.s32.totalorder %s159, 1
      %p361 = por %p359, %p360
      %p362 = scmp.ne.s32.totalorder %s353, %s354
      %p363 = scmp.eq.s32.totalorder %s159, 0
      %p364 = por %p362, %p363
      %p365 = scmp.ne.s32.totalorder %s353, %s354
      %p366 = scmp.eq.s32.totalorder %s160, 1
      %p367 = por %p365, %p366
      %p369 = scmp.ne.s32.totalorder %s354, %s368
      %p370 = scmp.eq.s32.totalorder %s160, 0
      %p371 = por %p369, %p370
      %s373 = sadd.s32 %s372, 1
      %p376 = scmp.eq.s32.totalorder %s154, 1
      %p377 = scmp.ne.s32.totalorder %s372, %s374
      %p378 = scmp.eq.s32.totalorder %s154, 0
      %p379 = por %p377, %p378
      %p380 = scmp.ne.s32.totalorder %s372, %s374
      %p381 = scmp.eq.s32.totalorder %s159, 1
      %p382 = por %p380, %p381
      %p383 = scmp.ne.s32.totalorder %s374, %s375
      %p384 = scmp.eq.s32.totalorder %s159, 0
      %p385 = por %p383, %p384
      %p386 = scmp.ne.s32.totalorder %s374, %s375
      %p387 = scmp.eq.s32.totalorder %s160, 1
      %p388 = por %p386, %p387
      %p390 = scmp.ne.s32.totalorder %s375, %s389
      %p391 = scmp.eq.s32.totalorder %s160, 0
      %p392 = por %p390, %p391
      %s394 = sadd.s32 %s393, 1
      %p397 = scmp.eq.s32.totalorder %s154, 1
      %p398 = scmp.ne.s32.totalorder %s393, %s395
      %p399 = scmp.eq.s32.totalorder %s154, 0
      %p400 = por %p398, %p399
      %p401 = scmp.ne.s32.totalorder %s393, %s395
      %p402 = scmp.eq.s32.totalorder %s159, 1
      %p403 = por %p401, %p402
      %p404 = scmp.ne.s32.totalorder %s395, %s396
      %p405 = scmp.eq.s32.totalorder %s159, 0
      %p406 = por %p404, %p405
      %p407 = scmp.ne.s32.totalorder %s395, %s396
      %p408 = scmp.eq.s32.totalorder %s160, 1
      %p409 = por %p407, %p408
      %p411 = scmp.ne.s32.totalorder %s396, %s410
      %p412 = scmp.eq.s32.totalorder %s160, 0
      %p413 = por %p411, %p412
      %s415 = sadd.s32 %s414, 1
      %p418 = scmp.eq.s32.totalorder %s154, 1
      %p419 = scmp.ne.s32.totalorder %s414, %s416
      %p420 = scmp.eq.s32.totalorder %s154, 0
      %p421 = por %p419, %p420
      %p422 = scmp.ne.s32.totalorder %s414, %s416
      %p423 = scmp.eq.s32.totalorder %s159, 1
      %p424 = por %p422, %p423
      %p425 = scmp.ne.s32.totalorder %s416, %s417
      %p426 = scmp.eq.s32.totalorder %s159, 0
      %p427 = por %p425, %p426
      %p428 = scmp.ne.s32.totalorder %s416, %s417
      %p429 = scmp.eq.s32.totalorder %s160, 1
      %p430 = por %p428, %p429
      %p432 = scmp.ne.s32.totalorder %s417, %s431
      %p433 = scmp.eq.s32.totalorder %s160, 0
      %p434 = por %p432, %p433
      %s436 = sadd.s32 %s435, 1
      %p439 = scmp.eq.s32.totalorder %s154, 1
      %p440 = scmp.ne.s32.totalorder %s435, %s437
      %p441 = scmp.eq.s32.totalorder %s154, 0
      %p442 = por %p440, %p441
      %p443 = scmp.ne.s32.totalorder %s435, %s437
      %p444 = scmp.eq.s32.totalorder %s159, 1
      %p445 = por %p443, %p444
      %p446 = scmp.ne.s32.totalorder %s437, %s438
      %p447 = scmp.eq.s32.totalorder %s159, 0
      %p448 = por %p446, %p447
      %p449 = scmp.ne.s32.totalorder %s437, %s438
      %p450 = scmp.eq.s32.totalorder %s160, 1
      %p451 = por %p449, %p450
      %p453 = scmp.ne.s32.totalorder %s438, %s452
      %p454 = scmp.eq.s32.totalorder %s160, 0
      %p455 = por %p453, %p454
      %s457 = sadd.s32 %s456, 1
      %p460 = scmp.eq.s32.totalorder %s154, 1
      %p461 = scmp.ne.s32.totalorder %s456, %s458
      %p462 = scmp.eq.s32.totalorder %s154, 0
      %p463 = por %p461, %p462
      %p464 = scmp.ne.s32.totalorder %s456, %s458
      %p465 = scmp.eq.s32.totalorder %s159, 1
      %p466 = por %p464, %p465
      %p467 = scmp.ne.s32.totalorder %s458, %s459
      %p468 = scmp.eq.s32.totalorder %s159, 0
      %p469 = por %p467, %p468
      %p470 = scmp.ne.s32.totalorder %s458, %s459
      %p471 = scmp.eq.s32.totalorder %s160, 1
      %p472 = por %p470, %p471
      %p474 = scmp.ne.s32.totalorder %s459, %s473
      %p475 = scmp.eq.s32.totalorder %s160, 0
      %p476 = por %p474, %p475
      %s478 = sadd.s32 %s477, 1
      %p481 = scmp.eq.s32.totalorder %s154, 1
      %p482 = scmp.ne.s32.totalorder %s477, %s479
      %p483 = scmp.eq.s32.totalorder %s154, 0
      %p484 = por %p482, %p483
      %p485 = scmp.ne.s32.totalorder %s477, %s479
      %p486 = scmp.eq.s32.totalorder %s159, 1
      %p487 = por %p485, %p486
      %p488 = scmp.ne.s32.totalorder %s479, %s480
      %p489 = scmp.eq.s32.totalorder %s159, 0
      %p490 = por %p488, %p489
      %p491 = scmp.ne.s32.totalorder %s479, %s480
      %p492 = scmp.eq.s32.totalorder %s160, 1
      %p493 = por %p491, %p492
      %p495 = scmp.ne.s32.totalorder %s480, %s494
      %p496 = scmp.eq.s32.totalorder %s160, 0
      %p497 = por %p495, %p496
      %s499 = sadd.s32 %s498, 1
      %p502 = scmp.eq.s32.totalorder %s154, 1
      %p503 = scmp.ne.s32.totalorder %s498, %s500
      %p504 = scmp.eq.s32.totalorder %s154, 0
      %p505 = por %p503, %p504
      %p506 = scmp.ne.s32.totalorder %s498, %s500
      %p507 = scmp.eq.s32.totalorder %s159, 1
      %p508 = por %p506, %p507
      %p509 = scmp.ne.s32.totalorder %s500, %s501
      %p510 = scmp.eq.s32.totalorder %s159, 0
      %p511 = por %p509, %p510
      %p512 = scmp.ne.s32.totalorder %s500, %s501
      %p513 = scmp.eq.s32.totalorder %s160, 1
      %p514 = por %p512, %p513
      %p516 = scmp.ne.s32.totalorder %s501, %s515
      %p517 = scmp.eq.s32.totalorder %s160, 0
      %p518 = por %p516, %p517
      %s520 = sadd.s32 %s519, 1
      %p523 = scmp.eq.s32.totalorder %s154, 1
      %p524 = scmp.ne.s32.totalorder %s519, %s521
      %p525 = scmp.eq.s32.totalorder %s154, 0
      %p526 = por %p524, %p525
      %p527 = scmp.ne.s32.totalorder %s519, %s521
      %p528 = scmp.eq.s32.totalorder %s159, 1
      %p529 = por %p527, %p528
      %p530 = scmp.ne.s32.totalorder %s521, %s522
      %p531 = scmp.eq.s32.totalorder %s159, 0
      %p532 = por %p530, %p531
      %p533 = scmp.ne.s32.totalorder %s521, %s522
      %p534 = scmp.eq.s32.totalorder %s160, 1
      %p535 = por %p533, %p534
      %p537 = scmp.ne.s32.totalorder %s522, %s536
      %p538 = scmp.eq.s32.totalorder %s160, 0
      %p539 = por %p537, %p538
      %s541 = sadd.s32 %s540, 1
      %p544 = scmp.eq.s32.totalorder %s154, 1
      %p545 = scmp.ne.s32.totalorder %s540, %s542
      %p546 = scmp.eq.s32.totalorder %s154, 0
      %p547 = por %p545, %p546
      %p548 = scmp.ne.s32.totalorder %s540, %s542
      %p549 = scmp.eq.s32.totalorder %s159, 1
      %p550 = por %p548, %p549
      %p551 = scmp.ne.s32.totalorder %s542, %s543
      %p552 = scmp.eq.s32.totalorder %s159, 0
      %p553 = por %p551, %p552
      %p554 = scmp.ne.s32.totalorder %s542, %s543
      %p555 = scmp.eq.s32.totalorder %s160, 1
      %p556 = por %p554, %p555
      %p558 = scmp.ne.s32.totalorder %s543, %s557
      %p559 = scmp.eq.s32.totalorder %s160, 0
      %p560 = por %p558, %p559
      %s562 = sadd.s32 %s561, 1
      %p565 = scmp.eq.s32.totalorder %s154, 1
      %p566 = scmp.ne.s32.totalorder %s561, %s563
      %p567 = scmp.eq.s32.totalorder %s154, 0
      %p568 = por %p566, %p567
      %p569 = scmp.ne.s32.totalorder %s561, %s563
      %p570 = scmp.eq.s32.totalorder %s159, 1
      %p571 = por %p569, %p570
      %p572 = scmp.ne.s32.totalorder %s563, %s564
      %p573 = scmp.eq.s32.totalorder %s159, 0
      %p574 = por %p572, %p573
      %p575 = scmp.ne.s32.totalorder %s563, %s564
      %p576 = scmp.eq.s32.totalorder %s160, 1
      %p577 = por %p575, %p576
      %p579 = scmp.ne.s32.totalorder %s564, %s578
      %p580 = scmp.eq.s32.totalorder %s160, 0
      %p581 = por %p579, %p580
      %s583 = sadd.s32 %s582, 1
      %p586 = scmp.eq.s32.totalorder %s154, 1
      %p587 = scmp.ne.s32.totalorder %s582, %s584
      %p588 = scmp.eq.s32.totalorder %s154, 0
      %p589 = por %p587, %p588
      %p590 = scmp.ne.s32.totalorder %s582, %s584
      %p591 = scmp.eq.s32.totalorder %s159, 1
      %p592 = por %p590, %p591
      %p593 = scmp.ne.s32.totalorder %s584, %s585
      %p594 = scmp.eq.s32.totalorder %s159, 0
      %p595 = por %p593, %p594
      %p596 = scmp.ne.s32.totalorder %s584, %s585
      %p597 = scmp.eq.s32.totalorder %s160, 1
      %p598 = por %p596, %p597
      %p600 = scmp.ne.s32.totalorder %s585, %s599
      %p601 = scmp.eq.s32.totalorder %s160, 0
      %p602 = por %p600, %p601
      %s604 = sadd.s32 %s603, 1
      %p607 = scmp.eq.s32.totalorder %s154, 1
      %p608 = scmp.ne.s32.totalorder %s603, %s605
      %p609 = scmp.eq.s32.totalorder %s154, 0
      %p610 = por %p608, %p609
      %p611 = scmp.ne.s32.totalorder %s603, %s605
      %p612 = scmp.eq.s32.totalorder %s159, 1
      %p613 = por %p611, %p612
      %p614 = scmp.ne.s32.totalorder %s605, %s606
      %p615 = scmp.eq.s32.totalorder %s159, 0
      %p616 = por %p614, %p615
      %p617 = scmp.ne.s32.totalorder %s605, %s606
      %p618 = scmp.eq.s32.totalorder %s160, 1
      %p619 = por %p617, %p618
      %p621 = scmp.ne.s32.totalorder %s606, %s620
      %p622 = scmp.eq.s32.totalorder %s160, 0
      %p623 = por %p621, %p622
      %s625 = sadd.s32 %s624, 1
      %p628 = scmp.eq.s32.totalorder %s154, 1
      %p629 = scmp.ne.s32.totalorder %s624, %s626
      %p630 = scmp.eq.s32.totalorder %s154, 0
      %p631 = por %p629, %p630
      %p632 = scmp.ne.s32.totalorder %s624, %s626
      %p633 = scmp.eq.s32.totalorder %s159, 1
      %p634 = por %p632, %p633
      %p635 = scmp.ne.s32.totalorder %s626, %s627
      %p636 = scmp.eq.s32.totalorder %s159, 0
      %p637 = por %p635, %p636
      %p638 = scmp.ne.s32.totalorder %s626, %s627
      %p639 = scmp.eq.s32.totalorder %s160, 1
      %p640 = por %p638, %p639
      %p642 = scmp.ne.s32.totalorder %s627, %s641
      %p643 = scmp.eq.s32.totalorder %s160, 0
      %p644 = por %p642, %p643
      %s646 = sadd.s32 %s645, 1
      %p649 = scmp.eq.s32.totalorder %s154, 1
      %p650 = scmp.ne.s32.totalorder %s645, %s647
      %p651 = scmp.eq.s32.totalorder %s154, 0
      %p652 = por %p650, %p651
      %p653 = scmp.ne.s32.totalorder %s645, %s647
      %p654 = scmp.eq.s32.totalorder %s159, 1
      %p655 = por %p653, %p654
      %p656 = scmp.ne.s32.totalorder %s647, %s648
      %p657 = scmp.eq.s32.totalorder %s159, 0
      %p658 = por %p656, %p657
      %p659 = scmp.ne.s32.totalorder %s647, %s648
      %p660 = scmp.eq.s32.totalorder %s160, 1
      %p661 = por %p659, %p660
      %p663 = scmp.ne.s32.totalorder %s648, %s662
      %p664 = scmp.eq.s32.totalorder %s160, 0
      %p665 = por %p663, %p664
      %s667 = sadd.s32 %s666, 1
      %p670 = scmp.eq.s32.totalorder %s154, 1
      %p671 = scmp.ne.s32.totalorder %s666, %s668
      %p672 = scmp.eq.s32.totalorder %s154, 0
      %p673 = por %p671, %p672
      %p674 = scmp.ne.s32.totalorder %s666, %s668
      %p675 = scmp.eq.s32.totalorder %s159, 1
      %p676 = por %p674, %p675
      %p677 = scmp.ne.s32.totalorder %s668, %s669
      %p678 = scmp.eq.s32.totalorder %s159, 0
      %p679 = por %p677, %p678
      %p680 = scmp.ne.s32.totalorder %s668, %s669
      %p681 = scmp.eq.s32.totalorder %s160, 1
      %p682 = por %p680, %p681
      %p684 = scmp.ne.s32.totalorder %s669, %s683
      %p685 = scmp.eq.s32.totalorder %s160, 0
      %p686 = por %p684, %p685
      %s688 = sadd.s32 %s687, 1
      %p691 = scmp.eq.s32.totalorder %s154, 1
      %p692 = scmp.ne.s32.totalorder %s687, %s689
      %p693 = scmp.eq.s32.totalorder %s154, 0
      %p694 = por %p692, %p693
      %p695 = scmp.ne.s32.totalorder %s687, %s689
      %p696 = scmp.eq.s32.totalorder %s159, 1
      %p697 = por %p695, %p696
      %p698 = scmp.ne.s32.totalorder %s689, %s690
      %p699 = scmp.eq.s32.totalorder %s159, 0
      %p700 = por %p698, %p699
      %p701 = scmp.ne.s32.totalorder %s689, %s690
      %p702 = scmp.eq.s32.totalorder %s160, 1
      %p703 = por %p701, %p702
      %p705 = scmp.ne.s32.totalorder %s690, %s704
      %p706 = scmp.eq.s32.totalorder %s160, 0
      %p707 = por %p705, %p706
      %s709 = sadd.s32 %s708, 1
      %p712 = scmp.eq.s32.totalorder %s154, 1
      %p713 = scmp.ne.s32.totalorder %s708, %s710
      %p714 = scmp.eq.s32.totalorder %s154, 0
      %p715 = por %p713, %p714
      %p716 = scmp.ne.s32.totalorder %s708, %s710
      %p717 = scmp.eq.s32.totalorder %s159, 1
      %p718 = por %p716, %p717
      %p719 = scmp.ne.s32.totalorder %s710, %s711
      %p720 = scmp.eq.s32.totalorder %s159, 0
      %p721 = por %p719, %p720
      %p722 = scmp.ne.s32.totalorder %s710, %s711
      %p723 = scmp.eq.s32.totalorder %s160, 1
      %p724 = por %p722, %p723
      %p726 = scmp.ne.s32.totalorder %s711, %s725
      %p727 = scmp.eq.s32.totalorder %s160, 0
      %p728 = por %p726, %p727
      %s730 = sadd.s32 %s729, 1
      %p733 = scmp.eq.s32.totalorder %s154, 1
      %p734 = scmp.ne.s32.totalorder %s729, %s731
      %p735 = scmp.eq.s32.totalorder %s154, 0
      %p736 = por %p734, %p735
      %p737 = scmp.ne.s32.totalorder %s729, %s731
      %p738 = scmp.eq.s32.totalorder %s159, 1
      %p739 = por %p737, %p738
      %p740 = scmp.ne.s32.totalorder %s731, %s732
      %p741 = scmp.eq.s32.totalorder %s159, 0
      %p742 = por %p740, %p741
      %p743 = scmp.ne.s32.totalorder %s731, %s732
      %p744 = scmp.eq.s32.totalorder %s160, 1
      %p745 = por %p743, %p744
      %p747 = scmp.ne.s32.totalorder %s732, %s746
      %p748 = scmp.eq.s32.totalorder %s160, 0
      %p749 = por %p747, %p748
      %s751 = sadd.s32 %s750, 1
      %p754 = scmp.eq.s32.totalorder %s154, 1
      %p755 = scmp.ne.s32.totalorder %s750, %s752
      %p756 = scmp.eq.s32.totalorder %s154, 0
      %p757 = por %p755, %p756
      %p758 = scmp.ne.s32.totalorder %s750, %s752
      %p759 = scmp.eq.s32.totalorder %s159, 1
      %p760 = por %p758, %p759
      %p761 = scmp.ne.s32.totalorder %s752, %s753
      %p762 = scmp.eq.s32.totalorder %s159, 0
      %p763 = por %p761, %p762
      %p764 = scmp.ne.s32.totalorder %s752, %s753
      %p765 = scmp.eq.s32.totalorder %s160, 1
      %p766 = por %p764, %p765
      %p768 = scmp.ne.s32.totalorder %s753, %s767
      %p769 = scmp.eq.s32.totalorder %s160, 0
      %p770 = por %p768, %p769
      %s772 = sadd.s32 %s771, 1
      %p775 = scmp.eq.s32.totalorder %s154, 1
      %p776 = scmp.ne.s32.totalorder %s771, %s773
      %p777 = scmp.eq.s32.totalorder %s154, 0
      %p778 = por %p776, %p777
      %p779 = scmp.ne.s32.totalorder %s771, %s773
      %p780 = scmp.eq.s32.totalorder %s159, 1
      %p781 = por %p779, %p780
      %p782 = scmp.ne.s32.totalorder %s773, %s774
      %p783 = scmp.eq.s32.totalorder %s159, 0
      %p784 = por %p782, %p783
      %p785 = scmp.ne.s32.totalorder %s773, %s774
      %p786 = scmp.eq.s32.totalorder %s160, 1
      %p787 = por %p785, %p786
      %p789 = scmp.ne.s32.totalorder %s774, %s788
      %p790 = scmp.eq.s32.totalorder %s160, 0
      %p791 = por %p789, %p790
      %s793 = sadd.s32 %s792, 1
      %p796 = scmp.eq.s32.totalorder %s154, 1
      %p797 = scmp.ne.s32.totalorder %s792, %s794
      %p798 = scmp.eq.s32.totalorder %s154, 0
      %p799 = por %p797, %p798
      %p800 = scmp.ne.s32.totalorder %s792, %s794
      %p801 = scmp.eq.s32.totalorder %s159, 1
      %p802 = por %p800, %p801
      %p803 = scmp.ne.s32.totalorder %s794, %s795
      %p804 = scmp.eq.s32.totalorder %s159, 0
      %p805 = por %p803, %p804
      %p806 = scmp.ne.s32.totalorder %s794, %s795
      %p807 = scmp.eq.s32.totalorder %s160, 1
      %p808 = por %p806, %p807
      %p810 = scmp.ne.s32.totalorder %s795, %s809
      %p811 = scmp.eq.s32.totalorder %s160, 0
      %p812 = por %p810, %p811
      %s814 = sadd.s32 %s813, 1
      %p817 = scmp.eq.s32.totalorder %s154, 1
      %p818 = scmp.ne.s32.totalorder %s813, %s815
      %p819 = scmp.eq.s32.totalorder %s154, 0
      %p820 = por %p818, %p819
      %p821 = scmp.ne.s32.totalorder %s813, %s815
      %p822 = scmp.eq.s32.totalorder %s159, 1
      %p823 = por %p821, %p822
      %p824 = scmp.ne.s32.totalorder %s815, %s816
      %p825 = scmp.eq.s32.totalorder %s159, 0
      %p826 = por %p824, %p825
      %p827 = scmp.ne.s32.totalorder %s815, %s816
      %p828 = scmp.eq.s32.totalorder %s160, 1
      %p829 = por %p827, %p828
      %p831 = scmp.ne.s32.totalorder %s816, %s830
      %p832 = scmp.eq.s32.totalorder %s160, 0
      %p833 = por %p831, %p832
      %s835 = sadd.s32 %s834, 1
      %p838 = scmp.eq.s32.totalorder %s154, 1
      %p839 = scmp.ne.s32.totalorder %s834, %s836
      %p840 = scmp.eq.s32.totalorder %s154, 0
      %p841 = por %p839, %p840
      %p842 = scmp.ne.s32.totalorder %s834, %s836
      %p843 = scmp.eq.s32.totalorder %s159, 1
      %p844 = por %p842, %p843
      %p845 = scmp.ne.s32.totalorder %s836, %s837
      %p846 = scmp.eq.s32.totalorder %s159, 0
      %p847 = por %p845, %p846
      %p848 = scmp.ne.s32.totalorder %s836, %s837
      %p849 = scmp.eq.s32.totalorder %s160, 1
      %p850 = por %p848, %p849
      %p852 = scmp.ne.s32.totalorder %s837, %s851
      %p853 = scmp.eq.s32.totalorder %s160, 0
      %p854 = por %p852, %p853
      %s856 = sadd.s32 %s855, 1
      %p859 = scmp.eq.s32.totalorder %s154, 1
      %p860 = scmp.ne.s32.totalorder %s855, %s857
      %p861 = scmp.eq.s32.totalorder %s154, 0
      %p862 = por %p860, %p861
      %p863 = scmp.ne.s32.totalorder %s855, %s857
      %p864 = scmp.eq.s32.totalorder %s159, 1
      %p865 = por %p863, %p864
      %p866 = scmp.ne.s32.totalorder %s857, %s858
      %p867 = scmp.eq.s32.totalorder %s159, 0
      %p868 = por %p866, %p867
      %p869 = scmp.ne.s32.totalorder %s857, %s858
      %p870 = scmp.eq.s32.totalorder %s160, 1
      %p871 = por %p869, %p870
      %p873 = scmp.ne.s32.totalorder %s858, %s872
      %p874 = scmp.eq.s32.totalorder %s160, 0
      %p875 = por %p873, %p874
      %s877 = sadd.s32 %s876, 1
      %p880 = scmp.eq.s32.totalorder %s154, 1
      %p881 = scmp.ne.s32.totalorder %s876, %s878
      %p882 = scmp.eq.s32.totalorder %s154, 0
      %p883 = por %p881, %p882
      %p884 = scmp.ne.s32.totalorder %s876, %s878
      %p885 = scmp.eq.s32.totalorder %s159, 1
      %p886 = por %p884, %p885
      %p887 = scmp.ne.s32.totalorder %s878, %s879
      %p888 = scmp.eq.s32.totalorder %s159, 0
      %p889 = por %p887, %p888
      %p890 = scmp.ne.s32.totalorder %s878, %s879
      %p891 = scmp.eq.s32.totalorder %s160, 1
      %p892 = por %p890, %p891
      %p894 = scmp.ne.s32.totalorder %s879, %s893
      %p895 = scmp.eq.s32.totalorder %s160, 0
      %p896 = por %p894, %p895
      %s898 = sadd.s32 %s897, 1
      %p901 = scmp.eq.s32.totalorder %s154, 1
      %p902 = scmp.ne.s32.totalorder %s897, %s899
      %p903 = scmp.eq.s32.totalorder %s154, 0
      %p904 = por %p902, %p903
      %p905 = scmp.ne.s32.totalorder %s897, %s899
      %p906 = scmp.eq.s32.totalorder %s159, 1
      %p907 = por %p905, %p906
      %p908 = scmp.ne.s32.totalorder %s899, %s900
      %p909 = scmp.eq.s32.totalorder %s159, 0
      %p910 = por %p908, %p909
      %p911 = scmp.ne.s32.totalorder %s899, %s900
      %p912 = scmp.eq.s32.totalorder %s160, 1
      %p913 = por %p911, %p912
      %p915 = scmp.ne.s32.totalorder %s900, %s914
      %p916 = scmp.eq.s32.totalorder %s160, 0
      %p917 = por %p915, %p916
      %s919 = sadd.s32 %s918, 1
      %p922 = scmp.eq.s32.totalorder %s154, 1
      %p923 = scmp.ne.s32.totalorder %s918, %s920
      %p924 = scmp.eq.s32.totalorder %s154, 0
      %p925 = por %p923, %p924
      %p926 = scmp.ne.s32.totalorder %s918, %s920
      %p927 = scmp.eq.s32.totalorder %s159, 1
      %p928 = por %p926, %p927
      %p929 = scmp.ne.s32.totalorder %s920, %s921
      %p930 = scmp.eq.s32.totalorder %s159, 0
      %p931 = por %p929, %p930
      %p932 = scmp.ne.s32.totalorder %s920, %s921
      %p933 = scmp.eq.s32.totalorder %s160, 1
      %p934 = por %p932, %p933
      %p936 = scmp.ne.s32.totalorder %s921, %s935
      %p937 = scmp.eq.s32.totalorder %s160, 0
      %p938 = por %p936, %p937
      %s940 = sadd.s32 %s939, 1
      %p943 = scmp.eq.s32.totalorder %s154, 1
      %p944 = scmp.ne.s32.totalorder %s939, %s941
      %p945 = scmp.eq.s32.totalorder %s154, 0
      %p946 = por %p944, %p945
      %p947 = scmp.ne.s32.totalorder %s939, %s941
      %p948 = scmp.eq.s32.totalorder %s159, 1
      %p949 = por %p947, %p948
      %p950 = scmp.ne.s32.totalorder %s941, %s942
      %p951 = scmp.eq.s32.totalorder %s159, 0
      %p952 = por %p950, %p951
      %p953 = scmp.ne.s32.totalorder %s941, %s942
      %p954 = scmp.eq.s32.totalorder %s160, 1
      %p955 = por %p953, %p954
      %p957 = scmp.ne.s32.totalorder %s942, %s956
      %p958 = scmp.eq.s32.totalorder %s160, 0
      %p959 = por %p957, %p958
      %s961 = sadd.s32 %s960, 1
      %p964 = scmp.eq.s32.totalorder %s154, 1
      %p965 = scmp.ne.s32.totalorder %s960, %s962
      %p966 = scmp.eq.s32.totalorder %s154, 0
      %p967 = por %p965, %p966
      %p968 = scmp.ne.s32.totalorder %s960, %s962
      %p969 = scmp.eq.s32.totalorder %s159, 1
      %p970 = por %p968, %p969
      %p971 = scmp.ne.s32.totalorder %s962, %s963
      %p972 = scmp.eq.s32.totalorder %s159, 0
      %p973 = por %p971, %p972
      %p974 = scmp.ne.s32.totalorder %s962, %s963
      %p975 = scmp.eq.s32.totalorder %s160, 1
      %p976 = por %p974, %p975
      %p978 = scmp.ne.s32.totalorder %s963, %s977
      %p979 = scmp.eq.s32.totalorder %s160, 0
      %p980 = por %p978, %p979
      %s982 = sadd.s32 %s981, 1
      %p985 = scmp.eq.s32.totalorder %s154, 1
      %p986 = scmp.ne.s32.totalorder %s981, %s983
      %p987 = scmp.eq.s32.totalorder %s154, 0
      %p988 = por %p986, %p987
      %p989 = scmp.ne.s32.totalorder %s981, %s983
      %p990 = scmp.eq.s32.totalorder %s159, 1
      %p991 = por %p989, %p990
      %p992 = scmp.ne.s32.totalorder %s983, %s984
      %p993 = scmp.eq.s32.totalorder %s159, 0
      %p994 = por %p992, %p993
      %p995 = scmp.ne.s32.totalorder %s983, %s984
      %p996 = scmp.eq.s32.totalorder %s160, 1
      %p997 = por %p995, %p996
      %p999 = scmp.ne.s32.totalorder %s984, %s998
      %p1000 = scmp.eq.s32.totalorder %s160, 0
      %p1001 = por %p999, %p1000
      %s1003 = sadd.s32 %s1002, 1
      %p1006 = scmp.eq.s32.totalorder %s154, 1
      %p1007 = scmp.ne.s32.totalorder %s1002, %s1004
      %p1008 = scmp.eq.s32.totalorder %s154, 0
      %p1009 = por %p1007, %p1008
      %p1010 = scmp.ne.s32.totalorder %s1002, %s1004
      %p1011 = scmp.eq.s32.totalorder %s159, 1
      %p1012 = por %p1010, %p1011
      %p1013 = scmp.ne.s32.totalorder %s1004, %s1005
      %p1014 = scmp.eq.s32.totalorder %s159, 0
      %p1015 = por %p1013, %p1014
      %p1016 = scmp.ne.s32.totalorder %s1004, %s1005
      %p1017 = scmp.eq.s32.totalorder %s160, 1
      %p1018 = por %p1016, %p1017
      %p1020 = scmp.ne.s32.totalorder %s1005, %s1019
      %p1021 = scmp.eq.s32.totalorder %s160, 0
      %p1022 = por %p1020, %p1021
      %s1024 = sadd.s32 %s1023, 1
      %p1027 = scmp.eq.s32.totalorder %s154, 1
      %p1028 = scmp.ne.s32.totalorder %s1023, %s1025
      %p1029 = scmp.eq.s32.totalorder %s154, 0
      %p1030 = por %p1028, %p1029
      %p1031 = scmp.ne.s32.totalorder %s1023, %s1025
      %p1032 = scmp.eq.s32.totalorder %s159, 1
      %p1033 = por %p1031, %p1032
      %p1034 = scmp.ne.s32.totalorder %s1025, %s1026
      %p1035 = scmp.eq.s32.totalorder %s159, 0
      %p1036 = por %p1034, %p1035
      %p1037 = scmp.ne.s32.totalorder %s1025, %s1026
      %p1038 = scmp.eq.s32.totalorder %s160, 1
      %p1039 = por %p1037, %p1038
      %p1041 = scmp.ne.s32.totalorder %s1026, %s1040
      %p1042 = scmp.eq.s32.totalorder %s160, 0
      %p1043 = por %p1041, %p1042
      %s1045 = sadd.s32 %s1044, 1
      %p1048 = scmp.eq.s32.totalorder %s154, 1
      %p1049 = scmp.ne.s32.totalorder %s1044, %s1046
      %p1050 = scmp.eq.s32.totalorder %s154, 0
      %p1051 = por %p1049, %p1050
      %p1052 = scmp.ne.s32.totalorder %s1044, %s1046
      %p1053 = scmp.eq.s32.totalorder %s159, 1
      %p1054 = por %p1052, %p1053
      %p1055 = scmp.ne.s32.totalorder %s1046, %s1047
      %p1056 = scmp.eq.s32.totalorder %s159, 0
      %p1057 = por %p1055, %p1056
      %p1058 = scmp.ne.s32.totalorder %s1046, %s1047
      %p1059 = scmp.eq.s32.totalorder %s160, 1
      %p1060 = por %p1058, %p1059
      %p1062 = scmp.ne.s32.totalorder %s1047, %s1061
      %p1063 = scmp.eq.s32.totalorder %s160, 0
      %p1064 = por %p1062, %p1063
      %s1066 = sadd.s32 %s1065, 1
      %p1069 = scmp.eq.s32.totalorder %s154, 1
      %p1070 = scmp.ne.s32.totalorder %s1065, %s1067
      %p1071 = scmp.eq.s32.totalorder %s154, 0
      %p1072 = por %p1070, %p1071
      %p1073 = scmp.ne.s32.totalorder %s1065, %s1067
      %p1074 = scmp.eq.s32.totalorder %s159, 1
      %p1075 = por %p1073, %p1074
      %p1076 = scmp.ne.s32.totalorder %s1067, %s1068
      %p1077 = scmp.eq.s32.totalorder %s159, 0
      %p1078 = por %p1076, %p1077
      %p1079 = scmp.ne.s32.totalorder %s1067, %s1068
      %p1080 = scmp.eq.s32.totalorder %s160, 1
      %p1081 = por %p1079, %p1080
      %p1083 = scmp.ne.s32.totalorder %s1068, %s1082
      %p1084 = scmp.eq.s32.totalorder %s160, 0
      %p1085 = por %p1083, %p1084
      %s1087 = sadd.s32 %s1086, 1
      %p1090 = scmp.eq.s32.totalorder %s154, 1
      %p1091 = scmp.ne.s32.totalorder %s1086, %s1088
      %p1092 = scmp.eq.s32.totalorder %s154, 0
      %p1093 = por %p1091, %p1092
      %p1094 = scmp.ne.s32.totalorder %s1086, %s1088
      %p1095 = scmp.eq.s32.totalorder %s159, 1
      %p1096 = por %p1094, %p1095
      %p1097 = scmp.ne.s32.totalorder %s1088, %s1089
      %p1098 = scmp.eq.s32.totalorder %s159, 0
      %p1099 = por %p1097, %p1098
      %p1100 = scmp.ne.s32.totalorder %s1088, %s1089
      %p1101 = scmp.eq.s32.totalorder %s160, 1
      %p1102 = por %p1100, %p1101
      %p1104 = scmp.ne.s32.totalorder %s1089, %s1103
      %p1105 = scmp.eq.s32.totalorder %s160, 0
      %p1106 = por %p1104, %p1105
      %s1108 = sadd.s32 %s1107, 1
      %p1111 = scmp.eq.s32.totalorder %s154, 1
      %p1112 = scmp.ne.s32.totalorder %s1107, %s1109
      %p1113 = scmp.eq.s32.totalorder %s154, 0
      %p1114 = por %p1112, %p1113
      %p1115 = scmp.ne.s32.totalorder %s1107, %s1109
      %p1116 = scmp.eq.s32.totalorder %s159, 1
      %p1117 = por %p1115, %p1116
      %p1118 = scmp.ne.s32.totalorder %s1109, %s1110
      %p1119 = scmp.eq.s32.totalorder %s159, 0
      %p1120 = por %p1118, %p1119
      %p1121 = scmp.ne.s32.totalorder %s1109, %s1110
      %p1122 = scmp.eq.s32.totalorder %s160, 1
      %p1123 = por %p1121, %p1122
      %p1125 = scmp.ne.s32.totalorder %s1110, %s1124
      %p1126 = scmp.eq.s32.totalorder %s160, 0
      %p1127 = por %p1125, %p1126
      %s1129 = sadd.s32 %s1128, 1
      %p1132 = scmp.eq.s32.totalorder %s154, 1
      %p1133 = scmp.ne.s32.totalorder %s1128, %s1130
      %p1134 = scmp.eq.s32.totalorder %s154, 0
      %p1135 = por %p1133, %p1134
      %p1136 = scmp.ne.s32.totalorder %s1128, %s1130
      %p1137 = scmp.eq.s32.totalorder %s159, 1
      %p1138 = por %p1136, %p1137
      %p1139 = scmp.ne.s32.totalorder %s1130, %s1131
      %p1140 = scmp.eq.s32.totalorder %s159, 0
      %p1141 = por %p1139, %p1140
      %p1142 = scmp.ne.s32.totalorder %s1130, %s1131
      %p1143 = scmp.eq.s32.totalorder %s160, 1
      %p1144 = por %p1142, %p1143
      %p1146 = scmp.ne.s32.totalorder %s1131, %s1145
      %p1147 = scmp.eq.s32.totalorder %s160, 0
      %p1148 = por %p1146, %p1147
      %s1150 = sadd.s32 %s1149, 1
      %p1153 = scmp.eq.s32.totalorder %s154, 1
      %p1154 = scmp.ne.s32.totalorder %s1149, %s1151
      %p1155 = scmp.eq.s32.totalorder %s154, 0
      %p1156 = por %p1154, %p1155
      %p1157 = scmp.ne.s32.totalorder %s1149, %s1151
      %p1158 = scmp.eq.s32.totalorder %s159, 1
      %p1159 = por %p1157, %p1158
      %p1160 = scmp.ne.s32.totalorder %s1151, %s1152
      %p1161 = scmp.eq.s32.totalorder %s159, 0
      %p1162 = por %p1160, %p1161
      %p1163 = scmp.ne.s32.totalorder %s1151, %s1152
      %p1164 = scmp.eq.s32.totalorder %s160, 1
      %p1165 = por %p1163, %p1164
      %p1167 = scmp.ne.s32.totalorder %s1152, %s1166
      %p1168 = scmp.eq.s32.totalorder %s160, 0
      %p1169 = por %p1167, %p1168
      %s1171 = sadd.s32 %s1170, 1
      %p1174 = scmp.eq.s32.totalorder %s154, 1
      %p1175 = scmp.ne.s32.totalorder %s1170, %s1172
      %p1176 = scmp.eq.s32.totalorder %s154, 0
      %p1177 = por %p1175, %p1176
      %p1178 = scmp.ne.s32.totalorder %s1170, %s1172
      %p1179 = scmp.eq.s32.totalorder %s159, 1
      %p1180 = por %p1178, %p1179
      %p1181 = scmp.ne.s32.totalorder %s1172, %s1173
      %p1182 = scmp.eq.s32.totalorder %s159, 0
      %p1183 = por %p1181, %p1182
      %p1184 = scmp.ne.s32.totalorder %s1172, %s1173
      %p1185 = scmp.eq.s32.totalorder %s160, 1
      %p1186 = por %p1184, %p1185
      %p1188 = scmp.ne.s32.totalorder %s1173, %s1187
      %p1189 = scmp.eq.s32.totalorder %s160, 0
      %p1190 = por %p1188, %p1189
      %s1192 = sadd.s32 %s1191, 1
      %p1195 = scmp.eq.s32.totalorder %s154, 1
      %p1196 = scmp.ne.s32.totalorder %s1191, %s1193
      %p1197 = scmp.eq.s32.totalorder %s154, 0
      %p1198 = por %p1196, %p1197
      %p1199 = scmp.ne.s32.totalorder %s1191, %s1193
      %p1200 = scmp.eq.s32.totalorder %s159, 1
      %p1201 = por %p1199, %p1200
      %p1202 = scmp.ne.s32.totalorder %s1193, %s1194
      %p1203 = scmp.eq.s32.totalorder %s159, 0
      %p1204 = por %p1202, %p1203
      %p1205 = scmp.ne.s32.totalorder %s1193, %s1194
      %p1206 = scmp.eq.s32.totalorder %s160, 1
      %p1207 = por %p1205, %p1206
      %p1209 = scmp.ne.s32.totalorder %s1194, %s1208
      %p1210 = scmp.eq.s32.totalorder %s160, 0
      %p1211 = por %p1209, %p1210
      %s1213 = sadd.s32 %s1212, 1
      %p1216 = scmp.eq.s32.totalorder %s154, 1
      %p1217 = scmp.ne.s32.totalorder %s1212, %s1214
      %p1218 = scmp.eq.s32.totalorder %s154, 0
      %p1219 = por %p1217, %p1218
      %p1220 = scmp.ne.s32.totalorder %s1212, %s1214
      %p1221 = scmp.eq.s32.totalorder %s159, 1
      %p1222 = por %p1220, %p1221
      %p1223 = scmp.ne.s32.totalorder %s1214, %s1215
      %p1224 = scmp.eq.s32.totalorder %s159, 0
      %p1225 = por %p1223, %p1224
      %p1226 = scmp.ne.s32.totalorder %s1214, %s1215
      %p1227 = scmp.eq.s32.totalorder %s160, 1
      %p1228 = por %p1226, %p1227
      %p1230 = scmp.ne.s32.totalorder %s1215, %s1229
      %p1231 = scmp.eq.s32.totalorder %s160, 0
      %p1232 = por %p1230, %p1231
      %s1234 = sadd.s32 %s1233, 1
      %p1237 = scmp.eq.s32.totalorder %s154, 1
      %p1238 = scmp.ne.s32.totalorder %s1233, %s1235
      %p1239 = scmp.eq.s32.totalorder %s154, 0
      %p1240 = por %p1238, %p1239
      %p1241 = scmp.ne.s32.totalorder %s1233, %s1235
      %p1242 = scmp.eq.s32.totalorder %s159, 1
      %p1243 = por %p1241, %p1242
      %p1244 = scmp.ne.s32.totalorder %s1235, %s1236
      %p1245 = scmp.eq.s32.totalorder %s159, 0
      %p1246 = por %p1244, %p1245
      %p1247 = scmp.ne.s32.totalorder %s1235, %s1236
      %p1248 = scmp.eq.s32.totalorder %s160, 1
      %p1249 = por %p1247, %p1248
      %p1251 = scmp.ne.s32.totalorder %s1236, %s1250
      %p1252 = scmp.eq.s32.totalorder %s160, 0
      %p1253 = por %p1251, %p1252
      %s1255 = sadd.s32 %s1254, 1
      %p1258 = scmp.eq.s32.totalorder %s154, 1
      %p1259 = scmp.ne.s32.totalorder %s1254, %s1256
      %p1260 = scmp.eq.s32.totalorder %s154, 0
      %p1261 = por %p1259, %p1260
      %p1262 = scmp.ne.s32.totalorder %s1254, %s1256
      %p1263 = scmp.eq.s32.totalorder %s159, 1
      %p1264 = por %p1262, %p1263
      %p1265 = scmp.ne.s32.totalorder %s1256, %s1257
      %p1266 = scmp.eq.s32.totalorder %s159, 0
      %p1267 = por %p1265, %p1266
      %p1268 = scmp.ne.s32.totalorder %s1256, %s1257
      %p1269 = scmp.eq.s32.totalorder %s160, 1
      %p1270 = por %p1268, %p1269
      %p1272 = scmp.ne.s32.totalorder %s1257, %s1271
      %p1273 = scmp.eq.s32.totalorder %s160, 0
      %p1274 = por %p1272, %p1273
      %s1276 = sadd.s32 %s1275, 1
      %p1279 = scmp.eq.s32.totalorder %s154, 1
      %p1280 = scmp.ne.s32.totalorder %s1275, %s1277
      %p1281 = scmp.eq.s32.totalorder %s154, 0
      %p1282 = por %p1280, %p1281
      %p1283 = scmp.ne.s32.totalorder %s1275, %s1277
      %p1284 = scmp.eq.s32.totalorder %s159, 1
      %p1285 = por %p1283, %p1284
      %p1286 = scmp.ne.s32.totalorder %s1277, %s1278
      %p1287 = scmp.eq.s32.totalorder %s159, 0
      %p1288 = por %p1286, %p1287
      %p1289 = scmp.ne.s32.totalorder %s1277, %s1278
      %p1290 = scmp.eq.s32.totalorder %s160, 1
      %p1291 = por %p1289, %p1290
      %p1293 = scmp.ne.s32.totalorder %s1278, %s1292
      %p1294 = scmp.eq.s32.totalorder %s160, 0
      %p1295 = por %p1293, %p1294
      %s1297 = sadd.s32 %s1296, 1
      %p1300 = scmp.eq.s32.totalorder %s154, 1
      %p1301 = scmp.ne.s32.totalorder %s1296, %s1298
      %p1302 = scmp.eq.s32.totalorder %s154, 0
      %p1303 = por %p1301, %p1302
      %p1304 = scmp.ne.s32.totalorder %s1296, %s1298
      %p1305 = scmp.eq.s32.totalorder %s159, 1
      %p1306 = por %p1304, %p1305
      %p1307 = scmp.ne.s32.totalorder %s1298, %s1299
      %p1308 = scmp.eq.s32.totalorder %s159, 0
      %p1309 = por %p1307, %p1308
      %p1310 = scmp.ne.s32.totalorder %s1298, %s1299
      %p1311 = scmp.eq.s32.totalorder %s160, 1
      %p1312 = por %p1310, %p1311
      %p1314 = scmp.ne.s32.totalorder %s1299, %s1313
      %p1315 = scmp.eq.s32.totalorder %s160, 0
      %p1316 = por %p1314, %p1315
      %s1318 = sadd.s32 %s1317, 1
      %p1321 = scmp.eq.s32.totalorder %s154, 1
      %p1322 = scmp.ne.s32.totalorder %s1317, %s1319
      %p1323 = scmp.eq.s32.totalorder %s154, 0
      %p1324 = por %p1322, %p1323
      %p1325 = scmp.ne.s32.totalorder %s1317, %s1319
      %p1326 = scmp.eq.s32.totalorder %s159, 1
      %p1327 = por %p1325, %p1326
      %p1328 = scmp.ne.s32.totalorder %s1319, %s1320
      %p1329 = scmp.eq.s32.totalorder %s159, 0
      %p1330 = por %p1328, %p1329
      %p1331 = scmp.ne.s32.totalorder %s1319, %s1320
      %p1332 = scmp.eq.s32.totalorder %s160, 1
      %p1333 = por %p1331, %p1332
      %p1335 = scmp.ne.s32.totalorder %s1320, %s1334
      %p1336 = scmp.eq.s32.totalorder %s160, 0
      %p1337 = por %p1335, %p1336
      %s1339 = sadd.s32 %s1338, 1
      %p1342 = scmp.eq.s32.totalorder %s154, 1
      %p1343 = scmp.ne.s32.totalorder %s1338, %s1340
      %p1344 = scmp.eq.s32.totalorder %s154, 0
      %p1345 = por %p1343, %p1344
      %p1346 = scmp.ne.s32.totalorder %s1338, %s1340
      %p1347 = scmp.eq.s32.totalorder %s159, 1
      %p1348 = por %p1346, %p1347
      %p1349 = scmp.ne.s32.totalorder %s1340, %s1341
      %p1350 = scmp.eq.s32.totalorder %s159, 0
      %p1351 = por %p1349, %p1350
      %p1352 = scmp.ne.s32.totalorder %s1340, %s1341
      %p1353 = scmp.eq.s32.totalorder %s160, 1
      %p1354 = por %p1352, %p1353
      %p1356 = scmp.ne.s32.totalorder %s1341, %s1355
      %p1357 = scmp.eq.s32.totalorder %s160, 0
      %p1358 = por %p1356, %p1357
      %s1360 = sadd.s32 %s1359, 1
      %p1363 = scmp.eq.s32.totalorder %s154, 1
      %p1364 = scmp.ne.s32.totalorder %s1359, %s1361
      %p1365 = scmp.eq.s32.totalorder %s154, 0
      %p1366 = por %p1364, %p1365
      %p1367 = scmp.ne.s32.totalorder %s1359, %s1361
      %p1368 = scmp.eq.s32.totalorder %s159, 1
      %p1369 = por %p1367, %p1368
      %p1370 = scmp.ne.s32.totalorder %s1361, %s1362
      %p1371 = scmp.eq.s32.totalorder %s159, 0
      %p1372 = por %p1370, %p1371
      %p1373 = scmp.ne.s32.totalorder %s1361, %s1362
      %p1374 = scmp.eq.s32.totalorder %s160, 1
      %p1375 = por %p1373, %p1374
      %p1377 = scmp.ne.s32.totalorder %s1362, %s1376
      %p1378 = scmp.eq.s32.totalorder %s160, 0
      %p1379 = por %p1377, %p1378
      %s1380 = ssub.s32 %s154, %s161
      %p1381 = scmp.eq.s32.totalorder %s1380, 0
      %s1383 = sadd.s32 %s1382, 1
      %s1384 = scalar_select %p1381, %s1382, %s1383
      %p1387 = pneg %p1381
      %p1388 = scmp.eq.s32.totalorder %s154, 1
      %p1389 = por %p1387, %p1388
      %p1390 = scmp.ne.s32.totalorder %s1382, %s1385
      %p1391 = scmp.eq.s32.totalorder %s154, 0
      %p1392 = por %p1390, %p1391
      %p1393 = scmp.ne.s32.totalorder %s1382, %s1385
      %p1394 = scmp.eq.s32.totalorder %s159, 1
      %p1395 = por %p1393, %p1394
      %p1396 = scmp.ne.s32.totalorder %s1385, %s1386
      %p1397 = scmp.eq.s32.totalorder %s159, 0
      %p1398 = por %p1396, %p1397
      %p1399 = scmp.ne.s32.totalorder %s1385, %s1386
      %p1400 = scmp.eq.s32.totalorder %s160, 1
      %p1401 = por %p1399, %p1400
      %p1403 = scmp.ne.s32.totalorder %s1386, %s1402
      %p1404 = scmp.eq.s32.totalorder %s160, 0
      %p1405 = por %p1403, %p1404
      %s1406 = ssub.s32 %s154, %s161
      %p1407 = scmp.eq.s32.totalorder %s1406, 0
      %s1409 = sadd.s32 %s1408, 1
      %s1410 = scalar_select %p1407, %s1408, %s1409
      %p1413 = pneg %p1407
      %p1414 = scmp.eq.s32.totalorder %s154, 1
      %p1415 = por %p1413, %p1414
      %p1416 = scmp.ne.s32.totalorder %s1408, %s1411
      %p1417 = scmp.eq.s32.totalorder %s154, 0
      %p1418 = por %p1416, %p1417
      %p1419 = scmp.ne.s32.totalorder %s1408, %s1411
      %p1420 = scmp.eq.s32.totalorder %s159, 1
      %p1421 = por %p1419, %p1420
      %p1422 = scmp.ne.s32.totalorder %s1411, %s1412
      %p1423 = scmp.eq.s32.totalorder %s159, 0
      %p1424 = por %p1422, %p1423
      %p1425 = scmp.ne.s32.totalorder %s1411, %s1412
      %p1426 = scmp.eq.s32.totalorder %s160, 1
      %p1427 = por %p1425, %p1426
      %p1429 = scmp.ne.s32.totalorder %s1412, %s1428
      %p1430 = scmp.eq.s32.totalorder %s160, 0
      %p1431 = por %p1429, %p1430
      %s1432 = ssub.s32 %s154, %s161
      %p1433 = scmp.eq.s32.totalorder %s1432, 0
      %s1435 = sadd.s32 %s1434, 1
      %s1436 = scalar_select %p1433, %s1434, %s1435
      %p1439 = pneg %p1433
      %p1440 = scmp.eq.s32.totalorder %s154, 1
      %p1441 = por %p1439, %p1440
      %p1442 = scmp.ne.s32.totalorder %s1434, %s1437
      %p1443 = scmp.eq.s32.totalorder %s154, 0
      %p1444 = por %p1442, %p1443
      %p1445 = scmp.ne.s32.totalorder %s1434, %s1437
      %p1446 = scmp.eq.s32.totalorder %s159, 1
      %p1447 = por %p1445, %p1446
      %p1448 = scmp.ne.s32.totalorder %s1437, %s1438
      %p1449 = scmp.eq.s32.totalorder %s159, 0
      %p1450 = por %p1448, %p1449
      %p1451 = scmp.ne.s32.totalorder %s1437, %s1438
      %p1452 = scmp.eq.s32.totalorder %s160, 1
      %p1453 = por %p1451, %p1452
      %p1455 = scmp.ne.s32.totalorder %s1438, %s1454
      %p1456 = scmp.eq.s32.totalorder %s160, 0
      %p1457 = por %p1455, %p1456
      %p1458 = scmp.le.s32.totalorder 1, %s154
      %p1459 = scmp.lt.s32.totalorder %s154, 3
      %p1460 = pnand %p1458, %p1459
      %p1461 = pneg %p1460
      // Predicated region
      $region9: #{tpu_custom_call.1} parent=5 // pred_check
        _
      $region10: #{tpu_custom_call.1} parent=5 // pred_check_branch
        %1463 = sbr.rel (%p1460) target = $region12
      $region11: #{tpu_custom_call.1} parent=5 // pred_region
        %s1464 = ssub.s32 %s154, 1
        // Predicated region
        $region13: #{tpu_custom_call.1} parent=11 // pred_check
          %p1465 = pneg %p175
        $region14: #{tpu_custom_call.1} parent=11 // pred_check_branch
          %1467 = sbr.rel (%p1465) target = $region16
        $region15: #{tpu_custom_call.1} parent=11 // pred_region
          %s1469 = ssub.s32 128, 128
          %1470 = vsyncadd [#allocation6], %s1469
          %s1472 = sshll.u32 [#allocation5], 4
          %s1473 = int_to_ptr.vmem [resolvable:$true] %s1472
          %1475 = dma.hbm_to_vmem [thread:$0]  %s1, 128, %s1473, [#allocation6]
        $region16: #{tpu_custom_call.1} parent=11 // pred_fallthru
          _
        // Predicated region
        $region17: #{tpu_custom_call.1} parent=11 // pred_check
          %p1476 = pneg %p196
        $region18: #{tpu_custom_call.1} parent=11 // pred_check_branch
          %1478 = sbr.rel (%p1476) target = $region20
        $region19: #{tpu_custom_call.1} parent=11 // pred_region
          %s1480 = ssub.s32 256, 256
          %1481 = vsyncadd [#allocation9], %s1480
          %s1482 = sshll.u32 [#allocation8], 4
          %s1483 = int_to_ptr.vmem [resolvable:$true] %s1482
          %1488 = dma.hbm_to_vmem [thread:$0]  %s3, 256, %s1483, [#allocation9], 128, 128, 8
        $region20: #{tpu_custom_call.1} parent=11 // pred_fallthru
          _
        // Predicated region
        $region21: #{tpu_custom_call.1} parent=11 // pred_check
          %p1489 = pneg %p217
        $region22: #{tpu_custom_call.1} parent=11 // pred_check_branch
          %1491 = sbr.rel (%p1489) target = $region24
        $region23: #{tpu_custom_call.1} parent=11 // pred_region
          %s1493 = ssub.s32 32, 32
          %1494 = vsyncadd [#allocation9], %s1493
          %s1496 = sshll.u32 [#allocation10], 4
          %s1497 = int_to_ptr.vmem [resolvable:$true] %s1496
          %1499 = dma.hbm_to_vmem [thread:$0]  %s5, 32, %s1497, [#allocation9]
        $region24: #{tpu_custom_call.1} parent=11 // pred_fallthru
          _
        // Predicated region
        $region25: #{tpu_custom_call.1} parent=11 // pred_check
          %p1500 = pneg %p238
        $region26: #{tpu_custom_call.1} parent=11 // pred_check_branch
          %1502 = sbr.rel (%p1500) target = $region28
        $region27: #{tpu_custom_call.1} parent=11 // pred_region
          _
        $region28: #{tpu_custom_call.1} parent=11 // pred_fallthru
          _
        // Predicated region
        $region29: #{tpu_custom_call.1} parent=11 // pred_check
          %p1503 = pneg %p259
        $region30: #{tpu_custom_call.1} parent=11 // pred_check_branch
          %1505 = sbr.rel (%p1503) target = $region32
        $region31: #{tpu_custom_call.1} parent=11 // pred_region
          _
        $region32: #{tpu_custom_call.1} parent=11 // pred_fallthru
          _
        // Predicated region
        $region33: #{tpu_custom_call.1} parent=11 // pred_check
          %p1506 = pneg %p280
        $region34: #{tpu_custom_call.1} parent=11 // pred_check_branch
          %1508 = sbr.rel (%p1506) target = $region36
        $region35: #{tpu_custom_call.1} parent=11 // pred_region
          %s1510 = ssub.s32 64, 64
          %1511 = vsyncadd [#allocation12], %s1510
          %s1513 = sshll.u32 [#allocation11], 4
          %s1514 = int_to_ptr.vmem [resolvable:$true] %s1513
          %1516 = dma.hbm_to_vmem [thread:$0]  %s11, 64, %s1514, [#allocation12]
        $region36: #{tpu_custom_call.1} parent=11 // pred_fallthru
          _
        // Predicated region
        $region37: #{tpu_custom_call.1} parent=11 // pred_check
          %p1517 = pneg %p301
        $region38: #{tpu_custom_call.1} parent=11 // pred_check_branch
          %1519 = sbr.rel (%p1517) target = $region40
        $region39: #{tpu_custom_call.1} parent=11 // pred_region
          _
        $region40: #{tpu_custom_call.1} parent=11 // pred_fallthru
          _
        // Predicated region
        $region41: #{tpu_custom_call.1} parent=11 // pred_check
          %p1520 = pneg %p322
        $region42: #{tpu_custom_call.1} parent=11 // pred_check_branch
          %1522 = sbr.rel (%p1520) target = $region44
        $region43: #{tpu_custom_call.1} parent=11 // pred_region
          %s1524 = ssub.s32 16, 16
          %1525 = vsyncadd [#allocation12], %s1524
          %s1527 = sshll.u32 [#allocation13], 4
          %s1528 = int_to_ptr.vmem [resolvable:$true] %s1527
          %1530 = dma.hbm_to_vmem [thread:$0]  %s15, 16, %s1528, [#allocation12]
        $region44: #{tpu_custom_call.1} parent=11 // pred_fallthru
          _
        // Predicated region
        $region45: #{tpu_custom_call.1} parent=11 // pred_check
          %p1531 = pneg %p343
        $region46: #{tpu_custom_call.1} parent=11 // pred_check_branch
          %1533 = sbr.rel (%p1531) target = $region48
        $region47: #{tpu_custom_call.1} parent=11 // pred_region
          _
        $region48: #{tpu_custom_call.1} parent=11 // pred_fallthru
          _
        // Predicated region
        $region49: #{tpu_custom_call.1} parent=11 // pred_check
          %p1534 = pneg %p364
        $region50: #{tpu_custom_call.1} parent=11 // pred_check_branch
          %1536 = sbr.rel (%p1534) target = $region52
        $region51: #{tpu_custom_call.1} parent=11 // pred_region
          %s1538 = ssub.s32 16, 16
          %1539 = vsyncadd [#allocation15], %s1538
          %s1541 = sshll.u32 [#allocation14], 4
          %s1542 = int_to_ptr.vmem [resolvable:$true] %s1541
          %1544 = dma.hbm_to_vmem [thread:$0]  %s19, 16, %s1542, [#allocation15]
        $region52: #{tpu_custom_call.1} parent=11 // pred_fallthru
          _
        // Predicated region
        $region53: #{tpu_custom_call.1} parent=11 // pred_check
          %p1545 = pneg %p385
        $region54: #{tpu_custom_call.1} parent=11 // pred_check_branch
          %1547 = sbr.rel (%p1545) target = $region56
        $region55: #{tpu_custom_call.1} parent=11 // pred_region
          _
        $region56: #{tpu_custom_call.1} parent=11 // pred_fallthru
          _
        // Predicated region
        $region57: #{tpu_custom_call.1} parent=11 // pred_check
          %p1548 = pneg %p406
        $region58: #{tpu_custom_call.1} parent=11 // pred_check_branch
          %1550 = sbr.rel (%p1548) target = $region60
        $region59: #{tpu_custom_call.1} parent=11 // pred_region
          %s1552 = ssub.s32 16, 16
          %1553 = vsyncadd [#allocation15], %s1552
          %s1555 = sshll.u32 [#allocation16], 4
          %s1556 = int_to_ptr.vmem [resolvable:$true] %s1555
          %1558 = dma.hbm_to_vmem [thread:$0]  %s23, 16, %s1556, [#allocation15]
        $region60: #{tpu_custom_call.1} parent=11 // pred_fallthru
          _
        // Predicated region
        $region61: #{tpu_custom_call.1} parent=11 // pred_check
          %p1559 = pneg %p427
        $region62: #{tpu_custom_call.1} parent=11 // pred_check_branch
          %1561 = sbr.rel (%p1559) target = $region64
        $region63: #{tpu_custom_call.1} parent=11 // pred_region
          %s1563 = ssub.s32 1024, 1024
          %1564 = vsyncadd [#allocation18], %s1563
          %s1565 = sshll.u32 [#allocation17], 4
          %s1566 = int_to_ptr.vmem [resolvable:$true] %s1565
          %1571 = dma.hbm_to_vmem [thread:$0]  %s25, 1024, %s1566, [#allocation18], 64, 64, 4
        $region64: #{tpu_custom_call.1} parent=11 // pred_fallthru
          _
        // Predicated region
        $region65: #{tpu_custom_call.1} parent=11 // pred_check
          %p1572 = pneg %p448
        $region66: #{tpu_custom_call.1} parent=11 // pred_check_branch
          %1574 = sbr.rel (%p1572) target = $region68
        $region67: #{tpu_custom_call.1} parent=11 // pred_region
          %s1576 = ssub.s32 16, 16
          %1577 = vsyncadd [#allocation18], %s1576
          %s1579 = sshll.u32 [#allocation19], 4
          %s1580 = int_to_ptr.vmem [resolvable:$true] %s1579
          %1582 = dma.hbm_to_vmem [thread:$0]  %s27, 16, %s1580, [#allocation18]
        $region68: #{tpu_custom_call.1} parent=11 // pred_fallthru
          _
        // Predicated region
        $region69: #{tpu_custom_call.1} parent=11 // pred_check
          %p1583 = pneg %p469
        $region70: #{tpu_custom_call.1} parent=11 // pred_check_branch
          %1585 = sbr.rel (%p1583) target = $region72
        $region71: #{tpu_custom_call.1} parent=11 // pred_region
          %s1587 = ssub.s32 16, 16
          %1588 = vsyncadd [#allocation21], %s1587
          %s1590 = sshll.u32 [#allocation20], 4
          %s1591 = int_to_ptr.vmem [resolvable:$true] %s1590
          %1593 = dma.hbm_to_vmem [thread:$0]  %s29, 16, %s1591, [#allocation21]
        $region72: #{tpu_custom_call.1} parent=11 // pred_fallthru
          _
        // Predicated region
        $region73: #{tpu_custom_call.1} parent=11 // pred_check
          %p1594 = pneg %p490
        $region74: #{tpu_custom_call.1} parent=11 // pred_check_branch
          %1596 = sbr.rel (%p1594) target = $region76
        $region75: #{tpu_custom_call.1} parent=11 // pred_region
          %s1598 = ssub.s32 16, 16
          %1599 = vsyncadd [#allocation21], %s1598
          %s1601 = sshll.u32 [#allocation22], 4
          %s1602 = int_to_ptr.vmem [resolvable:$true] %s1601
          %1604 = dma.hbm_to_vmem [thread:$0]  %s31, 16, %s1602, [#allocation21]
        $region76: #{tpu_custom_call.1} parent=11 // pred_fallthru
          _
        // Predicated region
        $region77: #{tpu_custom_call.1} parent=11 // pred_check
          %p1605 = pneg %p511
        $region78: #{tpu_custom_call.1} parent=11 // pred_check_branch
          %1607 = sbr.rel (%p1605) target = $region80
        $region79: #{tpu_custom_call.1} parent=11 // pred_region
          %s1609 = ssub.s32 1024, 1024
          %1610 = vsyncadd [#allocation24], %s1609
          %s1611 = sshll.u32 [#allocation23], 4
          %s1612 = int_to_ptr.vmem [resolvable:$true] %s1611
          %1617 = dma.hbm_to_vmem [thread:$0]  %s33, 1024, %s1612, [#allocation24], 64, 64, 4
        $region80: #{tpu_custom_call.1} parent=11 // pred_fallthru
          _
        // Predicated region
        $region81: #{tpu_custom_call.1} parent=11 // pred_check
          %p1618 = pneg %p532
        $region82: #{tpu_custom_call.1} parent=11 // pred_check_branch
          %1620 = sbr.rel (%p1618) target = $region84
        $region83: #{tpu_custom_call.1} parent=11 // pred_region
          %s1622 = ssub.s32 16, 16
          %1623 = vsyncadd [#allocation24], %s1622
          %s1625 = sshll.u32 [#allocation25], 4
          %s1626 = int_to_ptr.vmem [resolvable:$true] %s1625
          %1628 = dma.hbm_to_vmem [thread:$0]  %s35, 16, %s1626, [#allocation24]
        $region84: #{tpu_custom_call.1} parent=11 // pred_fallthru
          _
        // Predicated region
        $region85: #{tpu_custom_call.1} parent=11 // pred_check
          %p1629 = pneg %p553
        $region86: #{tpu_custom_call.1} parent=11 // pred_check_branch
          %1631 = sbr.rel (%p1629) target = $region88
        $region87: #{tpu_custom_call.1} parent=11 // pred_region
          %s1633 = ssub.s32 1024, 1024
          %1634 = vsyncadd [#allocation27], %s1633
          %s1635 = sshll.u32 [#allocation26], 4
          %s1636 = int_to_ptr.vmem [resolvable:$true] %s1635
          %1641 = dma.hbm_to_vmem [thread:$0]  %s37, 1024, %s1636, [#allocation27], 64, 64, 4
        $region88: #{tpu_custom_call.1} parent=11 // pred_fallthru
          _
        // Predicated region
        $region89: #{tpu_custom_call.1} parent=11 // pred_check
          %p1642 = pneg %p574
        $region90: #{tpu_custom_call.1} parent=11 // pred_check_branch
          %1644 = sbr.rel (%p1642) target = $region92
        $region91: #{tpu_custom_call.1} parent=11 // pred_region
          %s1646 = ssub.s32 16, 16
          %1647 = vsyncadd [#allocation27], %s1646
          %s1649 = sshll.u32 [#allocation28], 4
          %s1650 = int_to_ptr.vmem [resolvable:$true] %s1649
          %1652 = dma.hbm_to_vmem [thread:$0]  %s39, 16, %s1650, [#allocation27]
        $region92: #{tpu_custom_call.1} parent=11 // pred_fallthru
          _
        // Predicated region
        $region93: #{tpu_custom_call.1} parent=11 // pred_check
          %p1653 = pneg %p595
        $region94: #{tpu_custom_call.1} parent=11 // pred_check_branch
          %1655 = sbr.rel (%p1653) target = $region96
        $region95: #{tpu_custom_call.1} parent=11 // pred_region
          %s1657 = ssub.s32 16, 16
          %1658 = vsyncadd [#allocation30], %s1657
          %s1660 = sshll.u32 [#allocation29], 4
          %s1661 = int_to_ptr.vmem [resolvable:$true] %s1660
          %1663 = dma.hbm_to_vmem [thread:$0]  %s41, 16, %s1661, [#allocation30]
        $region96: #{tpu_custom_call.1} parent=11 // pred_fallthru
          _
        // Predicated region
        $region97: #{tpu_custom_call.1} parent=11 // pred_check
          %p1664 = pneg %p616
        $region98: #{tpu_custom_call.1} parent=11 // pred_check_branch
          %1666 = sbr.rel (%p1664) target = $region100
        $region99: #{tpu_custom_call.1} parent=11 // pred_region
          %s1668 = ssub.s32 16, 16
          %1669 = vsyncadd [#allocation30], %s1668
          %s1671 = sshll.u32 [#allocation31], 4
          %s1672 = int_to_ptr.vmem [resolvable:$true] %s1671
          %1674 = dma.hbm_to_vmem [thread:$0]  %s43, 16, %s1672, [#allocation30]
        $region100: #{tpu_custom_call.1} parent=11 // pred_fallthru
          _
        // Predicated region
        $region101: #{tpu_custom_call.1} parent=11 // pred_check
          %p1675 = pneg %p637
        $region102: #{tpu_custom_call.1} parent=11 // pred_check_branch
          %1677 = sbr.rel (%p1675) target = $region104
        $region103: #{tpu_custom_call.1} parent=11 // pred_region
          %s1679 = ssub.s32 1024, 1024
          %1680 = vsyncadd [#allocation33], %s1679
          %s1681 = sshll.u32 [#allocation32], 4
          %s1682 = int_to_ptr.vmem [resolvable:$true] %s1681
          %1687 = dma.hbm_to_vmem [thread:$0]  %s45, 1024, %s1682, [#allocation33], 64, 64, 4
        $region104: #{tpu_custom_call.1} parent=11 // pred_fallthru
          _
        // Predicated region
        $region105: #{tpu_custom_call.1} parent=11 // pred_check
          %p1688 = pneg %p658
        $region106: #{tpu_custom_call.1} parent=11 // pred_check_branch
          %1690 = sbr.rel (%p1688) target = $region108
        $region107: #{tpu_custom_call.1} parent=11 // pred_region
          %s1692 = ssub.s32 16, 16
          %1693 = vsyncadd [#allocation33], %s1692
          %s1695 = sshll.u32 [#allocation34], 4
          %s1696 = int_to_ptr.vmem [resolvable:$true] %s1695
          %1698 = dma.hbm_to_vmem [thread:$0]  %s47, 16, %s1696, [#allocation33]
        $region108: #{tpu_custom_call.1} parent=11 // pred_fallthru
          _
        // Predicated region
        $region109: #{tpu_custom_call.1} parent=11 // pred_check
          %p1699 = pneg %p679
        $region110: #{tpu_custom_call.1} parent=11 // pred_check_branch
          %1701 = sbr.rel (%p1699) target = $region112
        $region111: #{tpu_custom_call.1} parent=11 // pred_region
          _
        $region112: #{tpu_custom_call.1} parent=11 // pred_fallthru
          _
        // Predicated region
        $region113: #{tpu_custom_call.1} parent=11 // pred_check
          %p1702 = pneg %p700
        $region114: #{tpu_custom_call.1} parent=11 // pred_check_branch
          %1704 = sbr.rel (%p1702) target = $region116
        $region115: #{tpu_custom_call.1} parent=11 // pred_region
          _
        $region116: #{tpu_custom_call.1} parent=11 // pred_fallthru
          _
        // Predicated region
        $region117: #{tpu_custom_call.1} parent=11 // pred_check
          %p1705 = pneg %p721
        $region118: #{tpu_custom_call.1} parent=11 // pred_check_branch
          %1707 = sbr.rel (%p1705) target = $region120
        $region119: #{tpu_custom_call.1} parent=11 // pred_region
          %s1709 = ssub.s32 16, 16
          %1710 = vsyncadd [#allocation36], %s1709
          %s1712 = sshll.u32 [#allocation35], 4
          %s1713 = int_to_ptr.vmem [resolvable:$true] %s1712
          %1715 = dma.hbm_to_vmem [thread:$0]  %s53, 16, %s1713, [#allocation36]
        $region120: #{tpu_custom_call.1} parent=11 // pred_fallthru
          _
        // Predicated region
        $region121: #{tpu_custom_call.1} parent=11 // pred_check
          %p1716 = pneg %p742
        $region122: #{tpu_custom_call.1} parent=11 // pred_check_branch
          %1718 = sbr.rel (%p1716) target = $region124
        $region123: #{tpu_custom_call.1} parent=11 // pred_region
          %s1720 = ssub.s32 16, 16
          %1721 = vsyncadd [#allocation36], %s1720
          %s1723 = sshll.u32 [#allocation37], 4
          %s1724 = int_to_ptr.vmem [resolvable:$true] %s1723
          %1726 = dma.hbm_to_vmem [thread:$0]  %s55, 16, %s1724, [#allocation36]
        $region124: #{tpu_custom_call.1} parent=11 // pred_fallthru
          _
        // Predicated region
        $region125: #{tpu_custom_call.1} parent=11 // pred_check
          %p1727 = pneg %p763
        $region126: #{tpu_custom_call.1} parent=11 // pred_check_branch
          %1729 = sbr.rel (%p1727) target = $region128
        $region127: #{tpu_custom_call.1} parent=11 // pred_region
          %s1731 = ssub.s32 8192, 8192
          %1732 = vsyncadd [#allocation39], %s1731
          %s1733 = sshll.u32 [#allocation38], 4
          %s1734 = int_to_ptr.vmem [resolvable:$true] %s1733
          %1739 = dma.hbm_to_vmem [thread:$0]  %s57, 8192, %s1734, [#allocation39], 64, 64, 4
        $region128: #{tpu_custom_call.1} parent=11 // pred_fallthru
          _
        // Predicated region
        $region129: #{tpu_custom_call.1} parent=11 // pred_check
          %p1740 = pneg %p784
        $region130: #{tpu_custom_call.1} parent=11 // pred_check_branch
          %1742 = sbr.rel (%p1740) target = $region132
        $region131: #{tpu_custom_call.1} parent=11 // pred_region
          %s1744 = ssub.s32 16, 16
          %1745 = vsyncadd [#allocation39], %s1744
          %s1747 = sshll.u32 [#allocation40], 4
          %s1748 = int_to_ptr.vmem [resolvable:$true] %s1747
          %1750 = dma.hbm_to_vmem [thread:$0]  %s59, 16, %s1748, [#allocation39]
        $region132: #{tpu_custom_call.1} parent=11 // pred_fallthru
          _
        // Predicated region
        $region133: #{tpu_custom_call.1} parent=11 // pred_check
          %p1751 = pneg %p805
        $region134: #{tpu_custom_call.1} parent=11 // pred_check_branch
          %1753 = sbr.rel (%p1751) target = $region136
        $region135: #{tpu_custom_call.1} parent=11 // pred_region
          %s1755 = ssub.s32 1024, 1024
          %1756 = vsyncadd [#allocation42], %s1755
          %s1757 = sshll.u32 [#allocation41], 4
          %s1758 = int_to_ptr.vmem [resolvable:$true] %s1757
          %1763 = dma.hbm_to_vmem [thread:$0]  %s61, 1024, %s1758, [#allocation42], 64, 64, 4
        $region136: #{tpu_custom_call.1} parent=11 // pred_fallthru
          _
        // Predicated region
        $region137: #{tpu_custom_call.1} parent=11 // pred_check
          %p1764 = pneg %p826
        $region138: #{tpu_custom_call.1} parent=11 // pred_check_branch
          %1766 = sbr.rel (%p1764) target = $region140
        $region139: #{tpu_custom_call.1} parent=11 // pred_region
          %s1768 = ssub.s32 16, 16
          %1769 = vsyncadd [#allocation42], %s1768
          %s1771 = sshll.u32 [#allocation43], 4
          %s1772 = int_to_ptr.vmem [resolvable:$true] %s1771
          %1774 = dma.hbm_to_vmem [thread:$0]  %s63, 16, %s1772, [#allocation42]
        $region140: #{tpu_custom_call.1} parent=11 // pred_fallthru
          _
        // Predicated region
        $region141: #{tpu_custom_call.1} parent=11 // pred_check
          %p1775 = pneg %p847
        $region142: #{tpu_custom_call.1} parent=11 // pred_check_branch
          %1777 = sbr.rel (%p1775) target = $region144
        $region143: #{tpu_custom_call.1} parent=11 // pred_region
          %s1779 = ssub.s32 16, 16
          %1780 = vsyncadd [#allocation45], %s1779
          %s1782 = sshll.u32 [#allocation44], 4
          %s1783 = int_to_ptr.vmem [resolvable:$true] %s1782
          %1785 = dma.hbm_to_vmem [thread:$0]  %s65, 16, %s1783, [#allocation45]
        $region144: #{tpu_custom_call.1} parent=11 // pred_fallthru
          _
        // Predicated region
        $region145: #{tpu_custom_call.1} parent=11 // pred_check
          %p1786 = pneg %p868
        $region146: #{tpu_custom_call.1} parent=11 // pred_check_branch
          %1788 = sbr.rel (%p1786) target = $region148
        $region147: #{tpu_custom_call.1} parent=11 // pred_region
          %s1790 = ssub.s32 16, 16
          %1791 = vsyncadd [#allocation45], %s1790
          %s1793 = sshll.u32 [#allocation46], 4
          %s1794 = int_to_ptr.vmem [resolvable:$true] %s1793
          %1796 = dma.hbm_to_vmem [thread:$0]  %s67, 16, %s1794, [#allocation45]
        $region148: #{tpu_custom_call.1} parent=11 // pred_fallthru
          _
        // Predicated region
        $region149: #{tpu_custom_call.1} parent=11 // pred_check
          %p1797 = pneg %p889
        $region150: #{tpu_custom_call.1} parent=11 // pred_check_branch
          %1799 = sbr.rel (%p1797) target = $region152
        $region151: #{tpu_custom_call.1} parent=11 // pred_region
          %s1801 = ssub.s32 5120, 5120
          %1802 = vsyncadd [#allocation48], %s1801
          %s1803 = sshll.u32 [#allocation47], 4
          %s1804 = int_to_ptr.vmem [resolvable:$true] %s1803
          %1809 = dma.hbm_to_vmem [thread:$0]  %s69, 5120, %s1804, [#allocation48], 64, 64, 4
        $region152: #{tpu_custom_call.1} parent=11 // pred_fallthru
          _
        // Predicated region
        $region153: #{tpu_custom_call.1} parent=11 // pred_check
          %p1810 = pneg %p910
        $region154: #{tpu_custom_call.1} parent=11 // pred_check_branch
          %1812 = sbr.rel (%p1810) target = $region156
        $region155: #{tpu_custom_call.1} parent=11 // pred_region
          %s1814 = ssub.s32 16, 16
          %1815 = vsyncadd [#allocation48], %s1814
          %s1817 = sshll.u32 [#allocation49], 4
          %s1818 = int_to_ptr.vmem [resolvable:$true] %s1817
          %1820 = dma.hbm_to_vmem [thread:$0]  %s71, 16, %s1818, [#allocation48]
        $region156: #{tpu_custom_call.1} parent=11 // pred_fallthru
          _
        // Predicated region
        $region157: #{tpu_custom_call.1} parent=11 // pred_check
          %p1821 = pneg %p931
        $region158: #{tpu_custom_call.1} parent=11 // pred_check_branch
          %1823 = sbr.rel (%p1821) target = $region160
        $region159: #{tpu_custom_call.1} parent=11 // pred_region
          %s1825 = ssub.s32 1024, 1024
          %1826 = vsyncadd [#allocation51], %s1825
          %s1827 = sshll.u32 [#allocation50], 4
          %s1828 = int_to_ptr.vmem [resolvable:$true] %s1827
          %1833 = dma.hbm_to_vmem [thread:$0]  %s73, 1024, %s1828, [#allocation51], 64, 64, 4
        $region160: #{tpu_custom_call.1} parent=11 // pred_fallthru
          _
        // Predicated region
        $region161: #{tpu_custom_call.1} parent=11 // pred_check
          %p1834 = pneg %p952
        $region162: #{tpu_custom_call.1} parent=11 // pred_check_branch
          %1836 = sbr.rel (%p1834) target = $region164
        $region163: #{tpu_custom_call.1} parent=11 // pred_region
          %s1838 = ssub.s32 16, 16
          %1839 = vsyncadd [#allocation51], %s1838
          %s1841 = sshll.u32 [#allocation52], 4
          %s1842 = int_to_ptr.vmem [resolvable:$true] %s1841
          %1844 = dma.hbm_to_vmem [thread:$0]  %s75, 16, %s1842, [#allocation51]
        $region164: #{tpu_custom_call.1} parent=11 // pred_fallthru
          _
        // Predicated region
        $region165: #{tpu_custom_call.1} parent=11 // pred_check
          %p1845 = pneg %p973
        $region166: #{tpu_custom_call.1} parent=11 // pred_check_branch
          %1847 = sbr.rel (%p1845) target = $region168
        $region167: #{tpu_custom_call.1} parent=11 // pred_region
          %s1849 = ssub.s32 16, 16
          %1850 = vsyncadd [#allocation54], %s1849
          %s1852 = sshll.u32 [#allocation53], 4
          %s1853 = int_to_ptr.vmem [resolvable:$true] %s1852
          %1855 = dma.hbm_to_vmem [thread:$0]  %s77, 16, %s1853, [#allocation54]
        $region168: #{tpu_custom_call.1} parent=11 // pred_fallthru
          _
        // Predicated region
        $region169: #{tpu_custom_call.1} parent=11 // pred_check
          %p1856 = pneg %p994
        $region170: #{tpu_custom_call.1} parent=11 // pred_check_branch
          %1858 = sbr.rel (%p1856) target = $region172
        $region171: #{tpu_custom_call.1} parent=11 // pred_region
          %s1860 = ssub.s32 16, 16
          %1861 = vsyncadd [#allocation54], %s1860
          %s1863 = sshll.u32 [#allocation55], 4
          %s1864 = int_to_ptr.vmem [resolvable:$true] %s1863
          %1866 = dma.hbm_to_vmem [thread:$0]  %s79, 16, %s1864, [#allocation54]
        $region172: #{tpu_custom_call.1} parent=11 // pred_fallthru
          _
        // Predicated region
        $region173: #{tpu_custom_call.1} parent=11 // pred_check
          %p1867 = pneg %p1015
        $region174: #{tpu_custom_call.1} parent=11 // pred_check_branch
          %1869 = sbr.rel (%p1867) target = $region176
        $region175: #{tpu_custom_call.1} parent=11 // pred_region
          %s1871 = ssub.s32 4096, 4096
          %1872 = vsyncadd [#allocation57], %s1871
          %s1873 = sshll.u32 [#allocation56], 4
          %s1874 = int_to_ptr.vmem [resolvable:$true] %s1873
          %1879 = dma.hbm_to_vmem [thread:$0]  %s81, 4096, %s1874, [#allocation57], 64, 64, 4
        $region176: #{tpu_custom_call.1} parent=11 // pred_fallthru
          _
        // Predicated region
        $region177: #{tpu_custom_call.1} parent=11 // pred_check
          %p1880 = pneg %p1036
        $region178: #{tpu_custom_call.1} parent=11 // pred_check_branch
          %1882 = sbr.rel (%p1880) target = $region180
        $region179: #{tpu_custom_call.1} parent=11 // pred_region
          %s1884 = ssub.s32 16, 16
          %1885 = vsyncadd [#allocation57], %s1884
          %s1887 = sshll.u32 [#allocation58], 4
          %s1888 = int_to_ptr.vmem [resolvable:$true] %s1887
          %1890 = dma.hbm_to_vmem [thread:$0]  %s83, 16, %s1888, [#allocation57]
        $region180: #{tpu_custom_call.1} parent=11 // pred_fallthru
          _
        // Predicated region
        $region181: #{tpu_custom_call.1} parent=11 // pred_check
          %p1891 = pneg %p1057
        $region182: #{tpu_custom_call.1} parent=11 // pred_check_branch
          %1893 = sbr.rel (%p1891) target = $region184
        $region183: #{tpu_custom_call.1} parent=11 // pred_region
          _
        $region184: #{tpu_custom_call.1} parent=11 // pred_fallthru
          _
        // Predicated region
        $region185: #{tpu_custom_call.1} parent=11 // pred_check
          %p1894 = pneg %p1078
        $region186: #{tpu_custom_call.1} parent=11 // pred_check_branch
          %1896 = sbr.rel (%p1894) target = $region188
        $region187: #{tpu_custom_call.1} parent=11 // pred_region
          _
        $region188: #{tpu_custom_call.1} parent=11 // pred_fallthru
          _
        // Predicated region
        $region189: #{tpu_custom_call.1} parent=11 // pred_check
          %p1897 = pneg %p1099
        $region190: #{tpu_custom_call.1} parent=11 // pred_check_branch
          %1899 = sbr.rel (%p1897) target = $region192
        $region191: #{tpu_custom_call.1} parent=11 // pred_region
          _
        $region192: #{tpu_custom_call.1} parent=11 // pred_fallthru
          _
        // Predicated region
        $region193: #{tpu_custom_call.1} parent=11 // pred_check
          %p1900 = pneg %p1120
        $region194: #{tpu_custom_call.1} parent=11 // pred_check_branch
          %1902 = sbr.rel (%p1900) target = $region196
        $region195: #{tpu_custom_call.1} parent=11 // pred_region
          _
        $region196: #{tpu_custom_call.1} parent=11 // pred_fallthru
          _
        // Predicated region
        $region197: #{tpu_custom_call.1} parent=11 // pred_check
          %p1903 = pneg %p1141
        $region198: #{tpu_custom_call.1} parent=11 // pred_check_branch
          %1905 = sbr.rel (%p1903) target = $region200
        $region199: #{tpu_custom_call.1} parent=11 // pred_region
          %s1907 = ssub.s32 1024, 1024
          %1908 = vsyncadd [#allocation60], %s1907
          %s1909 = sshll.u32 [#allocation59], 4
          %s1910 = int_to_ptr.vmem [resolvable:$true] %s1909
          %1915 = dma.hbm_to_vmem [thread:$0]  %s93, 1024, %s1910, [#allocation60], 64, 64, 4
        $region200: #{tpu_custom_call.1} parent=11 // pred_fallthru
          _
        // Predicated region
        $region201: #{tpu_custom_call.1} parent=11 // pred_check
          %p1916 = pneg %p1162
        $region202: #{tpu_custom_call.1} parent=11 // pred_check_branch
          %1918 = sbr.rel (%p1916) target = $region204
        $region203: #{tpu_custom_call.1} parent=11 // pred_region
          _
        $region204: #{tpu_custom_call.1} parent=11 // pred_fallthru
          _
        // Predicated region
        $region205: #{tpu_custom_call.1} parent=11 // pred_check
          %p1919 = pneg %p1183
        $region206: #{tpu_custom_call.1} parent=11 // pred_check_branch
          %1921 = sbr.rel (%p1919) target = $region208
        $region207: #{tpu_custom_call.1} parent=11 // pred_region
          %s1923 = ssub.s32 1024, 1024
          %1924 = vsyncadd [#allocation60], %s1923
          %s1925 = sshll.u32 [#allocation61], 4
          %s1926 = int_to_ptr.vmem [resolvable:$true] %s1925
          %1931 = dma.hbm_to_vmem [thread:$0]  %s97, 1024, %s1926, [#allocation60], 64, 64, 4
        $region208: #{tpu_custom_call.1} parent=11 // pred_fallthru
          _
        // Predicated region
        $region209: #{tpu_custom_call.1} parent=11 // pred_check
          %p1932 = pneg %p1204
        $region210: #{tpu_custom_call.1} parent=11 // pred_check_branch
          %1934 = sbr.rel (%p1932) target = $region212
        $region211: #{tpu_custom_call.1} parent=11 // pred_region
          _
        $region212: #{tpu_custom_call.1} parent=11 // pred_fallthru
          _
        // Predicated region
        $region213: #{tpu_custom_call.1} parent=11 // pred_check
          %p1935 = pneg %p1225
        $region214: #{tpu_custom_call.1} parent=11 // pred_check_branch
          %1937 = sbr.rel (%p1935) target = $region216
        $region215: #{tpu_custom_call.1} parent=11 // pred_region
          _
        $region216: #{tpu_custom_call.1} parent=11 // pred_fallthru
          _
        // Predicated region
        $region217: #{tpu_custom_call.1} parent=11 // pred_check
          %p1938 = pneg %p1246
        $region218: #{tpu_custom_call.1} parent=11 // pred_check_branch
          %1940 = sbr.rel (%p1938) target = $region220
        $region219: #{tpu_custom_call.1} parent=11 // pred_region
          _
        $region220: #{tpu_custom_call.1} parent=11 // pred_fallthru
          _
        // Predicated region
        $region221: #{tpu_custom_call.1} parent=11 // pred_check
          %p1941 = pneg %p1267
        $region222: #{tpu_custom_call.1} parent=11 // pred_check_branch
          %1943 = sbr.rel (%p1941) target = $region224
        $region223: #{tpu_custom_call.1} parent=11 // pred_region
          %s1945 = ssub.s32 1024, 1024
          %1946 = vsyncadd [#allocation63], %s1945
          %s1947 = sshll.u32 [#allocation62], 4
          %s1948 = int_to_ptr.vmem [resolvable:$true] %s1947
          %1953 = dma.hbm_to_vmem [thread:$0]  %s105, 1024, %s1948, [#allocation63], 64, 64, 4
        $region224: #{tpu_custom_call.1} parent=11 // pred_fallthru
          _
        // Predicated region
        $region225: #{tpu_custom_call.1} parent=11 // pred_check
          %p1954 = pneg %p1288
        $region226: #{tpu_custom_call.1} parent=11 // pred_check_branch
          %1956 = sbr.rel (%p1954) target = $region228
        $region227: #{tpu_custom_call.1} parent=11 // pred_region
          _
        $region228: #{tpu_custom_call.1} parent=11 // pred_fallthru
          _
        // Predicated region
        $region229: #{tpu_custom_call.1} parent=11 // pred_check
          %p1957 = pneg %p1309
        $region230: #{tpu_custom_call.1} parent=11 // pred_check_branch
          %1959 = sbr.rel (%p1957) target = $region232
        $region231: #{tpu_custom_call.1} parent=11 // pred_region
          %s1961 = ssub.s32 1024, 1024
          %1962 = vsyncadd [#allocation63], %s1961
          %s1963 = sshll.u32 [#allocation64], 4
          %s1964 = int_to_ptr.vmem [resolvable:$true] %s1963
          %1969 = dma.hbm_to_vmem [thread:$0]  %s109, 1024, %s1964, [#allocation63], 64, 64, 4
        $region232: #{tpu_custom_call.1} parent=11 // pred_fallthru
          _
        // Predicated region
        $region233: #{tpu_custom_call.1} parent=11 // pred_check
          %p1970 = pneg %p1330
        $region234: #{tpu_custom_call.1} parent=11 // pred_check_branch
          %1972 = sbr.rel (%p1970) target = $region236
        $region235: #{tpu_custom_call.1} parent=11 // pred_region
          _
        $region236: #{tpu_custom_call.1} parent=11 // pred_fallthru
          _
        // Predicated region
        $region237: #{tpu_custom_call.1} parent=11 // pred_check
          %p1973 = pneg %p1351
        $region238: #{tpu_custom_call.1} parent=11 // pred_check_branch
          %1975 = sbr.rel (%p1973) target = $region240
        $region239: #{tpu_custom_call.1} parent=11 // pred_region
          _
        $region240: #{tpu_custom_call.1} parent=11 // pred_fallthru
          _
        // Predicated region
        $region241: #{tpu_custom_call.1} parent=11 // pred_check
          %p1976 = pneg %p1372
        $region242: #{tpu_custom_call.1} parent=11 // pred_check_branch
          %1978 = sbr.rel (%p1976) target = $region244
        $region243: #{tpu_custom_call.1} parent=11 // pred_region
          _
        $region244: #{tpu_custom_call.1} parent=11 // pred_fallthru
          _
      $region12: #{tpu_custom_call.1} parent=5 // pred_fallthru
        _
      %p1979 = scmp.lt.s32.totalorder %s154, 2
      // Predicated region
      $region245: #{tpu_custom_call.1} parent=5 // pred_check
        %p1980 = pneg %p1979
      $region246: #{tpu_custom_call.1} parent=5 // pred_check_branch
        %1982 = sbr.rel (%p1980) target = $region248
      $region247: #{tpu_custom_call.1} parent=5 // pred_region
        _
      $region248: #{tpu_custom_call.1} parent=5 // pred_fallthru
        _
      %p1983 = scmp.le.s32.totalorder 1, %s154
      %p1984 = scmp.lt.s32.totalorder %s154, 3
      %p1985 = pnand %p1983, %p1984
      %p1986 = pneg %p1985
      // Predicated region
      $region249: #{tpu_custom_call.1} parent=5 // pred_check
        _
      $region250: #{tpu_custom_call.1} parent=5 // pred_check_branch
        %1988 = sbr.rel (%p1985) target = $region252
      $region251: #{tpu_custom_call.1} parent=5 // pred_region
        %s1989 = ssub.s32 %s154, 1
        // Predicated region
        $region253: #{tpu_custom_call.1} parent=251 // pred_check
          %p1990 = pneg %p175
        $region254: #{tpu_custom_call.1} parent=251 // pred_check_branch
          %1992 = sbr.rel (%p1990) target = $region256
        $region255: #{tpu_custom_call.1} parent=251 // pred_region
          %1993 = dma.done [#allocation6], 128
        $region256: #{tpu_custom_call.1} parent=251 // pred_fallthru
          _
        // Predicated region
        $region257: #{tpu_custom_call.1} parent=251 // pred_check
          %p1994 = pneg %p196
        $region258: #{tpu_custom_call.1} parent=251 // pred_check_branch
          %1996 = sbr.rel (%p1994) target = $region260
        $region259: #{tpu_custom_call.1} parent=251 // pred_region
          %1997 = dma.done [#allocation9], 256
        $region260: #{tpu_custom_call.1} parent=251 // pred_fallthru
          _
        // Predicated region
        $region261: #{tpu_custom_call.1} parent=251 // pred_check
          %p1998 = pneg %p217
        $region262: #{tpu_custom_call.1} parent=251 // pred_check_branch
          %2000 = sbr.rel (%p1998) target = $region264
        $region263: #{tpu_custom_call.1} parent=251 // pred_region
          %2001 = dma.done [#allocation9], 32
        $region264: #{tpu_custom_call.1} parent=251 // pred_fallthru
          _
        // Predicated region
        $region265: #{tpu_custom_call.1} parent=251 // pred_check
          %p2002 = pneg %p280
        $region266: #{tpu_custom_call.1} parent=251 // pred_check_branch
          %2004 = sbr.rel (%p2002) target = $region268
        $region267: #{tpu_custom_call.1} parent=251 // pred_region
          %2005 = dma.done [#allocation12], 64
        $region268: #{tpu_custom_call.1} parent=251 // pred_fallthru
          _
        // Predicated region
        $region269: #{tpu_custom_call.1} parent=251 // pred_check
          %p2006 = pneg %p322
        $region270: #{tpu_custom_call.1} parent=251 // pred_check_branch
          %2008 = sbr.rel (%p2006) target = $region272
        $region271: #{tpu_custom_call.1} parent=251 // pred_region
          %2009 = dma.done [#allocation12], 16
        $region272: #{tpu_custom_call.1} parent=251 // pred_fallthru
          _
        // Predicated region
        $region273: #{tpu_custom_call.1} parent=251 // pred_check
          %p2010 = pneg %p364
        $region274: #{tpu_custom_call.1} parent=251 // pred_check_branch
          %2012 = sbr.rel (%p2010) target = $region276
        $region275: #{tpu_custom_call.1} parent=251 // pred_region
          %2013 = dma.done [#allocation15], 16
        $region276: #{tpu_custom_call.1} parent=251 // pred_fallthru
          _
        // Predicated region
        $region277: #{tpu_custom_call.1} parent=251 // pred_check
          %p2014 = pneg %p406
        $region278: #{tpu_custom_call.1} parent=251 // pred_check_branch
          %2016 = sbr.rel (%p2014) target = $region280
        $region279: #{tpu_custom_call.1} parent=251 // pred_region
          %2017 = dma.done [#allocation15], 16
        $region280: #{tpu_custom_call.1} parent=251 // pred_fallthru
          _
        // Predicated region
        $region281: #{tpu_custom_call.1} parent=251 // pred_check
          %p2018 = pneg %p427
        $region282: #{tpu_custom_call.1} parent=251 // pred_check_branch
          %2020 = sbr.rel (%p2018) target = $region284
        $region283: #{tpu_custom_call.1} parent=251 // pred_region
          %2021 = dma.done [#allocation18], 1024
        $region284: #{tpu_custom_call.1} parent=251 // pred_fallthru
          _
        // Predicated region
        $region285: #{tpu_custom_call.1} parent=251 // pred_check
          %p2022 = pneg %p448
        $region286: #{tpu_custom_call.1} parent=251 // pred_check_branch
          %2024 = sbr.rel (%p2022) target = $region288
        $region287: #{tpu_custom_call.1} parent=251 // pred_region
          %2025 = dma.done [#allocation18], 16
        $region288: #{tpu_custom_call.1} parent=251 // pred_fallthru
          _
        // Predicated region
        $region289: #{tpu_custom_call.1} parent=251 // pred_check
          %p2026 = pneg %p469
        $region290: #{tpu_custom_call.1} parent=251 // pred_check_branch
          %2028 = sbr.rel (%p2026) target = $region292
        $region291: #{tpu_custom_call.1} parent=251 // pred_region
          %2029 = dma.done [#allocation21], 16
        $region292: #{tpu_custom_call.1} parent=251 // pred_fallthru
          _
        // Predicated region
        $region293: #{tpu_custom_call.1} parent=251 // pred_check
          %p2030 = pneg %p490
        $region294: #{tpu_custom_call.1} parent=251 // pred_check_branch
          %2032 = sbr.rel (%p2030) target = $region296
        $region295: #{tpu_custom_call.1} parent=251 // pred_region
          %2033 = dma.done [#allocation21], 16
        $region296: #{tpu_custom_call.1} parent=251 // pred_fallthru
          _
        // Predicated region
        $region297: #{tpu_custom_call.1} parent=251 // pred_check
          %p2034 = pneg %p511
        $region298: #{tpu_custom_call.1} parent=251 // pred_check_branch
          %2036 = sbr.rel (%p2034) target = $region300
        $region299: #{tpu_custom_call.1} parent=251 // pred_region
          %2037 = dma.done [#allocation24], 1024
        $region300: #{tpu_custom_call.1} parent=251 // pred_fallthru
          _
        // Predicated region
        $region301: #{tpu_custom_call.1} parent=251 // pred_check
          %p2038 = pneg %p532
        $region302: #{tpu_custom_call.1} parent=251 // pred_check_branch
          %2040 = sbr.rel (%p2038) target = $region304
        $region303: #{tpu_custom_call.1} parent=251 // pred_region
          %2041 = dma.done [#allocation24], 16
        $region304: #{tpu_custom_call.1} parent=251 // pred_fallthru
          _
        // Predicated region
        $region305: #{tpu_custom_call.1} parent=251 // pred_check
          %p2042 = pneg %p553
        $region306: #{tpu_custom_call.1} parent=251 // pred_check_branch
          %2044 = sbr.rel (%p2042) target = $region308
        $region307: #{tpu_custom_call.1} parent=251 // pred_region
          %2045 = dma.done [#allocation27], 1024
        $region308: #{tpu_custom_call.1} parent=251 // pred_fallthru
          _
        // Predicated region
        $region309: #{tpu_custom_call.1} parent=251 // pred_check
          %p2046 = pneg %p574
        $region310: #{tpu_custom_call.1} parent=251 // pred_check_branch
          %2048 = sbr.rel (%p2046) target = $region312
        $region311: #{tpu_custom_call.1} parent=251 // pred_region
          %2049 = dma.done [#allocation27], 16
        $region312: #{tpu_custom_call.1} parent=251 // pred_fallthru
          _
        // Predicated region
        $region313: #{tpu_custom_call.1} parent=251 // pred_check
          %p2050 = pneg %p595
        $region314: #{tpu_custom_call.1} parent=251 // pred_check_branch
          %2052 = sbr.rel (%p2050) target = $region316
        $region315: #{tpu_custom_call.1} parent=251 // pred_region
          %2053 = dma.done [#allocation30], 16
        $region316: #{tpu_custom_call.1} parent=251 // pred_fallthru
          _
        // Predicated region
        $region317: #{tpu_custom_call.1} parent=251 // pred_check
          %p2054 = pneg %p616
        $region318: #{tpu_custom_call.1} parent=251 // pred_check_branch
          %2056 = sbr.rel (%p2054) target = $region320
        $region319: #{tpu_custom_call.1} parent=251 // pred_region
          %2057 = dma.done [#allocation30], 16
        $region320: #{tpu_custom_call.1} parent=251 // pred_fallthru
          _
        // Predicated region
        $region321: #{tpu_custom_call.1} parent=251 // pred_check
          %p2058 = pneg %p637
        $region322: #{tpu_custom_call.1} parent=251 // pred_check_branch
          %2060 = sbr.rel (%p2058) target = $region324
        $region323: #{tpu_custom_call.1} parent=251 // pred_region
          %2061 = dma.done [#allocation33], 1024
        $region324: #{tpu_custom_call.1} parent=251 // pred_fallthru
          _
        // Predicated region
        $region325: #{tpu_custom_call.1} parent=251 // pred_check
          %p2062 = pneg %p658
        $region326: #{tpu_custom_call.1} parent=251 // pred_check_branch
          %2064 = sbr.rel (%p2062) target = $region328
        $region327: #{tpu_custom_call.1} parent=251 // pred_region
          %2065 = dma.done [#allocation33], 16
        $region328: #{tpu_custom_call.1} parent=251 // pred_fallthru
          _
        // Predicated region
        $region329: #{tpu_custom_call.1} parent=251 // pred_check
          %p2066 = pneg %p721
        $region330: #{tpu_custom_call.1} parent=251 // pred_check_branch
          %2068 = sbr.rel (%p2066) target = $region332
        $region331: #{tpu_custom_call.1} parent=251 // pred_region
          %2069 = dma.done [#allocation36], 16
        $region332: #{tpu_custom_call.1} parent=251 // pred_fallthru
          _
        // Predicated region
        $region333: #{tpu_custom_call.1} parent=251 // pred_check
          %p2070 = pneg %p742
        $region334: #{tpu_custom_call.1} parent=251 // pred_check_branch
          %2072 = sbr.rel (%p2070) target = $region336
        $region335: #{tpu_custom_call.1} parent=251 // pred_region
          %2073 = dma.done [#allocation36], 16
        $region336: #{tpu_custom_call.1} parent=251 // pred_fallthru
          _
        // Predicated region
        $region337: #{tpu_custom_call.1} parent=251 // pred_check
          %p2074 = pneg %p763
        $region338: #{tpu_custom_call.1} parent=251 // pred_check_branch
          %2076 = sbr.rel (%p2074) target = $region340
        $region339: #{tpu_custom_call.1} parent=251 // pred_region
          %2077 = dma.done [#allocation39], 8192
        $region340: #{tpu_custom_call.1} parent=251 // pred_fallthru
          _
        // Predicated region
        $region341: #{tpu_custom_call.1} parent=251 // pred_check
          %p2078 = pneg %p784
        $region342: #{tpu_custom_call.1} parent=251 // pred_check_branch
          %2080 = sbr.rel (%p2078) target = $region344
        $region343: #{tpu_custom_call.1} parent=251 // pred_region
          %2081 = dma.done [#allocation39], 16
        $region344: #{tpu_custom_call.1} parent=251 // pred_fallthru
          _
        // Predicated region
        $region345: #{tpu_custom_call.1} parent=251 // pred_check
          %p2082 = pneg %p805
        $region346: #{tpu_custom_call.1} parent=251 // pred_check_branch
          %2084 = sbr.rel (%p2082) target = $region348
        $region347: #{tpu_custom_call.1} parent=251 // pred_region
          %2085 = dma.done [#allocation42], 1024
        $region348: #{tpu_custom_call.1} parent=251 // pred_fallthru
          _
        // Predicated region
        $region349: #{tpu_custom_call.1} parent=251 // pred_check
          %p2086 = pneg %p826
        $region350: #{tpu_custom_call.1} parent=251 // pred_check_branch
          %2088 = sbr.rel (%p2086) target = $region352
        $region351: #{tpu_custom_call.1} parent=251 // pred_region
          %2089 = dma.done [#allocation42], 16
        $region352: #{tpu_custom_call.1} parent=251 // pred_fallthru
          _
        // Predicated region
        $region353: #{tpu_custom_call.1} parent=251 // pred_check
          %p2090 = pneg %p847
        $region354: #{tpu_custom_call.1} parent=251 // pred_check_branch
          %2092 = sbr.rel (%p2090) target = $region356
        $region355: #{tpu_custom_call.1} parent=251 // pred_region
          %2093 = dma.done [#allocation45], 16
        $region356: #{tpu_custom_call.1} parent=251 // pred_fallthru
          _
        // Predicated region
        $region357: #{tpu_custom_call.1} parent=251 // pred_check
          %p2094 = pneg %p868
        $region358: #{tpu_custom_call.1} parent=251 // pred_check_branch
          %2096 = sbr.rel (%p2094) target = $region360
        $region359: #{tpu_custom_call.1} parent=251 // pred_region
          %2097 = dma.done [#allocation45], 16
        $region360: #{tpu_custom_call.1} parent=251 // pred_fallthru
          _
        // Predicated region
        $region361: #{tpu_custom_call.1} parent=251 // pred_check
          %p2098 = pneg %p889
        $region362: #{tpu_custom_call.1} parent=251 // pred_check_branch
          %2100 = sbr.rel (%p2098) target = $region364
        $region363: #{tpu_custom_call.1} parent=251 // pred_region
          %2101 = dma.done [#allocation48], 5120
        $region364: #{tpu_custom_call.1} parent=251 // pred_fallthru
          _
        // Predicated region
        $region365: #{tpu_custom_call.1} parent=251 // pred_check
          %p2102 = pneg %p910
        $region366: #{tpu_custom_call.1} parent=251 // pred_check_branch
          %2104 = sbr.rel (%p2102) target = $region368
        $region367: #{tpu_custom_call.1} parent=251 // pred_region
          %2105 = dma.done [#allocation48], 16
        $region368: #{tpu_custom_call.1} parent=251 // pred_fallthru
          _
        // Predicated region
        $region369: #{tpu_custom_call.1} parent=251 // pred_check
          %p2106 = pneg %p931
        $region370: #{tpu_custom_call.1} parent=251 // pred_check_branch
          %2108 = sbr.rel (%p2106) target = $region372
        $region371: #{tpu_custom_call.1} parent=251 // pred_region
          %2109 = dma.done [#allocation51], 1024
        $region372: #{tpu_custom_call.1} parent=251 // pred_fallthru
          _
        // Predicated region
        $region373: #{tpu_custom_call.1} parent=251 // pred_check
          %p2110 = pneg %p952
        $region374: #{tpu_custom_call.1} parent=251 // pred_check_branch
          %2112 = sbr.rel (%p2110) target = $region376
        $region375: #{tpu_custom_call.1} parent=251 // pred_region
          %2113 = dma.done [#allocation51], 16
        $region376: #{tpu_custom_call.1} parent=251 // pred_fallthru
          _
        // Predicated region
        $region377: #{tpu_custom_call.1} parent=251 // pred_check
          %p2114 = pneg %p973
        $region378: #{tpu_custom_call.1} parent=251 // pred_check_branch
          %2116 = sbr.rel (%p2114) target = $region380
        $region379: #{tpu_custom_call.1} parent=251 // pred_region
          %2117 = dma.done [#allocation54], 16
        $region380: #{tpu_custom_call.1} parent=251 // pred_fallthru
          _
        // Predicated region
        $region381: #{tpu_custom_call.1} parent=251 // pred_check
          %p2118 = pneg %p994
        $region382: #{tpu_custom_call.1} parent=251 // pred_check_branch
          %2120 = sbr.rel (%p2118) target = $region384
        $region383: #{tpu_custom_call.1} parent=251 // pred_region
          %2121 = dma.done [#allocation54], 16
        $region384: #{tpu_custom_call.1} parent=251 // pred_fallthru
          _
        // Predicated region
        $region385: #{tpu_custom_call.1} parent=251 // pred_check
          %p2122 = pneg %p1015
        $region386: #{tpu_custom_call.1} parent=251 // pred_check_branch
          %2124 = sbr.rel (%p2122) target = $region388
        $region387: #{tpu_custom_call.1} parent=251 // pred_region
          %2125 = dma.done [#allocation57], 4096
        $region388: #{tpu_custom_call.1} parent=251 // pred_fallthru
          _
        // Predicated region
        $region389: #{tpu_custom_call.1} parent=251 // pred_check
          %p2126 = pneg %p1036
        $region390: #{tpu_custom_call.1} parent=251 // pred_check_branch
          %2128 = sbr.rel (%p2126) target = $region392
        $region391: #{tpu_custom_call.1} parent=251 // pred_region
          %2129 = dma.done [#allocation57], 16
        $region392: #{tpu_custom_call.1} parent=251 // pred_fallthru
          _
        // Predicated region
        $region393: #{tpu_custom_call.1} parent=251 // pred_check
          %p2130 = pneg %p1141
        $region394: #{tpu_custom_call.1} parent=251 // pred_check_branch
          %2132 = sbr.rel (%p2130) target = $region396
        $region395: #{tpu_custom_call.1} parent=251 // pred_region
          %2133 = dma.done [#allocation60], 1024
        $region396: #{tpu_custom_call.1} parent=251 // pred_fallthru
          _
        // Predicated region
        $region397: #{tpu_custom_call.1} parent=251 // pred_check
          %p2134 = pneg %p1183
        $region398: #{tpu_custom_call.1} parent=251 // pred_check_branch
          %2136 = sbr.rel (%p2134) target = $region400
        $region399: #{tpu_custom_call.1} parent=251 // pred_region
          %2137 = dma.done [#allocation60], 1024
        $region400: #{tpu_custom_call.1} parent=251 // pred_fallthru
          _
        // Predicated region
        $region401: #{tpu_custom_call.1} parent=251 // pred_check
          %p2138 = pneg %p1267
        $region402: #{tpu_custom_call.1} parent=251 // pred_check_branch
          %2140 = sbr.rel (%p2138) target = $region404
        $region403: #{tpu_custom_call.1} parent=251 // pred_region
          %2141 = dma.done [#allocation63], 1024
        $region404: #{tpu_custom_call.1} parent=251 // pred_fallthru
          _
        // Predicated region
        $region405: #{tpu_custom_call.1} parent=251 // pred_check
          %p2142 = pneg %p1309
        $region406: #{tpu_custom_call.1} parent=251 // pred_check_branch
          %2144 = sbr.rel (%p2142) target = $region408
        $region407: #{tpu_custom_call.1} parent=251 // pred_region
          %2145 = dma.done [#allocation63], 1024
        $region408: #{tpu_custom_call.1} parent=251 // pred_fallthru
          _
        %p2146 = pneg %p175
        %p2147 = pneg %p172
        %p2148 = pneg %p196
        %p2149 = pneg %p193
        %p2150 = pneg %p217
        %p2151 = pneg %p214
        %p2152 = pneg %p238
        %p2153 = pneg %p235
        %p2154 = pneg %p259
        %p2155 = pneg %p256
        %p2156 = pneg %p280
        %p2157 = pneg %p277
        %p2158 = pneg %p301
        %p2159 = pneg %p298
        %p2160 = pneg %p322
        %p2161 = pneg %p319
        %p2162 = pneg %p343
        %p2163 = pneg %p340
        %p2164 = pneg %p364
        %p2165 = pneg %p361
        %p2166 = pneg %p385
        %p2167 = pneg %p382
        %p2168 = pneg %p406
        %p2169 = pneg %p403
        %p2170 = pneg %p427
        %p2171 = pneg %p424
        %p2172 = pneg %p448
        %p2173 = pneg %p445
        %p2174 = pneg %p469
        %p2175 = pneg %p466
        %p2176 = pneg %p490
        %p2177 = pneg %p487
        %p2178 = pneg %p511
        %p2179 = pneg %p508
        %p2180 = pneg %p532
        %p2181 = pneg %p529
        %p2182 = pneg %p553
        %p2183 = pneg %p550
        %p2184 = pneg %p574
        %p2185 = pneg %p571
        %p2186 = pneg %p595
        %p2187 = pneg %p592
        %p2188 = pneg %p616
        %p2189 = pneg %p613
        %p2190 = pneg %p637
        %p2191 = pneg %p634
        %p2192 = pneg %p658
        %p2193 = pneg %p655
        %p2194 = pneg %p679
        %p2195 = pneg %p676
        %p2196 = pneg %p700
        %p2197 = pneg %p697
        %p2198 = pneg %p721
        %p2199 = pneg %p718
        %p2200 = pneg %p742
        %p2201 = pneg %p739
        %p2202 = pneg %p763
        %p2203 = pneg %p760
        %p2204 = pneg %p784
        %p2205 = pneg %p781
        %p2206 = pneg %p805
        %p2207 = pneg %p802
        %p2208 = pneg %p826
        %p2209 = pneg %p823
        %p2210 = pneg %p847
        %p2211 = pneg %p844
        %p2212 = pneg %p868
        %p2213 = pneg %p865
        %p2214 = pneg %p889
        %p2215 = pneg %p886
        %p2216 = pneg %p910
        %p2217 = pneg %p907
        %p2218 = pneg %p931
        %p2219 = pneg %p928
        %p2220 = pneg %p952
        %p2221 = pneg %p949
        %p2222 = pneg %p973
        %p2223 = pneg %p970
        %p2224 = pneg %p994
        %p2225 = pneg %p991
        %p2226 = pneg %p1015
        %p2227 = pneg %p1012
        %p2228 = pneg %p1036
        %p2229 = pneg %p1033
        %p2230 = pneg %p1057
        %p2231 = pneg %p1054
        %p2232 = pneg %p1078
        %p2233 = pneg %p1075
        %p2234 = pneg %p1099
        %p2235 = pneg %p1096
        %p2236 = pneg %p1120
        %p2237 = pneg %p1117
        %p2238 = pneg %p1141
        %p2239 = pneg %p1138
        %p2240 = pneg %p1162
        %p2241 = pneg %p1159
        %p2242 = pneg %p1183
        %p2243 = pneg %p1180
        %p2244 = pneg %p1204
        %p2245 = pneg %p1201
        %p2246 = pneg %p1225
        %p2247 = pneg %p1222
        %p2248 = pneg %p1246
        %p2249 = pneg %p1243
        %p2250 = pneg %p1267
        %p2251 = pneg %p1264
        %p2252 = pneg %p1288
        %p2253 = pneg %p1285
        %p2254 = pneg %p1309
        %p2255 = pneg %p1306
        %p2256 = pneg %p1330
        %p2257 = pneg %p1327
        %p2258 = pneg %p1351
        %p2259 = pneg %p1348
        %p2260 = pneg %p1372
        %p2261 = pneg %p1369
        %p2262 = pneg %p1398
        %p2263 = pneg %p1395
        %s2264 = sand.u32 %s1385, 1
        %s2265 = scalar_lea.sflag [#allocation7], %s2264
        %s2266 = sand.u32 %s1385, 1
        %s2267 = smul.addr %s2266, 8
        %s2268 = scalar_lea.vmem [#allocation65], %s2267
        %p2269 = pneg %p1424
        %p2270 = pneg %p1421
        %p2271 = scmp.lt.s32.totalorder %s159, 1
        %s2272 = scalar_select %p2271, %s159, 1
        %s2273 = smul.addr %s2272, 2
        %s2274 = smul.addr %s2273, 8
        %s2275 = scalar_lea.vmem %s119, %s2274
        %p2276 = pneg %p1450
        %p2277 = pneg %p1447
        %s2278 = sand.u32 %s1437, 1
        %s2279 = scalar_lea.sflag [#allocation67], %s2278
        %s2280 = sand.u32 %s1437, 1
        %s2281 = smul.addr %s2280, 2
        %s2282 = scalar_lea.vmem [#allocation66], %s2281
        %p2283 = scmp.lt.s32.totalorder %s159, 1
        %s2284 = scalar_select %p2283, %s159, 1
        %s2285 = smul.addr %s2284, 2
        %s2286 = smul.addr %s2285, 8
        %s2287 = scalar_lea.vmem %s119, %s2286
        %p2289 = scmp.eq.s32.totalorder %s159, 0
        // Predicated region
        $region409: #{tpu_custom_call.1} parent=251 // pred_check
          %p2290 = pneg %p2289
        $region410: #{tpu_custom_call.1} parent=251 // pred_check_branch
          %2292 = sbr.rel (%p2290) target = $region412
        $region411: #{tpu_custom_call.1} parent=251 // pred_region
          %v2293 = vld [vmem:[#allocation5] sm:$0xff]
          %v2294 = vpack.c.bf16 %v2293, %v2293
          %v2295 = vld [vmem:[%s21] sm:$0xf]
          %v2296 = vld [vmem:[%s21 + $0x4] sm:$0xf]
          %v2297 = vld [vmem:[%s21 + $0x8] sm:$0xf]
          %v2298 = vld [vmem:[%s21 + $0xc] sm:$0xf]
          %v2299 = vld [vmem:[%s21 + $0x10] sm:$0xf]
          %v2300 = vld [vmem:[%s21 + $0x14] sm:$0xf]
          %v2301 = vld [vmem:[%s21 + $0x18] sm:$0xf]
          %v2302 = vld [vmem:[%s21 + $0x1c] sm:$0xf]
          %v2303 = vld [vmem:[%s21 + $0x20] sm:$0xf]
          %v2304 = vld [vmem:[%s21 + $0x24] sm:$0xf]
          %v2305 = vld [vmem:[%s21 + $0x28] sm:$0xf]
          %v2306 = vld [vmem:[%s21 + $0x2c] sm:$0xf]
          %v2307 = vld [vmem:[%s21 + $0x30] sm:$0xf]
          %v2308 = vld [vmem:[%s21 + $0x34] sm:$0xf]
          %v2309 = vld [vmem:[%s21 + $0x38] sm:$0xf]
          %v2310 = vld [vmem:[%s21 + $0x3c] sm:$0xf]
          %v2311 = vld [vmem:[#allocation16] sm:$0x1]
          %v2313 = vlaneseq
          %v2314 = vshrl.u32 %v2313, 7
          %v2315 = vsub.s32 0, %v2314
          %v2316 = vrot.slane %v2311, %v2315
          %v2334 = vunpack.c.l.b16 %v2295
          %v2335 = vunpack.c.l.b16 %v2296
          %v2336 = vunpack.c.l.b16 %v2297
          %v2337 = vunpack.c.l.b16 %v2298
          %v2338 = vunpack.c.l.b16 %v2299
          %v2339 = vunpack.c.l.b16 %v2300
          %v2340 = vunpack.c.l.b16 %v2301
          %v2341 = vunpack.c.l.b16 %v2302
          %v2342 = vunpack.c.l.b16 %v2303
          %v2343 = vunpack.c.l.b16 %v2304
          %v2344 = vunpack.c.l.b16 %v2305
          %v2345 = vunpack.c.l.b16 %v2306
          %v2346 = vunpack.c.l.b16 %v2307
          %v2347 = vunpack.c.l.b16 %v2308
          %v2348 = vunpack.c.l.b16 %v2309
          %v2349 = vunpack.c.l.b16 %v2310
          %v2350 = vpack.c.b16 %v2335, %v2334
          %v2351 = vpack.c.b16 %v2337, %v2336
          %v2352 = vpack.c.b16 %v2339, %v2338
          %v2353 = vpack.c.b16 %v2341, %v2340
          %v2354 = vpack.c.b16 %v2343, %v2342
          %v2355 = vpack.c.b16 %v2345, %v2344
          %v2356 = vpack.c.b16 %v2347, %v2346
          %v2357 = vpack.c.b16 %v2349, %v2348
          %2366 = vmatprep.subr.bf16.mxu0 0
          %2367 = vmatpush1.bf16.msra.mxu0 %v2350
          %2368 = vmatprep.subr.bf16.mxu0 0
          %2369 = vmatpush1.bf16.msra.mxu0 %v2351
          %2370 = vmatprep.subr.bf16.mxu0 0
          %2371 = vmatpush1.bf16.msra.mxu0 %v2352
          %2372 = vmatprep.subr.bf16.mxu0 0
          %2373 = vmatpush1.bf16.msra.mxu0 %v2353
          %2374 = vmatprep.subr.bf16.mxu0 0
          %2375 = vmatpush1.bf16.msra.mxu0 %v2354
          %2376 = vmatprep.subr.bf16.mxu0 0
          %2377 = vmatpush1.bf16.msra.mxu0 %v2355
          %2378 = vmatprep.subr.bf16.mxu0 0
          %2379 = vmatpush1.bf16.msra.mxu0 %v2356
          %2380 = vmatprep.subr.bf16.mxu0 0
          %2381 = vmatpush1.bf16.msra.mxu0 %v2357
          %2382 = vmatprep.subr.bf16.mxu0 0
          %2383 = vmatpush1.bf16.msra.mxu0 0
          %2384 = vmatprep.subr.bf16.mxu0 0
          %2385 = vmatpush1.bf16.msra.mxu0 0
          %2386 = vmatprep.subr.bf16.mxu0 0
          %2387 = vmatpush1.bf16.msra.mxu0 0
          %2388 = vmatprep.subr.bf16.mxu0 0
          %2389 = vmatpush1.bf16.msra.mxu0 0
          %2390 = vmatprep.subr.bf16.mxu0 0
          %2391 = vmatpush1.bf16.msra.mxu0 0
          %2392 = vmatprep.subr.bf16.mxu0 0
          %2393 = vmatpush1.bf16.msra.mxu0 0
          %2394 = vmatprep.subr.bf16.mxu0 0
          %2395 = vmatpush1.bf16.msra.mxu0 0
          %2396 = vmatprep.subr.bf16.mxu0 0
          %2397 = vmatpush1.bf16.msra.mxu0 0
          %2398 = vmatprep.mubr.bf16.mxu0 0
          %2399 = vmatmul.mubr.bf16.gmra.mrb[0].mxu0 %v2294
          %v2400 = vpop.f32.mrb[0].mxu0
          %v2401 = vadd.f32 %v2316, %v2400
          %v2402 = vpop.f32.mrb[0].mxu0
          %v2403 = vpop.f32.mrb[0].mxu0
          %v2404 = vpop.f32.mrb[0].mxu0
          %2405 = vdwg.mxu0
          %v2406 = vmax.f32 %v2401, 0.0
          %v2407 = vpack.c.bf16 %v2406, %v2406
          %v2408 = vld [vmem:[#allocation17] sm:$0xf]
          %v2409 = vld [vmem:[#allocation17 + $0x4] sm:$0xf]
          %v2410 = vld [vmem:[#allocation17 + $0x8] sm:$0xf]
          %v2411 = vld [vmem:[#allocation17 + $0xc] sm:$0xf]
          %v2412 = vld [vmem:[#allocation17 + $0x10] sm:$0xf]
          %v2413 = vld [vmem:[#allocation17 + $0x14] sm:$0xf]
          %v2414 = vld [vmem:[#allocation17 + $0x18] sm:$0xf]
          %v2415 = vld [vmem:[#allocation17 + $0x1c] sm:$0xf]
          %v2416 = vld [vmem:[#allocation17 + $0x20] sm:$0xf]
          %v2417 = vld [vmem:[#allocation17 + $0x24] sm:$0xf]
          %v2418 = vld [vmem:[#allocation17 + $0x28] sm:$0xf]
          %v2419 = vld [vmem:[#allocation17 + $0x2c] sm:$0xf]
          %v2420 = vld [vmem:[#allocation17 + $0x30] sm:$0xf]
          %v2421 = vld [vmem:[#allocation17 + $0x34] sm:$0xf]
          %v2422 = vld [vmem:[#allocation17 + $0x38] sm:$0xf]
          %v2423 = vld [vmem:[#allocation17 + $0x3c] sm:$0xf]
          %v2424 = vld [vmem:[#allocation19] sm:$0x1]
          %v2426 = vlaneseq
          %v2427 = vshrl.u32 %v2426, 7
          %v2428 = vsub.s32 0, %v2427
          %v2429 = vrot.slane %v2424, %v2428
          %v2447 = vunpack.c.l.b16 %v2408
          %v2448 = vunpack.c.l.b16 %v2409
          %v2449 = vunpack.c.l.b16 %v2410
          %v2450 = vunpack.c.l.b16 %v2411
          %v2451 = vunpack.c.l.b16 %v2412
          %v2452 = vunpack.c.l.b16 %v2413
          %v2453 = vunpack.c.l.b16 %v2414
          %v2454 = vunpack.c.l.b16 %v2415
          %v2455 = vunpack.c.l.b16 %v2416
          %v2456 = vunpack.c.l.b16 %v2417
          %v2457 = vunpack.c.l.b16 %v2418
          %v2458 = vunpack.c.l.b16 %v2419
          %v2459 = vunpack.c.l.b16 %v2420
          %v2460 = vunpack.c.l.b16 %v2421
          %v2461 = vunpack.c.l.b16 %v2422
          %v2462 = vunpack.c.l.b16 %v2423
          %v2463 = vpack.c.b16 %v2448, %v2447
          %v2464 = vpack.c.b16 %v2450, %v2449
          %v2465 = vpack.c.b16 %v2452, %v2451
          %v2466 = vpack.c.b16 %v2454, %v2453
          %v2467 = vpack.c.b16 %v2456, %v2455
          %v2468 = vpack.c.b16 %v2458, %v2457
          %v2469 = vpack.c.b16 %v2460, %v2459
          %v2470 = vpack.c.b16 %v2462, %v2461
          %2479 = vmatprep.subr.bf16.mxu0 0
          %2480 = vmatpush1.bf16.msra.mxu0 %v2463
          %2481 = vmatprep.subr.bf16.mxu0 0
          %2482 = vmatpush1.bf16.msra.mxu0 %v2464
          %2483 = vmatprep.subr.bf16.mxu0 0
          %2484 = vmatpush1.bf16.msra.mxu0 %v2465
          %2485 = vmatprep.subr.bf16.mxu0 0
          %2486 = vmatpush1.bf16.msra.mxu0 %v2466
          %2487 = vmatprep.subr.bf16.mxu0 0
          %2488 = vmatpush1.bf16.msra.mxu0 %v2467
          %2489 = vmatprep.subr.bf16.mxu0 0
          %2490 = vmatpush1.bf16.msra.mxu0 %v2468
          %2491 = vmatprep.subr.bf16.mxu0 0
          %2492 = vmatpush1.bf16.msra.mxu0 %v2469
          %2493 = vmatprep.subr.bf16.mxu0 0
          %2494 = vmatpush1.bf16.msra.mxu0 %v2470
          %2495 = vmatprep.subr.bf16.mxu0 0
          %2496 = vmatpush1.bf16.msra.mxu0 0
          %2497 = vmatprep.subr.bf16.mxu0 0
          %2498 = vmatpush1.bf16.msra.mxu0 0
          %2499 = vmatprep.subr.bf16.mxu0 0
          %2500 = vmatpush1.bf16.msra.mxu0 0
          %2501 = vmatprep.subr.bf16.mxu0 0
          %2502 = vmatpush1.bf16.msra.mxu0 0
          %2503 = vmatprep.subr.bf16.mxu0 0
          %2504 = vmatpush1.bf16.msra.mxu0 0
          %2505 = vmatprep.subr.bf16.mxu0 0
          %2506 = vmatpush1.bf16.msra.mxu0 0
          %2507 = vmatprep.subr.bf16.mxu0 0
          %2508 = vmatpush1.bf16.msra.mxu0 0
          %2509 = vmatprep.subr.bf16.mxu0 0
          %2510 = vmatpush1.bf16.msra.mxu0 0
          %2511 = vmatprep.mubr.bf16.mxu0 0
          %2512 = vmatmul.mubr.bf16.gmra.mrb[0].mxu0 %v2407
          %v2513 = vpop.f32.mrb[0].mxu0
          %v2514 = vadd.f32 %v2429, %v2513
          %v2515 = vpop.f32.mrb[0].mxu0
          %v2516 = vpop.f32.mrb[0].mxu0
          %v2517 = vpop.f32.mrb[0].mxu0
          %2518 = vdwg.mxu0
          %2519 = vadd.xlane.f32.xlu0 %v2514
          %v2520 = vpop.xlane.xlu0 %2519
          %v2521 = vmul.f32 %v2520, 0.0078125
          %v2522 = vmul.f32 %v2514, %v2514
          %2523 = vadd.xlane.f32.xlu0 %v2522
          %v2524 = vpop.xlane.xlu0 %2523
          %v2525 = vmul.f32 %v2524, 0.0078125
          %v2526 = vmul.f32 %v2521, %v2521
          %v2527 = vsub.f32 %v2525, %v2526
          %v2528 = vsub.f32 %v2514, %v2521
          %v2529 = vadd.f32 %v2527, 1e-05
          %v2530 = vrsqrt.pop %v2529
          %v2531 = vmul.f32 %v2528, %v2530
          %v2532 = vld [vmem:[#allocation20] sm:$0x1]
          %v2534 = vlaneseq
          %v2535 = vshrl.u32 %v2534, 7
          %v2536 = vsub.s32 0, %v2535
          %v2537 = vrot.slane %v2532, %v2536
          %v2539 = vmul.f32 %v2531, %v2537
          %v2540 = vld [vmem:[#allocation22] sm:$0x1]
          %v2542 = vlaneseq
          %v2543 = vshrl.u32 %v2542, 7
          %v2544 = vsub.s32 0, %v2543
          %v2545 = vrot.slane %v2540, %v2544
          %v2547 = vadd.f32 %v2539, %v2545
          %v2548 = vld [vmem:[#allocation8] sm:$0xff]
          %v2549 = vld [vmem:[#allocation8 + $0x8] sm:$0xf]
          %v2550 = vpack.c.bf16 %v2549, %v2548
          %v2551 = vld [vmem:[#allocation23] sm:$0xf]
          %v2552 = vld [vmem:[#allocation23 + $0x4] sm:$0xf]
          %v2553 = vld [vmem:[#allocation23 + $0x8] sm:$0xf]
          %v2554 = vld [vmem:[#allocation23 + $0xc] sm:$0xf]
          %v2555 = vld [vmem:[#allocation23 + $0x10] sm:$0xf]
          %v2556 = vld [vmem:[#allocation23 + $0x14] sm:$0xf]
          %v2557 = vld [vmem:[#allocation23 + $0x18] sm:$0xf]
          %v2558 = vld [vmem:[#allocation23 + $0x1c] sm:$0xf]
          %v2559 = vld [vmem:[#allocation23 + $0x20] sm:$0xf]
          %v2560 = vld [vmem:[#allocation23 + $0x24] sm:$0xf]
          %v2561 = vld [vmem:[#allocation23 + $0x28] sm:$0xf]
          %v2562 = vld [vmem:[#allocation23 + $0x2c] sm:$0xf]
          %v2563 = vld [vmem:[#allocation23 + $0x30] sm:$0xf]
          %v2564 = vld [vmem:[#allocation23 + $0x34] sm:$0xf]
          %v2565 = vld [vmem:[#allocation23 + $0x38] sm:$0xf]
          %v2566 = vld [vmem:[#allocation23 + $0x3c] sm:$0xf]
          %v2567 = vld [vmem:[#allocation25] sm:$0x1]
          %v2569 = vlaneseq
          %v2570 = vshrl.u32 %v2569, 7
          %v2571 = vsub.s32 0, %v2570
          %v2572 = vrot.slane %v2567, %v2571
          %v2590 = vunpack.c.l.b16 %v2551
          %v2591 = vunpack.c.l.b16 %v2552
          %v2592 = vunpack.c.l.b16 %v2553
          %v2593 = vunpack.c.l.b16 %v2554
          %v2594 = vunpack.c.l.b16 %v2555
          %v2595 = vunpack.c.l.b16 %v2556
          %v2596 = vunpack.c.l.b16 %v2557
          %v2597 = vunpack.c.l.b16 %v2558
          %v2598 = vunpack.c.l.b16 %v2559
          %v2599 = vunpack.c.l.b16 %v2560
          %v2600 = vunpack.c.l.b16 %v2561
          %v2601 = vunpack.c.l.b16 %v2562
          %v2602 = vunpack.c.l.b16 %v2563
          %v2603 = vunpack.c.l.b16 %v2564
          %v2604 = vunpack.c.l.b16 %v2565
          %v2605 = vunpack.c.l.b16 %v2566
          %v2606 = vpack.c.b16 %v2591, %v2590
          %v2607 = vpack.c.b16 %v2593, %v2592
          %v2608 = vpack.c.b16 %v2595, %v2594
          %v2609 = vpack.c.b16 %v2597, %v2596
          %v2610 = vpack.c.b16 %v2599, %v2598
          %v2611 = vpack.c.b16 %v2601, %v2600
          %v2612 = vpack.c.b16 %v2603, %v2602
          %v2613 = vpack.c.b16 %v2605, %v2604
          %2622 = vmatprep.subr.bf16.mxu0 0
          %2623 = vmatpush1.bf16.msra.mxu0 %v2606
          %2624 = vmatprep.subr.bf16.mxu0 0
          %2625 = vmatpush1.bf16.msra.mxu0 %v2607
          %2626 = vmatprep.subr.bf16.mxu0 0
          %2627 = vmatpush1.bf16.msra.mxu0 %v2608
          %2628 = vmatprep.subr.bf16.mxu0 0
          %2629 = vmatpush1.bf16.msra.mxu0 %v2609
          %2630 = vmatprep.subr.bf16.mxu0 0
          %2631 = vmatpush1.bf16.msra.mxu0 %v2610
          %2632 = vmatprep.subr.bf16.mxu0 0
          %2633 = vmatpush1.bf16.msra.mxu0 %v2611
          %2634 = vmatprep.subr.bf16.mxu0 0
          %2635 = vmatpush1.bf16.msra.mxu0 %v2612
          %2636 = vmatprep.subr.bf16.mxu0 0
          %2637 = vmatpush1.bf16.msra.mxu0 %v2613
          %2638 = vmatprep.subr.bf16.mxu0 0
          %2639 = vmatpush1.bf16.msra.mxu0 0
          %2640 = vmatprep.subr.bf16.mxu0 0
          %2641 = vmatpush1.bf16.msra.mxu0 0
          %2642 = vmatprep.subr.bf16.mxu0 0
          %2643 = vmatpush1.bf16.msra.mxu0 0
          %2644 = vmatprep.subr.bf16.mxu0 0
          %2645 = vmatpush1.bf16.msra.mxu0 0
          %2646 = vmatprep.subr.bf16.mxu0 0
          %2647 = vmatpush1.bf16.msra.mxu0 0
          %2648 = vmatprep.subr.bf16.mxu0 0
          %2649 = vmatpush1.bf16.msra.mxu0 0
          %2650 = vmatprep.subr.bf16.mxu0 0
          %2651 = vmatpush1.bf16.msra.mxu0 0
          %2652 = vmatprep.subr.bf16.mxu0 0
          %2653 = vmatpush1.bf16.msra.mxu0 0
          %2654 = vmatprep.mubr.bf16.mxu0 0
          %2655 = vmatmul.mubr.bf16.gmra.mrb[0].mxu0 %v2550
          %v2656 = vpop.f32.mrb[0].mxu0
          %v2657 = vadd.f32 %v2572, %v2656
          %v2658 = vpop.f32.mrb[0].mxu0
          %v2659 = vpop.f32.mrb[0].mxu0
          %v2660 = vadd.f32 %v2572, %v2659
          %v2661 = vpop.f32.mrb[0].mxu0
          %2662 = vdwg.mxu0
          %v2663 = vmax.f32 %v2657, 0.0
          %v2664 = vmax.f32 %v2660, 0.0
          %v2665 = vpack.c.bf16 %v2664, %v2663
          %v2666 = vld [vmem:[#allocation26] sm:$0xf]
          %v2667 = vld [vmem:[#allocation26 + $0x4] sm:$0xf]
          %v2668 = vld [vmem:[#allocation26 + $0x8] sm:$0xf]
          %v2669 = vld [vmem:[#allocation26 + $0xc] sm:$0xf]
          %v2670 = vld [vmem:[#allocation26 + $0x10] sm:$0xf]
          %v2671 = vld [vmem:[#allocation26 + $0x14] sm:$0xf]
          %v2672 = vld [vmem:[#allocation26 + $0x18] sm:$0xf]
          %v2673 = vld [vmem:[#allocation26 + $0x1c] sm:$0xf]
          %v2674 = vld [vmem:[#allocation26 + $0x20] sm:$0xf]
          %v2675 = vld [vmem:[#allocation26 + $0x24] sm:$0xf]
          %v2676 = vld [vmem:[#allocation26 + $0x28] sm:$0xf]
          %v2677 = vld [vmem:[#allocation26 + $0x2c] sm:$0xf]
          %v2678 = vld [vmem:[#allocation26 + $0x30] sm:$0xf]
          %v2679 = vld [vmem:[#allocation26 + $0x34] sm:$0xf]
          %v2680 = vld [vmem:[#allocation26 + $0x38] sm:$0xf]
          %v2681 = vld [vmem:[#allocation26 + $0x3c] sm:$0xf]
          %v2682 = vld [vmem:[#allocation28] sm:$0x1]
          %v2684 = vlaneseq
          %v2685 = vshrl.u32 %v2684, 7
          %v2686 = vsub.s32 0, %v2685
          %v2687 = vrot.slane %v2682, %v2686
          %v2705 = vunpack.c.l.b16 %v2666
          %v2706 = vunpack.c.l.b16 %v2667
          %v2707 = vunpack.c.l.b16 %v2668
          %v2708 = vunpack.c.l.b16 %v2669
          %v2709 = vunpack.c.l.b16 %v2670
          %v2710 = vunpack.c.l.b16 %v2671
          %v2711 = vunpack.c.l.b16 %v2672
          %v2712 = vunpack.c.l.b16 %v2673
          %v2713 = vunpack.c.l.b16 %v2674
          %v2714 = vunpack.c.l.b16 %v2675
          %v2715 = vunpack.c.l.b16 %v2676
          %v2716 = vunpack.c.l.b16 %v2677
          %v2717 = vunpack.c.l.b16 %v2678
          %v2718 = vunpack.c.l.b16 %v2679
          %v2719 = vunpack.c.l.b16 %v2680
          %v2720 = vunpack.c.l.b16 %v2681
          %v2721 = vpack.c.b16 %v2706, %v2705
          %v2722 = vpack.c.b16 %v2708, %v2707
          %v2723 = vpack.c.b16 %v2710, %v2709
          %v2724 = vpack.c.b16 %v2712, %v2711
          %v2725 = vpack.c.b16 %v2714, %v2713
          %v2726 = vpack.c.b16 %v2716, %v2715
          %v2727 = vpack.c.b16 %v2718, %v2717
          %v2728 = vpack.c.b16 %v2720, %v2719
          %2737 = vmatprep.subr.bf16.mxu0 0
          %2738 = vmatpush1.bf16.msra.mxu0 %v2721
          %2739 = vmatprep.subr.bf16.mxu0 0
          %2740 = vmatpush1.bf16.msra.mxu0 %v2722
          %2741 = vmatprep.subr.bf16.mxu0 0
          %2742 = vmatpush1.bf16.msra.mxu0 %v2723
          %2743 = vmatprep.subr.bf16.mxu0 0
          %2744 = vmatpush1.bf16.msra.mxu0 %v2724
          %2745 = vmatprep.subr.bf16.mxu0 0
          %2746 = vmatpush1.bf16.msra.mxu0 %v2725
          %2747 = vmatprep.subr.bf16.mxu0 0
          %2748 = vmatpush1.bf16.msra.mxu0 %v2726
          %2749 = vmatprep.subr.bf16.mxu0 0
          %2750 = vmatpush1.bf16.msra.mxu0 %v2727
          %2751 = vmatprep.subr.bf16.mxu0 0
          %2752 = vmatpush1.bf16.msra.mxu0 %v2728
          %2753 = vmatprep.subr.bf16.mxu0 0
          %2754 = vmatpush1.bf16.msra.mxu0 0
          %2755 = vmatprep.subr.bf16.mxu0 0
          %2756 = vmatpush1.bf16.msra.mxu0 0
          %2757 = vmatprep.subr.bf16.mxu0 0
          %2758 = vmatpush1.bf16.msra.mxu0 0
          %2759 = vmatprep.subr.bf16.mxu0 0
          %2760 = vmatpush1.bf16.msra.mxu0 0
          %2761 = vmatprep.subr.bf16.mxu0 0
          %2762 = vmatpush1.bf16.msra.mxu0 0
          %2763 = vmatprep.subr.bf16.mxu0 0
          %2764 = vmatpush1.bf16.msra.mxu0 0
          %2765 = vmatprep.subr.bf16.mxu0 0
          %2766 = vmatpush1.bf16.msra.mxu0 0
          %2767 = vmatprep.subr.bf16.mxu0 0
          %2768 = vmatpush1.bf16.msra.mxu0 0
          %2769 = vmatprep.mubr.bf16.mxu0 0
          %2770 = vmatmul.mubr.bf16.gmra.mrb[0].mxu0 %v2665
          %v2771 = vpop.f32.mrb[0].mxu0
          %v2772 = vadd.f32 %v2687, %v2771
          %v2773 = vpop.f32.mrb[0].mxu0
          %v2774 = vpop.f32.mrb[0].mxu0
          %v2775 = vadd.f32 %v2687, %v2774
          %v2776 = vpop.f32.mrb[0].mxu0
          %2777 = vdwg.mxu0
          %2778 = vadd.xlane.f32.xlu0 %v2772
          %v2779 = vpop.xlane.xlu0 %2778
          %vm2780 = vcmask 1043456
          %v2781 = vsel %vm2780, %v2775, 0.0
          %2782 = vadd.xlane.f32.xlu0 %v2781
          %v2783 = vpop.xlane.xlu0 %2782
          %v2784 = vmul.f32 %v2779, 0.0078125
          %v2785 = vmul.f32 %v2783, 0.0078125
          %v2786 = vmul.f32 %v2772, %v2772
          %v2787 = vmul.f32 %v2775, %v2775
          %2788 = vadd.xlane.f32.xlu0 %v2786
          %v2789 = vpop.xlane.xlu0 %2788
          %v2790 = vsel %vm2780, %v2787, 0.0
          %2791 = vadd.xlane.f32.xlu0 %v2790
          %v2792 = vpop.xlane.xlu0 %2791
          %v2793 = vmul.f32 %v2789, 0.0078125
          %v2794 = vmul.f32 %v2792, 0.0078125
          %v2795 = vmul.f32 %v2784, %v2784
          %v2796 = vmul.f32 %v2785, %v2785
          %v2797 = vsub.f32 %v2793, %v2795
          %v2798 = vsub.f32 %v2794, %v2796
          %v2799 = vsub.f32 %v2772, %v2784
          %v2800 = vsub.f32 %v2775, %v2785
          %v2801 = vadd.f32 %v2797, 1e-05
          %v2802 = vadd.f32 %v2798, 1e-05
          %v2803 = vrsqrt.pop %v2801
          %v2804 = vrsqrt.pop %v2802
          %v2805 = vmul.f32 %v2799, %v2803
          %v2806 = vmul.f32 %v2800, %v2804
          %v2807 = vld [vmem:[#allocation29] sm:$0x1]
          %v2809 = vlaneseq
          %v2810 = vshrl.u32 %v2809, 7
          %v2811 = vsub.s32 0, %v2810
          %v2812 = vrot.slane %v2807, %v2811
          %v2814 = vmul.f32 %v2805, %v2812
          %v2815 = vmul.f32 %v2806, %v2812
          %v2816 = vld [vmem:[#allocation31] sm:$0x1]
          %v2818 = vlaneseq
          %v2819 = vshrl.u32 %v2818, 7
          %v2820 = vsub.s32 0, %v2819
          %v2821 = vrot.slane %v2816, %v2820
          %v2823 = vadd.f32 %v2814, %v2821
          %v2824 = vadd.f32 %v2815, %v2821
          %v2825 = vld [vmem:[#allocation10] sm:$0x3]
          %v2826 = vpack.c.bf16 %v2825, %v2825
          %v2827 = vld [vmem:[#allocation32] sm:$0xf]
          %v2828 = vld [vmem:[#allocation32 + $0x4] sm:$0xf]
          %v2829 = vld [vmem:[#allocation32 + $0x8] sm:$0xf]
          %v2830 = vld [vmem:[#allocation32 + $0xc] sm:$0xf]
          %v2831 = vld [vmem:[#allocation32 + $0x10] sm:$0xf]
          %v2832 = vld [vmem:[#allocation32 + $0x14] sm:$0xf]
          %v2833 = vld [vmem:[#allocation32 + $0x18] sm:$0xf]
          %v2834 = vld [vmem:[#allocation32 + $0x1c] sm:$0xf]
          %v2835 = vld [vmem:[#allocation32 + $0x20] sm:$0xf]
          %v2836 = vld [vmem:[#allocation32 + $0x24] sm:$0xf]
          %v2837 = vld [vmem:[#allocation32 + $0x28] sm:$0xf]
          %v2838 = vld [vmem:[#allocation32 + $0x2c] sm:$0xf]
          %v2839 = vld [vmem:[#allocation32 + $0x30] sm:$0xf]
          %v2840 = vld [vmem:[#allocation32 + $0x34] sm:$0xf]
          %v2841 = vld [vmem:[#allocation32 + $0x38] sm:$0xf]
          %v2842 = vld [vmem:[#allocation32 + $0x3c] sm:$0xf]
          %v2843 = vld [vmem:[#allocation34] sm:$0x1]
          %v2845 = vlaneseq
          %v2846 = vshrl.u32 %v2845, 7
          %v2847 = vsub.s32 0, %v2846
          %v2848 = vrot.slane %v2843, %v2847
          %v2866 = vunpack.c.l.b16 %v2827
          %v2867 = vunpack.c.l.b16 %v2828
          %v2868 = vunpack.c.l.b16 %v2829
          %v2869 = vunpack.c.l.b16 %v2830
          %v2870 = vunpack.c.l.b16 %v2831
          %v2871 = vunpack.c.l.b16 %v2832
          %v2872 = vunpack.c.l.b16 %v2833
          %v2873 = vunpack.c.l.b16 %v2834
          %v2874 = vunpack.c.l.b16 %v2835
          %v2875 = vunpack.c.l.b16 %v2836
          %v2876 = vunpack.c.l.b16 %v2837
          %v2877 = vunpack.c.l.b16 %v2838
          %v2878 = vunpack.c.l.b16 %v2839
          %v2879 = vunpack.c.l.b16 %v2840
          %v2880 = vunpack.c.l.b16 %v2841
          %v2881 = vunpack.c.l.b16 %v2842
          %v2882 = vpack.c.b16 %v2867, %v2866
          %v2883 = vpack.c.b16 %v2869, %v2868
          %v2884 = vpack.c.b16 %v2871, %v2870
          %v2885 = vpack.c.b16 %v2873, %v2872
          %v2886 = vpack.c.b16 %v2875, %v2874
          %v2887 = vpack.c.b16 %v2877, %v2876
          %v2888 = vpack.c.b16 %v2879, %v2878
          %v2889 = vpack.c.b16 %v2881, %v2880
          %2898 = vmatprep.subr.bf16.mxu0 0
          %2899 = vmatpush1.bf16.msra.mxu0 %v2882
          %2900 = vmatprep.subr.bf16.mxu0 0
          %2901 = vmatpush1.bf16.msra.mxu0 %v2883
          %2902 = vmatprep.subr.bf16.mxu0 0
          %2903 = vmatpush1.bf16.msra.mxu0 %v2884
          %2904 = vmatprep.subr.bf16.mxu0 0
          %2905 = vmatpush1.bf16.msra.mxu0 %v2885
          %2906 = vmatprep.subr.bf16.mxu0 0
          %2907 = vmatpush1.bf16.msra.mxu0 %v2886
          %2908 = vmatprep.subr.bf16.mxu0 0
          %2909 = vmatpush1.bf16.msra.mxu0 %v2887
          %2910 = vmatprep.subr.bf16.mxu0 0
          %2911 = vmatpush1.bf16.msra.mxu0 %v2888
          %2912 = vmatprep.subr.bf16.mxu0 0
          %2913 = vmatpush1.bf16.msra.mxu0 %v2889
          %2914 = vmatprep.subr.bf16.mxu0 0
          %2915 = vmatpush1.bf16.msra.mxu0 0
          %2916 = vmatprep.subr.bf16.mxu0 0
          %2917 = vmatpush1.bf16.msra.mxu0 0
          %2918 = vmatprep.subr.bf16.mxu0 0
          %2919 = vmatpush1.bf16.msra.mxu0 0
          %2920 = vmatprep.subr.bf16.mxu0 0
          %2921 = vmatpush1.bf16.msra.mxu0 0
          %2922 = vmatprep.subr.bf16.mxu0 0
          %2923 = vmatpush1.bf16.msra.mxu0 0
          %2924 = vmatprep.subr.bf16.mxu0 0
          %2925 = vmatpush1.bf16.msra.mxu0 0
          %2926 = vmatprep.subr.bf16.mxu0 0
          %2927 = vmatpush1.bf16.msra.mxu0 0
          %2928 = vmatprep.subr.bf16.mxu0 0
          %2929 = vmatpush1.bf16.msra.mxu0 0
          %2930 = vmatprep.mubr.bf16.mxu0 0
          %2931 = vmatmul.mubr.bf16.gmra.mrb[0].mxu0 %v2826
          %v2932 = vpop.f32.mrb[0].mxu0
          %v2933 = vadd.f32 %v2848, %v2932
          %v2934 = vpop.f32.mrb[0].mxu0
          %v2935 = vpop.f32.mrb[0].mxu0
          %v2936 = vpop.f32.mrb[0].mxu0
          %2937 = vdwg.mxu0
          %v2938 = vmax.f32 %v2933, 0.0
          %v2939 = vpack.c.bf16 %v2938, %v2938
          %v2940 = vld [vmem:[%s49] sm:$0xf]
          %v2941 = vld [vmem:[%s49 + $0x4] sm:$0xf]
          %v2942 = vld [vmem:[%s49 + $0x8] sm:$0xf]
          %v2943 = vld [vmem:[%s49 + $0xc] sm:$0xf]
          %v2944 = vld [vmem:[%s49 + $0x10] sm:$0xf]
          %v2945 = vld [vmem:[%s49 + $0x14] sm:$0xf]
          %v2946 = vld [vmem:[%s49 + $0x18] sm:$0xf]
          %v2947 = vld [vmem:[%s49 + $0x1c] sm:$0xf]
          %v2948 = vld [vmem:[%s49 + $0x20] sm:$0xf]
          %v2949 = vld [vmem:[%s49 + $0x24] sm:$0xf]
          %v2950 = vld [vmem:[%s49 + $0x28] sm:$0xf]
          %v2951 = vld [vmem:[%s49 + $0x2c] sm:$0xf]
          %v2952 = vld [vmem:[%s49 + $0x30] sm:$0xf]
          %v2953 = vld [vmem:[%s49 + $0x34] sm:$0xf]
          %v2954 = vld [vmem:[%s49 + $0x38] sm:$0xf]
          %v2955 = vld [vmem:[%s49 + $0x3c] sm:$0xf]
          %v2956 = vld [vmem:[%s51] sm:$0x1]
          %v2958 = vlaneseq
          %v2959 = vshrl.u32 %v2958, 7
          %v2960 = vsub.s32 0, %v2959
          %v2961 = vrot.slane %v2956, %v2960
          %v2979 = vunpack.c.l.b16 %v2940
          %v2980 = vunpack.c.l.b16 %v2941
          %v2981 = vunpack.c.l.b16 %v2942
          %v2982 = vunpack.c.l.b16 %v2943
          %v2983 = vunpack.c.l.b16 %v2944
          %v2984 = vunpack.c.l.b16 %v2945
          %v2985 = vunpack.c.l.b16 %v2946
          %v2986 = vunpack.c.l.b16 %v2947
          %v2987 = vunpack.c.l.b16 %v2948
          %v2988 = vunpack.c.l.b16 %v2949
          %v2989 = vunpack.c.l.b16 %v2950
          %v2990 = vunpack.c.l.b16 %v2951
          %v2991 = vunpack.c.l.b16 %v2952
          %v2992 = vunpack.c.l.b16 %v2953
          %v2993 = vunpack.c.l.b16 %v2954
          %v2994 = vunpack.c.l.b16 %v2955
          %v2995 = vpack.c.b16 %v2980, %v2979
          %v2996 = vpack.c.b16 %v2982, %v2981
          %v2997 = vpack.c.b16 %v2984, %v2983
          %v2998 = vpack.c.b16 %v2986, %v2985
          %v2999 = vpack.c.b16 %v2988, %v2987
          %v3000 = vpack.c.b16 %v2990, %v2989
          %v3001 = vpack.c.b16 %v2992, %v2991
          %v3002 = vpack.c.b16 %v2994, %v2993
          %3011 = vmatprep.subr.bf16.mxu0 0
          %3012 = vmatpush1.bf16.msra.mxu0 %v2995
          %3013 = vmatprep.subr.bf16.mxu0 0
          %3014 = vmatpush1.bf16.msra.mxu0 %v2996
          %3015 = vmatprep.subr.bf16.mxu0 0
          %3016 = vmatpush1.bf16.msra.mxu0 %v2997
          %3017 = vmatprep.subr.bf16.mxu0 0
          %3018 = vmatpush1.bf16.msra.mxu0 %v2998
          %3019 = vmatprep.subr.bf16.mxu0 0
          %3020 = vmatpush1.bf16.msra.mxu0 %v2999
          %3021 = vmatprep.subr.bf16.mxu0 0
          %3022 = vmatpush1.bf16.msra.mxu0 %v3000
          %3023 = vmatprep.subr.bf16.mxu0 0
          %3024 = vmatpush1.bf16.msra.mxu0 %v3001
          %3025 = vmatprep.subr.bf16.mxu0 0
          %3026 = vmatpush1.bf16.msra.mxu0 %v3002
          %3027 = vmatprep.subr.bf16.mxu0 0
          %3028 = vmatpush1.bf16.msra.mxu0 0
          %3029 = vmatprep.subr.bf16.mxu0 0
          %3030 = vmatpush1.bf16.msra.mxu0 0
          %3031 = vmatprep.subr.bf16.mxu0 0
          %3032 = vmatpush1.bf16.msra.mxu0 0
          %3033 = vmatprep.subr.bf16.mxu0 0
          %3034 = vmatpush1.bf16.msra.mxu0 0
          %3035 = vmatprep.subr.bf16.mxu0 0
          %3036 = vmatpush1.bf16.msra.mxu0 0
          %3037 = vmatprep.subr.bf16.mxu0 0
          %3038 = vmatpush1.bf16.msra.mxu0 0
          %3039 = vmatprep.subr.bf16.mxu0 0
          %3040 = vmatpush1.bf16.msra.mxu0 0
          %3041 = vmatprep.subr.bf16.mxu0 0
          %3042 = vmatpush1.bf16.msra.mxu0 0
          %3043 = vmatprep.mubr.bf16.mxu0 0
          %3044 = vmatmul.mubr.bf16.gmra.mrb[0].mxu0 %v2939
          %v3045 = vpop.f32.mrb[0].mxu0
          %v3046 = vadd.f32 %v2961, %v3045
          %v3047 = vpop.f32.mrb[0].mxu0
          %v3048 = vpop.f32.mrb[0].mxu0
          %v3049 = vpop.f32.mrb[0].mxu0
          %3050 = vdwg.mxu0
          %vm3051 = vcmask 1041408
          %v3052 = vsel %vm3051, %v3046, 0.0
          %3053 = vadd.xlane.f32.xlu0 %v3052
          %v3054 = vpop.xlane.xlu0 %3053
          %v3055 = vmul.f32 %v3054, 0.0078125
          %v3056 = vmul.f32 %v3046, %v3046
          %v3057 = vsel %vm3051, %v3056, 0.0
          %3058 = vadd.xlane.f32.xlu0 %v3057
          %v3059 = vpop.xlane.xlu0 %3058
          %v3060 = vmul.f32 %v3059, 0.0078125
          %v3061 = vmul.f32 %v3055, %v3055
          %v3062 = vsub.f32 %v3060, %v3061
          %v3063 = vsub.f32 %v3046, %v3055
          %v3064 = vadd.f32 %v3062, 1e-05
          %v3065 = vrsqrt.pop %v3064
          %v3066 = vmul.f32 %v3063, %v3065
          %v3067 = vld [vmem:[#allocation35] sm:$0x1]
          %v3069 = vlaneseq
          %v3070 = vshrl.u32 %v3069, 7
          %v3071 = vsub.s32 0, %v3070
          %v3072 = vrot.slane %v3067, %v3071
          %v3074 = vmul.f32 %v3066, %v3072
          %v3075 = vld [vmem:[#allocation37] sm:$0x1]
          %v3077 = vlaneseq
          %v3078 = vshrl.u32 %v3077, 7
          %v3079 = vsub.s32 0, %v3078
          %v3080 = vrot.slane %v3075, %v3079
          %v3082 = vadd.f32 %v3074, %v3080
          %v3083 = vpack.c.bf16 %v2547, %v2547
          %v3084 = vpack.c.bf16 %v2824, %v2823
          %v3085 = vpack.c.bf16 %v3082, %v3082
          %3086 = vst [vmem:[#allocation2] sm:$0xf] %v3083
          %3087 = vst [vmem:[#allocation2 + $0x4] sm:$0xf] %v3083
          %v3089 = vunpack.c.l.b16 %v3084
          %v3090 = vunpack.c.h.b16 %v3084
          %v3091 = vpack.c.b16 %v3089, %v3089
          %v3092 = vpack.c.b16 %v3090, %v3090
          %3095 = vst [vmem:[#allocation3] sm:$0xf] %v3091
          %3096 = vst [vmem:[#allocation3 + $0x8] sm:$0x3] %v3092
          %3097 = vst [vmem:[#allocation3 + $0x4] sm:$0xf] %v3091
          %3098 = vst [vmem:[#allocation3 + $0xc] sm:$0x3] %v3092
          %3099 = vst [vmem:[#allocation4] sm:$0x1] %v3085
          %3100 = vst [vmem:[#allocation4 + $0x1] sm:$0x1] %v3085
        $region412: #{tpu_custom_call.1} parent=251 // pred_fallthru
          _
        %v3101 = vld [vmem:[#allocation2] sm:$0xff]
        %v3102 = vld [vmem:[#allocation3] sm:$0xff]
        %v3103 = vld [vmem:[#allocation3 + $0x8] sm:$0x33]
        %v3104 = vld [vmem:[#allocation4] sm:$0x3]
        %v3105 = vld [vmem:[%s7] sm:$0xf]
        %v3106 = vld [vmem:[%s7 + $0x4] sm:$0x3]
        %v3107 = vld [vmem:[%s9] sm:$0xf]
        %v3108 = vld [vmem:[%s9 + $0x4] sm:$0x3]
        %v3109 = vld [vmem:[#allocation11] sm:$0xf]
        %v3110 = vld [vmem:[%s13] sm:$0xf]
        %v3111 = vld [vmem:[#allocation13] sm:$0x1]
        %v3112 = vld [vmem:[%s17] sm:$0xf]
        %v3113 = vld [vmem:[%s17 + $0x4] sm:$0x3]
        %v3114 = vld [vmem:[#allocation14] sm:$0x1]
        %v3115 = vld [vmem:[#allocation38] sm:$0xf]
        %v3116 = vld [vmem:[#allocation38 + $0x4] sm:$0xf]
        %v3117 = vld [vmem:[#allocation38 + $0x8] sm:$0xf]
        %v3118 = vld [vmem:[#allocation38 + $0xc] sm:$0xf]
        %v3119 = vld [vmem:[#allocation38 + $0x10] sm:$0xf]
        %v3120 = vld [vmem:[#allocation38 + $0x14] sm:$0xf]
        %v3121 = vld [vmem:[#allocation38 + $0x18] sm:$0xf]
        %v3122 = vld [vmem:[#allocation38 + $0x1c] sm:$0xf]
        %v3123 = vld [vmem:[#allocation38 + $0x20] sm:$0xf]
        %v3124 = vld [vmem:[#allocation38 + $0x24] sm:$0xf]
        %v3125 = vld [vmem:[#allocation38 + $0x28] sm:$0xf]
        %v3126 = vld [vmem:[#allocation38 + $0x2c] sm:$0xf]
        %v3127 = vld [vmem:[#allocation38 + $0x30] sm:$0xf]
        %v3128 = vld [vmem:[#allocation38 + $0x34] sm:$0xf]
        %v3129 = vld [vmem:[#allocation38 + $0x38] sm:$0xf]
        %v3130 = vld [vmem:[#allocation38 + $0x3c] sm:$0xf]
        %v3131 = vld [vmem:[#allocation38 + $0x40] sm:$0xf]
        %v3132 = vld [vmem:[#allocation38 + $0x44] sm:$0xf]
        %v3133 = vld [vmem:[#allocation38 + $0x48] sm:$0xf]
        %v3134 = vld [vmem:[#allocation38 + $0x4c] sm:$0xf]
        %v3135 = vld [vmem:[#allocation38 + $0x50] sm:$0xf]
        %v3136 = vld [vmem:[#allocation38 + $0x54] sm:$0xf]
        %v3137 = vld [vmem:[#allocation38 + $0x58] sm:$0xf]
        %v3138 = vld [vmem:[#allocation38 + $0x5c] sm:$0xf]
        %v3139 = vld [vmem:[#allocation38 + $0x60] sm:$0xf]
        %v3140 = vld [vmem:[#allocation38 + $0x64] sm:$0xf]
        %v3141 = vld [vmem:[#allocation38 + $0x68] sm:$0xf]
        %v3142 = vld [vmem:[#allocation38 + $0x6c] sm:$0xf]
        %v3143 = vld [vmem:[#allocation38 + $0x70] sm:$0xf]
        %v3144 = vld [vmem:[#allocation38 + $0x74] sm:$0xf]
        %v3145 = vld [vmem:[#allocation38 + $0x78] sm:$0xf]
        %v3146 = vld [vmem:[#allocation38 + $0x7c] sm:$0xf]
        %v3148 = vunpack.c.l.b16 %v3101
        %v3149 = vunpack.c.h.b16 %v3101
        %v3150 = vpack.c.b16 %v3148, %v3148
        %v3151 = vpack.c.b16 %v3149, %v3149
        %v3186 = vunpack.c.l.b16 %v3115
        %v3187 = vunpack.c.l.b16 %v3116
        %v3188 = vunpack.c.l.b16 %v3117
        %v3189 = vunpack.c.l.b16 %v3118
        %v3190 = vunpack.c.l.b16 %v3119
        %v3191 = vunpack.c.l.b16 %v3120
        %v3192 = vunpack.c.l.b16 %v3121
        %v3193 = vunpack.c.l.b16 %v3122
        %v3194 = vunpack.c.l.b16 %v3123
        %v3195 = vunpack.c.l.b16 %v3124
        %v3196 = vunpack.c.l.b16 %v3125
        %v3197 = vunpack.c.l.b16 %v3126
        %v3198 = vunpack.c.l.b16 %v3127
        %v3199 = vunpack.c.l.b16 %v3128
        %v3200 = vunpack.c.l.b16 %v3129
        %v3201 = vunpack.c.l.b16 %v3130
        %v3202 = vunpack.c.l.b16 %v3131
        %v3203 = vunpack.c.l.b16 %v3132
        %v3204 = vunpack.c.l.b16 %v3133
        %v3205 = vunpack.c.l.b16 %v3134
        %v3206 = vunpack.c.l.b16 %v3135
        %v3207 = vunpack.c.l.b16 %v3136
        %v3208 = vunpack.c.l.b16 %v3137
        %v3209 = vunpack.c.l.b16 %v3138
        %v3210 = vunpack.c.l.b16 %v3139
        %v3211 = vunpack.c.l.b16 %v3140
        %v3212 = vunpack.c.l.b16 %v3141
        %v3213 = vunpack.c.l.b16 %v3142
        %v3214 = vunpack.c.l.b16 %v3143
        %v3215 = vunpack.c.l.b16 %v3144
        %v3216 = vunpack.c.l.b16 %v3145
        %v3217 = vunpack.c.l.b16 %v3146
        %v3218 = vpack.c.b16 %v3187, %v3186
        %v3219 = vpack.c.b16 %v3189, %v3188
        %v3220 = vpack.c.b16 %v3191, %v3190
        %v3221 = vpack.c.b16 %v3193, %v3192
        %v3222 = vpack.c.b16 %v3195, %v3194
        %v3223 = vpack.c.b16 %v3197, %v3196
        %v3224 = vpack.c.b16 %v3199, %v3198
        %v3225 = vpack.c.b16 %v3201, %v3200
        %v3226 = vpack.c.b16 %v3203, %v3202
        %v3227 = vpack.c.b16 %v3205, %v3204
        %v3228 = vpack.c.b16 %v3207, %v3206
        %v3229 = vpack.c.b16 %v3209, %v3208
        %v3230 = vpack.c.b16 %v3211, %v3210
        %v3231 = vpack.c.b16 %v3213, %v3212
        %v3232 = vpack.c.b16 %v3215, %v3214
        %v3233 = vpack.c.b16 %v3217, %v3216
        %3250 = vmatprep.subr.bf16.mxu0 0
        %3251 = vmatpush1.bf16.msra.mxu0 %v3218
        %3252 = vmatprep.subr.bf16.mxu0 0
        %3253 = vmatpush1.bf16.msra.mxu0 %v3219
        %3254 = vmatprep.subr.bf16.mxu0 0
        %3255 = vmatpush1.bf16.msra.mxu0 %v3220
        %3256 = vmatprep.subr.bf16.mxu0 0
        %3257 = vmatpush1.bf16.msra.mxu0 %v3221
        %3258 = vmatprep.subr.bf16.mxu0 0
        %3259 = vmatpush1.bf16.msra.mxu0 %v3222
        %3260 = vmatprep.subr.bf16.mxu0 0
        %3261 = vmatpush1.bf16.msra.mxu0 %v3223
        %3262 = vmatprep.subr.bf16.mxu0 0
        %3263 = vmatpush1.bf16.msra.mxu0 %v3224
        %3264 = vmatprep.subr.bf16.mxu0 0
        %3265 = vmatpush1.bf16.msra.mxu0 %v3225
        %3266 = vmatprep.subr.bf16.mxu0 0
        %3267 = vmatpush1.bf16.msra.mxu0 %v3226
        %3268 = vmatprep.subr.bf16.mxu0 0
        %3269 = vmatpush1.bf16.msra.mxu0 %v3227
        %3270 = vmatprep.subr.bf16.mxu0 0
        %3271 = vmatpush1.bf16.msra.mxu0 %v3228
        %3272 = vmatprep.subr.bf16.mxu0 0
        %3273 = vmatpush1.bf16.msra.mxu0 %v3229
        %3274 = vmatprep.subr.bf16.mxu0 0
        %3275 = vmatpush1.bf16.msra.mxu0 %v3230
        %3276 = vmatprep.subr.bf16.mxu0 0
        %3277 = vmatpush1.bf16.msra.mxu0 %v3231
        %3278 = vmatprep.subr.bf16.mxu0 0
        %3279 = vmatpush1.bf16.msra.mxu0 %v3232
        %3280 = vmatprep.subr.bf16.mxu0 0
        %3281 = vmatpush1.bf16.msra.mxu0 %v3233
        %3282 = vmatprep.mubr.bf16.mxu0 %v3151
        %3283 = vmatmul.mubr.bf16.gmra.mrb[0].mxu0 %v3150
        %v3284 = vpop.f32.mrb[0].mxu0
        %v3285 = vadd.f32 0.0, %v3284
        %v3286 = vpop.f32.mrb[0].mxu0
        %v3287 = vpop.f32.mrb[0].mxu0
        %v3288 = vpop.f32.mrb[0].mxu0
        %3289 = vdwg.mxu0
        %v3290 = vld [vmem:[#allocation38 + $0x80] sm:$0xf]
        %v3291 = vld [vmem:[#allocation38 + $0x84] sm:$0xf]
        %v3292 = vld [vmem:[#allocation38 + $0x88] sm:$0xf]
        %v3293 = vld [vmem:[#allocation38 + $0x8c] sm:$0xf]
        %v3294 = vld [vmem:[#allocation38 + $0x90] sm:$0xf]
        %v3295 = vld [vmem:[#allocation38 + $0x94] sm:$0xf]
        %v3296 = vld [vmem:[#allocation38 + $0x98] sm:$0xf]
        %v3297 = vld [vmem:[#allocation38 + $0x9c] sm:$0xf]
        %v3298 = vld [vmem:[#allocation38 + $0xa0] sm:$0xf]
        %v3299 = vld [vmem:[#allocation38 + $0xa4] sm:$0xf]
        %v3300 = vld [vmem:[#allocation38 + $0xa8] sm:$0xf]
        %v3301 = vld [vmem:[#allocation38 + $0xac] sm:$0xf]
        %v3302 = vld [vmem:[#allocation38 + $0xb0] sm:$0xf]
        %v3303 = vld [vmem:[#allocation38 + $0xb4] sm:$0xf]
        %v3304 = vld [vmem:[#allocation38 + $0xb8] sm:$0xf]
        %v3305 = vld [vmem:[#allocation38 + $0xbc] sm:$0xf]
        %v3306 = vld [vmem:[#allocation38 + $0xc0] sm:$0xf]
        %v3307 = vld [vmem:[#allocation38 + $0xc4] sm:$0xf]
        %v3308 = vld [vmem:[#allocation38 + $0xc8] sm:$0xf]
        %v3309 = vld [vmem:[#allocation38 + $0xcc] sm:$0xf]
        %v3310 = vld [vmem:[#allocation38 + $0xd0] sm:$0xf]
        %v3311 = vld [vmem:[#allocation38 + $0xd4] sm:$0xf]
        %v3312 = vld [vmem:[#allocation38 + $0xd8] sm:$0xf]
        %v3313 = vld [vmem:[#allocation38 + $0xdc] sm:$0xf]
        %v3314 = vld [vmem:[#allocation38 + $0xe0] sm:$0xf]
        %v3315 = vld [vmem:[#allocation38 + $0xe4] sm:$0xf]
        %v3316 = vld [vmem:[#allocation38 + $0xe8] sm:$0xf]
        %v3317 = vld [vmem:[#allocation38 + $0xec] sm:$0xf]
        %v3318 = vld [vmem:[#allocation38 + $0xf0] sm:$0xf]
        %v3319 = vld [vmem:[#allocation38 + $0xf4] sm:$0xf]
        %v3320 = vld [vmem:[#allocation38 + $0xf8] sm:$0xf]
        %v3321 = vld [vmem:[#allocation38 + $0xfc] sm:$0xf]
        %v3354 = vunpack.c.l.b16 %v3290
        %v3355 = vunpack.c.l.b16 %v3291
        %v3356 = vunpack.c.l.b16 %v3292
        %v3357 = vunpack.c.l.b16 %v3293
        %v3358 = vunpack.c.l.b16 %v3294
        %v3359 = vunpack.c.l.b16 %v3295
        %v3360 = vunpack.c.l.b16 %v3296
        %v3361 = vunpack.c.l.b16 %v3297
        %v3362 = vunpack.c.l.b16 %v3298
        %v3363 = vunpack.c.l.b16 %v3299
        %v3364 = vunpack.c.l.b16 %v3300
        %v3365 = vunpack.c.l.b16 %v3301
        %v3366 = vunpack.c.l.b16 %v3302
        %v3367 = vunpack.c.l.b16 %v3303
        %v3368 = vunpack.c.l.b16 %v3304
        %v3369 = vunpack.c.l.b16 %v3305
        %v3370 = vunpack.c.l.b16 %v3306
        %v3371 = vunpack.c.l.b16 %v3307
        %v3372 = vunpack.c.l.b16 %v3308
        %v3373 = vunpack.c.l.b16 %v3309
        %v3374 = vunpack.c.l.b16 %v3310
        %v3375 = vunpack.c.l.b16 %v3311
        %v3376 = vunpack.c.l.b16 %v3312
        %v3377 = vunpack.c.l.b16 %v3313
        %v3378 = vunpack.c.l.b16 %v3314
        %v3379 = vunpack.c.l.b16 %v3315
        %v3380 = vunpack.c.l.b16 %v3316
        %v3381 = vunpack.c.l.b16 %v3317
        %v3382 = vunpack.c.l.b16 %v3318
        %v3383 = vunpack.c.l.b16 %v3319
        %v3384 = vunpack.c.l.b16 %v3320
        %v3385 = vunpack.c.l.b16 %v3321
        %v3386 = vpack.c.b16 %v3355, %v3354
        %v3387 = vpack.c.b16 %v3357, %v3356
        %v3388 = vpack.c.b16 %v3359, %v3358
        %v3389 = vpack.c.b16 %v3361, %v3360
        %v3390 = vpack.c.b16 %v3363, %v3362
        %v3391 = vpack.c.b16 %v3365, %v3364
        %v3392 = vpack.c.b16 %v3367, %v3366
        %v3393 = vpack.c.b16 %v3369, %v3368
        %v3394 = vpack.c.b16 %v3371, %v3370
        %v3395 = vpack.c.b16 %v3373, %v3372
        %v3396 = vpack.c.b16 %v3375, %v3374
        %v3397 = vpack.c.b16 %v3377, %v3376
        %v3398 = vpack.c.b16 %v3379, %v3378
        %v3399 = vpack.c.b16 %v3381, %v3380
        %v3400 = vpack.c.b16 %v3383, %v3382
        %v3401 = vpack.c.b16 %v3385, %v3384
        %3418 = vmatprep.subr.bf16.mxu0 0
        %3419 = vmatpush1.bf16.msra.mxu0 %v3386
        %3420 = vmatprep.subr.bf16.mxu0 0
        %3421 = vmatpush1.bf16.msra.mxu0 %v3387
        %3422 = vmatprep.subr.bf16.mxu0 0
        %3423 = vmatpush1.bf16.msra.mxu0 %v3388
        %3424 = vmatprep.subr.bf16.mxu0 0
        %3425 = vmatpush1.bf16.msra.mxu0 %v3389
        %3426 = vmatprep.subr.bf16.mxu0 0
        %3427 = vmatpush1.bf16.msra.mxu0 %v3390
        %3428 = vmatprep.subr.bf16.mxu0 0
        %3429 = vmatpush1.bf16.msra.mxu0 %v3391
        %3430 = vmatprep.subr.bf16.mxu0 0
        %3431 = vmatpush1.bf16.msra.mxu0 %v3392
        %3432 = vmatprep.subr.bf16.mxu0 0
        %3433 = vmatpush1.bf16.msra.mxu0 %v3393
        %3434 = vmatprep.subr.bf16.mxu0 0
        %3435 = vmatpush1.bf16.msra.mxu0 %v3394
        %3436 = vmatprep.subr.bf16.mxu0 0
        %3437 = vmatpush1.bf16.msra.mxu0 %v3395
        %3438 = vmatprep.subr.bf16.mxu0 0
        %3439 = vmatpush1.bf16.msra.mxu0 %v3396
        %3440 = vmatprep.subr.bf16.mxu0 0
        %3441 = vmatpush1.bf16.msra.mxu0 %v3397
        %3442 = vmatprep.subr.bf16.mxu0 0
        %3443 = vmatpush1.bf16.msra.mxu0 %v3398
        %3444 = vmatprep.subr.bf16.mxu0 0
        %3445 = vmatpush1.bf16.msra.mxu0 %v3399
        %3446 = vmatprep.subr.bf16.mxu0 0
        %3447 = vmatpush1.bf16.msra.mxu0 %v3400
        %3448 = vmatprep.subr.bf16.mxu0 0
        %3449 = vmatpush1.bf16.msra.mxu0 %v3401
        %3450 = vmatprep.mubr.bf16.mxu0 %v3151
        %3451 = vmatmul.mubr.bf16.gmra.mrb[0].mxu0 %v3150
        %v3452 = vpop.f32.mrb[0].mxu0
        %v3453 = vadd.f32 0.0, %v3452
        %v3454 = vpop.f32.mrb[0].mxu0
        %v3455 = vpop.f32.mrb[0].mxu0
        %v3456 = vpop.f32.mrb[0].mxu0
        %3457 = vdwg.mxu0
        %v3458 = vld [vmem:[#allocation38 + $0x100] sm:$0xf]
        %v3459 = vld [vmem:[#allocation38 + $0x104] sm:$0xf]
        %v3460 = vld [vmem:[#allocation38 + $0x108] sm:$0xf]
        %v3461 = vld [vmem:[#allocation38 + $0x10c] sm:$0xf]
        %v3462 = vld [vmem:[#allocation38 + $0x110] sm:$0xf]
        %v3463 = vld [vmem:[#allocation38 + $0x114] sm:$0xf]
        %v3464 = vld [vmem:[#allocation38 + $0x118] sm:$0xf]
        %v3465 = vld [vmem:[#allocation38 + $0x11c] sm:$0xf]
        %v3466 = vld [vmem:[#allocation38 + $0x120] sm:$0xf]
        %v3467 = vld [vmem:[#allocation38 + $0x124] sm:$0xf]
        %v3468 = vld [vmem:[#allocation38 + $0x128] sm:$0xf]
        %v3469 = vld [vmem:[#allocation38 + $0x12c] sm:$0xf]
        %v3470 = vld [vmem:[#allocation38 + $0x130] sm:$0xf]
        %v3471 = vld [vmem:[#allocation38 + $0x134] sm:$0xf]
        %v3472 = vld [vmem:[#allocation38 + $0x138] sm:$0xf]
        %v3473 = vld [vmem:[#allocation38 + $0x13c] sm:$0xf]
        %v3474 = vld [vmem:[#allocation38 + $0x140] sm:$0xf]
        %v3475 = vld [vmem:[#allocation38 + $0x144] sm:$0xf]
        %v3476 = vld [vmem:[#allocation38 + $0x148] sm:$0xf]
        %v3477 = vld [vmem:[#allocation38 + $0x14c] sm:$0xf]
        %v3478 = vld [vmem:[#allocation38 + $0x150] sm:$0xf]
        %v3479 = vld [vmem:[#allocation38 + $0x154] sm:$0xf]
        %v3480 = vld [vmem:[#allocation38 + $0x158] sm:$0xf]
        %v3481 = vld [vmem:[#allocation38 + $0x15c] sm:$0xf]
        %v3482 = vld [vmem:[#allocation38 + $0x160] sm:$0xf]
        %v3483 = vld [vmem:[#allocation38 + $0x164] sm:$0xf]
        %v3484 = vld [vmem:[#allocation38 + $0x168] sm:$0xf]
        %v3485 = vld [vmem:[#allocation38 + $0x16c] sm:$0xf]
        %v3486 = vld [vmem:[#allocation38 + $0x170] sm:$0xf]
        %v3487 = vld [vmem:[#allocation38 + $0x174] sm:$0xf]
        %v3488 = vld [vmem:[#allocation38 + $0x178] sm:$0xf]
        %v3489 = vld [vmem:[#allocation38 + $0x17c] sm:$0xf]
        %v3492 = vunpack.c.l.b16 %v3102
        %v3493 = vunpack.c.h.b16 %v3102
        %v3494 = vunpack.c.l.b16 %v3103
        %v3495 = vunpack.c.h.b16 %v3103
        %v3496 = vpack.c.b16 %v3494, %v3492
        %v3497 = vpack.c.b16 %v3495, %v3493
        %v3532 = vunpack.c.l.b16 %v3458
        %v3533 = vunpack.c.l.b16 %v3459
        %v3534 = vunpack.c.l.b16 %v3460
        %v3535 = vunpack.c.l.b16 %v3461
        %v3536 = vunpack.c.l.b16 %v3462
        %v3537 = vunpack.c.l.b16 %v3463
        %v3538 = vunpack.c.l.b16 %v3464
        %v3539 = vunpack.c.l.b16 %v3465
        %v3540 = vunpack.c.l.b16 %v3466
        %v3541 = vunpack.c.l.b16 %v3467
        %v3542 = vunpack.c.l.b16 %v3468
        %v3543 = vunpack.c.l.b16 %v3469
        %v3544 = vunpack.c.l.b16 %v3470
        %v3545 = vunpack.c.l.b16 %v3471
        %v3546 = vunpack.c.l.b16 %v3472
        %v3547 = vunpack.c.l.b16 %v3473
        %v3548 = vunpack.c.l.b16 %v3474
        %v3549 = vunpack.c.l.b16 %v3475
        %v3550 = vunpack.c.l.b16 %v3476
        %v3551 = vunpack.c.l.b16 %v3477
        %v3552 = vunpack.c.l.b16 %v3478
        %v3553 = vunpack.c.l.b16 %v3479
        %v3554 = vunpack.c.l.b16 %v3480
        %v3555 = vunpack.c.l.b16 %v3481
        %v3556 = vunpack.c.l.b16 %v3482
        %v3557 = vunpack.c.l.b16 %v3483
        %v3558 = vunpack.c.l.b16 %v3484
        %v3559 = vunpack.c.l.b16 %v3485
        %v3560 = vunpack.c.l.b16 %v3486
        %v3561 = vunpack.c.l.b16 %v3487
        %v3562 = vunpack.c.l.b16 %v3488
        %v3563 = vunpack.c.l.b16 %v3489
        %v3564 = vpack.c.b16 %v3533, %v3532
        %v3565 = vpack.c.b16 %v3535, %v3534
        %v3566 = vpack.c.b16 %v3537, %v3536
        %v3567 = vpack.c.b16 %v3539, %v3538
        %v3568 = vpack.c.b16 %v3541, %v3540
        %v3569 = vpack.c.b16 %v3543, %v3542
        %v3570 = vpack.c.b16 %v3545, %v3544
        %v3571 = vpack.c.b16 %v3547, %v3546
        %v3572 = vpack.c.b16 %v3549, %v3548
        %v3573 = vpack.c.b16 %v3551, %v3550
        %v3574 = vpack.c.b16 %v3553, %v3552
        %v3575 = vpack.c.b16 %v3555, %v3554
        %v3576 = vpack.c.b16 %v3557, %v3556
        %v3577 = vpack.c.b16 %v3559, %v3558
        %v3578 = vpack.c.b16 %v3561, %v3560
        %v3579 = vpack.c.b16 %v3563, %v3562
        %3596 = vmatprep.subr.bf16.mxu0 0
        %3597 = vmatpush1.bf16.msra.mxu0 %v3564
        %3598 = vmatprep.subr.bf16.mxu0 0
        %3599 = vmatpush1.bf16.msra.mxu0 %v3565
        %3600 = vmatprep.subr.bf16.mxu0 0
        %3601 = vmatpush1.bf16.msra.mxu0 %v3566
        %3602 = vmatprep.subr.bf16.mxu0 0
        %3603 = vmatpush1.bf16.msra.mxu0 %v3567
        %3604 = vmatprep.subr.bf16.mxu0 0
        %3605 = vmatpush1.bf16.msra.mxu0 %v3568
        %3606 = vmatprep.subr.bf16.mxu0 0
        %3607 = vmatpush1.bf16.msra.mxu0 %v3569
        %3608 = vmatprep.subr.bf16.mxu0 0
        %3609 = vmatpush1.bf16.msra.mxu0 %v3570
        %3610 = vmatprep.subr.bf16.mxu0 0
        %3611 = vmatpush1.bf16.msra.mxu0 %v3571
        %3612 = vmatprep.subr.bf16.mxu0 0
        %3613 = vmatpush1.bf16.msra.mxu0 %v3572
        %3614 = vmatprep.subr.bf16.mxu0 0
        %3615 = vmatpush1.bf16.msra.mxu0 %v3573
        %3616 = vmatprep.subr.bf16.mxu0 0
        %3617 = vmatpush1.bf16.msra.mxu0 %v3574
        %3618 = vmatprep.subr.bf16.mxu0 0
        %3619 = vmatpush1.bf16.msra.mxu0 %v3575
        %3620 = vmatprep.subr.bf16.mxu0 0
        %3621 = vmatpush1.bf16.msra.mxu0 %v3576
        %3622 = vmatprep.subr.bf16.mxu0 0
        %3623 = vmatpush1.bf16.msra.mxu0 %v3577
        %3624 = vmatprep.subr.bf16.mxu0 0
        %3625 = vmatpush1.bf16.msra.mxu0 %v3578
        %3626 = vmatprep.subr.bf16.mxu0 0
        %3627 = vmatpush1.bf16.msra.mxu0 %v3579
        %3628 = vmatprep.mubr.bf16.mxu0 %v3497
        %3629 = vmatmul.mubr.bf16.gmra.mrb[0].mxu0 %v3496
        %v3630 = vpop.f32.mrb[0].mxu0
        %v3631 = vadd.f32 0.0, %v3630
        %v3632 = vpop.f32.mrb[0].mxu0
        %v3633 = vpop.f32.mrb[0].mxu0
        %v3634 = vadd.f32 0.0, %v3633
        %v3635 = vpop.f32.mrb[0].mxu0
        %3636 = vdwg.mxu0
        %v3637 = vld [vmem:[#allocation38 + $0x180] sm:$0xf]
        %v3638 = vld [vmem:[#allocation38 + $0x184] sm:$0xf]
        %v3639 = vld [vmem:[#allocation38 + $0x188] sm:$0xf]
        %v3640 = vld [vmem:[#allocation38 + $0x18c] sm:$0xf]
        %v3641 = vld [vmem:[#allocation38 + $0x190] sm:$0xf]
        %v3642 = vld [vmem:[#allocation38 + $0x194] sm:$0xf]
        %v3643 = vld [vmem:[#allocation38 + $0x198] sm:$0xf]
        %v3644 = vld [vmem:[#allocation38 + $0x19c] sm:$0xf]
        %v3645 = vld [vmem:[#allocation38 + $0x1a0] sm:$0xf]
        %v3646 = vld [vmem:[#allocation38 + $0x1a4] sm:$0xf]
        %v3647 = vld [vmem:[#allocation38 + $0x1a8] sm:$0xf]
        %v3648 = vld [vmem:[#allocation38 + $0x1ac] sm:$0xf]
        %v3649 = vld [vmem:[#allocation38 + $0x1b0] sm:$0xf]
        %v3650 = vld [vmem:[#allocation38 + $0x1b4] sm:$0xf]
        %v3651 = vld [vmem:[#allocation38 + $0x1b8] sm:$0xf]
        %v3652 = vld [vmem:[#allocation38 + $0x1bc] sm:$0xf]
        %v3653 = vld [vmem:[#allocation38 + $0x1c0] sm:$0xf]
        %v3654 = vld [vmem:[#allocation38 + $0x1c4] sm:$0xf]
        %v3655 = vld [vmem:[#allocation38 + $0x1c8] sm:$0xf]
        %v3656 = vld [vmem:[#allocation38 + $0x1cc] sm:$0xf]
        %v3657 = vld [vmem:[#allocation38 + $0x1d0] sm:$0xf]
        %v3658 = vld [vmem:[#allocation38 + $0x1d4] sm:$0xf]
        %v3659 = vld [vmem:[#allocation38 + $0x1d8] sm:$0xf]
        %v3660 = vld [vmem:[#allocation38 + $0x1dc] sm:$0xf]
        %v3661 = vld [vmem:[#allocation38 + $0x1e0] sm:$0xf]
        %v3662 = vld [vmem:[#allocation38 + $0x1e4] sm:$0xf]
        %v3663 = vld [vmem:[#allocation38 + $0x1e8] sm:$0xf]
        %v3664 = vld [vmem:[#allocation38 + $0x1ec] sm:$0xf]
        %v3665 = vld [vmem:[#allocation38 + $0x1f0] sm:$0xf]
        %v3666 = vld [vmem:[#allocation38 + $0x1f4] sm:$0xf]
        %v3667 = vld [vmem:[#allocation38 + $0x1f8] sm:$0xf]
        %v3668 = vld [vmem:[#allocation38 + $0x1fc] sm:$0xf]
        %v3671 = vunpack.c.l.s4 1966171168
        %v3672 = vunpack.c.0.s8 %v3671
        %v3673 = vlaneseq
        %v3674 = vshrl.u32 %v3673, 7
        %v3675 = vsub.s32 %v3672, %v3674
        %v3676 = vrot.slane %v3104, %v3675
        %v3677 = vcombine.high %v3676, %v3676
        %v3679 = vunpack.c.l.s4 1966171168
        %v3680 = vunpack.c.0.s8 %v3679
        %v3681 = vlaneseq
        %v3682 = vshrl.u32 %v3681, 7
        %v3683 = vsub.s32 %v3680, %v3682
        %v3684 = vrot.slane %v3676, %v3683
        %v3686 = vunpack.c.l.s4 1966171168
        %v3687 = vunpack.c.0.s8 %v3686
        %v3688 = vlaneseq
        %v3689 = vshrl.u32 %v3688, 7
        %v3690 = vsub.s32 %v3687, %v3689
        %v3691 = vrot.slane %v3677, %v3690
        %v3726 = vunpack.c.l.b16 %v3637
        %v3727 = vunpack.c.l.b16 %v3638
        %v3728 = vunpack.c.l.b16 %v3639
        %v3729 = vunpack.c.l.b16 %v3640
        %v3730 = vunpack.c.l.b16 %v3641
        %v3731 = vunpack.c.l.b16 %v3642
        %v3732 = vunpack.c.l.b16 %v3643
        %v3733 = vunpack.c.l.b16 %v3644
        %v3734 = vunpack.c.l.b16 %v3645
        %v3735 = vunpack.c.l.b16 %v3646
        %v3736 = vunpack.c.l.b16 %v3647
        %v3737 = vunpack.c.l.b16 %v3648
        %v3738 = vunpack.c.l.b16 %v3649
        %v3739 = vunpack.c.l.b16 %v3650
        %v3740 = vunpack.c.l.b16 %v3651
        %v3741 = vunpack.c.l.b16 %v3652
        %v3742 = vunpack.c.l.b16 %v3653
        %v3743 = vunpack.c.l.b16 %v3654
        %v3744 = vunpack.c.l.b16 %v3655
        %v3745 = vunpack.c.l.b16 %v3656
        %v3746 = vunpack.c.l.b16 %v3657
        %v3747 = vunpack.c.l.b16 %v3658
        %v3748 = vunpack.c.l.b16 %v3659
        %v3749 = vunpack.c.l.b16 %v3660
        %v3750 = vunpack.c.l.b16 %v3661
        %v3751 = vunpack.c.l.b16 %v3662
        %v3752 = vunpack.c.l.b16 %v3663
        %v3753 = vunpack.c.l.b16 %v3664
        %v3754 = vunpack.c.l.b16 %v3665
        %v3755 = vunpack.c.l.b16 %v3666
        %v3756 = vunpack.c.l.b16 %v3667
        %v3757 = vunpack.c.l.b16 %v3668
        %v3758 = vpack.c.b16 %v3727, %v3726
        %v3759 = vpack.c.b16 %v3729, %v3728
        %v3760 = vpack.c.b16 %v3731, %v3730
        %v3761 = vpack.c.b16 %v3733, %v3732
        %v3762 = vpack.c.b16 %v3735, %v3734
        %v3763 = vpack.c.b16 %v3737, %v3736
        %v3764 = vpack.c.b16 %v3739, %v3738
        %v3765 = vpack.c.b16 %v3741, %v3740
        %v3766 = vpack.c.b16 %v3743, %v3742
        %v3767 = vpack.c.b16 %v3745, %v3744
        %v3768 = vpack.c.b16 %v3747, %v3746
        %v3769 = vpack.c.b16 %v3749, %v3748
        %v3770 = vpack.c.b16 %v3751, %v3750
        %v3771 = vpack.c.b16 %v3753, %v3752
        %v3772 = vpack.c.b16 %v3755, %v3754
        %v3773 = vpack.c.b16 %v3757, %v3756
        %3790 = vmatprep.subr.bf16.mxu0 0
        %3791 = vmatpush1.bf16.msra.mxu0 %v3758
        %3792 = vmatprep.subr.bf16.mxu0 0
        %3793 = vmatpush1.bf16.msra.mxu0 %v3759
        %3794 = vmatprep.subr.bf16.mxu0 0
        %3795 = vmatpush1.bf16.msra.mxu0 %v3760
        %3796 = vmatprep.subr.bf16.mxu0 0
        %3797 = vmatpush1.bf16.msra.mxu0 %v3761
        %3798 = vmatprep.subr.bf16.mxu0 0
        %3799 = vmatpush1.bf16.msra.mxu0 %v3762
        %3800 = vmatprep.subr.bf16.mxu0 0
        %3801 = vmatpush1.bf16.msra.mxu0 %v3763
        %3802 = vmatprep.subr.bf16.mxu0 0
        %3803 = vmatpush1.bf16.msra.mxu0 %v3764
        %3804 = vmatprep.subr.bf16.mxu0 0
        %3805 = vmatpush1.bf16.msra.mxu0 %v3765
        %3806 = vmatprep.subr.bf16.mxu0 0
        %3807 = vmatpush1.bf16.msra.mxu0 %v3766
        %3808 = vmatprep.subr.bf16.mxu0 0
        %3809 = vmatpush1.bf16.msra.mxu0 %v3767
        %3810 = vmatprep.subr.bf16.mxu0 0
        %3811 = vmatpush1.bf16.msra.mxu0 %v3768
        %3812 = vmatprep.subr.bf16.mxu0 0
        %3813 = vmatpush1.bf16.msra.mxu0 %v3769
        %3814 = vmatprep.subr.bf16.mxu0 0
        %3815 = vmatpush1.bf16.msra.mxu0 %v3770
        %3816 = vmatprep.subr.bf16.mxu0 0
        %3817 = vmatpush1.bf16.msra.mxu0 %v3771
        %3818 = vmatprep.subr.bf16.mxu0 0
        %3819 = vmatpush1.bf16.msra.mxu0 %v3772
        %3820 = vmatprep.subr.bf16.mxu0 0
        %3821 = vmatpush1.bf16.msra.mxu0 %v3773
        %3822 = vmatprep.mubr.bf16.mxu0 %v3691
        %3823 = vmatmul.mubr.bf16.gmra.mrb[0].mxu0 %v3684
        %v3824 = vpop.f32.mrb[0].mxu0
        %v3825 = vadd.f32 0.0, %v3824
        %v3826 = vpop.f32.mrb[0].mxu0
        %v3827 = vpop.f32.mrb[0].mxu0
        %v3828 = vpop.f32.mrb[0].mxu0
        %3829 = vdwg.mxu0
        %v3830 = vpack.c.bf16 %v3285, %v3285
        %v3831 = vpack.c.bf16 %v3453, %v3453
        %v3834 = vunpack.c.l.b16 %v3107
        %v3835 = vunpack.c.l.b16 %v3108
        %v3836 = vpack.c.b16 %v3835, %v3834
        %vm3837 = vcmask 64512
        %v3839 = vsel %vm3837, %v3836, 0
        %vm3841 = vcmask 1043456
        %v3843 = vsel %vm3841, %v3831, 0
        %3845 = vmatprep.subr.bf16.mxu0 0
        %3846 = vmatpush1.bf16.msra.mxu0 %v3843
        %3847 = vmatprep.subr.bf16.mxu0 0
        %3848 = vmatpush1.bf16.msra.mxu0 0
        %3849 = vmatprep.subr.bf16.mxu0 0
        %3850 = vmatpush1.bf16.msra.mxu0 0
        %3851 = vmatprep.subr.bf16.mxu0 0
        %3852 = vmatpush1.bf16.msra.mxu0 0
        %3853 = vmatprep.subr.bf16.mxu0 0
        %3854 = vmatpush1.bf16.msra.mxu0 0
        %3855 = vmatprep.subr.bf16.mxu0 0
        %3856 = vmatpush1.bf16.msra.mxu0 0
        %3857 = vmatprep.subr.bf16.mxu0 0
        %3858 = vmatpush1.bf16.msra.mxu0 0
        %3859 = vmatprep.subr.bf16.mxu0 0
        %3860 = vmatpush1.bf16.msra.mxu0 0
        %3861 = vmatprep.subr.bf16.mxu0 0
        %3862 = vmatpush1.bf16.msra.mxu0 0
        %3863 = vmatprep.subr.bf16.mxu0 0
        %3864 = vmatpush1.bf16.msra.mxu0 0
        %3865 = vmatprep.subr.bf16.mxu0 0
        %3866 = vmatpush1.bf16.msra.mxu0 0
        %3867 = vmatprep.subr.bf16.mxu0 0
        %3868 = vmatpush1.bf16.msra.mxu0 0
        %3869 = vmatprep.subr.bf16.mxu0 0
        %3870 = vmatpush1.bf16.msra.mxu0 0
        %3871 = vmatprep.subr.bf16.mxu0 0
        %3872 = vmatpush1.bf16.msra.mxu0 0
        %3873 = vmatprep.subr.bf16.mxu0 0
        %3874 = vmatpush1.bf16.msra.mxu0 0
        %3875 = vmatprep.subr.bf16.mxu0 0
        %3876 = vmatpush1.bf16.msra.mxu0 0
        %3877 = vmatprep.mubr.bf16.mxu0 0
        %3878 = vmatmul.mubr.bf16.gmra.mrb[0].mxu0 %v3839
        %v3879 = vpop.f32.mrb[0].mxu0
        %v3880 = vadd.f32 0.0, %v3879
        %v3881 = vpop.f32.mrb[0].mxu0
        %v3882 = vpop.f32.mrb[0].mxu0
        %v3883 = vadd.f32 0.0, %v3882
        %v3884 = vpop.f32.mrb[0].mxu0
        %3885 = vdwg.mxu0
        %v3888 = vunpack.c.l.b16 %v3105
        %v3889 = vunpack.c.l.b16 %v3106
        %v3890 = vpack.c.b16 %v3889, %v3888
        %v3892 = vsel %vm3837, %v3890, 0
        %v3895 = vsel %vm3841, %v3830, 0
        %3897 = vmatprep.subr.bf16.mxu0 0
        %3898 = vmatpush1.bf16.msra.mxu0 %v3895
        %3899 = vmatprep.subr.bf16.mxu0 0
        %3900 = vmatpush1.bf16.msra.mxu0 0
        %3901 = vmatprep.subr.bf16.mxu0 0
        %3902 = vmatpush1.bf16.msra.mxu0 0
        %3903 = vmatprep.subr.bf16.mxu0 0
        %3904 = vmatpush1.bf16.msra.mxu0 0
        %3905 = vmatprep.subr.bf16.mxu0 0
        %3906 = vmatpush1.bf16.msra.mxu0 0
        %3907 = vmatprep.subr.bf16.mxu0 0
        %3908 = vmatpush1.bf16.msra.mxu0 0
        %3909 = vmatprep.subr.bf16.mxu0 0
        %3910 = vmatpush1.bf16.msra.mxu0 0
        %3911 = vmatprep.subr.bf16.mxu0 0
        %3912 = vmatpush1.bf16.msra.mxu0 0
        %3913 = vmatprep.subr.bf16.mxu0 0
        %3914 = vmatpush1.bf16.msra.mxu0 0
        %3915 = vmatprep.subr.bf16.mxu0 0
        %3916 = vmatpush1.bf16.msra.mxu0 0
        %3917 = vmatprep.subr.bf16.mxu0 0
        %3918 = vmatpush1.bf16.msra.mxu0 0
        %3919 = vmatprep.subr.bf16.mxu0 0
        %3920 = vmatpush1.bf16.msra.mxu0 0
        %3921 = vmatprep.subr.bf16.mxu0 0
        %3922 = vmatpush1.bf16.msra.mxu0 0
        %3923 = vmatprep.subr.bf16.mxu0 0
        %3924 = vmatpush1.bf16.msra.mxu0 0
        %3925 = vmatprep.subr.bf16.mxu0 0
        %3926 = vmatpush1.bf16.msra.mxu0 0
        %3927 = vmatprep.subr.bf16.mxu0 0
        %3928 = vmatpush1.bf16.msra.mxu0 0
        %3929 = vmatprep.mubr.bf16.mxu0 0
        %3930 = vmatmul.mubr.bf16.gmra.mrb[0].mxu0 %v3892
        %v3931 = vpop.f32.mrb[0].mxu0
        %v3932 = vadd.f32 %v3880, %v3931
        %v3933 = vpop.f32.mrb[0].mxu0
        %v3934 = vpop.f32.mrb[0].mxu0
        %v3935 = vadd.f32 %v3883, %v3934
        %v3936 = vpop.f32.mrb[0].mxu0
        %3937 = vdwg.mxu0
        %v3938 = vadd.f32 %v3932, %v3631
        %v3939 = vadd.f32 %v3935, %v3634
        %v3940 = vpack.c.bf16 %v3825, %v3825
        %v3943 = vunpack.c.l.b16 %v3112
        %v3944 = vunpack.c.l.b16 %v3113
        %v3945 = vpack.c.b16 %v3944, %v3943
        %vm3946 = vcmask 15360
        %v3948 = vsel %vm3946, %v3945, 0
        %vm3950 = vcmask 1040384
        %v3952 = vsel %vm3950, %v3940, 0
        %3954 = vmatprep.subr.bf16.mxu0 0
        %3955 = vmatpush1.bf16.msra.mxu0 %v3952
        %3956 = vmatprep.subr.bf16.mxu0 0
        %3957 = vmatpush1.bf16.msra.mxu0 0
        %3958 = vmatprep.subr.bf16.mxu0 0
        %3959 = vmatpush1.bf16.msra.mxu0 0
        %3960 = vmatprep.subr.bf16.mxu0 0
        %3961 = vmatpush1.bf16.msra.mxu0 0
        %3962 = vmatprep.subr.bf16.mxu0 0
        %3963 = vmatpush1.bf16.msra.mxu0 0
        %3964 = vmatprep.subr.bf16.mxu0 0
        %3965 = vmatpush1.bf16.msra.mxu0 0
        %3966 = vmatprep.subr.bf16.mxu0 0
        %3967 = vmatpush1.bf16.msra.mxu0 0
        %3968 = vmatprep.subr.bf16.mxu0 0
        %3969 = vmatpush1.bf16.msra.mxu0 0
        %3970 = vmatprep.subr.bf16.mxu0 0
        %3971 = vmatpush1.bf16.msra.mxu0 0
        %3972 = vmatprep.subr.bf16.mxu0 0
        %3973 = vmatpush1.bf16.msra.mxu0 0
        %3974 = vmatprep.subr.bf16.mxu0 0
        %3975 = vmatpush1.bf16.msra.mxu0 0
        %3976 = vmatprep.subr.bf16.mxu0 0
        %3977 = vmatpush1.bf16.msra.mxu0 0
        %3978 = vmatprep.subr.bf16.mxu0 0
        %3979 = vmatpush1.bf16.msra.mxu0 0
        %3980 = vmatprep.subr.bf16.mxu0 0
        %3981 = vmatpush1.bf16.msra.mxu0 0
        %3982 = vmatprep.subr.bf16.mxu0 0
        %3983 = vmatpush1.bf16.msra.mxu0 0
        %3984 = vmatprep.subr.bf16.mxu0 0
        %3985 = vmatpush1.bf16.msra.mxu0 0
        %3986 = vmatprep.mubr.bf16.mxu0 0
        %3987 = vmatmul.mubr.bf16.gmra.mrb[0].mxu0 %v3948
        %v3988 = vpop.f32.mrb[0].mxu0
        %v3989 = vadd.f32 0.0, %v3988
        %v3990 = vpop.f32.mrb[0].mxu0
        %v3991 = vpop.f32.mrb[0].mxu0
        %v3992 = vadd.f32 0.0, %v3991
        %v3993 = vpop.f32.mrb[0].mxu0
        %3994 = vdwg.mxu0
        %v3995 = vadd.f32 %v3938, %v3989
        %v3996 = vadd.f32 %v3939, %v3992
        %v3997 = vld [vmem:[#allocation40] sm:$0x1]
        %v3999 = vlaneseq
        %v4000 = vshrl.u32 %v3999, 7
        %v4001 = vsub.s32 0, %v4000
        %v4002 = vrot.slane %v3997, %v4001
        %v4004 = vadd.f32 %v3995, %v4002
        %v4005 = vadd.f32 %v3996, %v4002
        %v4006 = vmax.f32 %v4004, 0.0
        %v4007 = vmax.f32 %v4005, 0.0
        %v4008 = vpack.c.bf16 %v4007, %v4006
        %v4009 = vld [vmem:[#allocation41] sm:$0xf]
        %v4010 = vld [vmem:[#allocation41 + $0x4] sm:$0xf]
        %v4011 = vld [vmem:[#allocation41 + $0x8] sm:$0xf]
        %v4012 = vld [vmem:[#allocation41 + $0xc] sm:$0xf]
        %v4013 = vld [vmem:[#allocation41 + $0x10] sm:$0xf]
        %v4014 = vld [vmem:[#allocation41 + $0x14] sm:$0xf]
        %v4015 = vld [vmem:[#allocation41 + $0x18] sm:$0xf]
        %v4016 = vld [vmem:[#allocation41 + $0x1c] sm:$0xf]
        %v4017 = vld [vmem:[#allocation41 + $0x20] sm:$0xf]
        %v4018 = vld [vmem:[#allocation41 + $0x24] sm:$0xf]
        %v4019 = vld [vmem:[#allocation41 + $0x28] sm:$0xf]
        %v4020 = vld [vmem:[#allocation41 + $0x2c] sm:$0xf]
        %v4021 = vld [vmem:[#allocation41 + $0x30] sm:$0xf]
        %v4022 = vld [vmem:[#allocation41 + $0x34] sm:$0xf]
        %v4023 = vld [vmem:[#allocation41 + $0x38] sm:$0xf]
        %v4024 = vld [vmem:[#allocation41 + $0x3c] sm:$0xf]
        %v4025 = vld [vmem:[#allocation43] sm:$0x1]
        %v4027 = vlaneseq
        %v4028 = vshrl.u32 %v4027, 7
        %v4029 = vsub.s32 0, %v4028
        %v4030 = vrot.slane %v4025, %v4029
        %v4048 = vunpack.c.l.b16 %v4009
        %v4049 = vunpack.c.l.b16 %v4010
        %v4050 = vunpack.c.l.b16 %v4011
        %v4051 = vunpack.c.l.b16 %v4012
        %v4052 = vunpack.c.l.b16 %v4013
        %v4053 = vunpack.c.l.b16 %v4014
        %v4054 = vunpack.c.l.b16 %v4015
        %v4055 = vunpack.c.l.b16 %v4016
        %v4056 = vunpack.c.l.b16 %v4017
        %v4057 = vunpack.c.l.b16 %v4018
        %v4058 = vunpack.c.l.b16 %v4019
        %v4059 = vunpack.c.l.b16 %v4020
        %v4060 = vunpack.c.l.b16 %v4021
        %v4061 = vunpack.c.l.b16 %v4022
        %v4062 = vunpack.c.l.b16 %v4023
        %v4063 = vunpack.c.l.b16 %v4024
        %v4064 = vpack.c.b16 %v4049, %v4048
        %v4065 = vpack.c.b16 %v4051, %v4050
        %v4066 = vpack.c.b16 %v4053, %v4052
        %v4067 = vpack.c.b16 %v4055, %v4054
        %v4068 = vpack.c.b16 %v4057, %v4056
        %v4069 = vpack.c.b16 %v4059, %v4058
        %v4070 = vpack.c.b16 %v4061, %v4060
        %v4071 = vpack.c.b16 %v4063, %v4062
        %4080 = vmatprep.subr.bf16.mxu0 0
        %4081 = vmatpush1.bf16.msra.mxu0 %v4064
        %4082 = vmatprep.subr.bf16.mxu0 0
        %4083 = vmatpush1.bf16.msra.mxu0 %v4065
        %4084 = vmatprep.subr.bf16.mxu0 0
        %4085 = vmatpush1.bf16.msra.mxu0 %v4066
        %4086 = vmatprep.subr.bf16.mxu0 0
        %4087 = vmatpush1.bf16.msra.mxu0 %v4067
        %4088 = vmatprep.subr.bf16.mxu0 0
        %4089 = vmatpush1.bf16.msra.mxu0 %v4068
        %4090 = vmatprep.subr.bf16.mxu0 0
        %4091 = vmatpush1.bf16.msra.mxu0 %v4069
        %4092 = vmatprep.subr.bf16.mxu0 0
        %4093 = vmatpush1.bf16.msra.mxu0 %v4070
        %4094 = vmatprep.subr.bf16.mxu0 0
        %4095 = vmatpush1.bf16.msra.mxu0 %v4071
        %4096 = vmatprep.subr.bf16.mxu0 0
        %4097 = vmatpush1.bf16.msra.mxu0 0
        %4098 = vmatprep.subr.bf16.mxu0 0
        %4099 = vmatpush1.bf16.msra.mxu0 0
        %4100 = vmatprep.subr.bf16.mxu0 0
        %4101 = vmatpush1.bf16.msra.mxu0 0
        %4102 = vmatprep.subr.bf16.mxu0 0
        %4103 = vmatpush1.bf16.msra.mxu0 0
        %4104 = vmatprep.subr.bf16.mxu0 0
        %4105 = vmatpush1.bf16.msra.mxu0 0
        %4106 = vmatprep.subr.bf16.mxu0 0
        %4107 = vmatpush1.bf16.msra.mxu0 0
        %4108 = vmatprep.subr.bf16.mxu0 0
        %4109 = vmatpush1.bf16.msra.mxu0 0
        %4110 = vmatprep.subr.bf16.mxu0 0
        %4111 = vmatpush1.bf16.msra.mxu0 0
        %4112 = vmatprep.mubr.bf16.mxu0 0
        %4113 = vmatmul.mubr.bf16.gmra.mrb[0].mxu0 %v4008
        %v4114 = vpop.f32.mrb[0].mxu0
        %v4115 = vadd.f32 %v4030, %v4114
        %v4116 = vpop.f32.mrb[0].mxu0
        %v4117 = vpop.f32.mrb[0].mxu0
        %v4118 = vadd.f32 %v4030, %v4117
        %v4119 = vpop.f32.mrb[0].mxu0
        %4120 = vdwg.mxu0
        %4121 = vadd.xlane.f32.xlu0 %v4115
        %v4122 = vpop.xlane.xlu0 %4121
        %v4123 = vsel %vm3841, %v4118, 0.0
        %4124 = vadd.xlane.f32.xlu0 %v4123
        %v4125 = vpop.xlane.xlu0 %4124
        %v4126 = vmul.f32 %v4122, 0.0078125
        %v4127 = vmul.f32 %v4125, 0.0078125
        %v4128 = vmul.f32 %v4115, %v4115
        %v4129 = vmul.f32 %v4118, %v4118
        %4130 = vadd.xlane.f32.xlu0 %v4128
        %v4131 = vpop.xlane.xlu0 %4130
        %v4132 = vsel %vm3841, %v4129, 0.0
        %4133 = vadd.xlane.f32.xlu0 %v4132
        %v4134 = vpop.xlane.xlu0 %4133
        %v4135 = vmul.f32 %v4131, 0.0078125
        %v4136 = vmul.f32 %v4134, 0.0078125
        %v4137 = vmul.f32 %v4126, %v4126
        %v4138 = vmul.f32 %v4127, %v4127
        %v4139 = vsub.f32 %v4135, %v4137
        %v4140 = vsub.f32 %v4136, %v4138
        %v4141 = vsub.f32 %v4115, %v4126
        %v4142 = vsub.f32 %v4118, %v4127
        %v4143 = vadd.f32 %v4139, 1e-05
        %v4144 = vadd.f32 %v4140, 1e-05
        %v4145 = vrsqrt.pop %v4143
        %v4146 = vrsqrt.pop %v4144
        %v4147 = vmul.f32 %v4141, %v4145
        %v4148 = vmul.f32 %v4142, %v4146
        %v4149 = vld [vmem:[#allocation44] sm:$0x1]
        %v4151 = vlaneseq
        %v4152 = vshrl.u32 %v4151, 7
        %v4153 = vsub.s32 0, %v4152
        %v4154 = vrot.slane %v4149, %v4153
        %v4156 = vmul.f32 %v4147, %v4154
        %v4157 = vmul.f32 %v4148, %v4154
        %v4158 = vld [vmem:[#allocation46] sm:$0x1]
        %v4160 = vlaneseq
        %v4161 = vshrl.u32 %v4160, 7
        %v4162 = vsub.s32 0, %v4161
        %v4163 = vrot.slane %v4158, %v4162
        %v4165 = vadd.f32 %v4156, %v4163
        %v4166 = vadd.f32 %v4157, %v4163
        %v4167 = vpack.c.bf16 %v4166, %v4165
        %v4168 = vld [vmem:[#allocation47] sm:$0xf]
        %v4169 = vld [vmem:[#allocation47 + $0x4] sm:$0xf]
        %v4170 = vld [vmem:[#allocation47 + $0x8] sm:$0xf]
        %v4171 = vld [vmem:[#allocation47 + $0xc] sm:$0xf]
        %v4172 = vld [vmem:[#allocation47 + $0x10] sm:$0xf]
        %v4173 = vld [vmem:[#allocation47 + $0x14] sm:$0xf]
        %v4174 = vld [vmem:[#allocation47 + $0x18] sm:$0xf]
        %v4175 = vld [vmem:[#allocation47 + $0x1c] sm:$0xf]
        %v4176 = vld [vmem:[#allocation47 + $0x20] sm:$0xf]
        %v4177 = vld [vmem:[#allocation47 + $0x24] sm:$0xf]
        %v4178 = vld [vmem:[#allocation47 + $0x28] sm:$0xf]
        %v4179 = vld [vmem:[#allocation47 + $0x2c] sm:$0xf]
        %v4180 = vld [vmem:[#allocation47 + $0x30] sm:$0xf]
        %v4181 = vld [vmem:[#allocation47 + $0x34] sm:$0xf]
        %v4182 = vld [vmem:[#allocation47 + $0x38] sm:$0xf]
        %v4183 = vld [vmem:[#allocation47 + $0x3c] sm:$0xf]
        %v4184 = vld [vmem:[#allocation47 + $0x40] sm:$0xf]
        %v4185 = vld [vmem:[#allocation47 + $0x44] sm:$0xf]
        %v4186 = vld [vmem:[#allocation47 + $0x48] sm:$0xf]
        %v4187 = vld [vmem:[#allocation47 + $0x4c] sm:$0xf]
        %v4188 = vld [vmem:[#allocation47 + $0x50] sm:$0xf]
        %v4189 = vld [vmem:[#allocation47 + $0x54] sm:$0xf]
        %v4190 = vld [vmem:[#allocation47 + $0x58] sm:$0xf]
        %v4191 = vld [vmem:[#allocation47 + $0x5c] sm:$0xf]
        %v4192 = vld [vmem:[#allocation47 + $0x60] sm:$0xf]
        %v4193 = vld [vmem:[#allocation47 + $0x64] sm:$0xf]
        %v4194 = vld [vmem:[#allocation47 + $0x68] sm:$0xf]
        %v4195 = vld [vmem:[#allocation47 + $0x6c] sm:$0xf]
        %v4196 = vld [vmem:[#allocation47 + $0x70] sm:$0xf]
        %v4197 = vld [vmem:[#allocation47 + $0x74] sm:$0xf]
        %v4198 = vld [vmem:[#allocation47 + $0x78] sm:$0xf]
        %v4199 = vld [vmem:[#allocation47 + $0x7c] sm:$0xf]
        %vm4200 = vcmask 97280
        %v4202 = vsel %vm4200, %v3109, 0
        %vm4204 = vcmask 1045504
        %v4206 = vsel %vm4204, %v4167, 0
        %4208 = vmatprep.subr.bf16.mxu0 0
        %4209 = vmatpush1.bf16.msra.mxu0 %v4206
        %4210 = vmatprep.subr.bf16.mxu0 0
        %4211 = vmatpush1.bf16.msra.mxu0 0
        %4212 = vmatprep.subr.bf16.mxu0 0
        %4213 = vmatpush1.bf16.msra.mxu0 0
        %4214 = vmatprep.subr.bf16.mxu0 0
        %4215 = vmatpush1.bf16.msra.mxu0 0
        %4216 = vmatprep.subr.bf16.mxu0 0
        %4217 = vmatpush1.bf16.msra.mxu0 0
        %4218 = vmatprep.subr.bf16.mxu0 0
        %4219 = vmatpush1.bf16.msra.mxu0 0
        %4220 = vmatprep.subr.bf16.mxu0 0
        %4221 = vmatpush1.bf16.msra.mxu0 0
        %4222 = vmatprep.subr.bf16.mxu0 0
        %4223 = vmatpush1.bf16.msra.mxu0 0
        %4224 = vmatprep.subr.bf16.mxu0 0
        %4225 = vmatpush1.bf16.msra.mxu0 0
        %4226 = vmatprep.subr.bf16.mxu0 0
        %4227 = vmatpush1.bf16.msra.mxu0 0
        %4228 = vmatprep.subr.bf16.mxu0 0
        %4229 = vmatpush1.bf16.msra.mxu0 0
        %4230 = vmatprep.subr.bf16.mxu0 0
        %4231 = vmatpush1.bf16.msra.mxu0 0
        %4232 = vmatprep.subr.bf16.mxu0 0
        %4233 = vmatpush1.bf16.msra.mxu0 0
        %4234 = vmatprep.subr.bf16.mxu0 0
        %4235 = vmatpush1.bf16.msra.mxu0 0
        %4236 = vmatprep.subr.bf16.mxu0 0
        %4237 = vmatpush1.bf16.msra.mxu0 0
        %4238 = vmatprep.subr.bf16.mxu0 0
        %4239 = vmatpush1.bf16.msra.mxu0 0
        %4240 = vmatprep.mubr.bf16.mxu0 0
        %4241 = vmatmul.mubr.bf16.gmra.mrb[0].mxu0 %v4202
        %v4242 = vpop.f32.mrb[0].mxu0
        %v4243 = vadd.f32 0.0, %v4242
        %v4244 = vpop.f32.mrb[0].mxu0
        %v4245 = vpop.f32.mrb[0].mxu0
        %v4246 = vpop.f32.mrb[0].mxu0
        %4247 = vdwg.mxu0
        %v4248 = vpack.c.bf16 %v4243, %v4243
        %v4249 = vld [vmem:[#allocation47 + $0x80] sm:$0xf]
        %v4250 = vld [vmem:[#allocation47 + $0x84] sm:$0xf]
        %v4251 = vld [vmem:[#allocation47 + $0x88] sm:$0xf]
        %v4252 = vld [vmem:[#allocation47 + $0x8c] sm:$0xf]
        %v4253 = vld [vmem:[#allocation47 + $0x90] sm:$0xf]
        %v4254 = vld [vmem:[#allocation47 + $0x94] sm:$0xf]
        %v4255 = vld [vmem:[#allocation47 + $0x98] sm:$0xf]
        %v4256 = vld [vmem:[#allocation47 + $0x9c] sm:$0xf]
        %v4257 = vld [vmem:[#allocation47 + $0xa0] sm:$0xf]
        %v4258 = vld [vmem:[#allocation47 + $0xa4] sm:$0xf]
        %v4259 = vld [vmem:[#allocation47 + $0xa8] sm:$0xf]
        %v4260 = vld [vmem:[#allocation47 + $0xac] sm:$0xf]
        %v4261 = vld [vmem:[#allocation47 + $0xb0] sm:$0xf]
        %v4262 = vld [vmem:[#allocation47 + $0xb4] sm:$0xf]
        %v4263 = vld [vmem:[#allocation47 + $0xb8] sm:$0xf]
        %v4264 = vld [vmem:[#allocation47 + $0xbc] sm:$0xf]
        %v4281 = vunpack.c.l.b16 %v4249
        %v4282 = vunpack.c.l.b16 %v4250
        %v4283 = vunpack.c.l.b16 %v4251
        %v4284 = vunpack.c.l.b16 %v4252
        %v4285 = vunpack.c.l.b16 %v4253
        %v4286 = vunpack.c.l.b16 %v4254
        %v4287 = vunpack.c.l.b16 %v4255
        %v4288 = vunpack.c.l.b16 %v4256
        %v4289 = vunpack.c.l.b16 %v4257
        %v4290 = vunpack.c.l.b16 %v4258
        %v4291 = vunpack.c.l.b16 %v4259
        %v4292 = vunpack.c.l.b16 %v4260
        %v4293 = vunpack.c.l.b16 %v4261
        %v4294 = vunpack.c.l.b16 %v4262
        %v4295 = vunpack.c.l.b16 %v4263
        %v4296 = vunpack.c.l.b16 %v4264
        %v4297 = vpack.c.b16 %v4282, %v4281
        %v4298 = vpack.c.b16 %v4284, %v4283
        %v4299 = vpack.c.b16 %v4286, %v4285
        %v4300 = vpack.c.b16 %v4288, %v4287
        %v4301 = vpack.c.b16 %v4290, %v4289
        %v4302 = vpack.c.b16 %v4292, %v4291
        %v4303 = vpack.c.b16 %v4294, %v4293
        %v4304 = vpack.c.b16 %v4296, %v4295
        %4313 = vmatprep.subr.bf16.mxu0 0
        %4314 = vmatpush1.bf16.msra.mxu0 %v4297
        %4315 = vmatprep.subr.bf16.mxu0 0
        %4316 = vmatpush1.bf16.msra.mxu0 %v4298
        %4317 = vmatprep.subr.bf16.mxu0 0
        %4318 = vmatpush1.bf16.msra.mxu0 %v4299
        %4319 = vmatprep.subr.bf16.mxu0 0
        %4320 = vmatpush1.bf16.msra.mxu0 %v4300
        %4321 = vmatprep.subr.bf16.mxu0 0
        %4322 = vmatpush1.bf16.msra.mxu0 %v4301
        %4323 = vmatprep.subr.bf16.mxu0 0
        %4324 = vmatpush1.bf16.msra.mxu0 %v4302
        %4325 = vmatprep.subr.bf16.mxu0 0
        %4326 = vmatpush1.bf16.msra.mxu0 %v4303
        %4327 = vmatprep.subr.bf16.mxu0 0
        %4328 = vmatpush1.bf16.msra.mxu0 %v4304
        %4329 = vmatprep.subr.bf16.mxu0 0
        %4330 = vmatpush1.bf16.msra.mxu0 0
        %4331 = vmatprep.subr.bf16.mxu0 0
        %4332 = vmatpush1.bf16.msra.mxu0 0
        %4333 = vmatprep.subr.bf16.mxu0 0
        %4334 = vmatpush1.bf16.msra.mxu0 0
        %4335 = vmatprep.subr.bf16.mxu0 0
        %4336 = vmatpush1.bf16.msra.mxu0 0
        %4337 = vmatprep.subr.bf16.mxu0 0
        %4338 = vmatpush1.bf16.msra.mxu0 0
        %4339 = vmatprep.subr.bf16.mxu0 0
        %4340 = vmatpush1.bf16.msra.mxu0 0
        %4341 = vmatprep.subr.bf16.mxu0 0
        %4342 = vmatpush1.bf16.msra.mxu0 0
        %4343 = vmatprep.subr.bf16.mxu0 0
        %4344 = vmatpush1.bf16.msra.mxu0 0
        %4345 = vmatprep.mubr.bf16.mxu0 0
        %4346 = vmatmul.mubr.bf16.gmra.mrb[0].mxu0 %v4248
        %v4347 = vpop.f32.mrb[0].mxu0
        %v4348 = vadd.f32 0.0, %v4347
        %v4349 = vpop.f32.mrb[0].mxu0
        %v4350 = vpop.f32.mrb[0].mxu0
        %v4351 = vpop.f32.mrb[0].mxu0
        %4352 = vdwg.mxu0
        %v4353 = vld [vmem:[#allocation47 + $0xc0] sm:$0xf]
        %v4354 = vld [vmem:[#allocation47 + $0xc4] sm:$0xf]
        %v4355 = vld [vmem:[#allocation47 + $0xc8] sm:$0xf]
        %v4356 = vld [vmem:[#allocation47 + $0xcc] sm:$0xf]
        %v4357 = vld [vmem:[#allocation47 + $0xd0] sm:$0xf]
        %v4358 = vld [vmem:[#allocation47 + $0xd4] sm:$0xf]
        %v4359 = vld [vmem:[#allocation47 + $0xd8] sm:$0xf]
        %v4360 = vld [vmem:[#allocation47 + $0xdc] sm:$0xf]
        %v4361 = vld [vmem:[#allocation47 + $0xe0] sm:$0xf]
        %v4362 = vld [vmem:[#allocation47 + $0xe4] sm:$0xf]
        %v4363 = vld [vmem:[#allocation47 + $0xe8] sm:$0xf]
        %v4364 = vld [vmem:[#allocation47 + $0xec] sm:$0xf]
        %v4365 = vld [vmem:[#allocation47 + $0xf0] sm:$0xf]
        %v4366 = vld [vmem:[#allocation47 + $0xf4] sm:$0xf]
        %v4367 = vld [vmem:[#allocation47 + $0xf8] sm:$0xf]
        %v4368 = vld [vmem:[#allocation47 + $0xfc] sm:$0xf]
        %v4369 = vld [vmem:[#allocation47 + $0x100] sm:$0xf]
        %v4370 = vld [vmem:[#allocation47 + $0x104] sm:$0xf]
        %v4371 = vld [vmem:[#allocation47 + $0x108] sm:$0xf]
        %v4372 = vld [vmem:[#allocation47 + $0x10c] sm:$0xf]
        %v4373 = vld [vmem:[#allocation47 + $0x110] sm:$0xf]
        %v4374 = vld [vmem:[#allocation47 + $0x114] sm:$0xf]
        %v4375 = vld [vmem:[#allocation47 + $0x118] sm:$0xf]
        %v4376 = vld [vmem:[#allocation47 + $0x11c] sm:$0xf]
        %v4377 = vld [vmem:[#allocation47 + $0x120] sm:$0xf]
        %v4378 = vld [vmem:[#allocation47 + $0x124] sm:$0xf]
        %v4379 = vld [vmem:[#allocation47 + $0x128] sm:$0xf]
        %v4380 = vld [vmem:[#allocation47 + $0x12c] sm:$0xf]
        %v4381 = vld [vmem:[#allocation47 + $0x130] sm:$0xf]
        %v4382 = vld [vmem:[#allocation47 + $0x134] sm:$0xf]
        %v4383 = vld [vmem:[#allocation47 + $0x138] sm:$0xf]
        %v4384 = vld [vmem:[#allocation47 + $0x13c] sm:$0xf]
        %v4417 = vunpack.c.l.b16 %v4353
        %v4418 = vunpack.c.l.b16 %v4354
        %v4419 = vunpack.c.l.b16 %v4355
        %v4420 = vunpack.c.l.b16 %v4356
        %v4421 = vunpack.c.l.b16 %v4357
        %v4422 = vunpack.c.l.b16 %v4358
        %v4423 = vunpack.c.l.b16 %v4359
        %v4424 = vunpack.c.l.b16 %v4360
        %v4425 = vunpack.c.l.b16 %v4361
        %v4426 = vunpack.c.l.b16 %v4362
        %v4427 = vunpack.c.l.b16 %v4363
        %v4428 = vunpack.c.l.b16 %v4364
        %v4429 = vunpack.c.l.b16 %v4365
        %v4430 = vunpack.c.l.b16 %v4366
        %v4431 = vunpack.c.l.b16 %v4367
        %v4432 = vunpack.c.l.b16 %v4368
        %v4433 = vunpack.c.l.b16 %v4369
        %v4434 = vunpack.c.l.b16 %v4370
        %v4435 = vunpack.c.l.b16 %v4371
        %v4436 = vunpack.c.l.b16 %v4372
        %v4437 = vunpack.c.l.b16 %v4373
        %v4438 = vunpack.c.l.b16 %v4374
        %v4439 = vunpack.c.l.b16 %v4375
        %v4440 = vunpack.c.l.b16 %v4376
        %v4441 = vunpack.c.l.b16 %v4377
        %v4442 = vunpack.c.l.b16 %v4378
        %v4443 = vunpack.c.l.b16 %v4379
        %v4444 = vunpack.c.l.b16 %v4380
        %v4445 = vunpack.c.l.b16 %v4381
        %v4446 = vunpack.c.l.b16 %v4382
        %v4447 = vunpack.c.l.b16 %v4383
        %v4448 = vunpack.c.l.b16 %v4384
        %v4449 = vpack.c.b16 %v4418, %v4417
        %v4450 = vpack.c.b16 %v4420, %v4419
        %v4451 = vpack.c.b16 %v4422, %v4421
        %v4452 = vpack.c.b16 %v4424, %v4423
        %v4453 = vpack.c.b16 %v4426, %v4425
        %v4454 = vpack.c.b16 %v4428, %v4427
        %v4455 = vpack.c.b16 %v4430, %v4429
        %v4456 = vpack.c.b16 %v4432, %v4431
        %v4457 = vpack.c.b16 %v4434, %v4433
        %v4458 = vpack.c.b16 %v4436, %v4435
        %v4459 = vpack.c.b16 %v4438, %v4437
        %v4460 = vpack.c.b16 %v4440, %v4439
        %v4461 = vpack.c.b16 %v4442, %v4441
        %v4462 = vpack.c.b16 %v4444, %v4443
        %v4463 = vpack.c.b16 %v4446, %v4445
        %v4464 = vpack.c.b16 %v4448, %v4447
        %4481 = vmatprep.subr.bf16.mxu0 0
        %4482 = vmatpush1.bf16.msra.mxu0 %v4449
        %4483 = vmatprep.subr.bf16.mxu0 0
        %4484 = vmatpush1.bf16.msra.mxu0 %v4450
        %4485 = vmatprep.subr.bf16.mxu0 0
        %4486 = vmatpush1.bf16.msra.mxu0 %v4451
        %4487 = vmatprep.subr.bf16.mxu0 0
        %4488 = vmatpush1.bf16.msra.mxu0 %v4452
        %4489 = vmatprep.subr.bf16.mxu0 0
        %4490 = vmatpush1.bf16.msra.mxu0 %v4453
        %4491 = vmatprep.subr.bf16.mxu0 0
        %4492 = vmatpush1.bf16.msra.mxu0 %v4454
        %4493 = vmatprep.subr.bf16.mxu0 0
        %4494 = vmatpush1.bf16.msra.mxu0 %v4455
        %4495 = vmatprep.subr.bf16.mxu0 0
        %4496 = vmatpush1.bf16.msra.mxu0 %v4456
        %4497 = vmatprep.subr.bf16.mxu0 0
        %4498 = vmatpush1.bf16.msra.mxu0 %v4457
        %4499 = vmatprep.subr.bf16.mxu0 0
        %4500 = vmatpush1.bf16.msra.mxu0 %v4458
        %4501 = vmatprep.subr.bf16.mxu0 0
        %4502 = vmatpush1.bf16.msra.mxu0 %v4459
        %4503 = vmatprep.subr.bf16.mxu0 0
        %4504 = vmatpush1.bf16.msra.mxu0 %v4460
        %4505 = vmatprep.subr.bf16.mxu0 0
        %4506 = vmatpush1.bf16.msra.mxu0 %v4461
        %4507 = vmatprep.subr.bf16.mxu0 0
        %4508 = vmatpush1.bf16.msra.mxu0 %v4462
        %4509 = vmatprep.subr.bf16.mxu0 0
        %4510 = vmatpush1.bf16.msra.mxu0 %v4463
        %4511 = vmatprep.subr.bf16.mxu0 0
        %4512 = vmatpush1.bf16.msra.mxu0 %v4464
        %4513 = vmatprep.mubr.bf16.mxu0 %v3691
        %4514 = vmatmul.mubr.bf16.gmra.mrb[0].mxu0 %v3684
        %v4515 = vpop.f32.mrb[0].mxu0
        %v4516 = vadd.f32 0.0, %v4515
        %v4517 = vpop.f32.mrb[0].mxu0
        %v4518 = vpop.f32.mrb[0].mxu0
        %v4519 = vpop.f32.mrb[0].mxu0
        %4520 = vdwg.mxu0
        %v4553 = vunpack.c.l.b16 %v4168
        %v4554 = vunpack.c.l.b16 %v4169
        %v4555 = vunpack.c.l.b16 %v4170
        %v4556 = vunpack.c.l.b16 %v4171
        %v4557 = vunpack.c.l.b16 %v4172
        %v4558 = vunpack.c.l.b16 %v4173
        %v4559 = vunpack.c.l.b16 %v4174
        %v4560 = vunpack.c.l.b16 %v4175
        %v4561 = vunpack.c.l.b16 %v4176
        %v4562 = vunpack.c.l.b16 %v4177
        %v4563 = vunpack.c.l.b16 %v4178
        %v4564 = vunpack.c.l.b16 %v4179
        %v4565 = vunpack.c.l.b16 %v4180
        %v4566 = vunpack.c.l.b16 %v4181
        %v4567 = vunpack.c.l.b16 %v4182
        %v4568 = vunpack.c.l.b16 %v4183
        %v4569 = vunpack.c.l.b16 %v4184
        %v4570 = vunpack.c.l.b16 %v4185
        %v4571 = vunpack.c.l.b16 %v4186
        %v4572 = vunpack.c.l.b16 %v4187
        %v4573 = vunpack.c.l.b16 %v4188
        %v4574 = vunpack.c.l.b16 %v4189
        %v4575 = vunpack.c.l.b16 %v4190
        %v4576 = vunpack.c.l.b16 %v4191
        %v4577 = vunpack.c.l.b16 %v4192
        %v4578 = vunpack.c.l.b16 %v4193
        %v4579 = vunpack.c.l.b16 %v4194
        %v4580 = vunpack.c.l.b16 %v4195
        %v4581 = vunpack.c.l.b16 %v4196
        %v4582 = vunpack.c.l.b16 %v4197
        %v4583 = vunpack.c.l.b16 %v4198
        %v4584 = vunpack.c.l.b16 %v4199
        %v4585 = vpack.c.b16 %v4554, %v4553
        %v4586 = vpack.c.b16 %v4556, %v4555
        %v4587 = vpack.c.b16 %v4558, %v4557
        %v4588 = vpack.c.b16 %v4560, %v4559
        %v4589 = vpack.c.b16 %v4562, %v4561
        %v4590 = vpack.c.b16 %v4564, %v4563
        %v4591 = vpack.c.b16 %v4566, %v4565
        %v4592 = vpack.c.b16 %v4568, %v4567
        %v4593 = vpack.c.b16 %v4570, %v4569
        %v4594 = vpack.c.b16 %v4572, %v4571
        %v4595 = vpack.c.b16 %v4574, %v4573
        %v4596 = vpack.c.b16 %v4576, %v4575
        %v4597 = vpack.c.b16 %v4578, %v4577
        %v4598 = vpack.c.b16 %v4580, %v4579
        %v4599 = vpack.c.b16 %v4582, %v4581
        %v4600 = vpack.c.b16 %v4584, %v4583
        %4617 = vmatprep.subr.bf16.mxu0 0
        %4618 = vmatpush1.bf16.msra.mxu0 %v4585
        %4619 = vmatprep.subr.bf16.mxu0 0
        %4620 = vmatpush1.bf16.msra.mxu0 %v4586
        %4621 = vmatprep.subr.bf16.mxu0 0
        %4622 = vmatpush1.bf16.msra.mxu0 %v4587
        %4623 = vmatprep.subr.bf16.mxu0 0
        %4624 = vmatpush1.bf16.msra.mxu0 %v4588
        %4625 = vmatprep.subr.bf16.mxu0 0
        %4626 = vmatpush1.bf16.msra.mxu0 %v4589
        %4627 = vmatprep.subr.bf16.mxu0 0
        %4628 = vmatpush1.bf16.msra.mxu0 %v4590
        %4629 = vmatprep.subr.bf16.mxu0 0
        %4630 = vmatpush1.bf16.msra.mxu0 %v4591
        %4631 = vmatprep.subr.bf16.mxu0 0
        %4632 = vmatpush1.bf16.msra.mxu0 %v4592
        %4633 = vmatprep.subr.bf16.mxu0 0
        %4634 = vmatpush1.bf16.msra.mxu0 %v4593
        %4635 = vmatprep.subr.bf16.mxu0 0
        %4636 = vmatpush1.bf16.msra.mxu0 %v4594
        %4637 = vmatprep.subr.bf16.mxu0 0
        %4638 = vmatpush1.bf16.msra.mxu0 %v4595
        %4639 = vmatprep.subr.bf16.mxu0 0
        %4640 = vmatpush1.bf16.msra.mxu0 %v4596
        %4641 = vmatprep.subr.bf16.mxu0 0
        %4642 = vmatpush1.bf16.msra.mxu0 %v4597
        %4643 = vmatprep.subr.bf16.mxu0 0
        %4644 = vmatpush1.bf16.msra.mxu0 %v4598
        %4645 = vmatprep.subr.bf16.mxu0 0
        %4646 = vmatpush1.bf16.msra.mxu0 %v4599
        %4647 = vmatprep.subr.bf16.mxu0 0
        %4648 = vmatpush1.bf16.msra.mxu0 %v4600
        %4649 = vmatprep.mubr.bf16.mxu0 %v3151
        %4650 = vmatmul.mubr.bf16.gmra.mrb[0].mxu0 %v3150
        %v4651 = vpop.f32.mrb[0].mxu0
        %v4652 = vadd.f32 %v4348, %v4651
        %v4653 = vpop.f32.mrb[0].mxu0
        %v4654 = vpop.f32.mrb[0].mxu0
        %v4655 = vpop.f32.mrb[0].mxu0
        %4656 = vdwg.mxu0
        %v4657 = vpack.c.bf16 %v4516, %v4516
        %v4659 = vsel %vm3946, %v3110, 0
        %v4662 = vsel %vm3950, %v4657, 0
        %4664 = vmatprep.subr.bf16.mxu0 0
        %4665 = vmatpush1.bf16.msra.mxu0 %v4662
        %4666 = vmatprep.subr.bf16.mxu0 0
        %4667 = vmatpush1.bf16.msra.mxu0 0
        %4668 = vmatprep.subr.bf16.mxu0 0
        %4669 = vmatpush1.bf16.msra.mxu0 0
        %4670 = vmatprep.subr.bf16.mxu0 0
        %4671 = vmatpush1.bf16.msra.mxu0 0
        %4672 = vmatprep.subr.bf16.mxu0 0
        %4673 = vmatpush1.bf16.msra.mxu0 0
        %4674 = vmatprep.subr.bf16.mxu0 0
        %4675 = vmatpush1.bf16.msra.mxu0 0
        %4676 = vmatprep.subr.bf16.mxu0 0
        %4677 = vmatpush1.bf16.msra.mxu0 0
        %4678 = vmatprep.subr.bf16.mxu0 0
        %4679 = vmatpush1.bf16.msra.mxu0 0
        %4680 = vmatprep.subr.bf16.mxu0 0
        %4681 = vmatpush1.bf16.msra.mxu0 0
        %4682 = vmatprep.subr.bf16.mxu0 0
        %4683 = vmatpush1.bf16.msra.mxu0 0
        %4684 = vmatprep.subr.bf16.mxu0 0
        %4685 = vmatpush1.bf16.msra.mxu0 0
        %4686 = vmatprep.subr.bf16.mxu0 0
        %4687 = vmatpush1.bf16.msra.mxu0 0
        %4688 = vmatprep.subr.bf16.mxu0 0
        %4689 = vmatpush1.bf16.msra.mxu0 0
        %4690 = vmatprep.subr.bf16.mxu0 0
        %4691 = vmatpush1.bf16.msra.mxu0 0
        %4692 = vmatprep.subr.bf16.mxu0 0
        %4693 = vmatpush1.bf16.msra.mxu0 0
        %4694 = vmatprep.subr.bf16.mxu0 0
        %4695 = vmatpush1.bf16.msra.mxu0 0
        %4696 = vmatprep.mubr.bf16.mxu0 0
        %4697 = vmatmul.mubr.bf16.gmra.mrb[0].mxu0 %v4659
        %v4698 = vpop.f32.mrb[0].mxu0
        %v4699 = vadd.f32 0.0, %v4698
        %v4700 = vpop.f32.mrb[0].mxu0
        %v4701 = vpop.f32.mrb[0].mxu0
        %v4702 = vpop.f32.mrb[0].mxu0
        %4703 = vdwg.mxu0
        %v4704 = vadd.f32 %v4652, %v4699
        %v4705 = vld [vmem:[#allocation49] sm:$0x1]
        %v4707 = vlaneseq
        %v4708 = vshrl.u32 %v4707, 7
        %v4709 = vsub.s32 0, %v4708
        %v4710 = vrot.slane %v4705, %v4709
        %v4712 = vadd.f32 %v4704, %v4710
        %v4713 = vmax.f32 %v4712, 0.0
        %v4714 = vpack.c.bf16 %v4713, %v4713
        %v4715 = vld [vmem:[#allocation50] sm:$0xf]
        %v4716 = vld [vmem:[#allocation50 + $0x4] sm:$0xf]
        %v4717 = vld [vmem:[#allocation50 + $0x8] sm:$0xf]
        %v4718 = vld [vmem:[#allocation50 + $0xc] sm:$0xf]
        %v4719 = vld [vmem:[#allocation50 + $0x10] sm:$0xf]
        %v4720 = vld [vmem:[#allocation50 + $0x14] sm:$0xf]
        %v4721 = vld [vmem:[#allocation50 + $0x18] sm:$0xf]
        %v4722 = vld [vmem:[#allocation50 + $0x1c] sm:$0xf]
        %v4723 = vld [vmem:[#allocation50 + $0x20] sm:$0xf]
        %v4724 = vld [vmem:[#allocation50 + $0x24] sm:$0xf]
        %v4725 = vld [vmem:[#allocation50 + $0x28] sm:$0xf]
        %v4726 = vld [vmem:[#allocation50 + $0x2c] sm:$0xf]
        %v4727 = vld [vmem:[#allocation50 + $0x30] sm:$0xf]
        %v4728 = vld [vmem:[#allocation50 + $0x34] sm:$0xf]
        %v4729 = vld [vmem:[#allocation50 + $0x38] sm:$0xf]
        %v4730 = vld [vmem:[#allocation50 + $0x3c] sm:$0xf]
        %v4731 = vld [vmem:[#allocation52] sm:$0x1]
        %v4733 = vlaneseq
        %v4734 = vshrl.u32 %v4733, 7
        %v4735 = vsub.s32 0, %v4734
        %v4736 = vrot.slane %v4731, %v4735
        %v4754 = vunpack.c.l.b16 %v4715
        %v4755 = vunpack.c.l.b16 %v4716
        %v4756 = vunpack.c.l.b16 %v4717
        %v4757 = vunpack.c.l.b16 %v4718
        %v4758 = vunpack.c.l.b16 %v4719
        %v4759 = vunpack.c.l.b16 %v4720
        %v4760 = vunpack.c.l.b16 %v4721
        %v4761 = vunpack.c.l.b16 %v4722
        %v4762 = vunpack.c.l.b16 %v4723
        %v4763 = vunpack.c.l.b16 %v4724
        %v4764 = vunpack.c.l.b16 %v4725
        %v4765 = vunpack.c.l.b16 %v4726
        %v4766 = vunpack.c.l.b16 %v4727
        %v4767 = vunpack.c.l.b16 %v4728
        %v4768 = vunpack.c.l.b16 %v4729
        %v4769 = vunpack.c.l.b16 %v4730
        %v4770 = vpack.c.b16 %v4755, %v4754
        %v4771 = vpack.c.b16 %v4757, %v4756
        %v4772 = vpack.c.b16 %v4759, %v4758
        %v4773 = vpack.c.b16 %v4761, %v4760
        %v4774 = vpack.c.b16 %v4763, %v4762
        %v4775 = vpack.c.b16 %v4765, %v4764
        %v4776 = vpack.c.b16 %v4767, %v4766
        %v4777 = vpack.c.b16 %v4769, %v4768
        %4786 = vmatprep.subr.bf16.mxu0 0
        %4787 = vmatpush1.bf16.msra.mxu0 %v4770
        %4788 = vmatprep.subr.bf16.mxu0 0
        %4789 = vmatpush1.bf16.msra.mxu0 %v4771
        %4790 = vmatprep.subr.bf16.mxu0 0
        %4791 = vmatpush1.bf16.msra.mxu0 %v4772
        %4792 = vmatprep.subr.bf16.mxu0 0
        %4793 = vmatpush1.bf16.msra.mxu0 %v4773
        %4794 = vmatprep.subr.bf16.mxu0 0
        %4795 = vmatpush1.bf16.msra.mxu0 %v4774
        %4796 = vmatprep.subr.bf16.mxu0 0
        %4797 = vmatpush1.bf16.msra.mxu0 %v4775
        %4798 = vmatprep.subr.bf16.mxu0 0
        %4799 = vmatpush1.bf16.msra.mxu0 %v4776
        %4800 = vmatprep.subr.bf16.mxu0 0
        %4801 = vmatpush1.bf16.msra.mxu0 %v4777
        %4802 = vmatprep.subr.bf16.mxu0 0
        %4803 = vmatpush1.bf16.msra.mxu0 0
        %4804 = vmatprep.subr.bf16.mxu0 0
        %4805 = vmatpush1.bf16.msra.mxu0 0
        %4806 = vmatprep.subr.bf16.mxu0 0
        %4807 = vmatpush1.bf16.msra.mxu0 0
        %4808 = vmatprep.subr.bf16.mxu0 0
        %4809 = vmatpush1.bf16.msra.mxu0 0
        %4810 = vmatprep.subr.bf16.mxu0 0
        %4811 = vmatpush1.bf16.msra.mxu0 0
        %4812 = vmatprep.subr.bf16.mxu0 0
        %4813 = vmatpush1.bf16.msra.mxu0 0
        %4814 = vmatprep.subr.bf16.mxu0 0
        %4815 = vmatpush1.bf16.msra.mxu0 0
        %4816 = vmatprep.subr.bf16.mxu0 0
        %4817 = vmatpush1.bf16.msra.mxu0 0
        %4818 = vmatprep.mubr.bf16.mxu0 0
        %4819 = vmatmul.mubr.bf16.gmra.mrb[0].mxu0 %v4714
        %v4820 = vpop.f32.mrb[0].mxu0
        %v4821 = vadd.f32 %v4736, %v4820
        %v4822 = vpop.f32.mrb[0].mxu0
        %v4823 = vpop.f32.mrb[0].mxu0
        %v4824 = vpop.f32.mrb[0].mxu0
        %4825 = vdwg.mxu0
        %4826 = vadd.xlane.f32.xlu0 %v4821
        %v4827 = vpop.xlane.xlu0 %4826
        %v4828 = vmul.f32 %v4827, 0.0078125
        %v4829 = vmul.f32 %v4821, %v4821
        %4830 = vadd.xlane.f32.xlu0 %v4829
        %v4831 = vpop.xlane.xlu0 %4830
        %v4832 = vmul.f32 %v4831, 0.0078125
        %v4833 = vmul.f32 %v4828, %v4828
        %v4834 = vsub.f32 %v4832, %v4833
        %v4835 = vsub.f32 %v4821, %v4828
        %v4836 = vadd.f32 %v4834, 1e-05
        %v4837 = vrsqrt.pop %v4836
        %v4838 = vmul.f32 %v4835, %v4837
        %v4839 = vld [vmem:[#allocation53] sm:$0x1]
        %v4841 = vlaneseq
        %v4842 = vshrl.u32 %v4841, 7
        %v4843 = vsub.s32 0, %v4842
        %v4844 = vrot.slane %v4839, %v4843
        %v4846 = vmul.f32 %v4838, %v4844
        %v4847 = vld [vmem:[#allocation55] sm:$0x1]
        %v4849 = vlaneseq
        %v4850 = vshrl.u32 %v4849, 7
        %v4851 = vsub.s32 0, %v4850
        %v4852 = vrot.slane %v4847, %v4851
        %v4854 = vadd.f32 %v4846, %v4852
        %v4855 = vpack.c.bf16 %v4854, %v4854
        %v4856 = vld [vmem:[#allocation56] sm:$0xf]
        %v4857 = vld [vmem:[#allocation56 + $0x4] sm:$0xf]
        %v4858 = vld [vmem:[#allocation56 + $0x8] sm:$0xf]
        %v4859 = vld [vmem:[#allocation56 + $0xc] sm:$0xf]
        %v4860 = vld [vmem:[#allocation56 + $0x10] sm:$0xf]
        %v4861 = vld [vmem:[#allocation56 + $0x14] sm:$0xf]
        %v4862 = vld [vmem:[#allocation56 + $0x18] sm:$0xf]
        %v4863 = vld [vmem:[#allocation56 + $0x1c] sm:$0xf]
        %v4864 = vld [vmem:[#allocation56 + $0x20] sm:$0xf]
        %v4865 = vld [vmem:[#allocation56 + $0x24] sm:$0xf]
        %v4866 = vld [vmem:[#allocation56 + $0x28] sm:$0xf]
        %v4867 = vld [vmem:[#allocation56 + $0x2c] sm:$0xf]
        %v4868 = vld [vmem:[#allocation56 + $0x30] sm:$0xf]
        %v4869 = vld [vmem:[#allocation56 + $0x34] sm:$0xf]
        %v4870 = vld [vmem:[#allocation56 + $0x38] sm:$0xf]
        %v4871 = vld [vmem:[#allocation56 + $0x3c] sm:$0xf]
        %v4872 = vld [vmem:[#allocation56 + $0x40] sm:$0xf]
        %v4873 = vld [vmem:[#allocation56 + $0x44] sm:$0xf]
        %v4874 = vld [vmem:[#allocation56 + $0x48] sm:$0xf]
        %v4875 = vld [vmem:[#allocation56 + $0x4c] sm:$0xf]
        %v4876 = vld [vmem:[#allocation56 + $0x50] sm:$0xf]
        %v4877 = vld [vmem:[#allocation56 + $0x54] sm:$0xf]
        %v4878 = vld [vmem:[#allocation56 + $0x58] sm:$0xf]
        %v4879 = vld [vmem:[#allocation56 + $0x5c] sm:$0xf]
        %v4880 = vld [vmem:[#allocation56 + $0x60] sm:$0xf]
        %v4881 = vld [vmem:[#allocation56 + $0x64] sm:$0xf]
        %v4882 = vld [vmem:[#allocation56 + $0x68] sm:$0xf]
        %v4883 = vld [vmem:[#allocation56 + $0x6c] sm:$0xf]
        %v4884 = vld [vmem:[#allocation56 + $0x70] sm:$0xf]
        %v4885 = vld [vmem:[#allocation56 + $0x74] sm:$0xf]
        %v4886 = vld [vmem:[#allocation56 + $0x78] sm:$0xf]
        %v4887 = vld [vmem:[#allocation56 + $0x7c] sm:$0xf]
        %v4889 = vsel %vm3837, %v3111, 0
        %v4892 = vsel %vm3841, %v4855, 0
        %4894 = vmatprep.subr.bf16.mxu0 0
        %4895 = vmatpush1.bf16.msra.mxu0 %v4892
        %4896 = vmatprep.subr.bf16.mxu0 0
        %4897 = vmatpush1.bf16.msra.mxu0 0
        %4898 = vmatprep.subr.bf16.mxu0 0
        %4899 = vmatpush1.bf16.msra.mxu0 0
        %4900 = vmatprep.subr.bf16.mxu0 0
        %4901 = vmatpush1.bf16.msra.mxu0 0
        %4902 = vmatprep.subr.bf16.mxu0 0
        %4903 = vmatpush1.bf16.msra.mxu0 0
        %4904 = vmatprep.subr.bf16.mxu0 0
        %4905 = vmatpush1.bf16.msra.mxu0 0
        %4906 = vmatprep.subr.bf16.mxu0 0
        %4907 = vmatpush1.bf16.msra.mxu0 0
        %4908 = vmatprep.subr.bf16.mxu0 0
        %4909 = vmatpush1.bf16.msra.mxu0 0
        %4910 = vmatprep.subr.bf16.mxu0 0
        %4911 = vmatpush1.bf16.msra.mxu0 0
        %4912 = vmatprep.subr.bf16.mxu0 0
        %4913 = vmatpush1.bf16.msra.mxu0 0
        %4914 = vmatprep.subr.bf16.mxu0 0
        %4915 = vmatpush1.bf16.msra.mxu0 0
        %4916 = vmatprep.subr.bf16.mxu0 0
        %4917 = vmatpush1.bf16.msra.mxu0 0
        %4918 = vmatprep.subr.bf16.mxu0 0
        %4919 = vmatpush1.bf16.msra.mxu0 0
        %4920 = vmatprep.subr.bf16.mxu0 0
        %4921 = vmatpush1.bf16.msra.mxu0 0
        %4922 = vmatprep.subr.bf16.mxu0 0
        %4923 = vmatpush1.bf16.msra.mxu0 0
        %4924 = vmatprep.subr.bf16.mxu0 0
        %4925 = vmatpush1.bf16.msra.mxu0 0
        %4926 = vmatprep.mubr.bf16.mxu0 0
        %4927 = vmatmul.mubr.bf16.gmra.mrb[0].mxu0 %v4889
        %v4928 = vpop.f32.mrb[0].mxu0
        %v4929 = vadd.f32 0.0, %v4928
        %v4930 = vpop.f32.mrb[0].mxu0
        %v4931 = vpop.f32.mrb[0].mxu0
        %v4932 = vpop.f32.mrb[0].mxu0
        %4933 = vdwg.mxu0
        %v4935 = vsel %vm4200, %v3114, 0
        %4937 = vmatprep.subr.bf16.mxu0 0
        %4938 = vmatpush1.bf16.msra.mxu0 %v4206
        %4939 = vmatprep.subr.bf16.mxu0 0
        %4940 = vmatpush1.bf16.msra.mxu0 0
        %4941 = vmatprep.subr.bf16.mxu0 0
        %4942 = vmatpush1.bf16.msra.mxu0 0
        %4943 = vmatprep.subr.bf16.mxu0 0
        %4944 = vmatpush1.bf16.msra.mxu0 0
        %4945 = vmatprep.subr.bf16.mxu0 0
        %4946 = vmatpush1.bf16.msra.mxu0 0
        %4947 = vmatprep.subr.bf16.mxu0 0
        %4948 = vmatpush1.bf16.msra.mxu0 0
        %4949 = vmatprep.subr.bf16.mxu0 0
        %4950 = vmatpush1.bf16.msra.mxu0 0
        %4951 = vmatprep.subr.bf16.mxu0 0
        %4952 = vmatpush1.bf16.msra.mxu0 0
        %4953 = vmatprep.subr.bf16.mxu0 0
        %4954 = vmatpush1.bf16.msra.mxu0 0
        %4955 = vmatprep.subr.bf16.mxu0 0
        %4956 = vmatpush1.bf16.msra.mxu0 0
        %4957 = vmatprep.subr.bf16.mxu0 0
        %4958 = vmatpush1.bf16.msra.mxu0 0
        %4959 = vmatprep.subr.bf16.mxu0 0
        %4960 = vmatpush1.bf16.msra.mxu0 0
        %4961 = vmatprep.subr.bf16.mxu0 0
        %4962 = vmatpush1.bf16.msra.mxu0 0
        %4963 = vmatprep.subr.bf16.mxu0 0
        %4964 = vmatpush1.bf16.msra.mxu0 0
        %4965 = vmatprep.subr.bf16.mxu0 0
        %4966 = vmatpush1.bf16.msra.mxu0 0
        %4967 = vmatprep.subr.bf16.mxu0 0
        %4968 = vmatpush1.bf16.msra.mxu0 0
        %4969 = vmatprep.mubr.bf16.mxu0 0
        %4970 = vmatmul.mubr.bf16.gmra.mrb[0].mxu0 %v4935
        %v4971 = vpop.f32.mrb[0].mxu0
        %v4972 = vadd.f32 0.0, %v4971
        %v4973 = vpop.f32.mrb[0].mxu0
        %v4974 = vpop.f32.mrb[0].mxu0
        %v4975 = vpop.f32.mrb[0].mxu0
        %4976 = vdwg.mxu0
        %v4977 = vpack.c.bf16 %v4929, %v4929
        %v4978 = vld [vmem:[#allocation56 + $0x80] sm:$0xf]
        %v4979 = vld [vmem:[#allocation56 + $0x84] sm:$0xf]
        %v4980 = vld [vmem:[#allocation56 + $0x88] sm:$0xf]
        %v4981 = vld [vmem:[#allocation56 + $0x8c] sm:$0xf]
        %v4982 = vld [vmem:[#allocation56 + $0x90] sm:$0xf]
        %v4983 = vld [vmem:[#allocation56 + $0x94] sm:$0xf]
        %v4984 = vld [vmem:[#allocation56 + $0x98] sm:$0xf]
        %v4985 = vld [vmem:[#allocation56 + $0x9c] sm:$0xf]
        %v4986 = vld [vmem:[#allocation56 + $0xa0] sm:$0xf]
        %v4987 = vld [vmem:[#allocation56 + $0xa4] sm:$0xf]
        %v4988 = vld [vmem:[#allocation56 + $0xa8] sm:$0xf]
        %v4989 = vld [vmem:[#allocation56 + $0xac] sm:$0xf]
        %v4990 = vld [vmem:[#allocation56 + $0xb0] sm:$0xf]
        %v4991 = vld [vmem:[#allocation56 + $0xb4] sm:$0xf]
        %v4992 = vld [vmem:[#allocation56 + $0xb8] sm:$0xf]
        %v4993 = vld [vmem:[#allocation56 + $0xbc] sm:$0xf]
        %v5010 = vunpack.c.l.b16 %v4978
        %v5011 = vunpack.c.l.b16 %v4979
        %v5012 = vunpack.c.l.b16 %v4980
        %v5013 = vunpack.c.l.b16 %v4981
        %v5014 = vunpack.c.l.b16 %v4982
        %v5015 = vunpack.c.l.b16 %v4983
        %v5016 = vunpack.c.l.b16 %v4984
        %v5017 = vunpack.c.l.b16 %v4985
        %v5018 = vunpack.c.l.b16 %v4986
        %v5019 = vunpack.c.l.b16 %v4987
        %v5020 = vunpack.c.l.b16 %v4988
        %v5021 = vunpack.c.l.b16 %v4989
        %v5022 = vunpack.c.l.b16 %v4990
        %v5023 = vunpack.c.l.b16 %v4991
        %v5024 = vunpack.c.l.b16 %v4992
        %v5025 = vunpack.c.l.b16 %v4993
        %v5026 = vpack.c.b16 %v5011, %v5010
        %v5027 = vpack.c.b16 %v5013, %v5012
        %v5028 = vpack.c.b16 %v5015, %v5014
        %v5029 = vpack.c.b16 %v5017, %v5016
        %v5030 = vpack.c.b16 %v5019, %v5018
        %v5031 = vpack.c.b16 %v5021, %v5020
        %v5032 = vpack.c.b16 %v5023, %v5022
        %v5033 = vpack.c.b16 %v5025, %v5024
        %5042 = vmatprep.subr.bf16.mxu0 0
        %5043 = vmatpush1.bf16.msra.mxu0 %v5026
        %5044 = vmatprep.subr.bf16.mxu0 0
        %5045 = vmatpush1.bf16.msra.mxu0 %v5027
        %5046 = vmatprep.subr.bf16.mxu0 0
        %5047 = vmatpush1.bf16.msra.mxu0 %v5028
        %5048 = vmatprep.subr.bf16.mxu0 0
        %5049 = vmatpush1.bf16.msra.mxu0 %v5029
        %5050 = vmatprep.subr.bf16.mxu0 0
        %5051 = vmatpush1.bf16.msra.mxu0 %v5030
        %5052 = vmatprep.subr.bf16.mxu0 0
        %5053 = vmatpush1.bf16.msra.mxu0 %v5031
        %5054 = vmatprep.subr.bf16.mxu0 0
        %5055 = vmatpush1.bf16.msra.mxu0 %v5032
        %5056 = vmatprep.subr.bf16.mxu0 0
        %5057 = vmatpush1.bf16.msra.mxu0 %v5033
        %5058 = vmatprep.subr.bf16.mxu0 0
        %5059 = vmatpush1.bf16.msra.mxu0 0
        %5060 = vmatprep.subr.bf16.mxu0 0
        %5061 = vmatpush1.bf16.msra.mxu0 0
        %5062 = vmatprep.subr.bf16.mxu0 0
        %5063 = vmatpush1.bf16.msra.mxu0 0
        %5064 = vmatprep.subr.bf16.mxu0 0
        %5065 = vmatpush1.bf16.msra.mxu0 0
        %5066 = vmatprep.subr.bf16.mxu0 0
        %5067 = vmatpush1.bf16.msra.mxu0 0
        %5068 = vmatprep.subr.bf16.mxu0 0
        %5069 = vmatpush1.bf16.msra.mxu0 0
        %5070 = vmatprep.subr.bf16.mxu0 0
        %5071 = vmatpush1.bf16.msra.mxu0 0
        %5072 = vmatprep.subr.bf16.mxu0 0
        %5073 = vmatpush1.bf16.msra.mxu0 0
        %5074 = vmatprep.mubr.bf16.mxu0 0
        %5075 = vmatmul.mubr.bf16.gmra.mrb[0].mxu0 %v4977
        %v5076 = vpop.f32.mrb[0].mxu0
        %v5077 = vadd.f32 0.0, %v5076
        %v5078 = vpop.f32.mrb[0].mxu0
        %v5079 = vpop.f32.mrb[0].mxu0
        %v5080 = vpop.f32.mrb[0].mxu0
        %5081 = vdwg.mxu0
        %v5114 = vunpack.c.l.b16 %v4856
        %v5115 = vunpack.c.l.b16 %v4857
        %v5116 = vunpack.c.l.b16 %v4858
        %v5117 = vunpack.c.l.b16 %v4859
        %v5118 = vunpack.c.l.b16 %v4860
        %v5119 = vunpack.c.l.b16 %v4861
        %v5120 = vunpack.c.l.b16 %v4862
        %v5121 = vunpack.c.l.b16 %v4863
        %v5122 = vunpack.c.l.b16 %v4864
        %v5123 = vunpack.c.l.b16 %v4865
        %v5124 = vunpack.c.l.b16 %v4866
        %v5125 = vunpack.c.l.b16 %v4867
        %v5126 = vunpack.c.l.b16 %v4868
        %v5127 = vunpack.c.l.b16 %v4869
        %v5128 = vunpack.c.l.b16 %v4870
        %v5129 = vunpack.c.l.b16 %v4871
        %v5130 = vunpack.c.l.b16 %v4872
        %v5131 = vunpack.c.l.b16 %v4873
        %v5132 = vunpack.c.l.b16 %v4874
        %v5133 = vunpack.c.l.b16 %v4875
        %v5134 = vunpack.c.l.b16 %v4876
        %v5135 = vunpack.c.l.b16 %v4877
        %v5136 = vunpack.c.l.b16 %v4878
        %v5137 = vunpack.c.l.b16 %v4879
        %v5138 = vunpack.c.l.b16 %v4880
        %v5139 = vunpack.c.l.b16 %v4881
        %v5140 = vunpack.c.l.b16 %v4882
        %v5141 = vunpack.c.l.b16 %v4883
        %v5142 = vunpack.c.l.b16 %v4884
        %v5143 = vunpack.c.l.b16 %v4885
        %v5144 = vunpack.c.l.b16 %v4886
        %v5145 = vunpack.c.l.b16 %v4887
        %v5146 = vpack.c.b16 %v5115, %v5114
        %v5147 = vpack.c.b16 %v5117, %v5116
        %v5148 = vpack.c.b16 %v5119, %v5118
        %v5149 = vpack.c.b16 %v5121, %v5120
        %v5150 = vpack.c.b16 %v5123, %v5122
        %v5151 = vpack.c.b16 %v5125, %v5124
        %v5152 = vpack.c.b16 %v5127, %v5126
        %v5153 = vpack.c.b16 %v5129, %v5128
        %v5154 = vpack.c.b16 %v5131, %v5130
        %v5155 = vpack.c.b16 %v5133, %v5132
        %v5156 = vpack.c.b16 %v5135, %v5134
        %v5157 = vpack.c.b16 %v5137, %v5136
        %v5158 = vpack.c.b16 %v5139, %v5138
        %v5159 = vpack.c.b16 %v5141, %v5140
        %v5160 = vpack.c.b16 %v5143, %v5142
        %v5161 = vpack.c.b16 %v5145, %v5144
        %5178 = vmatprep.subr.bf16.mxu0 0
        %5179 = vmatpush1.bf16.msra.mxu0 %v5146
        %5180 = vmatprep.subr.bf16.mxu0 0
        %5181 = vmatpush1.bf16.msra.mxu0 %v5147
        %5182 = vmatprep.subr.bf16.mxu0 0
        %5183 = vmatpush1.bf16.msra.mxu0 %v5148
        %5184 = vmatprep.subr.bf16.mxu0 0
        %5185 = vmatpush1.bf16.msra.mxu0 %v5149
        %5186 = vmatprep.subr.bf16.mxu0 0
        %5187 = vmatpush1.bf16.msra.mxu0 %v5150
        %5188 = vmatprep.subr.bf16.mxu0 0
        %5189 = vmatpush1.bf16.msra.mxu0 %v5151
        %5190 = vmatprep.subr.bf16.mxu0 0
        %5191 = vmatpush1.bf16.msra.mxu0 %v5152
        %5192 = vmatprep.subr.bf16.mxu0 0
        %5193 = vmatpush1.bf16.msra.mxu0 %v5153
        %5194 = vmatprep.subr.bf16.mxu0 0
        %5195 = vmatpush1.bf16.msra.mxu0 %v5154
        %5196 = vmatprep.subr.bf16.mxu0 0
        %5197 = vmatpush1.bf16.msra.mxu0 %v5155
        %5198 = vmatprep.subr.bf16.mxu0 0
        %5199 = vmatpush1.bf16.msra.mxu0 %v5156
        %5200 = vmatprep.subr.bf16.mxu0 0
        %5201 = vmatpush1.bf16.msra.mxu0 %v5157
        %5202 = vmatprep.subr.bf16.mxu0 0
        %5203 = vmatpush1.bf16.msra.mxu0 %v5158
        %5204 = vmatprep.subr.bf16.mxu0 0
        %5205 = vmatpush1.bf16.msra.mxu0 %v5159
        %5206 = vmatprep.subr.bf16.mxu0 0
        %5207 = vmatpush1.bf16.msra.mxu0 %v5160
        %5208 = vmatprep.subr.bf16.mxu0 0
        %5209 = vmatpush1.bf16.msra.mxu0 %v5161
        %5210 = vmatprep.mubr.bf16.mxu0 %v3691
        %5211 = vmatmul.mubr.bf16.gmra.mrb[0].mxu0 %v3684
        %v5212 = vpop.f32.mrb[0].mxu0
        %v5213 = vadd.f32 %v5077, %v5212
        %v5214 = vpop.f32.mrb[0].mxu0
        %v5215 = vpop.f32.mrb[0].mxu0
        %v5216 = vpop.f32.mrb[0].mxu0
        %5217 = vdwg.mxu0
        %v5218 = vpack.c.bf16 %v4972, %v4972
        %v5219 = vld [vmem:[#allocation56 + $0xc0] sm:$0xf]
        %v5220 = vld [vmem:[#allocation56 + $0xc4] sm:$0xf]
        %v5221 = vld [vmem:[#allocation56 + $0xc8] sm:$0xf]
        %v5222 = vld [vmem:[#allocation56 + $0xcc] sm:$0xf]
        %v5223 = vld [vmem:[#allocation56 + $0xd0] sm:$0xf]
        %v5224 = vld [vmem:[#allocation56 + $0xd4] sm:$0xf]
        %v5225 = vld [vmem:[#allocation56 + $0xd8] sm:$0xf]
        %v5226 = vld [vmem:[#allocation56 + $0xdc] sm:$0xf]
        %v5227 = vld [vmem:[#allocation56 + $0xe0] sm:$0xf]
        %v5228 = vld [vmem:[#allocation56 + $0xe4] sm:$0xf]
        %v5229 = vld [vmem:[#allocation56 + $0xe8] sm:$0xf]
        %v5230 = vld [vmem:[#allocation56 + $0xec] sm:$0xf]
        %v5231 = vld [vmem:[#allocation56 + $0xf0] sm:$0xf]
        %v5232 = vld [vmem:[#allocation56 + $0xf4] sm:$0xf]
        %v5233 = vld [vmem:[#allocation56 + $0xf8] sm:$0xf]
        %v5234 = vld [vmem:[#allocation56 + $0xfc] sm:$0xf]
        %v5251 = vunpack.c.l.b16 %v5219
        %v5252 = vunpack.c.l.b16 %v5220
        %v5253 = vunpack.c.l.b16 %v5221
        %v5254 = vunpack.c.l.b16 %v5222
        %v5255 = vunpack.c.l.b16 %v5223
        %v5256 = vunpack.c.l.b16 %v5224
        %v5257 = vunpack.c.l.b16 %v5225
        %v5258 = vunpack.c.l.b16 %v5226
        %v5259 = vunpack.c.l.b16 %v5227
        %v5260 = vunpack.c.l.b16 %v5228
        %v5261 = vunpack.c.l.b16 %v5229
        %v5262 = vunpack.c.l.b16 %v5230
        %v5263 = vunpack.c.l.b16 %v5231
        %v5264 = vunpack.c.l.b16 %v5232
        %v5265 = vunpack.c.l.b16 %v5233
        %v5266 = vunpack.c.l.b16 %v5234
        %v5267 = vpack.c.b16 %v5252, %v5251
        %v5268 = vpack.c.b16 %v5254, %v5253
        %v5269 = vpack.c.b16 %v5256, %v5255
        %v5270 = vpack.c.b16 %v5258, %v5257
        %v5271 = vpack.c.b16 %v5260, %v5259
        %v5272 = vpack.c.b16 %v5262, %v5261
        %v5273 = vpack.c.b16 %v5264, %v5263
        %v5274 = vpack.c.b16 %v5266, %v5265
        %5283 = vmatprep.subr.bf16.mxu0 0
        %5284 = vmatpush1.bf16.msra.mxu0 %v5267
        %5285 = vmatprep.subr.bf16.mxu0 0
        %5286 = vmatpush1.bf16.msra.mxu0 %v5268
        %5287 = vmatprep.subr.bf16.mxu0 0
        %5288 = vmatpush1.bf16.msra.mxu0 %v5269
        %5289 = vmatprep.subr.bf16.mxu0 0
        %5290 = vmatpush1.bf16.msra.mxu0 %v5270
        %5291 = vmatprep.subr.bf16.mxu0 0
        %5292 = vmatpush1.bf16.msra.mxu0 %v5271
        %5293 = vmatprep.subr.bf16.mxu0 0
        %5294 = vmatpush1.bf16.msra.mxu0 %v5272
        %5295 = vmatprep.subr.bf16.mxu0 0
        %5296 = vmatpush1.bf16.msra.mxu0 %v5273
        %5297 = vmatprep.subr.bf16.mxu0 0
        %5298 = vmatpush1.bf16.msra.mxu0 %v5274
        %5299 = vmatprep.subr.bf16.mxu0 0
        %5300 = vmatpush1.bf16.msra.mxu0 0
        %5301 = vmatprep.subr.bf16.mxu0 0
        %5302 = vmatpush1.bf16.msra.mxu0 0
        %5303 = vmatprep.subr.bf16.mxu0 0
        %5304 = vmatpush1.bf16.msra.mxu0 0
        %5305 = vmatprep.subr.bf16.mxu0 0
        %5306 = vmatpush1.bf16.msra.mxu0 0
        %5307 = vmatprep.subr.bf16.mxu0 0
        %5308 = vmatpush1.bf16.msra.mxu0 0
        %5309 = vmatprep.subr.bf16.mxu0 0
        %5310 = vmatpush1.bf16.msra.mxu0 0
        %5311 = vmatprep.subr.bf16.mxu0 0
        %5312 = vmatpush1.bf16.msra.mxu0 0
        %5313 = vmatprep.subr.bf16.mxu0 0
        %5314 = vmatpush1.bf16.msra.mxu0 0
        %5315 = vmatprep.mubr.bf16.mxu0 0
        %5316 = vmatmul.mubr.bf16.gmra.mrb[0].mxu0 %v5218
        %v5317 = vpop.f32.mrb[0].mxu0
        %v5318 = vadd.f32 0.0, %v5317
        %v5319 = vpop.f32.mrb[0].mxu0
        %v5320 = vpop.f32.mrb[0].mxu0
        %v5321 = vpop.f32.mrb[0].mxu0
        %5322 = vdwg.mxu0
        %v5323 = vadd.f32 %v5213, %v5318
        %v5324 = vld [vmem:[#allocation58] sm:$0x1]
        %v5326 = vlaneseq
        %v5327 = vshrl.u32 %v5326, 7
        %v5328 = vsub.s32 0, %v5327
        %v5329 = vrot.slane %v5324, %v5328
        %v5331 = vadd.f32 %v5323, %v5329
        %v5332 = vmax.f32 %v5331, 0.0
        %v5333 = vpack.c.bf16 %v5332, %v5332
        %v5334 = vld [vmem:[%s85] sm:$0xf]
        %v5335 = vld [vmem:[%s85 + $0x4] sm:$0xf]
        %v5336 = vld [vmem:[%s85 + $0x8] sm:$0xf]
        %v5337 = vld [vmem:[%s85 + $0xc] sm:$0xf]
        %v5338 = vld [vmem:[%s85 + $0x10] sm:$0xf]
        %v5339 = vld [vmem:[%s85 + $0x14] sm:$0xf]
        %v5340 = vld [vmem:[%s85 + $0x18] sm:$0xf]
        %v5341 = vld [vmem:[%s85 + $0x1c] sm:$0xf]
        %v5342 = vld [vmem:[%s85 + $0x20] sm:$0xf]
        %v5343 = vld [vmem:[%s85 + $0x24] sm:$0xf]
        %v5344 = vld [vmem:[%s85 + $0x28] sm:$0xf]
        %v5345 = vld [vmem:[%s85 + $0x2c] sm:$0xf]
        %v5346 = vld [vmem:[%s85 + $0x30] sm:$0xf]
        %v5347 = vld [vmem:[%s85 + $0x34] sm:$0xf]
        %v5348 = vld [vmem:[%s85 + $0x38] sm:$0xf]
        %v5349 = vld [vmem:[%s85 + $0x3c] sm:$0xf]
        %v5350 = vld [vmem:[%s87] sm:$0x1]
        %v5352 = vlaneseq
        %v5353 = vshrl.u32 %v5352, 7
        %v5354 = vsub.s32 0, %v5353
        %v5355 = vrot.slane %v5350, %v5354
        %v5373 = vunpack.c.l.b16 %v5334
        %v5374 = vunpack.c.l.b16 %v5335
        %v5375 = vunpack.c.l.b16 %v5336
        %v5376 = vunpack.c.l.b16 %v5337
        %v5377 = vunpack.c.l.b16 %v5338
        %v5378 = vunpack.c.l.b16 %v5339
        %v5379 = vunpack.c.l.b16 %v5340
        %v5380 = vunpack.c.l.b16 %v5341
        %v5381 = vunpack.c.l.b16 %v5342
        %v5382 = vunpack.c.l.b16 %v5343
        %v5383 = vunpack.c.l.b16 %v5344
        %v5384 = vunpack.c.l.b16 %v5345
        %v5385 = vunpack.c.l.b16 %v5346
        %v5386 = vunpack.c.l.b16 %v5347
        %v5387 = vunpack.c.l.b16 %v5348
        %v5388 = vunpack.c.l.b16 %v5349
        %v5389 = vpack.c.b16 %v5374, %v5373
        %v5390 = vpack.c.b16 %v5376, %v5375
        %v5391 = vpack.c.b16 %v5378, %v5377
        %v5392 = vpack.c.b16 %v5380, %v5379
        %v5393 = vpack.c.b16 %v5382, %v5381
        %v5394 = vpack.c.b16 %v5384, %v5383
        %v5395 = vpack.c.b16 %v5386, %v5385
        %v5396 = vpack.c.b16 %v5388, %v5387
        %5405 = vmatprep.subr.bf16.mxu0 0
        %5406 = vmatpush1.bf16.msra.mxu0 %v5389
        %5407 = vmatprep.subr.bf16.mxu0 0
        %5408 = vmatpush1.bf16.msra.mxu0 %v5390
        %5409 = vmatprep.subr.bf16.mxu0 0
        %5410 = vmatpush1.bf16.msra.mxu0 %v5391
        %5411 = vmatprep.subr.bf16.mxu0 0
        %5412 = vmatpush1.bf16.msra.mxu0 %v5392
        %5413 = vmatprep.subr.bf16.mxu0 0
        %5414 = vmatpush1.bf16.msra.mxu0 %v5393
        %5415 = vmatprep.subr.bf16.mxu0 0
        %5416 = vmatpush1.bf16.msra.mxu0 %v5394
        %5417 = vmatprep.subr.bf16.mxu0 0
        %5418 = vmatpush1.bf16.msra.mxu0 %v5395
        %5419 = vmatprep.subr.bf16.mxu0 0
        %5420 = vmatpush1.bf16.msra.mxu0 %v5396
        %5421 = vmatprep.subr.bf16.mxu0 0
        %5422 = vmatpush1.bf16.msra.mxu0 0
        %5423 = vmatprep.subr.bf16.mxu0 0
        %5424 = vmatpush1.bf16.msra.mxu0 0
        %5425 = vmatprep.subr.bf16.mxu0 0
        %5426 = vmatpush1.bf16.msra.mxu0 0
        %5427 = vmatprep.subr.bf16.mxu0 0
        %5428 = vmatpush1.bf16.msra.mxu0 0
        %5429 = vmatprep.subr.bf16.mxu0 0
        %5430 = vmatpush1.bf16.msra.mxu0 0
        %5431 = vmatprep.subr.bf16.mxu0 0
        %5432 = vmatpush1.bf16.msra.mxu0 0
        %5433 = vmatprep.subr.bf16.mxu0 0
        %5434 = vmatpush1.bf16.msra.mxu0 0
        %5435 = vmatprep.subr.bf16.mxu0 0
        %5436 = vmatpush1.bf16.msra.mxu0 0
        %5437 = vmatprep.mubr.bf16.mxu0 0
        %5438 = vmatmul.mubr.bf16.gmra.mrb[0].mxu0 %v5333
        %v5439 = vpop.f32.mrb[0].mxu0
        %v5440 = vadd.f32 %v5355, %v5439
        %v5441 = vpop.f32.mrb[0].mxu0
        %v5442 = vpop.f32.mrb[0].mxu0
        %v5443 = vpop.f32.mrb[0].mxu0
        %5444 = vdwg.mxu0
        %vm5445 = vcmask 1041408
        %v5446 = vsel %vm5445, %v5440, 0.0
        %5447 = vadd.xlane.f32.xlu0 %v5446
        %v5448 = vpop.xlane.xlu0 %5447
        %v5449 = vmul.f32 %v5448, 0.0078125
        %v5450 = vmul.f32 %v5440, %v5440
        %v5451 = vsel %vm5445, %v5450, 0.0
        %5452 = vadd.xlane.f32.xlu0 %v5451
        %v5453 = vpop.xlane.xlu0 %5452
        %v5454 = vmul.f32 %v5453, 0.0078125
        %v5455 = vmul.f32 %v5449, %v5449
        %v5456 = vsub.f32 %v5454, %v5455
        %v5457 = vsub.f32 %v5440, %v5449
        %v5458 = vadd.f32 %v5456, 1e-05
        %v5459 = vrsqrt.pop %v5458
        %v5460 = vmul.f32 %v5457, %v5459
        %v5461 = vld [vmem:[%s89] sm:$0x1]
        %v5463 = vlaneseq
        %v5464 = vshrl.u32 %v5463, 7
        %v5465 = vsub.s32 0, %v5464
        %v5466 = vrot.slane %v5461, %v5465
        %v5468 = vmul.f32 %v5460, %v5466
        %v5469 = vld [vmem:[%s91] sm:$0x1]
        %v5471 = vlaneseq
        %v5472 = vshrl.u32 %v5471, 7
        %v5473 = vsub.s32 0, %v5472
        %v5474 = vrot.slane %v5469, %v5473
        %v5476 = vadd.f32 %v5468, %v5474
        %v5477 = vpack.c.bf16 %v5476, %v5476
        %v5478 = vld [vmem:[#allocation59] sm:$0xf]
        %v5479 = vld [vmem:[#allocation59 + $0x4] sm:$0xf]
        %v5480 = vld [vmem:[#allocation59 + $0x8] sm:$0xf]
        %v5481 = vld [vmem:[#allocation59 + $0xc] sm:$0xf]
        %v5482 = vld [vmem:[#allocation59 + $0x10] sm:$0xf]
        %v5483 = vld [vmem:[#allocation59 + $0x14] sm:$0xf]
        %v5484 = vld [vmem:[#allocation59 + $0x18] sm:$0xf]
        %v5485 = vld [vmem:[#allocation59 + $0x1c] sm:$0xf]
        %v5486 = vld [vmem:[#allocation59 + $0x20] sm:$0xf]
        %v5487 = vld [vmem:[#allocation59 + $0x24] sm:$0xf]
        %v5488 = vld [vmem:[#allocation59 + $0x28] sm:$0xf]
        %v5489 = vld [vmem:[#allocation59 + $0x2c] sm:$0xf]
        %v5490 = vld [vmem:[#allocation59 + $0x30] sm:$0xf]
        %v5491 = vld [vmem:[#allocation59 + $0x34] sm:$0xf]
        %v5492 = vld [vmem:[#allocation59 + $0x38] sm:$0xf]
        %v5493 = vld [vmem:[#allocation59 + $0x3c] sm:$0xf]
        %v5494 = vld [vmem:[%s95] sm:$0x1]
        %v5496 = vlaneseq
        %v5497 = vshrl.u32 %v5496, 7
        %v5498 = vsub.s32 0, %v5497
        %v5499 = vrot.slane %v5494, %v5498
        %v5517 = vunpack.c.l.b16 %v5478
        %v5518 = vunpack.c.l.b16 %v5479
        %v5519 = vunpack.c.l.b16 %v5480
        %v5520 = vunpack.c.l.b16 %v5481
        %v5521 = vunpack.c.l.b16 %v5482
        %v5522 = vunpack.c.l.b16 %v5483
        %v5523 = vunpack.c.l.b16 %v5484
        %v5524 = vunpack.c.l.b16 %v5485
        %v5525 = vunpack.c.l.b16 %v5486
        %v5526 = vunpack.c.l.b16 %v5487
        %v5527 = vunpack.c.l.b16 %v5488
        %v5528 = vunpack.c.l.b16 %v5489
        %v5529 = vunpack.c.l.b16 %v5490
        %v5530 = vunpack.c.l.b16 %v5491
        %v5531 = vunpack.c.l.b16 %v5492
        %v5532 = vunpack.c.l.b16 %v5493
        %v5533 = vpack.c.b16 %v5518, %v5517
        %v5534 = vpack.c.b16 %v5520, %v5519
        %v5535 = vpack.c.b16 %v5522, %v5521
        %v5536 = vpack.c.b16 %v5524, %v5523
        %v5537 = vpack.c.b16 %v5526, %v5525
        %v5538 = vpack.c.b16 %v5528, %v5527
        %v5539 = vpack.c.b16 %v5530, %v5529
        %v5540 = vpack.c.b16 %v5532, %v5531
        %5549 = vmatprep.subr.bf16.mxu0 0
        %5550 = vmatpush1.bf16.msra.mxu0 %v5533
        %5551 = vmatprep.subr.bf16.mxu0 0
        %5552 = vmatpush1.bf16.msra.mxu0 %v5534
        %5553 = vmatprep.subr.bf16.mxu0 0
        %5554 = vmatpush1.bf16.msra.mxu0 %v5535
        %5555 = vmatprep.subr.bf16.mxu0 0
        %5556 = vmatpush1.bf16.msra.mxu0 %v5536
        %5557 = vmatprep.subr.bf16.mxu0 0
        %5558 = vmatpush1.bf16.msra.mxu0 %v5537
        %5559 = vmatprep.subr.bf16.mxu0 0
        %5560 = vmatpush1.bf16.msra.mxu0 %v5538
        %5561 = vmatprep.subr.bf16.mxu0 0
        %5562 = vmatpush1.bf16.msra.mxu0 %v5539
        %5563 = vmatprep.subr.bf16.mxu0 0
        %5564 = vmatpush1.bf16.msra.mxu0 %v5540
        %5565 = vmatprep.subr.bf16.mxu0 0
        %5566 = vmatpush1.bf16.msra.mxu0 0
        %5567 = vmatprep.subr.bf16.mxu0 0
        %5568 = vmatpush1.bf16.msra.mxu0 0
        %5569 = vmatprep.subr.bf16.mxu0 0
        %5570 = vmatpush1.bf16.msra.mxu0 0
        %5571 = vmatprep.subr.bf16.mxu0 0
        %5572 = vmatpush1.bf16.msra.mxu0 0
        %5573 = vmatprep.subr.bf16.mxu0 0
        %5574 = vmatpush1.bf16.msra.mxu0 0
        %5575 = vmatprep.subr.bf16.mxu0 0
        %5576 = vmatpush1.bf16.msra.mxu0 0
        %5577 = vmatprep.subr.bf16.mxu0 0
        %5578 = vmatpush1.bf16.msra.mxu0 0
        %5579 = vmatprep.subr.bf16.mxu0 0
        %5580 = vmatpush1.bf16.msra.mxu0 0
        %5581 = vmatprep.mubr.bf16.mxu0 0
        %5582 = vmatmul.mubr.bf16.gmra.mrb[0].mxu0 %v4855
        %v5583 = vpop.f32.mrb[0].mxu0
        %v5584 = vadd.f32 %v5499, %v5583
        %v5585 = vpop.f32.mrb[0].mxu0
        %v5586 = vpop.f32.mrb[0].mxu0
        %v5587 = vpop.f32.mrb[0].mxu0
        %5588 = vdwg.mxu0
        %v5589 = vmax.f32 %v5584, 0.0
        %v5590 = vpack.c.bf16 %v5589, %v5589
        %v5591 = vld [vmem:[#allocation61] sm:$0xf]
        %v5592 = vld [vmem:[#allocation61 + $0x4] sm:$0xf]
        %v5593 = vld [vmem:[#allocation61 + $0x8] sm:$0xf]
        %v5594 = vld [vmem:[#allocation61 + $0xc] sm:$0xf]
        %v5595 = vld [vmem:[#allocation61 + $0x10] sm:$0xf]
        %v5596 = vld [vmem:[#allocation61 + $0x14] sm:$0xf]
        %v5597 = vld [vmem:[#allocation61 + $0x18] sm:$0xf]
        %v5598 = vld [vmem:[#allocation61 + $0x1c] sm:$0xf]
        %v5599 = vld [vmem:[#allocation61 + $0x20] sm:$0xf]
        %v5600 = vld [vmem:[#allocation61 + $0x24] sm:$0xf]
        %v5601 = vld [vmem:[#allocation61 + $0x28] sm:$0xf]
        %v5602 = vld [vmem:[#allocation61 + $0x2c] sm:$0xf]
        %v5603 = vld [vmem:[#allocation61 + $0x30] sm:$0xf]
        %v5604 = vld [vmem:[#allocation61 + $0x34] sm:$0xf]
        %v5605 = vld [vmem:[#allocation61 + $0x38] sm:$0xf]
        %v5606 = vld [vmem:[#allocation61 + $0x3c] sm:$0xf]
        %v5607 = vld [vmem:[%s99] sm:$0x1]
        %v5609 = vlaneseq
        %v5610 = vshrl.u32 %v5609, 7
        %v5611 = vsub.s32 0, %v5610
        %v5612 = vrot.slane %v5607, %v5611
        %v5630 = vunpack.c.l.b16 %v5591
        %v5631 = vunpack.c.l.b16 %v5592
        %v5632 = vunpack.c.l.b16 %v5593
        %v5633 = vunpack.c.l.b16 %v5594
        %v5634 = vunpack.c.l.b16 %v5595
        %v5635 = vunpack.c.l.b16 %v5596
        %v5636 = vunpack.c.l.b16 %v5597
        %v5637 = vunpack.c.l.b16 %v5598
        %v5638 = vunpack.c.l.b16 %v5599
        %v5639 = vunpack.c.l.b16 %v5600
        %v5640 = vunpack.c.l.b16 %v5601
        %v5641 = vunpack.c.l.b16 %v5602
        %v5642 = vunpack.c.l.b16 %v5603
        %v5643 = vunpack.c.l.b16 %v5604
        %v5644 = vunpack.c.l.b16 %v5605
        %v5645 = vunpack.c.l.b16 %v5606
        %v5646 = vpack.c.b16 %v5631, %v5630
        %v5647 = vpack.c.b16 %v5633, %v5632
        %v5648 = vpack.c.b16 %v5635, %v5634
        %v5649 = vpack.c.b16 %v5637, %v5636
        %v5650 = vpack.c.b16 %v5639, %v5638
        %v5651 = vpack.c.b16 %v5641, %v5640
        %v5652 = vpack.c.b16 %v5643, %v5642
        %v5653 = vpack.c.b16 %v5645, %v5644
        %5662 = vmatprep.subr.bf16.mxu0 0
        %5663 = vmatpush1.bf16.msra.mxu0 %v5646
        %5664 = vmatprep.subr.bf16.mxu0 0
        %5665 = vmatpush1.bf16.msra.mxu0 %v5647
        %5666 = vmatprep.subr.bf16.mxu0 0
        %5667 = vmatpush1.bf16.msra.mxu0 %v5648
        %5668 = vmatprep.subr.bf16.mxu0 0
        %5669 = vmatpush1.bf16.msra.mxu0 %v5649
        %5670 = vmatprep.subr.bf16.mxu0 0
        %5671 = vmatpush1.bf16.msra.mxu0 %v5650
        %5672 = vmatprep.subr.bf16.mxu0 0
        %5673 = vmatpush1.bf16.msra.mxu0 %v5651
        %5674 = vmatprep.subr.bf16.mxu0 0
        %5675 = vmatpush1.bf16.msra.mxu0 %v5652
        %5676 = vmatprep.subr.bf16.mxu0 0
        %5677 = vmatpush1.bf16.msra.mxu0 %v5653
        %5678 = vmatprep.subr.bf16.mxu0 0
        %5679 = vmatpush1.bf16.msra.mxu0 0
        %5680 = vmatprep.subr.bf16.mxu0 0
        %5681 = vmatpush1.bf16.msra.mxu0 0
        %5682 = vmatprep.subr.bf16.mxu0 0
        %5683 = vmatpush1.bf16.msra.mxu0 0
        %5684 = vmatprep.subr.bf16.mxu0 0
        %5685 = vmatpush1.bf16.msra.mxu0 0
        %5686 = vmatprep.subr.bf16.mxu0 0
        %5687 = vmatpush1.bf16.msra.mxu0 0
        %5688 = vmatprep.subr.bf16.mxu0 0
        %5689 = vmatpush1.bf16.msra.mxu0 0
        %5690 = vmatprep.subr.bf16.mxu0 0
        %5691 = vmatpush1.bf16.msra.mxu0 0
        %5692 = vmatprep.subr.bf16.mxu0 0
        %5693 = vmatpush1.bf16.msra.mxu0 0
        %5694 = vmatprep.mubr.bf16.mxu0 0
        %5695 = vmatmul.mubr.bf16.gmra.mrb[0].mxu0 %v5590
        %v5696 = vpop.f32.mrb[0].mxu0
        %v5697 = vadd.f32 %v5612, %v5696
        %v5698 = vpop.f32.mrb[0].mxu0
        %v5699 = vpop.f32.mrb[0].mxu0
        %v5700 = vpop.f32.mrb[0].mxu0
        %5701 = vdwg.mxu0
        %5702 = vadd.xlane.f32.xlu0 %v5697
        %v5703 = vpop.xlane.xlu0 %5702
        %v5704 = vmul.f32 %v5703, 0.16666667
        %v5705 = vmul.f32 %v5697, %v5697
        %5706 = vadd.xlane.f32.xlu0 %v5705
        %v5707 = vpop.xlane.xlu0 %5706
        %v5708 = vmul.f32 %v5707, 0.16666667
        %v5709 = vmul.f32 %v5704, %v5704
        %v5710 = vsub.f32 %v5708, %v5709
        %v5711 = vsub.f32 %v5697, %v5704
        %v5712 = vadd.f32 %v5710, 1e-05
        %v5713 = vrsqrt.pop %v5712
        %v5714 = vmul.f32 %v5711, %v5713
        %v5715 = vld [vmem:[%s101] sm:$0x1]
        %v5717 = vlaneseq
        %v5718 = vshrl.u32 %v5717, 7
        %v5719 = vsub.s32 0, %v5718
        %v5720 = vrot.slane %v5715, %v5719
        %v5722 = vmul.f32 %v5714, %v5720
        %v5723 = vld [vmem:[%s103] sm:$0x1]
        %v5725 = vlaneseq
        %v5726 = vshrl.u32 %v5725, 7
        %v5727 = vsub.s32 0, %v5726
        %v5728 = vrot.slane %v5723, %v5727
        %v5730 = vadd.f32 %v5722, %v5728
        %v5731 = vld [vmem:[#allocation62] sm:$0xf]
        %v5732 = vld [vmem:[#allocation62 + $0x4] sm:$0xf]
        %v5733 = vld [vmem:[#allocation62 + $0x8] sm:$0xf]
        %v5734 = vld [vmem:[#allocation62 + $0xc] sm:$0xf]
        %v5735 = vld [vmem:[#allocation62 + $0x10] sm:$0xf]
        %v5736 = vld [vmem:[#allocation62 + $0x14] sm:$0xf]
        %v5737 = vld [vmem:[#allocation62 + $0x18] sm:$0xf]
        %v5738 = vld [vmem:[#allocation62 + $0x1c] sm:$0xf]
        %v5739 = vld [vmem:[#allocation62 + $0x20] sm:$0xf]
        %v5740 = vld [vmem:[#allocation62 + $0x24] sm:$0xf]
        %v5741 = vld [vmem:[#allocation62 + $0x28] sm:$0xf]
        %v5742 = vld [vmem:[#allocation62 + $0x2c] sm:$0xf]
        %v5743 = vld [vmem:[#allocation62 + $0x30] sm:$0xf]
        %v5744 = vld [vmem:[#allocation62 + $0x34] sm:$0xf]
        %v5745 = vld [vmem:[#allocation62 + $0x38] sm:$0xf]
        %v5746 = vld [vmem:[#allocation62 + $0x3c] sm:$0xf]
        %v5747 = vld [vmem:[%s107] sm:$0x1]
        %v5749 = vlaneseq
        %v5750 = vshrl.u32 %v5749, 7
        %v5751 = vsub.s32 0, %v5750
        %v5752 = vrot.slane %v5747, %v5751
        %v5770 = vunpack.c.l.b16 %v5731
        %v5771 = vunpack.c.l.b16 %v5732
        %v5772 = vunpack.c.l.b16 %v5733
        %v5773 = vunpack.c.l.b16 %v5734
        %v5774 = vunpack.c.l.b16 %v5735
        %v5775 = vunpack.c.l.b16 %v5736
        %v5776 = vunpack.c.l.b16 %v5737
        %v5777 = vunpack.c.l.b16 %v5738
        %v5778 = vunpack.c.l.b16 %v5739
        %v5779 = vunpack.c.l.b16 %v5740
        %v5780 = vunpack.c.l.b16 %v5741
        %v5781 = vunpack.c.l.b16 %v5742
        %v5782 = vunpack.c.l.b16 %v5743
        %v5783 = vunpack.c.l.b16 %v5744
        %v5784 = vunpack.c.l.b16 %v5745
        %v5785 = vunpack.c.l.b16 %v5746
        %v5786 = vpack.c.b16 %v5771, %v5770
        %v5787 = vpack.c.b16 %v5773, %v5772
        %v5788 = vpack.c.b16 %v5775, %v5774
        %v5789 = vpack.c.b16 %v5777, %v5776
        %v5790 = vpack.c.b16 %v5779, %v5778
        %v5791 = vpack.c.b16 %v5781, %v5780
        %v5792 = vpack.c.b16 %v5783, %v5782
        %v5793 = vpack.c.b16 %v5785, %v5784
        %5802 = vmatprep.subr.bf16.mxu0 0
        %5803 = vmatpush1.bf16.msra.mxu0 %v5786
        %5804 = vmatprep.subr.bf16.mxu0 0
        %5805 = vmatpush1.bf16.msra.mxu0 %v5787
        %5806 = vmatprep.subr.bf16.mxu0 0
        %5807 = vmatpush1.bf16.msra.mxu0 %v5788
        %5808 = vmatprep.subr.bf16.mxu0 0
        %5809 = vmatpush1.bf16.msra.mxu0 %v5789
        %5810 = vmatprep.subr.bf16.mxu0 0
        %5811 = vmatpush1.bf16.msra.mxu0 %v5790
        %5812 = vmatprep.subr.bf16.mxu0 0
        %5813 = vmatpush1.bf16.msra.mxu0 %v5791
        %5814 = vmatprep.subr.bf16.mxu0 0
        %5815 = vmatpush1.bf16.msra.mxu0 %v5792
        %5816 = vmatprep.subr.bf16.mxu0 0
        %5817 = vmatpush1.bf16.msra.mxu0 %v5793
        %5818 = vmatprep.subr.bf16.mxu0 0
        %5819 = vmatpush1.bf16.msra.mxu0 0
        %5820 = vmatprep.subr.bf16.mxu0 0
        %5821 = vmatpush1.bf16.msra.mxu0 0
        %5822 = vmatprep.subr.bf16.mxu0 0
        %5823 = vmatpush1.bf16.msra.mxu0 0
        %5824 = vmatprep.subr.bf16.mxu0 0
        %5825 = vmatpush1.bf16.msra.mxu0 0
        %5826 = vmatprep.subr.bf16.mxu0 0
        %5827 = vmatpush1.bf16.msra.mxu0 0
        %5828 = vmatprep.subr.bf16.mxu0 0
        %5829 = vmatpush1.bf16.msra.mxu0 0
        %5830 = vmatprep.subr.bf16.mxu0 0
        %5831 = vmatpush1.bf16.msra.mxu0 0
        %5832 = vmatprep.subr.bf16.mxu0 0
        %5833 = vmatpush1.bf16.msra.mxu0 0
        %5834 = vmatprep.mubr.bf16.mxu0 0
        %5835 = vmatmul.mubr.bf16.gmra.mrb[0].mxu0 %v5477
        %v5836 = vpop.f32.mrb[0].mxu0
        %v5837 = vadd.f32 %v5752, %v5836
        %v5838 = vpop.f32.mrb[0].mxu0
        %v5839 = vpop.f32.mrb[0].mxu0
        %v5840 = vpop.f32.mrb[0].mxu0
        %5841 = vdwg.mxu0
        %v5842 = vmax.f32 %v5837, 0.0
        %v5843 = vpack.c.bf16 %v5842, %v5842
        %v5844 = vld [vmem:[#allocation64] sm:$0xf]
        %v5845 = vld [vmem:[#allocation64 + $0x4] sm:$0xf]
        %v5846 = vld [vmem:[#allocation64 + $0x8] sm:$0xf]
        %v5847 = vld [vmem:[#allocation64 + $0xc] sm:$0xf]
        %v5848 = vld [vmem:[#allocation64 + $0x10] sm:$0xf]
        %v5849 = vld [vmem:[#allocation64 + $0x14] sm:$0xf]
        %v5850 = vld [vmem:[#allocation64 + $0x18] sm:$0xf]
        %v5851 = vld [vmem:[#allocation64 + $0x1c] sm:$0xf]
        %v5852 = vld [vmem:[#allocation64 + $0x20] sm:$0xf]
        %v5853 = vld [vmem:[#allocation64 + $0x24] sm:$0xf]
        %v5854 = vld [vmem:[#allocation64 + $0x28] sm:$0xf]
        %v5855 = vld [vmem:[#allocation64 + $0x2c] sm:$0xf]
        %v5856 = vld [vmem:[#allocation64 + $0x30] sm:$0xf]
        %v5857 = vld [vmem:[#allocation64 + $0x34] sm:$0xf]
        %v5858 = vld [vmem:[#allocation64 + $0x38] sm:$0xf]
        %v5859 = vld [vmem:[#allocation64 + $0x3c] sm:$0xf]
        %v5860 = vld [vmem:[%s111] sm:$0x1]
        %v5862 = vlaneseq
        %v5863 = vshrl.u32 %v5862, 7
        %v5864 = vsub.s32 0, %v5863
        %v5865 = vrot.slane %v5860, %v5864
        %v5883 = vunpack.c.l.b16 %v5844
        %v5884 = vunpack.c.l.b16 %v5845
        %v5885 = vunpack.c.l.b16 %v5846
        %v5886 = vunpack.c.l.b16 %v5847
        %v5887 = vunpack.c.l.b16 %v5848
        %v5888 = vunpack.c.l.b16 %v5849
        %v5889 = vunpack.c.l.b16 %v5850
        %v5890 = vunpack.c.l.b16 %v5851
        %v5891 = vunpack.c.l.b16 %v5852
        %v5892 = vunpack.c.l.b16 %v5853
        %v5893 = vunpack.c.l.b16 %v5854
        %v5894 = vunpack.c.l.b16 %v5855
        %v5895 = vunpack.c.l.b16 %v5856
        %v5896 = vunpack.c.l.b16 %v5857
        %v5897 = vunpack.c.l.b16 %v5858
        %v5898 = vunpack.c.l.b16 %v5859
        %v5899 = vpack.c.b16 %v5884, %v5883
        %v5900 = vpack.c.b16 %v5886, %v5885
        %v5901 = vpack.c.b16 %v5888, %v5887
        %v5902 = vpack.c.b16 %v5890, %v5889
        %v5903 = vpack.c.b16 %v5892, %v5891
        %v5904 = vpack.c.b16 %v5894, %v5893
        %v5905 = vpack.c.b16 %v5896, %v5895
        %v5906 = vpack.c.b16 %v5898, %v5897
        %5915 = vmatprep.subr.bf16.mxu0 0
        %5916 = vmatpush1.bf16.msra.mxu0 %v5899
        %5917 = vmatprep.subr.bf16.mxu0 0
        %5918 = vmatpush1.bf16.msra.mxu0 %v5900
        %5919 = vmatprep.subr.bf16.mxu0 0
        %5920 = vmatpush1.bf16.msra.mxu0 %v5901
        %5921 = vmatprep.subr.bf16.mxu0 0
        %5922 = vmatpush1.bf16.msra.mxu0 %v5902
        %5923 = vmatprep.subr.bf16.mxu0 0
        %5924 = vmatpush1.bf16.msra.mxu0 %v5903
        %5925 = vmatprep.subr.bf16.mxu0 0
        %5926 = vmatpush1.bf16.msra.mxu0 %v5904
        %5927 = vmatprep.subr.bf16.mxu0 0
        %5928 = vmatpush1.bf16.msra.mxu0 %v5905
        %5929 = vmatprep.subr.bf16.mxu0 0
        %5930 = vmatpush1.bf16.msra.mxu0 %v5906
        %5931 = vmatprep.subr.bf16.mxu0 0
        %5932 = vmatpush1.bf16.msra.mxu0 0
        %5933 = vmatprep.subr.bf16.mxu0 0
        %5934 = vmatpush1.bf16.msra.mxu0 0
        %5935 = vmatprep.subr.bf16.mxu0 0
        %5936 = vmatpush1.bf16.msra.mxu0 0
        %5937 = vmatprep.subr.bf16.mxu0 0
        %5938 = vmatpush1.bf16.msra.mxu0 0
        %5939 = vmatprep.subr.bf16.mxu0 0
        %5940 = vmatpush1.bf16.msra.mxu0 0
        %5941 = vmatprep.subr.bf16.mxu0 0
        %5942 = vmatpush1.bf16.msra.mxu0 0
        %5943 = vmatprep.subr.bf16.mxu0 0
        %5944 = vmatpush1.bf16.msra.mxu0 0
        %5945 = vmatprep.subr.bf16.mxu0 0
        %5946 = vmatpush1.bf16.msra.mxu0 0
        %5947 = vmatprep.mubr.bf16.mxu0 0
        %5948 = vmatmul.mubr.bf16.gmra.mrb[0].mxu0 %v5843
        %v5949 = vpop.f32.mrb[0].mxu0
        %v5950 = vadd.f32 %v5865, %v5949
        %v5951 = vpop.f32.mrb[0].mxu0
        %v5952 = vpop.f32.mrb[0].mxu0
        %v5953 = vpop.f32.mrb[0].mxu0
        %5954 = vdwg.mxu0
        %v5955 = vsel %vm5445, %v5950, 0.0
        %5956 = vadd.xlane.f32.xlu0 %v5955
        %v5957 = vpop.xlane.xlu0 %5956
        %v5958 = vmul.f32 %v5957, 0.25
        %v5959 = vmul.f32 %v5950, %v5950
        %v5960 = vsel %vm5445, %v5959, 0.0
        %5961 = vadd.xlane.f32.xlu0 %v5960
        %v5962 = vpop.xlane.xlu0 %5961
        %v5963 = vmul.f32 %v5962, 0.25
        %v5964 = vmul.f32 %v5958, %v5958
        %v5965 = vsub.f32 %v5963, %v5964
        %v5966 = vsub.f32 %v5950, %v5958
        %v5967 = vadd.f32 %v5965, 1e-05
        %v5968 = vrsqrt.pop %v5967
        %v5969 = vmul.f32 %v5966, %v5968
        %v5970 = vld [vmem:[%s113] sm:$0x1]
        %v5972 = vlaneseq
        %v5973 = vshrl.u32 %v5972, 7
        %v5974 = vsub.s32 0, %v5973
        %v5975 = vrot.slane %v5970, %v5974
        %v5977 = vmul.f32 %v5969, %v5975
        %v5978 = vld [vmem:[%s115] sm:$0x1]
        %v5980 = vlaneseq
        %v5981 = vshrl.u32 %v5980, 7
        %v5982 = vsub.s32 0, %v5981
        %v5983 = vrot.slane %v5978, %v5982
        %v5985 = vadd.f32 %v5977, %v5983
        %5986 = vst [vmem:[%s2268] sm:$0xff] %v5730
        %5987 = vst [vmem:[%s2287] sm:$0xff] %v4165
        %5988 = vst [vmem:[%s2287 + $0x8] sm:$0xf] %v4166
        %5989 = vst [vmem:[%s2282] sm:$0x3] %v5985
        %5990 = vst [vmem:[#allocation2 + $0x4] sm:$0xf] %v4855
        %v5992 = vunpack.c.l.b16 %v4167
        %v5993 = vunpack.c.h.b16 %v4167
        %v5994 = vpack.c.b16 %v5992, %v5992
        %v5995 = vpack.c.b16 %v5993, %v5993
        %5998 = vst [vmem:[#allocation3 + $0x4] sm:$0xf] %v5994
        %5999 = vst [vmem:[#allocation3 + $0xc] sm:$0x3] %v5995
        %6000 = vst [vmem:[#allocation4 + $0x1] sm:$0x1] %v5477
        %s6001 = sand.u32 %s1385, 1
        %s6002 = scalar_lea.sflag [#allocation7], %s6001
        %s6003 = sand.u32 %s1385, 1
        %s6004 = smul.addr %s6003, 8
        %s6005 = scalar_lea.vmem [#allocation65], %s6004
        %p6006 = scmp.lt.s32.totalorder %s159, 1
        %s6007 = scalar_select %p6006, %s159, 1
        %s6008 = smul.addr %s6007, 2
        %s6009 = smul.addr %s6008, 8
        %s6010 = scalar_lea.vmem %s119, %s6009
        %s6011 = sand.u32 %s1437, 1
        %s6012 = scalar_lea.sflag [#allocation67], %s6011
        %s6013 = sand.u32 %s1437, 1
        %s6014 = smul.addr %s6013, 2
        %s6015 = scalar_lea.vmem [#allocation66], %s6014
        // Predicated region
        $region413: #{tpu_custom_call.1} parent=251 // pred_check
          %p6016 = pneg %p1395
        $region414: #{tpu_custom_call.1} parent=251 // pred_check_branch
          %6018 = sbr.rel (%p6016) target = $region416
        $region415: #{tpu_custom_call.1} parent=251 // pred_region
          %s6020 = ssub.s32 128, 128
          %6021 = vsyncadd %s6002, %s6020
          %s6022 = smul.addr %s159, 128
          %s6023 = scalar_lea.hbm %s117, %s6022
          %s6025 = sshll.u32 %s6005, 4
          %s6026 = int_to_ptr.vmem [resolvable:$true] %s6025
          %6028 = dma.vmem_to_hbm [thread:$0]  %s6026, 128, %s6023, %s6002
        $region416: #{tpu_custom_call.1} parent=251 // pred_fallthru
          _
        // Predicated region
        $region417: #{tpu_custom_call.1} parent=251 // pred_check
          %p6029 = pneg %p1421
        $region418: #{tpu_custom_call.1} parent=251 // pred_check_branch
          %6031 = sbr.rel (%p6029) target = $region420
        $region419: #{tpu_custom_call.1} parent=251 // pred_region
          _
        $region420: #{tpu_custom_call.1} parent=251 // pred_fallthru
          _
        // Predicated region
        $region421: #{tpu_custom_call.1} parent=251 // pred_check
          %p6032 = pneg %p1447
        $region422: #{tpu_custom_call.1} parent=251 // pred_check_branch
          %6034 = sbr.rel (%p6032) target = $region424
        $region423: #{tpu_custom_call.1} parent=251 // pred_region
          %s6036 = ssub.s32 32, 32
          %6037 = vsyncadd %s6012, %s6036
          %s6038 = smul.addr %s159, 32
          %s6039 = scalar_lea.hbm %s121, %s6038
          %s6041 = sshll.u32 %s6015, 4
          %s6042 = int_to_ptr.vmem [resolvable:$true] %s6041
          %6044 = dma.vmem_to_hbm [thread:$0]  %s6042, 32, %s6039, %s6012
        $region424: #{tpu_custom_call.1} parent=251 // pred_fallthru
          _
      $region252: #{tpu_custom_call.1} parent=5 // pred_fallthru
        _
      %p6045 = scmp.le.s32.totalorder 2, %s154
      // Predicated region
      $region425: #{tpu_custom_call.1} parent=5 // pred_check
        %p6046 = pneg %p6045
      $region426: #{tpu_custom_call.1} parent=5 // pred_check_branch
        %6048 = sbr.rel (%p6046) target = $region428
      $region427: #{tpu_custom_call.1} parent=5 // pred_region
        %s6049 = ssub.s32 %s154, 2
        // Predicated region
        $region429: #{tpu_custom_call.1} parent=427 // pred_check
          %p6050 = pneg %p1401
        $region430: #{tpu_custom_call.1} parent=427 // pred_check_branch
          %6052 = sbr.rel (%p6050) target = $region432
        $region431: #{tpu_custom_call.1} parent=427 // pred_region
          %s6053 = sand.u32 %s1386, 1
          %s6054 = scalar_lea.sflag [#allocation7], %s6053
          %s6055 = sand.u32 %s1386, 1
          %s6056 = smul.addr %s6055, 8
          %s6057 = scalar_lea.vmem [#allocation65], %s6056
          %6058 = dma.done %s6054, 128
        $region432: #{tpu_custom_call.1} parent=427 // pred_fallthru
          _
        // Predicated region
        $region433: #{tpu_custom_call.1} parent=427 // pred_check
          %p6059 = pneg %p1427
        $region434: #{tpu_custom_call.1} parent=427 // pred_check_branch
          %6061 = sbr.rel (%p6059) target = $region436
        $region435: #{tpu_custom_call.1} parent=427 // pred_region
          %p6062 = scmp.lt.s32.totalorder %s160, 1
          %s6063 = scalar_select %p6062, %s160, 1
          %s6064 = smul.addr %s6063, 2
          %s6065 = smul.addr %s6064, 8
          %s6066 = scalar_lea.vmem %s119, %s6065
        $region436: #{tpu_custom_call.1} parent=427 // pred_fallthru
          _
        // Predicated region
        $region437: #{tpu_custom_call.1} parent=427 // pred_check
          %p6067 = pneg %p1453
        $region438: #{tpu_custom_call.1} parent=427 // pred_check_branch
          %6069 = sbr.rel (%p6067) target = $region440
        $region439: #{tpu_custom_call.1} parent=427 // pred_region
          %s6070 = sand.u32 %s1438, 1
          %s6071 = scalar_lea.sflag [#allocation67], %s6070
          %s6072 = sand.u32 %s1438, 1
          %s6073 = smul.addr %s6072, 2
          %s6074 = scalar_lea.vmem [#allocation66], %s6073
          %6075 = dma.done %s6071, 32
        $region440: #{tpu_custom_call.1} parent=427 // pred_fallthru
          _
      $region428: #{tpu_custom_call.1} parent=5 // pred_fallthru
        _
    $region6: #{tpu_custom_call.1} parent=1 // loop_footer
      %s158 = sadd.s32 1, %s154
    $region7: #{tpu_custom_call.1} parent=1 // loop_footer_branch
      %153 = sbr.rel target = $region3
    $region8: #{tpu_custom_call.1} parent=1 // loop_exit
      _
    %6076 = vsyncpa [#allocation6], 1
    %s6077 = scalar_lea.sflag [#allocation6], 1
    %6078 = vsyncpa %s6077, 1
    %6079 = vsyncpa [#allocation9], 1
    %6080 = vsyncpa [#allocation12], 1
    %6081 = vsyncpa [#allocation15], 1
    %6082 = vsyncpa [#allocation18], 1
    %6083 = vsyncpa [#allocation21], 1
    %6084 = vsyncpa [#allocation24], 1
    %6085 = vsyncpa [#allocation27], 1
    %6086 = vsyncpa [#allocation30], 1
    %6087 = vsyncpa [#allocation33], 1
    %6088 = vsyncpa [#allocation36], 1
    %6089 = vsyncpa [#allocation39], 1
    %6090 = vsyncpa [#allocation42], 1
    %6091 = vsyncpa [#allocation45], 1
    %6092 = vsyncpa [#allocation48], 1
    %6093 = vsyncpa [#allocation51], 1
    %6094 = vsyncpa [#allocation54], 1
    %6095 = vsyncpa [#allocation57], 1
    %6096 = vsyncpa [#allocation60], 1
    %6097 = vsyncpa [#allocation63], 1
    %6098 = vsyncpa [#allocation7], 1
    %s6099 = scalar_lea.sflag [#allocation7], 1
    %6100 = vsyncpa %s6099, 1
    %6101 = vsyncpa [#allocation67], 1
    %s6102 = scalar_lea.sflag [#allocation67], 1
    %6103 = vsyncpa %s6102, 1

</llo_original>
